<compile_context>
chip_gen: v7x
topology: tpu7x:2x2x1
jax: 0.10.0
libtpu: 0.0.40
codegen_flags: <defaults>
</compile_context>

<pallas_src>
import functools
import math

import jax
import jax.numpy as jnp
from jax import lax
from jax.experimental import pallas as pl
from jax.experimental.pallas import tpu as pltpu


# ----------------------------------------------------------------------------
# Small helpers (used inside the kernel).
# ----------------------------------------------------------------------------
def _silu(x):
    # SiLU with the divide moved to the EUP (approx reciprocal).
    return x * pl.reciprocal(1.0 + jnp.exp(-x), approx=True)


def _softplus(x):
    return jnp.where(x > 20.0, x, jnp.log1p(jnp.exp(jnp.minimum(x, 20.0))))


# ----------------------------------------------------------------------------
# AvgPool3d(kernel=s, stride=s) and trilinear upsample (align_corners=True):
# pure resampling glue, left to XLA (reshape-mean / static gather + lerp).
# ----------------------------------------------------------------------------
def avg_pool3d(x, s):
    B, C, D, H, W = x.shape
    return x.reshape(B, C, D // s, s, H // s, s, W // s, s).mean(axis=(3, 5, 7))


def _interp_axis(x, axis, scale):
    n = x.shape[axis]
    out = n * scale
    if n == 1:
        reps = [1] * x.ndim
        reps[axis] = out
        return jnp.tile(x, reps)
    src = jnp.arange(out, dtype=jnp.float32) * ((n - 1) / (out - 1))
    lo = jnp.clip(jnp.floor(src).astype(jnp.int32), 0, n - 1)
    hi = jnp.minimum(lo + 1, n - 1)
    w = (src - lo.astype(jnp.float32)).astype(x.dtype)
    xlo = jnp.take(x, lo, axis=axis)
    xhi = jnp.take(x, hi, axis=axis)
    shape = [1] * x.ndim
    shape[axis] = out
    w = w.reshape(shape)
    return xlo * (1.0 - w) + xhi * w


def upsample_trilinear(x, scale):
    for ax in (2, 3, 4):
        x = _interp_axis(x, ax, scale)
    return x


# ----------------------------------------------------------------------------
# Pallas kernel: full MambaLayer (LayerNorm + Mamba-1 block) on one batch
# element.  Activation layout is channel-major (d, L): tokens on the lane axis.
# ----------------------------------------------------------------------------
def _mamba_layer_kernel(x_ref, ln_g_ref, ln_b_ref, w_in_ref, conv_w_ref,
                        conv_b_ref, w_proj_ref, b_dt_ref, a_log_ref, d_ref,
                        w_out_ref, out_ref,
                        u_s, delta_s, zg_s, bc_s, y_s, *, chunk):
    dm, L = x_ref.shape[1], x_ref.shape[2]
    di = conv_b_ref.shape[0]
    n = a_log_ref.shape[0]
    d_conv = conv_w_ref.shape[1]
    T = chunk
    nchunks = L // T

    x = x_ref[0]                                          # (dm, L) channel-major

    # --- LayerNorm over channels (sublane axis), eps=1e-5 ---
    mean = jnp.mean(x, axis=0, keepdims=True)
    xc = x - mean
    var = jnp.mean(xc * xc, axis=0, keepdims=True)
    xn = xc * lax.rsqrt(var + 1e-5) * ln_g_ref[...] + ln_b_ref[...]

    # --- fused in_proj (x & z in one (2di, dm) bf16 matmul, f32 accumulate) ---
    xz = jnp.dot(w_in_ref[...], xn.astype(jnp.bfloat16),
                 preferred_element_type=jnp.float32)      # (2di, L)
    xi = xz[:di]
    z = xz[di:]

    # --- causal depthwise conv1d along tokens (lane axis) + SiLU ---
    lane = lax.broadcasted_iota(jnp.int32, (1, L), 1)
    acc = conv_w_ref[:, d_conv - 1:d_conv] * xi           # zero-shift tap
    for k in range(d_conv - 1):
        shift = d_conv - 1 - k
        rolled = pltpu.roll(xi, shift=shift, axis=1)
        acc = acc + conv_w_ref[:, k:k + 1] * jnp.where(lane >= shift, rolled, 0.0)
    u_cm = _silu(acc + conv_b_ref[...])                   # (di, L)

    # --- fused x_proj + dt_proj:  rows = [B ; C ; delta_pre]  (one matmul) ---
    proj = jnp.dot(w_proj_ref[...], u_cm.astype(jnp.bfloat16),
                   preferred_element_type=jnp.float32)    # (2n + di, L)
    bc_cm = proj[:2 * n]                                  # (2n, L) channel-major
    delta_cm = _softplus(proj[2 * n:] + b_dt_ref[...])    # (di, L)

    # --- XLU transposes (replace the old identity-matmul transposes) ---
    u_s[...] = jnp.transpose(u_cm)                        # (L, di) token-major
    delta_s[...] = jnp.transpose(delta_cm)                # (L, di)
    zg_s[...] = jnp.transpose(_silu(z))                   # (L, di) gate, ready

    # --- stage B/C as chunk-major (2n, T) tiles: all scan-time ref indexing is
    #     then leading-axis (bc_s[ci]) or sublane pl.ds -> guaranteed lowering.
    for ci in range(nchunks):
        bc_s[ci] = bc_cm[:, ci * T:(ci + 1) * T]

    a_t = -jnp.exp(a_log_ref[...])                        # (n, di)

    # --- chunked selective scan: T tokens per step, recurrence unrolled.
    # dA for the whole chunk is computed up front (contiguous EUP pushes), so
    # the serial per-token path is just 2 VPU ops on the 2-vreg (n, di) state.
    def chunk_body(ci, h):
        s0 = pl.multiple_of(ci * T, T)
        d_c = delta_s[pl.ds(s0, T), :]                    # (T, di)
        u_c = u_s[pl.ds(s0, T), :]                        # (T, di)
        du_c = d_c * u_c                                  # (T, di)
        bc_c = bc_s[ci]                                   # (2n, T)
        b_c = bc_c[:n]                                    # (n, T)
        c_c = bc_c[n:]                                    # (n, T)
        # All T exp tiles issued back-to-back (off the h critical path).
        dAs = [jnp.exp(d_c[t:t + 1, :] * a_t) for t in range(T)]
        ys = []
        for t in range(T):                                # unrolled, VPU only
            dBu = b_c[:, t:t + 1] * du_c[t:t + 1, :]      # (n, di) outer product
            h = dAs[t] * h + dBu
            ys.append(jnp.sum(c_c[:, t:t + 1] * h, axis=0, keepdims=True))
        y_s[pl.ds(s0, T), :] = jnp.concatenate(ys, axis=0)  # one store/chunk
        return h

    # TODO(synk): sweep chunk in {8,16,32} and try fori_loop unroll=2 once vreg
    #             pressure is confirmed in the bundle dump.
    lax.fori_loop(0, nchunks, chunk_body, jnp.zeros((n, di), jnp.float32))

    # --- epilogue: D-skip + SiLU(z) gate token-major, then out_proj with a
    #     transposed-RHS matmul -> channel-major (dm, L) output, lane-dense.
    gated = ((y_s[...] + d_ref[...] * u_s[...]) * zg_s[...]).astype(jnp.bfloat16)
    out_ref[0] = lax.dot_general(w_out_ref[...], gated,
                                 (((1,), (1,)), ((), ())),
                                 preferred_element_type=jnp.float32)   # (dm, L)


def mamba_layer_cm(x_cl, p, *, chunk=8):
    """x_cl: (B, d_model, L) channel-major tokens.  Returns (B, d_model, L)."""
    B, dm, L = x_cl.shape
    di = p["conv_b"].shape[0]
    n = p["a_log_t"].shape[0]
    assert L % chunk == 0 and L % 128 == 0, (L, chunk)
    assert di % 8 == 0 and (2 * n) % 8 == 0, (di, n)

    weights = [p["ln_g"], p["ln_b"], p["w_in_t"], p["conv_w"], p["conv_b"],
               p["w_proj_t"], p["b_dt"], p["a_log_t"], p["d_row"], p["w_out_t"]]

    in_specs = [pl.BlockSpec((1, dm, L), lambda b: (b, 0, 0))]
    in_specs += [pl.BlockSpec(w.shape, lambda b: (0, 0)) for w in weights]

    kernel = functools.partial(_mamba_layer_kernel, chunk=chunk)
    return pl.pallas_call(
        kernel,
        out_shape=jax.ShapeDtypeStruct((B, dm, L), jnp.float32),
        grid=(B,),
        in_specs=in_specs,
        out_specs=pl.BlockSpec((1, dm, L), lambda b: (b, 0, 0)),
        scratch_shapes=[
            pltpu.VMEM((L, di), jnp.float32),                 # u      (token-major)
            pltpu.VMEM((L, di), jnp.float32),                 # delta  (token-major)
            pltpu.VMEM((L, di), jnp.float32),                 # silu(z)(token-major)
            pltpu.VMEM((L // chunk, 2 * n, chunk), jnp.float32),  # [B;C] chunk tiles
            pltpu.VMEM((L, di), jnp.float32),                 # y      (token-major)
        ],
        compiler_params=pltpu.CompilerParams(
            dimension_semantics=("parallel",),                # megacore over batch
            vmem_limit_bytes=32 * 1024 * 1024),
    )(x_cl, *weights)


# ----------------------------------------------------------------------------
# Deterministic parameter init (Mamba defaults: d_state=16, d_conv=4, expand=2,
# dt_rank=ceil(d_model/16)).  Weights are stored pre-transposed / pre-fused for
# the channel-major kernel; big projection weights are bf16.
# ----------------------------------------------------------------------------
def init_mamba_params(key, d_model, d_state=16, d_conv=4, expand=2):
    d_inner = expand * d_model
    dt_rank = math.ceil(d_model / d_state)
    ks = jax.random.split(key, 7)
    sc = lambda fan: 1.0 / math.sqrt(fan)

    a_log_t = jnp.log(jnp.broadcast_to(
        jnp.arange(1, d_state + 1, dtype=jnp.float32)[:, None],
        (d_state, d_inner)))                                           # (n, di)
    w_in = jax.random.normal(ks[0], (d_model, 2 * d_inner), jnp.float32) * sc(d_model)
    w_x = jax.random.normal(ks[3], (d_inner, dt_rank + 2 * d_state), jnp.float32) * sc(d_inner)
    w_x_dt = w_x[:, :dt_rank]                                          # (di, r)
    w_xb = w_x[:, dt_rank:dt_rank + d_state]                           # (di, n)
    w_xc = w_x[:, dt_rank + d_state:]                                  # (di, n)
    w_dt = jax.random.normal(ks[4], (dt_rank, d_inner), jnp.float32) * sc(dt_rank)
    # dt_proj has no intermediate nonlinearity: compose the low-rank pair once
    # (exact in f32), so the kernel does a single fused B/C/delta projection.
    w_delta = w_x_dt @ w_dt                                            # (di, di)
    w_proj_t = jnp.concatenate([w_xb.T, w_xc.T, w_delta.T],
                               axis=0).astype(jnp.bfloat16)            # (2n+di, di)

    return dict(
        ln_g=jnp.ones((d_model, 1), jnp.float32),
        ln_b=jnp.zeros((d_model, 1), jnp.float32),
        w_in_t=w_in.T.astype(jnp.bfloat16),                            # (2di, dm)
        conv_w=jax.random.normal(ks[1], (d_inner, d_conv), jnp.float32) * sc(d_conv),
        conv_b=jax.random.normal(ks[2], (d_inner, 1), jnp.float32) * 0.01,
        w_proj_t=w_proj_t,
        b_dt=jax.random.normal(ks[5], (d_inner, 1), jnp.float32) * 0.01,
        a_log_t=a_log_t,
        d_row=jnp.ones((1, d_inner), jnp.float32),
        w_out_t=(jax.random.normal(ks[6], (d_inner, d_model), jnp.float32)
                 * sc(d_inner)).T.astype(jnp.bfloat16),                # (dm, di)
    )


# ----------------------------------------------------------------------------
# MultiScaleFusionBlock.forward (tri_orientation=False, mlp=None).
# TODO(synk): assumes MambaLayer.forward_patch_token has no internal residual
# (only the outer `blk + skips[i]` residual, matching the reference config).
# ----------------------------------------------------------------------------
def multi_scale_fusion_block(skips, features, mamba_params, fusion_count):
    mid = (fusion_count - 1) / 2.0
    dis = fusion_count // 2

    def resample(x, i):
        if i < mid:
            return avg_pool3d(x, 2 ** (dis - i))
        elif i > mid:
            return upsample_trilinear(x, 2 ** (i - dis))
        return x

    resampled = [resample(skips[i], i) for i in range(fusion_count)]
    concat = jnp.concatenate(resampled, axis=1)            # (B, sum(C), D, H, W)

    B, c_sum = concat.shape[:2]
    spatial = concat.shape[2:]
    L = math.prod(spatial)
    # Channel-major tokens: no host (B,C,L)<->(B,L,C) transposes around the
    # kernel; the Pallas kernel consumes/produces (C, L) directly.
    y = mamba_layer_cm(concat.reshape(B, c_sum, L), mamba_params)
    x = y.reshape(B, c_sum, *spatial)

    out = list(skips)
    off = 0
    for i, feat in enumerate(features[:fusion_count]):
        blk = x[:, off:off + feat]
        j = fusion_count - 1 - i                           # samples[-i-1]
        blk = resample(blk, j)
        off += feat
        out[i] = blk + skips[i]
    return out


if __name__ == "__main__":
    key = jax.random.PRNGKey(0)
    fusion_count = 3
    features = [4, 8, 16]
    B, base = 2, 16          # fused resolution 8^3 -> L = 512 tokens (lane-dense)
    shapes = [(B, features[i], base >> i, base >> i, base >> i)
              for i in range(fusion_count)]

    keys = jax.random.split(key, fusion_count + 1)
    skips = [jax.random.normal(keys[i], shapes[i], jnp.float32)
             for i in range(fusion_count)]

    mamba_params = init_mamba_params(keys[-1], sum(features))

    outs = multi_scale_fusion_block(skips, features, mamba_params, fusion_count)
    outs = jax.block_until_ready(outs)

    for o, s in zip(outs, shapes):
        assert o.shape == s, (o.shape, s)
        assert bool(jnp.all(jnp.isfinite(o)))
    print("KERNEL_OK")
</pallas_src>

<mosaic_0001>
module attributes {stable_mosaic.version = 11 : i64} {
  func.func @_mamba_layer_kernel(%arg0: i32, %arg1: memref<1x28x512xf32, #tpu.memory_space<vmem>>, %arg2: memref<28x1xf32, #tpu.memory_space<vmem>>, %arg3: memref<28x1xf32, #tpu.memory_space<vmem>>, %arg4: memref<112x28xbf16, #tpu.memory_space<vmem>>, %arg5: memref<56x4xf32, #tpu.memory_space<vmem>>, %arg6: memref<56x1xf32, #tpu.memory_space<vmem>>, %arg7: memref<88x56xbf16, #tpu.memory_space<vmem>>, %arg8: memref<56x1xf32, #tpu.memory_space<vmem>>, %arg9: memref<16x56xf32, #tpu.memory_space<vmem>>, %arg10: memref<1x56xf32, #tpu.memory_space<vmem>>, %arg11: memref<28x56xbf16, #tpu.memory_space<vmem>>, %arg12: memref<1x28x512xf32, #tpu.memory_space<vmem>>, %arg13: memref<512x56xf32, #tpu.memory_space<vmem>>, %arg14: memref<512x56xf32, #tpu.memory_space<vmem>>, %arg15: memref<512x56xf32, #tpu.memory_space<vmem>>, %arg16: memref<64x32x8xf32, #tpu.memory_space<vmem>>, %arg17: memref<512x56xf32, #tpu.memory_space<vmem>>) attributes {dimension_semantics = [#tpu.dimension_semantics<parallel>], iteration_bounds = array<i64: 2>, scalar_prefetch = 0 : i64, scratch_operands = 5 : i64, tpu.core_type = #tpu.core_type<tc>, window_params = [{transform_indices = @transform_0, window_bounds = array<i64: 1, 28, 512>}, {pipeline_mode = #tpu.pipeline_mode<synchronous>, transform_indices = @transform_1, window_bounds = array<i64: 28, 1>}, {pipeline_mode = #tpu.pipeline_mode<synchronous>, transform_indices = @transform_2, window_bounds = array<i64: 28, 1>}, {pipeline_mode = #tpu.pipeline_mode<synchronous>, transform_indices = @transform_3, window_bounds = array<i64: 112, 28>}, {pipeline_mode = #tpu.pipeline_mode<synchronous>, transform_indices = @transform_4, window_bounds = array<i64: 56, 4>}, {pipeline_mode = #tpu.pipeline_mode<synchronous>, transform_indices = @transform_5, window_bounds = array<i64: 56, 1>}, {pipeline_mode = #tpu.pipeline_mode<synchronous>, transform_indices = @transform_6, window_bounds = array<i64: 88, 56>}, {pipeline_mode = #tpu.pipeline_mode<synchronous>, transform_indices = @transform_7, window_bounds = array<i64: 56, 1>}, {pipeline_mode = #tpu.pipeline_mode<synchronous>, transform_indices = @transform_8, window_bounds = array<i64: 16, 56>}, {pipeline_mode = #tpu.pipeline_mode<synchronous>, transform_indices = @transform_9, window_bounds = array<i64: 1, 56>}, {pipeline_mode = #tpu.pipeline_mode<synchronous>, transform_indices = @transform_10, window_bounds = array<i64: 28, 56>}, {transform_indices = @transform_11, window_bounds = array<i64: 1, 28, 512>}]} {
    %c0 = arith.constant 0 : index
    %c0_0 = arith.constant 0 : index
    %c0_1 = arith.constant 0 : index
    %0 = vector.load %arg1[%c0, %c0_0, %c0_1] : memref<1x28x512xf32, #tpu.memory_space<vmem>>, vector<1x28x512xf32>
    %1 = vector.shape_cast %0 : vector<1x28x512xf32> to vector<28x512xf32>
    %cst = arith.constant dense<0.000000e+00> : vector<512xf32>
    %2 = vector.multi_reduction <add>, %1, %cst [0] : vector<28x512xf32> to vector<512xf32>
    %3 = vector.shape_cast %2 : vector<512xf32> to vector<1x512xf32>
    %cst_2 = arith.constant 2.800000e+01 : f32
    %4 = vector.broadcast %cst_2 : f32 to vector<1x512xf32>
    %5 = arith.divf %3, %4 : vector<1x512xf32>
    %6 = vector.broadcast %5 : vector<1x512xf32> to vector<28x512xf32>
    %7 = arith.subf %1, %6 : vector<28x512xf32>
    %8 = arith.mulf %7, %7 : vector<28x512xf32>
    %cst_3 = arith.constant dense<0.000000e+00> : vector<512xf32>
    %9 = vector.multi_reduction <add>, %8, %cst_3 [0] : vector<28x512xf32> to vector<512xf32>
    %10 = vector.shape_cast %9 : vector<512xf32> to vector<1x512xf32>
    %cst_4 = arith.constant 2.800000e+01 : f32
    %11 = vector.broadcast %cst_4 : f32 to vector<1x512xf32>
    %12 = arith.divf %10, %11 : vector<1x512xf32>
    %cst_5 = arith.constant 9.99999974E-6 : f32
    %13 = vector.broadcast %cst_5 : f32 to vector<1x512xf32>
    %14 = arith.addf %12, %13 : vector<1x512xf32>
    %15 = math.rsqrt %14 : vector<1x512xf32>
    %16 = vector.broadcast %15 : vector<1x512xf32> to vector<28x512xf32>
    %17 = arith.mulf %7, %16 : vector<28x512xf32>
    %c0_6 = arith.constant 0 : index
    %c0_7 = arith.constant 0 : index
    %18 = vector.load %arg2[%c0_6, %c0_7] : memref<28x1xf32, #tpu.memory_space<vmem>>, vector<28x1xf32>
    %19 = vector.broadcast %18 : vector<28x1xf32> to vector<28x512xf32>
    %20 = arith.mulf %17, %19 : vector<28x512xf32>
    %c0_8 = arith.constant 0 : index
    %c0_9 = arith.constant 0 : index
    %21 = vector.load %arg3[%c0_8, %c0_9] : memref<28x1xf32, #tpu.memory_space<vmem>>, vector<28x1xf32>
    %22 = vector.broadcast %21 : vector<28x1xf32> to vector<28x512xf32>
    %23 = arith.addf %20, %22 : vector<28x512xf32>
    %c0_10 = arith.constant 0 : index
    %c0_11 = arith.constant 0 : index
    %24 = vector.load %arg4[%c0_10, %c0_11] : memref<112x28xbf16, #tpu.memory_space<vmem>>, vector<112x28xbf16>
    %25 = arith.truncf %23 : vector<28x512xf32> to vector<28x512xbf16>
    %cst_12 = arith.constant dense<0.000000e+00> : vector<112x512xf32>
    %26 = tpu.matmul %24, %25, %cst_12 {dimension_numbers = #tpu.dot_dimension_numbers<[1], [0], [0], [1], [0, 0, 1, 1], [], []>} : vector<112x28xbf16>, vector<28x512xbf16>, vector<112x512xf32> -> vector<112x512xf32>
    %27 = vector.extract_strided_slice %26 {offsets = [0, 0], sizes = [56, 512], strides = [1, 1]} : vector<112x512xf32> to vector<56x512xf32>
    %28 = vector.extract_strided_slice %26 {offsets = [56, 0], sizes = [56, 512], strides = [1, 1]} : vector<112x512xf32> to vector<56x512xf32>
    %29 = tpu.iota {dimensions = array<i32: 1>} : vector<1x512xi32>
    %c0_13 = arith.constant 0 : index
    %c3 = arith.constant 3 : index
    %30 = vector.load %arg5[%c0_13, %c3] : memref<56x4xf32, #tpu.memory_space<vmem>>, vector<56x1xf32>
    %31 = vector.broadcast %30 : vector<56x1xf32> to vector<56x512xf32>
    %32 = arith.mulf %31, %27 : vector<56x512xf32>
    %c3_i32 = arith.constant 3 : i32
    %33 = tpu.dynamic_rotate %27 by %c3_i32 dim 1 : vector<56x512xf32>, i32 -> vector<56x512xf32>
    %c0_14 = arith.constant 0 : index
    %c0_15 = arith.constant 0 : index
    %34 = vector.load %arg5[%c0_14, %c0_15] : memref<56x4xf32, #tpu.memory_space<vmem>>, vector<56x1xf32>
    %c3_i32_16 = arith.constant 3 : i32
    %35 = vector.broadcast %c3_i32_16 : i32 to vector<1x512xi32>
    %36 = arith.cmpi sge, %29, %35 : vector<1x512xi32>
    %cst_17 = arith.constant 0.000000e+00 : f32
    %37 = vector.shape_cast %36 : vector<1x512xi1> to vector<1x512xi1>
    %38 = vector.broadcast %37 : vector<1x512xi1> to vector<56x512xi1>
    %39 = vector.broadcast %cst_17 : f32 to vector<56x512xf32>
    %40 = arith.select %38, %33, %39 : vector<56x512xi1>, vector<56x512xf32>
    %41 = vector.broadcast %34 : vector<56x1xf32> to vector<56x512xf32>
    %42 = arith.mulf %41, %40 : vector<56x512xf32>
    %43 = arith.addf %32, %42 : vector<56x512xf32>
    %c2_i32 = arith.constant 2 : i32
    %44 = tpu.dynamic_rotate %27 by %c2_i32 dim 1 : vector<56x512xf32>, i32 -> vector<56x512xf32>
    %c0_18 = arith.constant 0 : index
    %c1 = arith.constant 1 : index
    %45 = vector.load %arg5[%c0_18, %c1] : memref<56x4xf32, #tpu.memory_space<vmem>>, vector<56x1xf32>
    %c2_i32_19 = arith.constant 2 : i32
    %46 = vector.broadcast %c2_i32_19 : i32 to vector<1x512xi32>
    %47 = arith.cmpi sge, %29, %46 : vector<1x512xi32>
    %cst_20 = arith.constant 0.000000e+00 : f32
    %48 = vector.shape_cast %47 : vector<1x512xi1> to vector<1x512xi1>
    %49 = vector.broadcast %48 : vector<1x512xi1> to vector<56x512xi1>
    %50 = vector.broadcast %cst_20 : f32 to vector<56x512xf32>
    %51 = arith.select %49, %44, %50 : vector<56x512xi1>, vector<56x512xf32>
    %52 = vector.broadcast %45 : vector<56x1xf32> to vector<56x512xf32>
    %53 = arith.mulf %52, %51 : vector<56x512xf32>
    %54 = arith.addf %43, %53 : vector<56x512xf32>
    %c1_i32 = arith.constant 1 : i32
    %55 = tpu.dynamic_rotate %27 by %c1_i32 dim 1 : vector<56x512xf32>, i32 -> vector<56x512xf32>
    %c0_21 = arith.constant 0 : index
    %c2 = arith.constant 2 : index
    %56 = vector.load %arg5[%c0_21, %c2] : memref<56x4xf32, #tpu.memory_space<vmem>>, vector<56x1xf32>
    %c1_i32_22 = arith.constant 1 : i32
    %57 = vector.broadcast %c1_i32_22 : i32 to vector<1x512xi32>
    %58 = arith.cmpi sge, %29, %57 : vector<1x512xi32>
    %cst_23 = arith.constant 0.000000e+00 : f32
    %59 = vector.shape_cast %58 : vector<1x512xi1> to vector<1x512xi1>
    %60 = vector.broadcast %59 : vector<1x512xi1> to vector<56x512xi1>
    %61 = vector.broadcast %cst_23 : f32 to vector<56x512xf32>
    %62 = arith.select %60, %55, %61 : vector<56x512xi1>, vector<56x512xf32>
    %63 = vector.broadcast %56 : vector<56x1xf32> to vector<56x512xf32>
    %64 = arith.mulf %63, %62 : vector<56x512xf32>
    %65 = arith.addf %54, %64 : vector<56x512xf32>
    %c0_24 = arith.constant 0 : index
    %c0_25 = arith.constant 0 : index
    %66 = vector.load %arg6[%c0_24, %c0_25] : memref<56x1xf32, #tpu.memory_space<vmem>>, vector<56x1xf32>
    %67 = vector.broadcast %66 : vector<56x1xf32> to vector<56x512xf32>
    %68 = arith.addf %65, %67 : vector<56x512xf32>
    %cst_26 = arith.constant 0.000000e+00 : f32
    %69 = vector.broadcast %cst_26 : f32 to vector<56x512xf32>
    %70 = arith.subf %69, %68 : vector<56x512xf32>
    %71 = math.exp %70 : vector<56x512xf32>
    %cst_27 = arith.constant 1.000000e+00 : f32
    %72 = vector.broadcast %cst_27 : f32 to vector<56x512xf32>
    %73 = arith.addf %72, %71 : vector<56x512xf32>
    %74 = tpu.reciprocal %73 {approx = true} : vector<56x512xf32> -> vector<56x512xf32>
    %75 = arith.mulf %68, %74 : vector<56x512xf32>
    %c0_28 = arith.constant 0 : index
    %c0_29 = arith.constant 0 : index
    %76 = vector.load %arg7[%c0_28, %c0_29] : memref<88x56xbf16, #tpu.memory_space<vmem>>, vector<88x56xbf16>
    %77 = arith.truncf %75 : vector<56x512xf32> to vector<56x512xbf16>
    %cst_30 = arith.constant dense<0.000000e+00> : vector<88x512xf32>
    %78 = tpu.matmul %76, %77, %cst_30 {dimension_numbers = #tpu.dot_dimension_numbers<[1], [0], [0], [1], [0, 0, 1, 1], [], []>} : vector<88x56xbf16>, vector<56x512xbf16>, vector<88x512xf32> -> vector<88x512xf32>
    %79 = vector.extract_strided_slice %78 {offsets = [0, 0], sizes = [32, 512], strides = [1, 1]} : vector<88x512xf32> to vector<32x512xf32>
    %80 = vector.extract_strided_slice %78 {offsets = [32, 0], sizes = [56, 512], strides = [1, 1]} : vector<88x512xf32> to vector<56x512xf32>
    %c0_31 = arith.constant 0 : index
    %c0_32 = arith.constant 0 : index
    %81 = vector.load %arg8[%c0_31, %c0_32] : memref<56x1xf32, #tpu.memory_space<vmem>>, vector<56x1xf32>
    %82 = vector.broadcast %81 : vector<56x1xf32> to vector<56x512xf32>
    %83 = arith.addf %80, %82 : vector<56x512xf32>
    %cst_33 = arith.constant 2.000000e+01 : f32
    %84 = vector.broadcast %cst_33 : f32 to vector<56x512xf32>
    %85 = arith.cmpf ogt, %83, %84 : vector<56x512xf32>
    %cst_34 = arith.constant 2.000000e+01 : f32
    %86 = vector.broadcast %cst_34 : f32 to vector<56x512xf32>
    %87 = arith.minimumf %83, %86 : vector<56x512xf32>
    %88 = math.exp %87 : vector<56x512xf32>
    %89 = math.log1p %88 : vector<56x512xf32>
    %90 = arith.select %85, %83, %89 : vector<56x512xi1>, vector<56x512xf32>
    %91 = tpu.transpose %75, [1, 0] : vector<56x512xf32> -> vector<512x56xf32>
    %c0_35 = arith.constant 0 : index
    %c0_36 = arith.constant 0 : index
    %92 = vector.load %arg13[%c0_35, %c0_36] : memref<512x56xf32, #tpu.memory_space<vmem>>, vector<512x56xf32>
    tpu.vector_store %arg13[%c0_35, %c0_36], %91 {strides = array<i32>} : memref<512x56xf32, #tpu.memory_space<vmem>>, vector<512x56xf32>,
    %93 = tpu.transpose %90, [1, 0] : vector<56x512xf32> -> vector<512x56xf32>
    %c0_37 = arith.constant 0 : index
    %c0_38 = arith.constant 0 : index
    %94 = vector.load %arg14[%c0_37, %c0_38] : memref<512x56xf32, #tpu.memory_space<vmem>>, vector<512x56xf32>
    tpu.vector_store %arg14[%c0_37, %c0_38], %93 {strides = array<i32>} : memref<512x56xf32, #tpu.memory_space<vmem>>, vector<512x56xf32>,
    %cst_39 = arith.constant 0.000000e+00 : f32
    %95 = vector.broadcast %cst_39 : f32 to vector<56x512xf32>
    %96 = arith.subf %95, %28 : vector<56x512xf32>
    %97 = math.exp %96 : vector<56x512xf32>
    %cst_40 = arith.constant 1.000000e+00 : f32
    %98 = vector.broadcast %cst_40 : f32 to vector<56x512xf32>
    %99 = arith.addf %98, %97 : vector<56x512xf32>
    %100 = tpu.reciprocal %99 {approx = true} : vector<56x512xf32> -> vector<56x512xf32>
    %101 = arith.mulf %28, %100 : vector<56x512xf32>
    %102 = tpu.transpose %101, [1, 0] : vector<56x512xf32> -> vector<512x56xf32>
    %c0_41 = arith.constant 0 : index
    %c0_42 = arith.constant 0 : index
    %103 = vector.load %arg15[%c0_41, %c0_42] : memref<512x56xf32, #tpu.memory_space<vmem>>, vector<512x56xf32>
    tpu.vector_store %arg15[%c0_41, %c0_42], %102 {strides = array<i32>} : memref<512x56xf32, #tpu.memory_space<vmem>>, vector<512x56xf32>,
    %104 = vector.extract_strided_slice %79 {offsets = [0, 0], sizes = [32, 8], strides = [1, 1]} : vector<32x512xf32> to vector<32x8xf32>
    %c0_43 = arith.constant 0 : index
    %c0_44 = arith.constant 0 : index
    %c0_45 = arith.constant 0 : index
    %105 = vector.load %arg16[%c0_43, %c0_44, %c0_45] : memref<64x32x8xf32, #tpu.memory_space<vmem>>, vector<1x32x8xf32>
    %106 = vector.shape_cast %105 : vector<1x32x8xf32> to vector<32x8xf32>
    %107 = vector.shape_cast %104 : vector<32x8xf32> to vector<1x32x8xf32>
    tpu.vector_store %arg16[%c0_43, %c0_44, %c0_45], %107 {strides = array<i32>} : memref<64x32x8xf32, #tpu.memory_space<vmem>>, vector<1x32x8xf32>,
    %108 = vector.extract_strided_slice %79 {offsets = [0, 8], sizes = [32, 8], strides = [1, 1]} : vector<32x512xf32> to vector<32x8xf32>
    %c1_46 = arith.constant 1 : index
    %c0_47 = arith.constant 0 : index
    %c0_48 = arith.constant 0 : index
    %109 = vector.load %arg16[%c1_46, %c0_47, %c0_48] : memref<64x32x8xf32, #tpu.memory_space<vmem>>, vector<1x32x8xf32>
    %110 = vector.shape_cast %109 : vector<1x32x8xf32> to vector<32x8xf32>
    %111 = vector.shape_cast %108 : vector<32x8xf32> to vector<1x32x8xf32>
    tpu.vector_store %arg16[%c1_46, %c0_47, %c0_48], %111 {strides = array<i32>} : memref<64x32x8xf32, #tpu.memory_space<vmem>>, vector<1x32x8xf32>,
    %112 = vector.extract_strided_slice %79 {offsets = [0, 16], sizes = [32, 8], strides = [1, 1]} : vector<32x512xf32> to vector<32x8xf32>
    %c2_49 = arith.constant 2 : index
    %c0_50 = arith.constant 0 : index
    %c0_51 = arith.constant 0 : index
    %113 = vector.load %arg16[%c2_49, %c0_50, %c0_51] : memref<64x32x8xf32, #tpu.memory_space<vmem>>, vector<1x32x8xf32>
    %114 = vector.shape_cast %113 : vector<1x32x8xf32> to vector<32x8xf32>
    %115 = vector.shape_cast %112 : vector<32x8xf32> to vector<1x32x8xf32>
    tpu.vector_store %arg16[%c2_49, %c0_50, %c0_51], %115 {strides = array<i32>} : memref<64x32x8xf32, #tpu.memory_space<vmem>>, vector<1x32x8xf32>,
    %116 = vector.extract_strided_slice %79 {offsets = [0, 24], sizes = [32, 8], strides = [1, 1]} : vector<32x512xf32> to vector<32x8xf32>
    %c3_52 = arith.constant 3 : index
    %c0_53 = arith.constant 0 : index
    %c0_54 = arith.constant 0 : index
    %117 = vector.load %arg16[%c3_52, %c0_53, %c0_54] : memref<64x32x8xf32, #tpu.memory_space<vmem>>, vector<1x32x8xf32>
    %118 = vector.shape_cast %117 : vector<1x32x8xf32> to vector<32x8xf32>
    %119 = vector.shape_cast %116 : vector<32x8xf32> to vector<1x32x8xf32>
    tpu.vector_store %arg16[%c3_52, %c0_53, %c0_54], %119 {strides = array<i32>} : memref<64x32x8xf32, #tpu.memory_space<vmem>>, vector<1x32x8xf32>,
    %120 = vector.extract_strided_slice %79 {offsets = [0, 32], sizes = [32, 8], strides = [1, 1]} : vector<32x512xf32> to vector<32x8xf32>
    %c4 = arith.constant 4 : index
    %c0_55 = arith.constant 0 : index
    %c0_56 = arith.constant 0 : index
    %121 = vector.load %arg16[%c4, %c0_55, %c0_56] : memref<64x32x8xf32, #tpu.memory_space<vmem>>, vector<1x32x8xf32>
    %122 = vector.shape_cast %121 : vector<1x32x8xf32> to vector<32x8xf32>
    %123 = vector.shape_cast %120 : vector<32x8xf32> to vector<1x32x8xf32>
    tpu.vector_store %arg16[%c4, %c0_55, %c0_56], %123 {strides = array<i32>} : memref<64x32x8xf32, #tpu.memory_space<vmem>>, vector<1x32x8xf32>,
    %124 = vector.extract_strided_slice %79 {offsets = [0, 40], sizes = [32, 8], strides = [1, 1]} : vector<32x512xf32> to vector<32x8xf32>
    %c5 = arith.constant 5 : index
    %c0_57 = arith.constant 0 : index
    %c0_58 = arith.constant 0 : index
    %125 = vector.load %arg16[%c5, %c0_57, %c0_58] : memref<64x32x8xf32, #tpu.memory_space<vmem>>, vector<1x32x8xf32>
    %126 = vector.shape_cast %125 : vector<1x32x8xf32> to vector<32x8xf32>
    %127 = vector.shape_cast %124 : vector<32x8xf32> to vector<1x32x8xf32>
    tpu.vector_store %arg16[%c5, %c0_57, %c0_58], %127 {strides = array<i32>} : memref<64x32x8xf32, #tpu.memory_space<vmem>>, vector<1x32x8xf32>,
    %128 = vector.extract_strided_slice %79 {offsets = [0, 48], sizes = [32, 8], strides = [1, 1]} : vector<32x512xf32> to vector<32x8xf32>
    %c6 = arith.constant 6 : index
    %c0_59 = arith.constant 0 : index
    %c0_60 = arith.constant 0 : index
    %129 = vector.load %arg16[%c6, %c0_59, %c0_60] : memref<64x32x8xf32, #tpu.memory_space<vmem>>, vector<1x32x8xf32>
    %130 = vector.shape_cast %129 : vector<1x32x8xf32> to vector<32x8xf32>
    %131 = vector.shape_cast %128 : vector<32x8xf32> to vector<1x32x8xf32>
    tpu.vector_store %arg16[%c6, %c0_59, %c0_60], %131 {strides = array<i32>} : memref<64x32x8xf32, #tpu.memory_space<vmem>>, vector<1x32x8xf32>,
    %132 = vector.extract_strided_slice %79 {offsets = [0, 56], sizes = [32, 8], strides = [1, 1]} : vector<32x512xf32> to vector<32x8xf32>
    %c7 = arith.constant 7 : index
    %c0_61 = arith.constant 0 : index
    %c0_62 = arith.constant 0 : index
    %133 = vector.load %arg16[%c7, %c0_61, %c0_62] : memref<64x32x8xf32, #tpu.memory_space<vmem>>, vector<1x32x8xf32>
    %134 = vector.shape_cast %133 : vector<1x32x8xf32> to vector<32x8xf32>
    %135 = vector.shape_cast %132 : vector<32x8xf32> to vector<1x32x8xf32>
    tpu.vector_store %arg16[%c7, %c0_61, %c0_62], %135 {strides = array<i32>} : memref<64x32x8xf32, #tpu.memory_space<vmem>>, vector<1x32x8xf32>,
    %136 = vector.extract_strided_slice %79 {offsets = [0, 64], sizes = [32, 8], strides = [1, 1]} : vector<32x512xf32> to vector<32x8xf32>
    %c8 = arith.constant 8 : index
    %c0_63 = arith.constant 0 : index
    %c0_64 = arith.constant 0 : index
    %137 = vector.load %arg16[%c8, %c0_63, %c0_64] : memref<64x32x8xf32, #tpu.memory_space<vmem>>, vector<1x32x8xf32>
    %138 = vector.shape_cast %137 : vector<1x32x8xf32> to vector<32x8xf32>
    %139 = vector.shape_cast %136 : vector<32x8xf32> to vector<1x32x8xf32>
    tpu.vector_store %arg16[%c8, %c0_63, %c0_64], %139 {strides = array<i32>} : memref<64x32x8xf32, #tpu.memory_space<vmem>>, vector<1x32x8xf32>,
    %140 = vector.extract_strided_slice %79 {offsets = [0, 72], sizes = [32, 8], strides = [1, 1]} : vector<32x512xf32> to vector<32x8xf32>
    %c9 = arith.constant 9 : index
    %c0_65 = arith.constant 0 : index
    %c0_66 = arith.constant 0 : index
    %141 = vector.load %arg16[%c9, %c0_65, %c0_66] : memref<64x32x8xf32, #tpu.memory_space<vmem>>, vector<1x32x8xf32>
    %142 = vector.shape_cast %141 : vector<1x32x8xf32> to vector<32x8xf32>
    %143 = vector.shape_cast %140 : vector<32x8xf32> to vector<1x32x8xf32>
    tpu.vector_store %arg16[%c9, %c0_65, %c0_66], %143 {strides = array<i32>} : memref<64x32x8xf32, #tpu.memory_space<vmem>>, vector<1x32x8xf32>,
    %144 = vector.extract_strided_slice %79 {offsets = [0, 80], sizes = [32, 8], strides = [1, 1]} : vector<32x512xf32> to vector<32x8xf32>
    %c10 = arith.constant 10 : index
    %c0_67 = arith.constant 0 : index
    %c0_68 = arith.constant 0 : index
    %145 = vector.load %arg16[%c10, %c0_67, %c0_68] : memref<64x32x8xf32, #tpu.memory_space<vmem>>, vector<1x32x8xf32>
    %146 = vector.shape_cast %145 : vector<1x32x8xf32> to vector<32x8xf32>
    %147 = vector.shape_cast %144 : vector<32x8xf32> to vector<1x32x8xf32>
    tpu.vector_store %arg16[%c10, %c0_67, %c0_68], %147 {strides = array<i32>} : memref<64x32x8xf32, #tpu.memory_space<vmem>>, vector<1x32x8xf32>,
    %148 = vector.extract_strided_slice %79 {offsets = [0, 88], sizes = [32, 8], strides = [1, 1]} : vector<32x512xf32> to vector<32x8xf32>
    %c11 = arith.constant 11 : index
    %c0_69 = arith.constant 0 : index
    %c0_70 = arith.constant 0 : index
    %149 = vector.load %arg16[%c11, %c0_69, %c0_70] : memref<64x32x8xf32, #tpu.memory_space<vmem>>, vector<1x32x8xf32>
    %150 = vector.shape_cast %149 : vector<1x32x8xf32> to vector<32x8xf32>
    %151 = vector.shape_cast %148 : vector<32x8xf32> to vector<1x32x8xf32>
    tpu.vector_store %arg16[%c11, %c0_69, %c0_70], %151 {strides = array<i32>} : memref<64x32x8xf32, #tpu.memory_space<vmem>>, vector<1x32x8xf32>,
    %152 = vector.extract_strided_slice %79 {offsets = [0, 96], sizes = [32, 8], strides = [1, 1]} : vector<32x512xf32> to vector<32x8xf32>
    %c12 = arith.constant 12 : index
    %c0_71 = arith.constant 0 : index
    %c0_72 = arith.constant 0 : index
    %153 = vector.load %arg16[%c12, %c0_71, %c0_72] : memref<64x32x8xf32, #tpu.memory_space<vmem>>, vector<1x32x8xf32>
    %154 = vector.shape_cast %153 : vector<1x32x8xf32> to vector<32x8xf32>
    %155 = vector.shape_cast %152 : vector<32x8xf32> to vector<1x32x8xf32>
    tpu.vector_store %arg16[%c12, %c0_71, %c0_72], %155 {strides = array<i32>} : memref<64x32x8xf32, #tpu.memory_space<vmem>>, vector<1x32x8xf32>,
    %156 = vector.extract_strided_slice %79 {offsets = [0, 104], sizes = [32, 8], strides = [1, 1]} : vector<32x512xf32> to vector<32x8xf32>
    %c13 = arith.constant 13 : index
    %c0_73 = arith.constant 0 : index
    %c0_74 = arith.constant 0 : index
    %157 = vector.load %arg16[%c13, %c0_73, %c0_74] : memref<64x32x8xf32, #tpu.memory_space<vmem>>, vector<1x32x8xf32>
    %158 = vector.shape_cast %157 : vector<1x32x8xf32> to vector<32x8xf32>
    %159 = vector.shape_cast %156 : vector<32x8xf32> to vector<1x32x8xf32>
    tpu.vector_store %arg16[%c13, %c0_73, %c0_74], %159 {strides = array<i32>} : memref<64x32x8xf32, #tpu.memory_space<vmem>>, vector<1x32x8xf32>,
    %160 = vector.extract_strided_slice %79 {offsets = [0, 112], sizes = [32, 8], strides = [1, 1]} : vector<32x512xf32> to vector<32x8xf32>
    %c14 = arith.constant 14 : index
    %c0_75 = arith.constant 0 : index
    %c0_76 = arith.constant 0 : index
    %161 = vector.load %arg16[%c14, %c0_75, %c0_76] : memref<64x32x8xf32, #tpu.memory_space<vmem>>, vector<1x32x8xf32>
    %162 = vector.shape_cast %161 : vector<1x32x8xf32> to vector<32x8xf32>
    %163 = vector.shape_cast %160 : vector<32x8xf32> to vector<1x32x8xf32>
    tpu.vector_store %arg16[%c14, %c0_75, %c0_76], %163 {strides = array<i32>} : memref<64x32x8xf32, #tpu.memory_space<vmem>>, vector<1x32x8xf32>,
    %164 = vector.extract_strided_slice %79 {offsets = [0, 120], sizes = [32, 8], strides = [1, 1]} : vector<32x512xf32> to vector<32x8xf32>
    %c15 = arith.constant 15 : index
    %c0_77 = arith.constant 0 : index
    %c0_78 = arith.constant 0 : index
    %165 = vector.load %arg16[%c15, %c0_77, %c0_78] : memref<64x32x8xf32, #tpu.memory_space<vmem>>, vector<1x32x8xf32>
    %166 = vector.shape_cast %165 : vector<1x32x8xf32> to vector<32x8xf32>
    %167 = vector.shape_cast %164 : vector<32x8xf32> to vector<1x32x8xf32>
    tpu.vector_store %arg16[%c15, %c0_77, %c0_78], %167 {strides = array<i32>} : memref<64x32x8xf32, #tpu.memory_space<vmem>>, vector<1x32x8xf32>,
    %168 = vector.extract_strided_slice %79 {offsets = [0, 128], sizes = [32, 8], strides = [1, 1]} : vector<32x512xf32> to vector<32x8xf32>
    %c16 = arith.constant 16 : index
    %c0_79 = arith.constant 0 : index
    %c0_80 = arith.constant 0 : index
    %169 = vector.load %arg16[%c16, %c0_79, %c0_80] : memref<64x32x8xf32, #tpu.memory_space<vmem>>, vector<1x32x8xf32>
    %170 = vector.shape_cast %169 : vector<1x32x8xf32> to vector<32x8xf32>
    %171 = vector.shape_cast %168 : vector<32x8xf32> to vector<1x32x8xf32>
    tpu.vector_store %arg16[%c16, %c0_79, %c0_80], %171 {strides = array<i32>} : memref<64x32x8xf32, #tpu.memory_space<vmem>>, vector<1x32x8xf32>,
    %172 = vector.extract_strided_slice %79 {offsets = [0, 136], sizes = [32, 8], strides = [1, 1]} : vector<32x512xf32> to vector<32x8xf32>
    %c17 = arith.constant 17 : index
    %c0_81 = arith.constant 0 : index
    %c0_82 = arith.constant 0 : index
    %173 = vector.load %arg16[%c17, %c0_81, %c0_82] : memref<64x32x8xf32, #tpu.memory_space<vmem>>, vector<1x32x8xf32>
    %174 = vector.shape_cast %173 : vector<1x32x8xf32> to vector<32x8xf32>
    %175 = vector.shape_cast %172 : vector<32x8xf32> to vector<1x32x8xf32>
    tpu.vector_store %arg16[%c17, %c0_81, %c0_82], %175 {strides = array<i32>} : memref<64x32x8xf32, #tpu.memory_space<vmem>>, vector<1x32x8xf32>,
    %176 = vector.extract_strided_slice %79 {offsets = [0, 144], sizes = [32, 8], strides = [1, 1]} : vector<32x512xf32> to vector<32x8xf32>
    %c18 = arith.constant 18 : index
    %c0_83 = arith.constant 0 : index
    %c0_84 = arith.constant 0 : index
    %177 = vector.load %arg16[%c18, %c0_83, %c0_84] : memref<64x32x8xf32, #tpu.memory_space<vmem>>, vector<1x32x8xf32>
    %178 = vector.shape_cast %177 : vector<1x32x8xf32> to vector<32x8xf32>
    %179 = vector.shape_cast %176 : vector<32x8xf32> to vector<1x32x8xf32>
    tpu.vector_store %arg16[%c18, %c0_83, %c0_84], %179 {strides = array<i32>} : memref<64x32x8xf32, #tpu.memory_space<vmem>>, vector<1x32x8xf32>,
    %180 = vector.extract_strided_slice %79 {offsets = [0, 152], sizes = [32, 8], strides = [1, 1]} : vector<32x512xf32> to vector<32x8xf32>
    %c19 = arith.constant 19 : index
    %c0_85 = arith.constant 0 : index
    %c0_86 = arith.constant 0 : index
    %181 = vector.load %arg16[%c19, %c0_85, %c0_86] : memref<64x32x8xf32, #tpu.memory_space<vmem>>, vector<1x32x8xf32>
    %182 = vector.shape_cast %181 : vector<1x32x8xf32> to vector<32x8xf32>
    %183 = vector.shape_cast %180 : vector<32x8xf32> to vector<1x32x8xf32>
    tpu.vector_store %arg16[%c19, %c0_85, %c0_86], %183 {strides = array<i32>} : memref<64x32x8xf32, #tpu.memory_space<vmem>>, vector<1x32x8xf32>,
    %184 = vector.extract_strided_slice %79 {offsets = [0, 160], sizes = [32, 8], strides = [1, 1]} : vector<32x512xf32> to vector<32x8xf32>
    %c20 = arith.constant 20 : index
    %c0_87 = arith.constant 0 : index
    %c0_88 = arith.constant 0 : index
    %185 = vector.load %arg16[%c20, %c0_87, %c0_88] : memref<64x32x8xf32, #tpu.memory_space<vmem>>, vector<1x32x8xf32>
    %186 = vector.shape_cast %185 : vector<1x32x8xf32> to vector<32x8xf32>
    %187 = vector.shape_cast %184 : vector<32x8xf32> to vector<1x32x8xf32>
    tpu.vector_store %arg16[%c20, %c0_87, %c0_88], %187 {strides = array<i32>} : memref<64x32x8xf32, #tpu.memory_space<vmem>>, vector<1x32x8xf32>,
    %188 = vector.extract_strided_slice %79 {offsets = [0, 168], sizes = [32, 8], strides = [1, 1]} : vector<32x512xf32> to vector<32x8xf32>
    %c21 = arith.constant 21 : index
    %c0_89 = arith.constant 0 : index
    %c0_90 = arith.constant 0 : index
    %189 = vector.load %arg16[%c21, %c0_89, %c0_90] : memref<64x32x8xf32, #tpu.memory_space<vmem>>, vector<1x32x8xf32>
    %190 = vector.shape_cast %189 : vector<1x32x8xf32> to vector<32x8xf32>
    %191 = vector.shape_cast %188 : vector<32x8xf32> to vector<1x32x8xf32>
    tpu.vector_store %arg16[%c21, %c0_89, %c0_90], %191 {strides = array<i32>} : memref<64x32x8xf32, #tpu.memory_space<vmem>>, vector<1x32x8xf32>,
    %192 = vector.extract_strided_slice %79 {offsets = [0, 176], sizes = [32, 8], strides = [1, 1]} : vector<32x512xf32> to vector<32x8xf32>
    %c22 = arith.constant 22 : index
    %c0_91 = arith.constant 0 : index
    %c0_92 = arith.constant 0 : index
    %193 = vector.load %arg16[%c22, %c0_91, %c0_92] : memref<64x32x8xf32, #tpu.memory_space<vmem>>, vector<1x32x8xf32>
    %194 = vector.shape_cast %193 : vector<1x32x8xf32> to vector<32x8xf32>
    %195 = vector.shape_cast %192 : vector<32x8xf32> to vector<1x32x8xf32>
    tpu.vector_store %arg16[%c22, %c0_91, %c0_92], %195 {strides = array<i32>} : memref<64x32x8xf32, #tpu.memory_space<vmem>>, vector<1x32x8xf32>,
    %196 = vector.extract_strided_slice %79 {offsets = [0, 184], sizes = [32, 8], strides = [1, 1]} : vector<32x512xf32> to vector<32x8xf32>
    %c23 = arith.constant 23 : index
    %c0_93 = arith.constant 0 : index
    %c0_94 = arith.constant 0 : index
    %197 = vector.load %arg16[%c23, %c0_93, %c0_94] : memref<64x32x8xf32, #tpu.memory_space<vmem>>, vector<1x32x8xf32>
    %198 = vector.shape_cast %197 : vector<1x32x8xf32> to vector<32x8xf32>
    %199 = vector.shape_cast %196 : vector<32x8xf32> to vector<1x32x8xf32>
    tpu.vector_store %arg16[%c23, %c0_93, %c0_94], %199 {strides = array<i32>} : memref<64x32x8xf32, #tpu.memory_space<vmem>>, vector<1x32x8xf32>,
    %200 = vector.extract_strided_slice %79 {offsets = [0, 192], sizes = [32, 8], strides = [1, 1]} : vector<32x512xf32> to vector<32x8xf32>
    %c24 = arith.constant 24 : index
    %c0_95 = arith.constant 0 : index
    %c0_96 = arith.constant 0 : index
    %201 = vector.load %arg16[%c24, %c0_95, %c0_96] : memref<64x32x8xf32, #tpu.memory_space<vmem>>, vector<1x32x8xf32>
    %202 = vector.shape_cast %201 : vector<1x32x8xf32> to vector<32x8xf32>
    %203 = vector.shape_cast %200 : vector<32x8xf32> to vector<1x32x8xf32>
    tpu.vector_store %arg16[%c24, %c0_95, %c0_96], %203 {strides = array<i32>} : memref<64x32x8xf32, #tpu.memory_space<vmem>>, vector<1x32x8xf32>,
    %204 = vector.extract_strided_slice %79 {offsets = [0, 200], sizes = [32, 8], strides = [1, 1]} : vector<32x512xf32> to vector<32x8xf32>
    %c25 = arith.constant 25 : index
    %c0_97 = arith.constant 0 : index
    %c0_98 = arith.constant 0 : index
    %205 = vector.load %arg16[%c25, %c0_97, %c0_98] : memref<64x32x8xf32, #tpu.memory_space<vmem>>, vector<1x32x8xf32>
    %206 = vector.shape_cast %205 : vector<1x32x8xf32> to vector<32x8xf32>
    %207 = vector.shape_cast %204 : vector<32x8xf32> to vector<1x32x8xf32>
    tpu.vector_store %arg16[%c25, %c0_97, %c0_98], %207 {strides = array<i32>} : memref<64x32x8xf32, #tpu.memory_space<vmem>>, vector<1x32x8xf32>,
    %208 = vector.extract_strided_slice %79 {offsets = [0, 208], sizes = [32, 8], strides = [1, 1]} : vector<32x512xf32> to vector<32x8xf32>
    %c26 = arith.constant 26 : index
    %c0_99 = arith.constant 0 : index
    %c0_100 = arith.constant 0 : index
    %209 = vector.load %arg16[%c26, %c0_99, %c0_100] : memref<64x32x8xf32, #tpu.memory_space<vmem>>, vector<1x32x8xf32>
    %210 = vector.shape_cast %209 : vector<1x32x8xf32> to vector<32x8xf32>
    %211 = vector.shape_cast %208 : vector<32x8xf32> to vector<1x32x8xf32>
    tpu.vector_store %arg16[%c26, %c0_99, %c0_100], %211 {strides = array<i32>} : memref<64x32x8xf32, #tpu.memory_space<vmem>>, vector<1x32x8xf32>,
    %212 = vector.extract_strided_slice %79 {offsets = [0, 216], sizes = [32, 8], strides = [1, 1]} : vector<32x512xf32> to vector<32x8xf32>
    %c27 = arith.constant 27 : index
    %c0_101 = arith.constant 0 : index
    %c0_102 = arith.constant 0 : index
    %213 = vector.load %arg16[%c27, %c0_101, %c0_102] : memref<64x32x8xf32, #tpu.memory_space<vmem>>, vector<1x32x8xf32>
    %214 = vector.shape_cast %213 : vector<1x32x8xf32> to vector<32x8xf32>
    %215 = vector.shape_cast %212 : vector<32x8xf32> to vector<1x32x8xf32>
    tpu.vector_store %arg16[%c27, %c0_101, %c0_102], %215 {strides = array<i32>} : memref<64x32x8xf32, #tpu.memory_space<vmem>>, vector<1x32x8xf32>,
    %216 = vector.extract_strided_slice %79 {offsets = [0, 224], sizes = [32, 8], strides = [1, 1]} : vector<32x512xf32> to vector<32x8xf32>
    %c28 = arith.constant 28 : index
    %c0_103 = arith.constant 0 : index
    %c0_104 = arith.constant 0 : index
    %217 = vector.load %arg16[%c28, %c0_103, %c0_104] : memref<64x32x8xf32, #tpu.memory_space<vmem>>, vector<1x32x8xf32>
    %218 = vector.shape_cast %217 : vector<1x32x8xf32> to vector<32x8xf32>
    %219 = vector.shape_cast %216 : vector<32x8xf32> to vector<1x32x8xf32>
    tpu.vector_store %arg16[%c28, %c0_103, %c0_104], %219 {strides = array<i32>} : memref<64x32x8xf32, #tpu.memory_space<vmem>>, vector<1x32x8xf32>,
    %220 = vector.extract_strided_slice %79 {offsets = [0, 232], sizes = [32, 8], strides = [1, 1]} : vector<32x512xf32> to vector<32x8xf32>
    %c29 = arith.constant 29 : index
    %c0_105 = arith.constant 0 : index
    %c0_106 = arith.constant 0 : index
    %221 = vector.load %arg16[%c29, %c0_105, %c0_106] : memref<64x32x8xf32, #tpu.memory_space<vmem>>, vector<1x32x8xf32>
    %222 = vector.shape_cast %221 : vector<1x32x8xf32> to vector<32x8xf32>
    %223 = vector.shape_cast %220 : vector<32x8xf32> to vector<1x32x8xf32>
    tpu.vector_store %arg16[%c29, %c0_105, %c0_106], %223 {strides = array<i32>} : memref<64x32x8xf32, #tpu.memory_space<vmem>>, vector<1x32x8xf32>,
    %224 = vector.extract_strided_slice %79 {offsets = [0, 240], sizes = [32, 8], strides = [1, 1]} : vector<32x512xf32> to vector<32x8xf32>
    %c30 = arith.constant 30 : index
    %c0_107 = arith.constant 0 : index
    %c0_108 = arith.constant 0 : index
    %225 = vector.load %arg16[%c30, %c0_107, %c0_108] : memref<64x32x8xf32, #tpu.memory_space<vmem>>, vector<1x32x8xf32>
    %226 = vector.shape_cast %225 : vector<1x32x8xf32> to vector<32x8xf32>
    %227 = vector.shape_cast %224 : vector<32x8xf32> to vector<1x32x8xf32>
    tpu.vector_store %arg16[%c30, %c0_107, %c0_108], %227 {strides = array<i32>} : memref<64x32x8xf32, #tpu.memory_space<vmem>>, vector<1x32x8xf32>,
    %228 = vector.extract_strided_slice %79 {offsets = [0, 248], sizes = [32, 8], strides = [1, 1]} : vector<32x512xf32> to vector<32x8xf32>
    %c31 = arith.constant 31 : index
    %c0_109 = arith.constant 0 : index
    %c0_110 = arith.constant 0 : index
    %229 = vector.load %arg16[%c31, %c0_109, %c0_110] : memref<64x32x8xf32, #tpu.memory_space<vmem>>, vector<1x32x8xf32>
    %230 = vector.shape_cast %229 : vector<1x32x8xf32> to vector<32x8xf32>
    %231 = vector.shape_cast %228 : vector<32x8xf32> to vector<1x32x8xf32>
    tpu.vector_store %arg16[%c31, %c0_109, %c0_110], %231 {strides = array<i32>} : memref<64x32x8xf32, #tpu.memory_space<vmem>>, vector<1x32x8xf32>,
    %232 = vector.extract_strided_slice %79 {offsets = [0, 256], sizes = [32, 8], strides = [1, 1]} : vector<32x512xf32> to vector<32x8xf32>
    %c32 = arith.constant 32 : index
    %c0_111 = arith.constant 0 : index
    %c0_112 = arith.constant 0 : index
    %233 = vector.load %arg16[%c32, %c0_111, %c0_112] : memref<64x32x8xf32, #tpu.memory_space<vmem>>, vector<1x32x8xf32>
    %234 = vector.shape_cast %233 : vector<1x32x8xf32> to vector<32x8xf32>
    %235 = vector.shape_cast %232 : vector<32x8xf32> to vector<1x32x8xf32>
    tpu.vector_store %arg16[%c32, %c0_111, %c0_112], %235 {strides = array<i32>} : memref<64x32x8xf32, #tpu.memory_space<vmem>>, vector<1x32x8xf32>,
    %236 = vector.extract_strided_slice %79 {offsets = [0, 264], sizes = [32, 8], strides = [1, 1]} : vector<32x512xf32> to vector<32x8xf32>
    %c33 = arith.constant 33 : index
    %c0_113 = arith.constant 0 : index
    %c0_114 = arith.constant 0 : index
    %237 = vector.load %arg16[%c33, %c0_113, %c0_114] : memref<64x32x8xf32, #tpu.memory_space<vmem>>, vector<1x32x8xf32>
    %238 = vector.shape_cast %237 : vector<1x32x8xf32> to vector<32x8xf32>
    %239 = vector.shape_cast %236 : vector<32x8xf32> to vector<1x32x8xf32>
    tpu.vector_store %arg16[%c33, %c0_113, %c0_114], %239 {strides = array<i32>} : memref<64x32x8xf32, #tpu.memory_space<vmem>>, vector<1x32x8xf32>,
    %240 = vector.extract_strided_slice %79 {offsets = [0, 272], sizes = [32, 8], strides = [1, 1]} : vector<32x512xf32> to vector<32x8xf32>
    %c34 = arith.constant 34 : index
    %c0_115 = arith.constant 0 : index
    %c0_116 = arith.constant 0 : index
    %241 = vector.load %arg16[%c34, %c0_115, %c0_116] : memref<64x32x8xf32, #tpu.memory_space<vmem>>, vector<1x32x8xf32>
    %242 = vector.shape_cast %241 : vector<1x32x8xf32> to vector<32x8xf32>
    %243 = vector.shape_cast %240 : vector<32x8xf32> to vector<1x32x8xf32>
    tpu.vector_store %arg16[%c34, %c0_115, %c0_116], %243 {strides = array<i32>} : memref<64x32x8xf32, #tpu.memory_space<vmem>>, vector<1x32x8xf32>,
    %244 = vector.extract_strided_slice %79 {offsets = [0, 280], sizes = [32, 8], strides = [1, 1]} : vector<32x512xf32> to vector<32x8xf32>
    %c35 = arith.constant 35 : index
    %c0_117 = arith.constant 0 : index
    %c0_118 = arith.constant 0 : index
    %245 = vector.load %arg16[%c35, %c0_117, %c0_118] : memref<64x32x8xf32, #tpu.memory_space<vmem>>, vector<1x32x8xf32>
    %246 = vector.shape_cast %245 : vector<1x32x8xf32> to vector<32x8xf32>
    %247 = vector.shape_cast %244 : vector<32x8xf32> to vector<1x32x8xf32>
    tpu.vector_store %arg16[%c35, %c0_117, %c0_118], %247 {strides = array<i32>} : memref<64x32x8xf32, #tpu.memory_space<vmem>>, vector<1x32x8xf32>,
    %248 = vector.extract_strided_slice %79 {offsets = [0, 288], sizes = [32, 8], strides = [1, 1]} : vector<32x512xf32> to vector<32x8xf32>
    %c36 = arith.constant 36 : index
    %c0_119 = arith.constant 0 : index
    %c0_120 = arith.constant 0 : index
    %249 = vector.load %arg16[%c36, %c0_119, %c0_120] : memref<64x32x8xf32, #tpu.memory_space<vmem>>, vector<1x32x8xf32>
    %250 = vector.shape_cast %249 : vector<1x32x8xf32> to vector<32x8xf32>
    %251 = vector.shape_cast %248 : vector<32x8xf32> to vector<1x32x8xf32>
    tpu.vector_store %arg16[%c36, %c0_119, %c0_120], %251 {strides = array<i32>} : memref<64x32x8xf32, #tpu.memory_space<vmem>>, vector<1x32x8xf32>,
    %252 = vector.extract_strided_slice %79 {offsets = [0, 296], sizes = [32, 8], strides = [1, 1]} : vector<32x512xf32> to vector<32x8xf32>
    %c37 = arith.constant 37 : index
    %c0_121 = arith.constant 0 : index
    %c0_122 = arith.constant 0 : index
    %253 = vector.load %arg16[%c37, %c0_121, %c0_122] : memref<64x32x8xf32, #tpu.memory_space<vmem>>, vector<1x32x8xf32>
    %254 = vector.shape_cast %253 : vector<1x32x8xf32> to vector<32x8xf32>
    %255 = vector.shape_cast %252 : vector<32x8xf32> to vector<1x32x8xf32>
    tpu.vector_store %arg16[%c37, %c0_121, %c0_122], %255 {strides = array<i32>} : memref<64x32x8xf32, #tpu.memory_space<vmem>>, vector<1x32x8xf32>,
    %256 = vector.extract_strided_slice %79 {offsets = [0, 304], sizes = [32, 8], strides = [1, 1]} : vector<32x512xf32> to vector<32x8xf32>
    %c38 = arith.constant 38 : index
    %c0_123 = arith.constant 0 : index
    %c0_124 = arith.constant 0 : index
    %257 = vector.load %arg16[%c38, %c0_123, %c0_124] : memref<64x32x8xf32, #tpu.memory_space<vmem>>, vector<1x32x8xf32>
    %258 = vector.shape_cast %257 : vector<1x32x8xf32> to vector<32x8xf32>
    %259 = vector.shape_cast %256 : vector<32x8xf32> to vector<1x32x8xf32>
    tpu.vector_store %arg16[%c38, %c0_123, %c0_124], %259 {strides = array<i32>} : memref<64x32x8xf32, #tpu.memory_space<vmem>>, vector<1x32x8xf32>,
    %260 = vector.extract_strided_slice %79 {offsets = [0, 312], sizes = [32, 8], strides = [1, 1]} : vector<32x512xf32> to vector<32x8xf32>
    %c39 = arith.constant 39 : index
    %c0_125 = arith.constant 0 : index
    %c0_126 = arith.constant 0 : index
    %261 = vector.load %arg16[%c39, %c0_125, %c0_126] : memref<64x32x8xf32, #tpu.memory_space<vmem>>, vector<1x32x8xf32>
    %262 = vector.shape_cast %261 : vector<1x32x8xf32> to vector<32x8xf32>
    %263 = vector.shape_cast %260 : vector<32x8xf32> to vector<1x32x8xf32>
    tpu.vector_store %arg16[%c39, %c0_125, %c0_126], %263 {strides = array<i32>} : memref<64x32x8xf32, #tpu.memory_space<vmem>>, vector<1x32x8xf32>,
    %264 = vector.extract_strided_slice %79 {offsets = [0, 320], sizes = [32, 8], strides = [1, 1]} : vector<32x512xf32> to vector<32x8xf32>
    %c40 = arith.constant 40 : index
    %c0_127 = arith.constant 0 : index
    %c0_128 = arith.constant 0 : index
    %265 = vector.load %arg16[%c40, %c0_127, %c0_128] : memref<64x32x8xf32, #tpu.memory_space<vmem>>, vector<1x32x8xf32>
    %266 = vector.shape_cast %265 : vector<1x32x8xf32> to vector<32x8xf32>
    %267 = vector.shape_cast %264 : vector<32x8xf32> to vector<1x32x8xf32>
    tpu.vector_store %arg16[%c40, %c0_127, %c0_128], %267 {strides = array<i32>} : memref<64x32x8xf32, #tpu.memory_space<vmem>>, vector<1x32x8xf32>,
    %268 = vector.extract_strided_slice %79 {offsets = [0, 328], sizes = [32, 8], strides = [1, 1]} : vector<32x512xf32> to vector<32x8xf32>
    %c41 = arith.constant 41 : index
    %c0_129 = arith.constant 0 : index
    %c0_130 = arith.constant 0 : index
    %269 = vector.load %arg16[%c41, %c0_129, %c0_130] : memref<64x32x8xf32, #tpu.memory_space<vmem>>, vector<1x32x8xf32>
    %270 = vector.shape_cast %269 : vector<1x32x8xf32> to vector<32x8xf32>
    %271 = vector.shape_cast %268 : vector<32x8xf32> to vector<1x32x8xf32>
    tpu.vector_store %arg16[%c41, %c0_129, %c0_130], %271 {strides = array<i32>} : memref<64x32x8xf32, #tpu.memory_space<vmem>>, vector<1x32x8xf32>,
    %272 = vector.extract_strided_slice %79 {offsets = [0, 336], sizes = [32, 8], strides = [1, 1]} : vector<32x512xf32> to vector<32x8xf32>
    %c42 = arith.constant 42 : index
    %c0_131 = arith.constant 0 : index
    %c0_132 = arith.constant 0 : index
    %273 = vector.load %arg16[%c42, %c0_131, %c0_132] : memref<64x32x8xf32, #tpu.memory_space<vmem>>, vector<1x32x8xf32>
    %274 = vector.shape_cast %273 : vector<1x32x8xf32> to vector<32x8xf32>
    %275 = vector.shape_cast %272 : vector<32x8xf32> to vector<1x32x8xf32>
    tpu.vector_store %arg16[%c42, %c0_131, %c0_132], %275 {strides = array<i32>} : memref<64x32x8xf32, #tpu.memory_space<vmem>>, vector<1x32x8xf32>,
    %276 = vector.extract_strided_slice %79 {offsets = [0, 344], sizes = [32, 8], strides = [1, 1]} : vector<32x512xf32> to vector<32x8xf32>
    %c43 = arith.constant 43 : index
    %c0_133 = arith.constant 0 : index
    %c0_134 = arith.constant 0 : index
    %277 = vector.load %arg16[%c43, %c0_133, %c0_134] : memref<64x32x8xf32, #tpu.memory_space<vmem>>, vector<1x32x8xf32>
    %278 = vector.shape_cast %277 : vector<1x32x8xf32> to vector<32x8xf32>
    %279 = vector.shape_cast %276 : vector<32x8xf32> to vector<1x32x8xf32>
    tpu.vector_store %arg16[%c43, %c0_133, %c0_134], %279 {strides = array<i32>} : memref<64x32x8xf32, #tpu.memory_space<vmem>>, vector<1x32x8xf32>,
    %280 = vector.extract_strided_slice %79 {offsets = [0, 352], sizes = [32, 8], strides = [1, 1]} : vector<32x512xf32> to vector<32x8xf32>
    %c44 = arith.constant 44 : index
    %c0_135 = arith.constant 0 : index
    %c0_136 = arith.constant 0 : index
    %281 = vector.load %arg16[%c44, %c0_135, %c0_136] : memref<64x32x8xf32, #tpu.memory_space<vmem>>, vector<1x32x8xf32>
    %282 = vector.shape_cast %281 : vector<1x32x8xf32> to vector<32x8xf32>
    %283 = vector.shape_cast %280 : vector<32x8xf32> to vector<1x32x8xf32>
    tpu.vector_store %arg16[%c44, %c0_135, %c0_136], %283 {strides = array<i32>} : memref<64x32x8xf32, #tpu.memory_space<vmem>>, vector<1x32x8xf32>,
    %284 = vector.extract_strided_slice %79 {offsets = [0, 360], sizes = [32, 8], strides = [1, 1]} : vector<32x512xf32> to vector<32x8xf32>
    %c45 = arith.constant 45 : index
    %c0_137 = arith.constant 0 : index
    %c0_138 = arith.constant 0 : index
    %285 = vector.load %arg16[%c45, %c0_137, %c0_138] : memref<64x32x8xf32, #tpu.memory_space<vmem>>, vector<1x32x8xf32>
    %286 = vector.shape_cast %285 : vector<1x32x8xf32> to vector<32x8xf32>
    %287 = vector.shape_cast %284 : vector<32x8xf32> to vector<1x32x8xf32>
    tpu.vector_store %arg16[%c45, %c0_137, %c0_138], %287 {strides = array<i32>} : memref<64x32x8xf32, #tpu.memory_space<vmem>>, vector<1x32x8xf32>,
    %288 = vector.extract_strided_slice %79 {offsets = [0, 368], sizes = [32, 8], strides = [1, 1]} : vector<32x512xf32> to vector<32x8xf32>
    %c46 = arith.constant 46 : index
    %c0_139 = arith.constant 0 : index
    %c0_140 = arith.constant 0 : index
    %289 = vector.load %arg16[%c46, %c0_139, %c0_140] : memref<64x32x8xf32, #tpu.memory_space<vmem>>, vector<1x32x8xf32>
    %290 = vector.shape_cast %289 : vector<1x32x8xf32> to vector<32x8xf32>
    %291 = vector.shape_cast %288 : vector<32x8xf32> to vector<1x32x8xf32>
    tpu.vector_store %arg16[%c46, %c0_139, %c0_140], %291 {strides = array<i32>} : memref<64x32x8xf32, #tpu.memory_space<vmem>>, vector<1x32x8xf32>,
    %292 = vector.extract_strided_slice %79 {offsets = [0, 376], sizes = [32, 8], strides = [1, 1]} : vector<32x512xf32> to vector<32x8xf32>
    %c47 = arith.constant 47 : index
    %c0_141 = arith.constant 0 : index
    %c0_142 = arith.constant 0 : index
    %293 = vector.load %arg16[%c47, %c0_141, %c0_142] : memref<64x32x8xf32, #tpu.memory_space<vmem>>, vector<1x32x8xf32>
    %294 = vector.shape_cast %293 : vector<1x32x8xf32> to vector<32x8xf32>
    %295 = vector.shape_cast %292 : vector<32x8xf32> to vector<1x32x8xf32>
    tpu.vector_store %arg16[%c47, %c0_141, %c0_142], %295 {strides = array<i32>} : memref<64x32x8xf32, #tpu.memory_space<vmem>>, vector<1x32x8xf32>,
    %296 = vector.extract_strided_slice %79 {offsets = [0, 384], sizes = [32, 8], strides = [1, 1]} : vector<32x512xf32> to vector<32x8xf32>
    %c48 = arith.constant 48 : index
    %c0_143 = arith.constant 0 : index
    %c0_144 = arith.constant 0 : index
    %297 = vector.load %arg16[%c48, %c0_143, %c0_144] : memref<64x32x8xf32, #tpu.memory_space<vmem>>, vector<1x32x8xf32>
    %298 = vector.shape_cast %297 : vector<1x32x8xf32> to vector<32x8xf32>
    %299 = vector.shape_cast %296 : vector<32x8xf32> to vector<1x32x8xf32>
    tpu.vector_store %arg16[%c48, %c0_143, %c0_144], %299 {strides = array<i32>} : memref<64x32x8xf32, #tpu.memory_space<vmem>>, vector<1x32x8xf32>,
    %300 = vector.extract_strided_slice %79 {offsets = [0, 392], sizes = [32, 8], strides = [1, 1]} : vector<32x512xf32> to vector<32x8xf32>
    %c49 = arith.constant 49 : index
    %c0_145 = arith.constant 0 : index
    %c0_146 = arith.constant 0 : index
    %301 = vector.load %arg16[%c49, %c0_145, %c0_146] : memref<64x32x8xf32, #tpu.memory_space<vmem>>, vector<1x32x8xf32>
    %302 = vector.shape_cast %301 : vector<1x32x8xf32> to vector<32x8xf32>
    %303 = vector.shape_cast %300 : vector<32x8xf32> to vector<1x32x8xf32>
    tpu.vector_store %arg16[%c49, %c0_145, %c0_146], %303 {strides = array<i32>} : memref<64x32x8xf32, #tpu.memory_space<vmem>>, vector<1x32x8xf32>,
    %304 = vector.extract_strided_slice %79 {offsets = [0, 400], sizes = [32, 8], strides = [1, 1]} : vector<32x512xf32> to vector<32x8xf32>
    %c50 = arith.constant 50 : index
    %c0_147 = arith.constant 0 : index
    %c0_148 = arith.constant 0 : index
    %305 = vector.load %arg16[%c50, %c0_147, %c0_148] : memref<64x32x8xf32, #tpu.memory_space<vmem>>, vector<1x32x8xf32>
    %306 = vector.shape_cast %305 : vector<1x32x8xf32> to vector<32x8xf32>
    %307 = vector.shape_cast %304 : vector<32x8xf32> to vector<1x32x8xf32>
    tpu.vector_store %arg16[%c50, %c0_147, %c0_148], %307 {strides = array<i32>} : memref<64x32x8xf32, #tpu.memory_space<vmem>>, vector<1x32x8xf32>,
    %308 = vector.extract_strided_slice %79 {offsets = [0, 408], sizes = [32, 8], strides = [1, 1]} : vector<32x512xf32> to vector<32x8xf32>
    %c51 = arith.constant 51 : index
    %c0_149 = arith.constant 0 : index
    %c0_150 = arith.constant 0 : index
    %309 = vector.load %arg16[%c51, %c0_149, %c0_150] : memref<64x32x8xf32, #tpu.memory_space<vmem>>, vector<1x32x8xf32>
    %310 = vector.shape_cast %309 : vector<1x32x8xf32> to vector<32x8xf32>
    %311 = vector.shape_cast %308 : vector<32x8xf32> to vector<1x32x8xf32>
    tpu.vector_store %arg16[%c51, %c0_149, %c0_150], %311 {strides = array<i32>} : memref<64x32x8xf32, #tpu.memory_space<vmem>>, vector<1x32x8xf32>,
    %312 = vector.extract_strided_slice %79 {offsets = [0, 416], sizes = [32, 8], strides = [1, 1]} : vector<32x512xf32> to vector<32x8xf32>
    %c52 = arith.constant 52 : index
    %c0_151 = arith.constant 0 : index
    %c0_152 = arith.constant 0 : index
    %313 = vector.load %arg16[%c52, %c0_151, %c0_152] : memref<64x32x8xf32, #tpu.memory_space<vmem>>, vector<1x32x8xf32>
    %314 = vector.shape_cast %313 : vector<1x32x8xf32> to vector<32x8xf32>
    %315 = vector.shape_cast %312 : vector<32x8xf32> to vector<1x32x8xf32>
    tpu.vector_store %arg16[%c52, %c0_151, %c0_152], %315 {strides = array<i32>} : memref<64x32x8xf32, #tpu.memory_space<vmem>>, vector<1x32x8xf32>,
    %316 = vector.extract_strided_slice %79 {offsets = [0, 424], sizes = [32, 8], strides = [1, 1]} : vector<32x512xf32> to vector<32x8xf32>
    %c53 = arith.constant 53 : index
    %c0_153 = arith.constant 0 : index
    %c0_154 = arith.constant 0 : index
    %317 = vector.load %arg16[%c53, %c0_153, %c0_154] : memref<64x32x8xf32, #tpu.memory_space<vmem>>, vector<1x32x8xf32>
    %318 = vector.shape_cast %317 : vector<1x32x8xf32> to vector<32x8xf32>
    %319 = vector.shape_cast %316 : vector<32x8xf32> to vector<1x32x8xf32>
    tpu.vector_store %arg16[%c53, %c0_153, %c0_154], %319 {strides = array<i32>} : memref<64x32x8xf32, #tpu.memory_space<vmem>>, vector<1x32x8xf32>,
    %320 = vector.extract_strided_slice %79 {offsets = [0, 432], sizes = [32, 8], strides = [1, 1]} : vector<32x512xf32> to vector<32x8xf32>
    %c54 = arith.constant 54 : index
    %c0_155 = arith.constant 0 : index
    %c0_156 = arith.constant 0 : index
    %321 = vector.load %arg16[%c54, %c0_155, %c0_156] : memref<64x32x8xf32, #tpu.memory_space<vmem>>, vector<1x32x8xf32>
    %322 = vector.shape_cast %321 : vector<1x32x8xf32> to vector<32x8xf32>
    %323 = vector.shape_cast %320 : vector<32x8xf32> to vector<1x32x8xf32>
    tpu.vector_store %arg16[%c54, %c0_155, %c0_156], %323 {strides = array<i32>} : memref<64x32x8xf32, #tpu.memory_space<vmem>>, vector<1x32x8xf32>,
    %324 = vector.extract_strided_slice %79 {offsets = [0, 440], sizes = [32, 8], strides = [1, 1]} : vector<32x512xf32> to vector<32x8xf32>
    %c55 = arith.constant 55 : index
    %c0_157 = arith.constant 0 : index
    %c0_158 = arith.constant 0 : index
    %325 = vector.load %arg16[%c55, %c0_157, %c0_158] : memref<64x32x8xf32, #tpu.memory_space<vmem>>, vector<1x32x8xf32>
    %326 = vector.shape_cast %325 : vector<1x32x8xf32> to vector<32x8xf32>
    %327 = vector.shape_cast %324 : vector<32x8xf32> to vector<1x32x8xf32>
    tpu.vector_store %arg16[%c55, %c0_157, %c0_158], %327 {strides = array<i32>} : memref<64x32x8xf32, #tpu.memory_space<vmem>>, vector<1x32x8xf32>,
    %328 = vector.extract_strided_slice %79 {offsets = [0, 448], sizes = [32, 8], strides = [1, 1]} : vector<32x512xf32> to vector<32x8xf32>
    %c56 = arith.constant 56 : index
    %c0_159 = arith.constant 0 : index
    %c0_160 = arith.constant 0 : index
    %329 = vector.load %arg16[%c56, %c0_159, %c0_160] : memref<64x32x8xf32, #tpu.memory_space<vmem>>, vector<1x32x8xf32>
    %330 = vector.shape_cast %329 : vector<1x32x8xf32> to vector<32x8xf32>
    %331 = vector.shape_cast %328 : vector<32x8xf32> to vector<1x32x8xf32>
    tpu.vector_store %arg16[%c56, %c0_159, %c0_160], %331 {strides = array<i32>} : memref<64x32x8xf32, #tpu.memory_space<vmem>>, vector<1x32x8xf32>,
    %332 = vector.extract_strided_slice %79 {offsets = [0, 456], sizes = [32, 8], strides = [1, 1]} : vector<32x512xf32> to vector<32x8xf32>
    %c57 = arith.constant 57 : index
    %c0_161 = arith.constant 0 : index
    %c0_162 = arith.constant 0 : index
    %333 = vector.load %arg16[%c57, %c0_161, %c0_162] : memref<64x32x8xf32, #tpu.memory_space<vmem>>, vector<1x32x8xf32>
    %334 = vector.shape_cast %333 : vector<1x32x8xf32> to vector<32x8xf32>
    %335 = vector.shape_cast %332 : vector<32x8xf32> to vector<1x32x8xf32>
    tpu.vector_store %arg16[%c57, %c0_161, %c0_162], %335 {strides = array<i32>} : memref<64x32x8xf32, #tpu.memory_space<vmem>>, vector<1x32x8xf32>,
    %336 = vector.extract_strided_slice %79 {offsets = [0, 464], sizes = [32, 8], strides = [1, 1]} : vector<32x512xf32> to vector<32x8xf32>
    %c58 = arith.constant 58 : index
    %c0_163 = arith.constant 0 : index
    %c0_164 = arith.constant 0 : index
    %337 = vector.load %arg16[%c58, %c0_163, %c0_164] : memref<64x32x8xf32, #tpu.memory_space<vmem>>, vector<1x32x8xf32>
    %338 = vector.shape_cast %337 : vector<1x32x8xf32> to vector<32x8xf32>
    %339 = vector.shape_cast %336 : vector<32x8xf32> to vector<1x32x8xf32>
    tpu.vector_store %arg16[%c58, %c0_163, %c0_164], %339 {strides = array<i32>} : memref<64x32x8xf32, #tpu.memory_space<vmem>>, vector<1x32x8xf32>,
    %340 = vector.extract_strided_slice %79 {offsets = [0, 472], sizes = [32, 8], strides = [1, 1]} : vector<32x512xf32> to vector<32x8xf32>
    %c59 = arith.constant 59 : index
    %c0_165 = arith.constant 0 : index
    %c0_166 = arith.constant 0 : index
    %341 = vector.load %arg16[%c59, %c0_165, %c0_166] : memref<64x32x8xf32, #tpu.memory_space<vmem>>, vector<1x32x8xf32>
    %342 = vector.shape_cast %341 : vector<1x32x8xf32> to vector<32x8xf32>
    %343 = vector.shape_cast %340 : vector<32x8xf32> to vector<1x32x8xf32>
    tpu.vector_store %arg16[%c59, %c0_165, %c0_166], %343 {strides = array<i32>} : memref<64x32x8xf32, #tpu.memory_space<vmem>>, vector<1x32x8xf32>,
    %344 = vector.extract_strided_slice %79 {offsets = [0, 480], sizes = [32, 8], strides = [1, 1]} : vector<32x512xf32> to vector<32x8xf32>
    %c60 = arith.constant 60 : index
    %c0_167 = arith.constant 0 : index
    %c0_168 = arith.constant 0 : index
    %345 = vector.load %arg16[%c60, %c0_167, %c0_168] : memref<64x32x8xf32, #tpu.memory_space<vmem>>, vector<1x32x8xf32>
    %346 = vector.shape_cast %345 : vector<1x32x8xf32> to vector<32x8xf32>
    %347 = vector.shape_cast %344 : vector<32x8xf32> to vector<1x32x8xf32>
    tpu.vector_store %arg16[%c60, %c0_167, %c0_168], %347 {strides = array<i32>} : memref<64x32x8xf32, #tpu.memory_space<vmem>>, vector<1x32x8xf32>,
    %348 = vector.extract_strided_slice %79 {offsets = [0, 488], sizes = [32, 8], strides = [1, 1]} : vector<32x512xf32> to vector<32x8xf32>
    %c61 = arith.constant 61 : index
    %c0_169 = arith.constant 0 : index
    %c0_170 = arith.constant 0 : index
    %349 = vector.load %arg16[%c61, %c0_169, %c0_170] : memref<64x32x8xf32, #tpu.memory_space<vmem>>, vector<1x32x8xf32>
    %350 = vector.shape_cast %349 : vector<1x32x8xf32> to vector<32x8xf32>
    %351 = vector.shape_cast %348 : vector<32x8xf32> to vector<1x32x8xf32>
    tpu.vector_store %arg16[%c61, %c0_169, %c0_170], %351 {strides = array<i32>} : memref<64x32x8xf32, #tpu.memory_space<vmem>>, vector<1x32x8xf32>,
    %352 = vector.extract_strided_slice %79 {offsets = [0, 496], sizes = [32, 8], strides = [1, 1]} : vector<32x512xf32> to vector<32x8xf32>
    %c62 = arith.constant 62 : index
    %c0_171 = arith.constant 0 : index
    %c0_172 = arith.constant 0 : index
    %353 = vector.load %arg16[%c62, %c0_171, %c0_172] : memref<64x32x8xf32, #tpu.memory_space<vmem>>, vector<1x32x8xf32>
    %354 = vector.shape_cast %353 : vector<1x32x8xf32> to vector<32x8xf32>
    %355 = vector.shape_cast %352 : vector<32x8xf32> to vector<1x32x8xf32>
    tpu.vector_store %arg16[%c62, %c0_171, %c0_172], %355 {strides = array<i32>} : memref<64x32x8xf32, #tpu.memory_space<vmem>>, vector<1x32x8xf32>,
    %356 = vector.extract_strided_slice %79 {offsets = [0, 504], sizes = [32, 8], strides = [1, 1]} : vector<32x512xf32> to vector<32x8xf32>
    %c63 = arith.constant 63 : index
    %c0_173 = arith.constant 0 : index
    %c0_174 = arith.constant 0 : index
    %357 = vector.load %arg16[%c63, %c0_173, %c0_174] : memref<64x32x8xf32, #tpu.memory_space<vmem>>, vector<1x32x8xf32>
    %358 = vector.shape_cast %357 : vector<1x32x8xf32> to vector<32x8xf32>
    %359 = vector.shape_cast %356 : vector<32x8xf32> to vector<1x32x8xf32>
    tpu.vector_store %arg16[%c63, %c0_173, %c0_174], %359 {strides = array<i32>} : memref<64x32x8xf32, #tpu.memory_space<vmem>>, vector<1x32x8xf32>,
    %c0_175 = arith.constant 0 : index
    %c0_176 = arith.constant 0 : index
    %360 = vector.load %arg9[%c0_175, %c0_176] : memref<16x56xf32, #tpu.memory_space<vmem>>, vector<16x56xf32>
    %361 = math.exp %360 : vector<16x56xf32>
    %cst_177 = arith.constant 0.000000e+00 : f32
    %362 = vector.broadcast %cst_177 : f32 to vector<16x56xf32>
    %363 = arith.subf %362, %361 : vector<16x56xf32>
    %cst_178 = arith.constant 0.000000e+00 : f32
    %364 = vector.broadcast %cst_178 : f32 to vector<16x56xf32>
    %c0_i32 = arith.constant 0 : i32
    %c64_i32 = arith.constant 64 : i32
    %365 = arith.addi %c0_i32, %c64_i32 : i32
    %c1_i32_179 = arith.constant 1 : i32
    %366 = scf.for %arg18 = %c0_i32 to %365 step %c1_i32_179 iter_args(%arg19 = %364) -> (vector<16x56xf32>)  : i32 {
      %c8_i32 = arith.constant 8 : i32
      %381 = arith.muli %arg18, %c8_i32 : i32
      %382 = tpu.assume_multiple %381, 8 : i32
      %383 = arith.index_cast %382 : i32 to index
      %c0_195 = arith.constant 0 : index
      %384 = vector.load %arg14[%383, %c0_195] : memref<512x56xf32, #tpu.memory_space<vmem>>, vector<8x56xf32>
      %385 = arith.index_cast %382 : i32 to index
      %c0_196 = arith.constant 0 : index
      %386 = vector.load %arg13[%385, %c0_196] : memref<512x56xf32, #tpu.memory_space<vmem>>, vector<8x56xf32>
      %387 = arith.mulf %384, %386 : vector<8x56xf32>
      %388 = arith.index_cast %arg18 : i32 to index
      %c0_197 = arith.constant 0 : index
      %c0_198 = arith.constant 0 : index
      %389 = vector.load %arg16[%388, %c0_197, %c0_198] : memref<64x32x8xf32, #tpu.memory_space<vmem>>, vector<1x32x8xf32>
      %390 = vector.shape_cast %389 : vector<1x32x8xf32> to vector<32x8xf32>
      %391 = vector.extract_strided_slice %390 {offsets = [0, 0], sizes = [16, 8], strides = [1, 1]} : vector<32x8xf32> to vector<16x8xf32>
      %392 = vector.extract_strided_slice %390 {offsets = [16, 0], sizes = [16, 8], strides = [1, 1]} : vector<32x8xf32> to vector<16x8xf32>
      %393 = vector.extract_strided_slice %384 {offsets = [0, 0], sizes = [1, 56], strides = [1, 1]} : vector<8x56xf32> to vector<1x56xf32>
      %394 = vector.broadcast %393 : vector<1x56xf32> to vector<16x56xf32>
      %395 = arith.mulf %394, %363 : vector<16x56xf32>
      %396 = math.exp %395 : vector<16x56xf32>
      %397 = vector.extract_strided_slice %384 {offsets = [1, 0], sizes = [1, 56], strides = [1, 1]} : vector<8x56xf32> to vector<1x56xf32>
      %398 = vector.broadcast %397 : vector<1x56xf32> to vector<16x56xf32>
      %399 = arith.mulf %398, %363 : vector<16x56xf32>
      %400 = math.exp %399 : vector<16x56xf32>
      %401 = vector.extract_strided_slice %384 {offsets = [2, 0], sizes = [1, 56], strides = [1, 1]} : vector<8x56xf32> to vector<1x56xf32>
      %402 = vector.broadcast %401 : vector<1x56xf32> to vector<16x56xf32>
      %403 = arith.mulf %402, %363 : vector<16x56xf32>
      %404 = math.exp %403 : vector<16x56xf32>
      %405 = vector.extract_strided_slice %384 {offsets = [3, 0], sizes = [1, 56], strides = [1, 1]} : vector<8x56xf32> to vector<1x56xf32>
      %406 = vector.broadcast %405 : vector<1x56xf32> to vector<16x56xf32>
      %407 = arith.mulf %406, %363 : vector<16x56xf32>
      %408 = math.exp %407 : vector<16x56xf32>
      %409 = vector.extract_strided_slice %384 {offsets = [4, 0], sizes = [1, 56], strides = [1, 1]} : vector<8x56xf32> to vector<1x56xf32>
      %410 = vector.broadcast %409 : vector<1x56xf32> to vector<16x56xf32>
      %411 = arith.mulf %410, %363 : vector<16x56xf32>
      %412 = math.exp %411 : vector<16x56xf32>
      %413 = vector.extract_strided_slice %384 {offsets = [5, 0], sizes = [1, 56], strides = [1, 1]} : vector<8x56xf32> to vector<1x56xf32>
      %414 = vector.broadcast %413 : vector<1x56xf32> to vector<16x56xf32>
      %415 = arith.mulf %414, %363 : vector<16x56xf32>
      %416 = math.exp %415 : vector<16x56xf32>
      %417 = vector.extract_strided_slice %384 {offsets = [6, 0], sizes = [1, 56], strides = [1, 1]} : vector<8x56xf32> to vector<1x56xf32>
      %418 = vector.broadcast %417 : vector<1x56xf32> to vector<16x56xf32>
      %419 = arith.mulf %418, %363 : vector<16x56xf32>
      %420 = math.exp %419 : vector<16x56xf32>
      %421 = vector.extract_strided_slice %384 {offsets = [7, 0], sizes = [1, 56], strides = [1, 1]} : vector<8x56xf32> to vector<1x56xf32>
      %422 = vector.broadcast %421 : vector<1x56xf32> to vector<16x56xf32>
      %423 = arith.mulf %422, %363 : vector<16x56xf32>
      %424 = math.exp %423 : vector<16x56xf32>
      %425 = vector.extract_strided_slice %391 {offsets = [0, 0], sizes = [16, 1], strides = [1, 1]} : vector<16x8xf32> to vector<16x1xf32>
      %426 = vector.extract_strided_slice %387 {offsets = [0, 0], sizes = [1, 56], strides = [1, 1]} : vector<8x56xf32> to vector<1x56xf32>
      %427 = vector.broadcast %425 : vector<16x1xf32> to vector<16x56xf32>
      %428 = vector.broadcast %426 : vector<1x56xf32> to vector<16x56xf32>
      %429 = arith.mulf %427, %428 : vector<16x56xf32>
      %430 = arith.mulf %396, %arg19 : vector<16x56xf32>
      %431 = arith.addf %430, %429 : vector<16x56xf32>
      %432 = vector.extract_strided_slice %392 {offsets = [0, 0], sizes = [16, 1], strides = [1, 1]} : vector<16x8xf32> to vector<16x1xf32>
      %433 = vector.broadcast %432 : vector<16x1xf32> to vector<16x56xf32>
      %434 = arith.mulf %433, %431 : vector<16x56xf32>
      %cst_199 = arith.constant dense<0.000000e+00> : vector<56xf32>
      %435 = vector.multi_reduction <add>, %434, %cst_199 [0] : vector<16x56xf32> to vector<56xf32>
      %436 = vector.shape_cast %435 : vector<56xf32> to vector<1x56xf32>
      %437 = vector.extract_strided_slice %391 {offsets = [0, 1], sizes = [16, 1], strides = [1, 1]} : vector<16x8xf32> to vector<16x1xf32>
      %438 = vector.extract_strided_slice %387 {offsets = [1, 0], sizes = [1, 56], strides = [1, 1]} : vector<8x56xf32> to vector<1x56xf32>
      %439 = vector.broadcast %437 : vector<16x1xf32> to vector<16x56xf32>
      %440 = vector.broadcast %438 : vector<1x56xf32> to vector<16x56xf32>
      %441 = arith.mulf %439, %440 : vector<16x56xf32>
      %442 = arith.mulf %400, %431 : vector<16x56xf32>
      %443 = arith.addf %442, %441 : vector<16x56xf32>
      %444 = vector.extract_strided_slice %392 {offsets = [0, 1], sizes = [16, 1], strides = [1, 1]} : vector<16x8xf32> to vector<16x1xf32>
      %445 = vector.broadcast %444 : vector<16x1xf32> to vector<16x56xf32>
      %446 = arith.mulf %445, %443 : vector<16x56xf32>
      %cst_200 = arith.constant dense<0.000000e+00> : vector<56xf32>
      %447 = vector.multi_reduction <add>, %446, %cst_200 [0] : vector<16x56xf32> to vector<56xf32>
      %448 = vector.shape_cast %447 : vector<56xf32> to vector<1x56xf32>
      %449 = vector.extract_strided_slice %391 {offsets = [0, 2], sizes = [16, 1], strides = [1, 1]} : vector<16x8xf32> to vector<16x1xf32>
      %450 = vector.extract_strided_slice %387 {offsets = [2, 0], sizes = [1, 56], strides = [1, 1]} : vector<8x56xf32> to vector<1x56xf32>
      %451 = vector.broadcast %449 : vector<16x1xf32> to vector<16x56xf32>
      %452 = vector.broadcast %450 : vector<1x56xf32> to vector<16x56xf32>
      %453 = arith.mulf %451, %452 : vector<16x56xf32>
      %454 = arith.mulf %404, %443 : vector<16x56xf32>
      %455 = arith.addf %454, %453 : vector<16x56xf32>
      %456 = vector.extract_strided_slice %392 {offsets = [0, 2], sizes = [16, 1], strides = [1, 1]} : vector<16x8xf32> to vector<16x1xf32>
      %457 = vector.broadcast %456 : vector<16x1xf32> to vector<16x56xf32>
      %458 = arith.mulf %457, %455 : vector<16x56xf32>
      %cst_201 = arith.constant dense<0.000000e+00> : vector<56xf32>
      %459 = vector.multi_reduction <add>, %458, %cst_201 [0] : vector<16x56xf32> to vector<56xf32>
      %460 = vector.shape_cast %459 : vector<56xf32> to vector<1x56xf32>
      %461 = vector.extract_strided_slice %391 {offsets = [0, 3], sizes = [16, 1], strides = [1, 1]} : vector<16x8xf32> to vector<16x1xf32>
      %462 = vector.extract_strided_slice %387 {offsets = [3, 0], sizes = [1, 56], strides = [1, 1]} : vector<8x56xf32> to vector<1x56xf32>
      %463 = vector.broadcast %461 : vector<16x1xf32> to vector<16x56xf32>
      %464 = vector.broadcast %462 : vector<1x56xf32> to vector<16x56xf32>
      %465 = arith.mulf %463, %464 : vector<16x56xf32>
      %466 = arith.mulf %408, %455 : vector<16x56xf32>
      %467 = arith.addf %466, %465 : vector<16x56xf32>
      %468 = vector.extract_strided_slice %392 {offsets = [0, 3], sizes = [16, 1], strides = [1, 1]} : vector<16x8xf32> to vector<16x1xf32>
      %469 = vector.broadcast %468 : vector<16x1xf32> to vector<16x56xf32>
      %470 = arith.mulf %469, %467 : vector<16x56xf32>
      %cst_202 = arith.constant dense<0.000000e+00> : vector<56xf32>
      %471 = vector.multi_reduction <add>, %470, %cst_202 [0] : vector<16x56xf32> to vector<56xf32>
      %472 = vector.shape_cast %471 : vector<56xf32> to vector<1x56xf32>
      %473 = vector.extract_strided_slice %391 {offsets = [0, 4], sizes = [16, 1], strides = [1, 1]} : vector<16x8xf32> to vector<16x1xf32>
      %474 = vector.extract_strided_slice %387 {offsets = [4, 0], sizes = [1, 56], strides = [1, 1]} : vector<8x56xf32> to vector<1x56xf32>
      %475 = vector.broadcast %473 : vector<16x1xf32> to vector<16x56xf32>
      %476 = vector.broadcast %474 : vector<1x56xf32> to vector<16x56xf32>
      %477 = arith.mulf %475, %476 : vector<16x56xf32>
      %478 = arith.mulf %412, %467 : vector<16x56xf32>
      %479 = arith.addf %478, %477 : vector<16x56xf32>
      %480 = vector.extract_strided_slice %392 {offsets = [0, 4], sizes = [16, 1], strides = [1, 1]} : vector<16x8xf32> to vector<16x1xf32>
      %481 = vector.broadcast %480 : vector<16x1xf32> to vector<16x56xf32>
      %482 = arith.mulf %481, %479 : vector<16x56xf32>
      %cst_203 = arith.constant dense<0.000000e+00> : vector<56xf32>
      %483 = vector.multi_reduction <add>, %482, %cst_203 [0] : vector<16x56xf32> to vector<56xf32>
      %484 = vector.shape_cast %483 : vector<56xf32> to vector<1x56xf32>
      %485 = vector.extract_strided_slice %391 {offsets = [0, 5], sizes = [16, 1], strides = [1, 1]} : vector<16x8xf32> to vector<16x1xf32>
      %486 = vector.extract_strided_slice %387 {offsets = [5, 0], sizes = [1, 56], strides = [1, 1]} : vector<8x56xf32> to vector<1x56xf32>
      %487 = vector.broadcast %485 : vector<16x1xf32> to vector<16x56xf32>
      %488 = vector.broadcast %486 : vector<1x56xf32> to vector<16x56xf32>
      %489 = arith.mulf %487, %488 : vector<16x56xf32>
      %490 = arith.mulf %416, %479 : vector<16x56xf32>
      %491 = arith.addf %490, %489 : vector<16x56xf32>
      %492 = vector.extract_strided_slice %392 {offsets = [0, 5], sizes = [16, 1], strides = [1, 1]} : vector<16x8xf32> to vector<16x1xf32>
      %493 = vector.broadcast %492 : vector<16x1xf32> to vector<16x56xf32>
      %494 = arith.mulf %493, %491 : vector<16x56xf32>
      %cst_204 = arith.constant dense<0.000000e+00> : vector<56xf32>
      %495 = vector.multi_reduction <add>, %494, %cst_204 [0] : vector<16x56xf32> to vector<56xf32>
      %496 = vector.shape_cast %495 : vector<56xf32> to vector<1x56xf32>
      %497 = vector.extract_strided_slice %391 {offsets = [0, 6], sizes = [16, 1], strides = [1, 1]} : vector<16x8xf32> to vector<16x1xf32>
      %498 = vector.extract_strided_slice %387 {offsets = [6, 0], sizes = [1, 56], strides = [1, 1]} : vector<8x56xf32> to vector<1x56xf32>
      %499 = vector.broadcast %497 : vector<16x1xf32> to vector<16x56xf32>
      %500 = vector.broadcast %498 : vector<1x56xf32> to vector<16x56xf32>
      %501 = arith.mulf %499, %500 : vector<16x56xf32>
      %502 = arith.mulf %420, %491 : vector<16x56xf32>
      %503 = arith.addf %502, %501 : vector<16x56xf32>
      %504 = vector.extract_strided_slice %392 {offsets = [0, 6], sizes = [16, 1], strides = [1, 1]} : vector<16x8xf32> to vector<16x1xf32>
      %505 = vector.broadcast %504 : vector<16x1xf32> to vector<16x56xf32>
      %506 = arith.mulf %505, %503 : vector<16x56xf32>
      %cst_205 = arith.constant dense<0.000000e+00> : vector<56xf32>
      %507 = vector.multi_reduction <add>, %506, %cst_205 [0] : vector<16x56xf32> to vector<56xf32>
      %508 = vector.shape_cast %507 : vector<56xf32> to vector<1x56xf32>
      %509 = vector.extract_strided_slice %391 {offsets = [0, 7], sizes = [16, 1], strides = [1, 1]} : vector<16x8xf32> to vector<16x1xf32>
      %510 = vector.extract_strided_slice %387 {offsets = [7, 0], sizes = [1, 56], strides = [1, 1]} : vector<8x56xf32> to vector<1x56xf32>
      %511 = vector.broadcast %509 : vector<16x1xf32> to vector<16x56xf32>
      %512 = vector.broadcast %510 : vector<1x56xf32> to vector<16x56xf32>
      %513 = arith.mulf %511, %512 : vector<16x56xf32>
      %514 = arith.mulf %424, %503 : vector<16x56xf32>
      %515 = arith.addf %514, %513 : vector<16x56xf32>
      %516 = vector.extract_strided_slice %392 {offsets = [0, 7], sizes = [16, 1], strides = [1, 1]} : vector<16x8xf32> to vector<16x1xf32>
      %517 = vector.broadcast %516 : vector<16x1xf32> to vector<16x56xf32>
      %518 = arith.mulf %517, %515 : vector<16x56xf32>
      %cst_206 = arith.constant dense<0.000000e+00> : vector<56xf32>
      %519 = vector.multi_reduction <add>, %518, %cst_206 [0] : vector<16x56xf32> to vector<56xf32>
      %520 = vector.shape_cast %519 : vector<56xf32> to vector<1x56xf32>
      %521 = tpu.concatenate %436, %448, %460, %472, %484, %496, %508, %520 in 0 : vector<1x56xf32>, vector<1x56xf32>, vector<1x56xf32>, vector<1x56xf32>, vector<1x56xf32>, vector<1x56xf32>, vector<1x56xf32>, vector<1x56xf32> -> vector<8x56xf32>
      %522 = arith.index_cast %382 : i32 to index
      %c0_207 = arith.constant 0 : index
      %523 = vector.load %arg17[%522, %c0_207] : memref<512x56xf32, #tpu.memory_space<vmem>>, vector<8x56xf32>
      tpu.vector_store %arg17[%522, %c0_207], %521 {strides = array<i32>} : memref<512x56xf32, #tpu.memory_space<vmem>>, vector<8x56xf32>,
      scf.yield %515 : vector<16x56xf32>
    }
    %c64_i32_180 = arith.constant 64 : i32
    %c0_181 = arith.constant 0 : index
    %c0_182 = arith.constant 0 : index
    %367 = vector.load %arg17[%c0_181, %c0_182] : memref<512x56xf32, #tpu.memory_space<vmem>>, vector<512x56xf32>
    %c0_183 = arith.constant 0 : index
    %c0_184 = arith.constant 0 : index
    %368 = vector.load %arg10[%c0_183, %c0_184] : memref<1x56xf32, #tpu.memory_space<vmem>>, vector<1x56xf32>
    %c0_185 = arith.constant 0 : index
    %c0_186 = arith.constant 0 : index
    %369 = vector.load %arg13[%c0_185, %c0_186] : memref<512x56xf32, #tpu.memory_space<vmem>>, vector<512x56xf32>
    %370 = vector.broadcast %368 : vector<1x56xf32> to vector<512x56xf32>
    %371 = arith.mulf %370, %369 : vector<512x56xf32>
    %372 = arith.addf %367, %371 : vector<512x56xf32>
    %c0_187 = arith.constant 0 : index
    %c0_188 = arith.constant 0 : index
    %373 = vector.load %arg15[%c0_187, %c0_188] : memref<512x56xf32, #tpu.memory_space<vmem>>, vector<512x56xf32>
    %374 = arith.mulf %372, %373 : vector<512x56xf32>
    %375 = arith.truncf %374 : vector<512x56xf32> to vector<512x56xbf16>
    %c0_189 = arith.constant 0 : index
    %c0_190 = arith.constant 0 : index
    %376 = vector.load %arg11[%c0_189, %c0_190] : memref<28x56xbf16, #tpu.memory_space<vmem>>, vector<28x56xbf16>
    %cst_191 = arith.constant dense<0.000000e+00> : vector<28x512xf32>
    %377 = tpu.matmul %376, %375, %cst_191 {dimension_numbers = #tpu.dot_dimension_numbers<[1], [1], [0], [0], [0, 0, 1, 0], [], []>} : vector<28x56xbf16>, vector<512x56xbf16>, vector<28x512xf32> -> vector<28x512xf32>
    %c0_192 = arith.constant 0 : index
    %c0_193 = arith.constant 0 : index
    %c0_194 = arith.constant 0 : index
    %378 = vector.load %arg12[%c0_192, %c0_193, %c0_194] : memref<1x28x512xf32, #tpu.memory_space<vmem>>, vector<1x28x512xf32>
    %379 = vector.shape_cast %378 : vector<1x28x512xf32> to vector<28x512xf32>
    %380 = vector.shape_cast %377 : vector<28x512xf32> to vector<1x28x512xf32>
    tpu.vector_store %arg12[%c0_192, %c0_193, %c0_194], %380 {strides = array<i32>} : memref<1x28x512xf32, #tpu.memory_space<vmem>>, vector<1x28x512xf32>,
    return
  }
  func.func @transform_0(%arg0: i32) -> (i32, i32, i32) {
    %c0_i32 = arith.constant 0 : i32
    %c0_i32_0 = arith.constant 0 : i32
    %c0_i32_1 = arith.constant 0 : i32
    return %arg0, %c0_i32, %c0_i32_0 : i32, i32, i32
  }
  func.func @transform_1(%arg0: i32) -> (i32, i32) {
    %c0_i32 = arith.constant 0 : i32
    %c0_i32_0 = arith.constant 0 : i32
    %c0_i32_1 = arith.constant 0 : i32
    return %c0_i32, %c0_i32_0 : i32, i32
  }
  func.func @transform_2(%arg0: i32) -> (i32, i32) {
    %c0_i32 = arith.constant 0 : i32
    %c0_i32_0 = arith.constant 0 : i32
    %c0_i32_1 = arith.constant 0 : i32
    return %c0_i32, %c0_i32_0 : i32, i32
  }
  func.func @transform_3(%arg0: i32) -> (i32, i32) {
    %c0_i32 = arith.constant 0 : i32
    %c0_i32_0 = arith.constant 0 : i32
    %c0_i32_1 = arith.constant 0 : i32
    return %c0_i32, %c0_i32_0 : i32, i32
  }
  func.func @transform_4(%arg0: i32) -> (i32, i32) {
    %c0_i32 = arith.constant 0 : i32
    %c0_i32_0 = arith.constant 0 : i32
    %c0_i32_1 = arith.constant 0 : i32
    return %c0_i32, %c0_i32_0 : i32, i32
  }
  func.func @transform_5(%arg0: i32) -> (i32, i32) {
    %c0_i32 = arith.constant 0 : i32
    %c0_i32_0 = arith.constant 0 : i32
    %c0_i32_1 = arith.constant 0 : i32
    return %c0_i32, %c0_i32_0 : i32, i32
  }
  func.func @transform_6(%arg0: i32) -> (i32, i32) {
    %c0_i32 = arith.constant 0 : i32
    %c0_i32_0 = arith.constant 0 : i32
    %c0_i32_1 = arith.constant 0 : i32
    return %c0_i32, %c0_i32_0 : i32, i32
  }
  func.func @transform_7(%arg0: i32) -> (i32, i32) {
    %c0_i32 = arith.constant 0 : i32
    %c0_i32_0 = arith.constant 0 : i32
    %c0_i32_1 = arith.constant 0 : i32
    return %c0_i32, %c0_i32_0 : i32, i32
  }
  func.func @transform_8(%arg0: i32) -> (i32, i32) {
    %c0_i32 = arith.constant 0 : i32
    %c0_i32_0 = arith.constant 0 : i32
    %c0_i32_1 = arith.constant 0 : i32
    return %c0_i32, %c0_i32_0 : i32, i32
  }
  func.func @transform_9(%arg0: i32) -> (i32, i32) {
    %c0_i32 = arith.constant 0 : i32
    %c0_i32_0 = arith.constant 0 : i32
    %c0_i32_1 = arith.constant 0 : i32
    return %c0_i32, %c0_i32_0 : i32, i32
  }
  func.func @transform_10(%arg0: i32) -> (i32, i32) {
    %c0_i32 = arith.constant 0 : i32
    %c0_i32_0 = arith.constant 0 : i32
    %c0_i32_1 = arith.constant 0 : i32
    return %c0_i32, %c0_i32_0 : i32, i32
  }
  func.func @transform_11(%arg0: i32) -> (i32, i32, i32) {
    %c0_i32 = arith.constant 0 : i32
    %c0_i32_0 = arith.constant 0 : i32
    %c0_i32_1 = arith.constant 0 : i32
    return %arg0, %c0_i32, %c0_i32_0 : i32, i32, i32
  }
}

</mosaic_0001>

<llo_original>
// kernel: tpu_custom_call.1
$region0: #{tpu_custom_call.1}
  #allocation0 [shape = 'u32[]', space=smem, size = 0x4, offset = 0x4, fixed_abs, tag = 'smem constant byte address 0x4 - core index']
  #allocation1 [shape = 'u32[144,128]{1,0:T(1,128)}', space=vmem, size = 0x12000, scoped, tag = 'internal scratch']
  #allocation2 [shape = 'f32[512,56]{1,0:T(8,128)}', space=vmem, size = 0x40000, scoped, tag = 'scratch operand']
  #allocation3 [shape = 'f32[512,56]{1,0:T(8,128)}', space=vmem, size = 0x40000, scoped, tag = 'scratch operand']
  #allocation4 [shape = 'f32[512,56]{1,0:T(8,128)}', space=vmem, size = 0x40000, scoped, tag = 'scratch operand']
  #allocation5 [shape = 'f32[64,32,8]{2,1,0:T(8,128)}', space=vmem, size = 0x100000, scoped, tag = 'scratch operand']
  #allocation6 [shape = 'f32[512,56]{1,0:T(8,128)}', space=vmem, size = 0x40000, scoped, tag = 'scratch operand']
  %s0 = inlined_call_operand.vmem [shape: f32[2,28,512], index: 0, kind: input, shape index: {}]
  %s1 = inlined_call_operand.vmem [shape: f32[28,1], index: 1, kind: input, shape index: {}]
  %s2 = inlined_call_operand.vmem [shape: f32[28,1], index: 2, kind: input, shape index: {}]
  %s3 = inlined_call_operand.vmem [shape: bf16[112,28], index: 3, kind: input, shape index: {}]
  %s4 = inlined_call_operand.vmem [shape: f32[56,4], index: 4, kind: input, shape index: {}]
  %s5 = inlined_call_operand.vmem [shape: f32[56,1], index: 5, kind: input, shape index: {}]
  %s6 = inlined_call_operand.vmem [shape: bf16[88,56], index: 6, kind: input, shape index: {}]
  %s7 = inlined_call_operand.vmem [shape: f32[56,1], index: 7, kind: input, shape index: {}]
  %s8 = inlined_call_operand.vmem [shape: f32[16,56], index: 8, kind: input, shape index: {}]
  %s9 = inlined_call_operand.vmem [shape: f32[1,56], index: 9, kind: input, shape index: {}]
  %s10 = inlined_call_operand.vmem [shape: bf16[28,56], index: 10, kind: input, shape index: {}]
  %s11 = inlined_call_operand.vmem [shape: f32[2,28,512], index: 11, kind: output, shape index: {}]
  %s12 = sld [smem:[#allocation0]]
  $region84: #{tpu_custom_call.1} parent=0
    _
  %s14 = ssub.s32 1, %s12
  %s15 = scalar_select 0, %s14, %s12
  loop: start=0, step=1, limit=4
  $region2: #{tpu_custom_call.1} parent=0 // loop_pre_header
    _
  $region3: #{tpu_custom_call.1} parent=0 // loop_header
    %s17 = sphi 0, %s21
    %p18 = scmp.ge.s32.totalorder %s17, 4
    %s27 = sphi 0, %s29
    %s30 = sphi 0, %s27
    %s31 = sphi 0, %s30
    %s47 = sphi 0, %s31
    %s51 = sphi 0, %s51
    %s53 = sphi 0, %s51
    %s54 = sphi 0, %s53
    %s68 = sphi 0, %s54
    %s72 = sphi 0, %s72
    %s74 = sphi 0, %s72
    %s75 = sphi 0, %s74
    %s89 = sphi 0, %s75
    %s93 = sphi 0, %s93
    %s95 = sphi 0, %s93
    %s96 = sphi 0, %s95
    %s110 = sphi 0, %s96
    %s114 = sphi 0, %s114
    %s116 = sphi 0, %s114
    %s117 = sphi 0, %s116
    %s131 = sphi 0, %s117
    %s135 = sphi 0, %s135
    %s137 = sphi 0, %s135
    %s138 = sphi 0, %s137
    %s152 = sphi 0, %s138
    %s156 = sphi 0, %s156
    %s158 = sphi 0, %s156
    %s159 = sphi 0, %s158
    %s173 = sphi 0, %s159
    %s177 = sphi 0, %s177
    %s179 = sphi 0, %s177
    %s180 = sphi 0, %s179
    %s194 = sphi 0, %s180
    %s198 = sphi 0, %s198
    %s200 = sphi 0, %s198
    %s201 = sphi 0, %s200
    %s215 = sphi 0, %s201
    %s219 = sphi 0, %s219
    %s221 = sphi 0, %s219
    %s222 = sphi 0, %s221
    %s236 = sphi 0, %s222
    %s240 = sphi 0, %s240
    %s242 = sphi 0, %s240
    %s243 = sphi 0, %s242
    %s257 = sphi 0, %s243
    %s263 = sphi 0, %s265
    %s266 = sphi 0, %s263
    %s267 = sphi 0, %s266
    %s283 = sphi 0, %s267
  $region4: #{tpu_custom_call.1} parent=0 // loop_header_branch
    %20 = sbr.rel (%p18) target = $region8
  $region5: #{tpu_custom_call.1} parent=0 // loop_body
    %s22 = ssub.s32 %s17, 1
    %s23 = ssub.s32 %s17, 2
    %s24 = sadd.s32 %s17, 1
    %s25 = ssub.s32 %s17, %s24
    %p26 = scmp.eq.s32.totalorder %s25, 0
    %s28 = sadd.s32 %s27, 1
    %s29 = scalar_select %p26, %s27, %s28
    %p32 = pneg %p26
    %p33 = scmp.eq.s32.totalorder %s17, 1
    %p34 = por %p32, %p33
    %p35 = scmp.ne.s32.totalorder %s27, %s30
    %p36 = scmp.eq.s32.totalorder %s17, 0
    %p37 = por %p35, %p36
    %p38 = scmp.ne.s32.totalorder %s27, %s30
    %p39 = scmp.eq.s32.totalorder %s22, 1
    %p40 = por %p38, %p39
    %p41 = scmp.ne.s32.totalorder %s30, %s31
    %p42 = scmp.eq.s32.totalorder %s22, 0
    %p43 = por %p41, %p42
    %p44 = scmp.ne.s32.totalorder %s30, %s31
    %p45 = scmp.eq.s32.totalorder %s23, 1
    %p46 = por %p44, %p45
    %p48 = scmp.ne.s32.totalorder %s31, %s47
    %p49 = scmp.eq.s32.totalorder %s23, 0
    %p50 = por %p48, %p49
    %s52 = sadd.s32 %s51, 1
    %p55 = scmp.eq.s32.totalorder %s17, 1
    %p56 = scmp.ne.s32.totalorder %s51, %s53
    %p57 = scmp.eq.s32.totalorder %s17, 0
    %p58 = por %p56, %p57
    %p59 = scmp.ne.s32.totalorder %s51, %s53
    %p60 = scmp.eq.s32.totalorder %s22, 1
    %p61 = por %p59, %p60
    %p62 = scmp.ne.s32.totalorder %s53, %s54
    %p63 = scmp.eq.s32.totalorder %s22, 0
    %p64 = por %p62, %p63
    %p65 = scmp.ne.s32.totalorder %s53, %s54
    %p66 = scmp.eq.s32.totalorder %s23, 1
    %p67 = por %p65, %p66
    %p69 = scmp.ne.s32.totalorder %s54, %s68
    %p70 = scmp.eq.s32.totalorder %s23, 0
    %p71 = por %p69, %p70
    %s73 = sadd.s32 %s72, 1
    %p76 = scmp.eq.s32.totalorder %s17, 1
    %p77 = scmp.ne.s32.totalorder %s72, %s74
    %p78 = scmp.eq.s32.totalorder %s17, 0
    %p79 = por %p77, %p78
    %p80 = scmp.ne.s32.totalorder %s72, %s74
    %p81 = scmp.eq.s32.totalorder %s22, 1
    %p82 = por %p80, %p81
    %p83 = scmp.ne.s32.totalorder %s74, %s75
    %p84 = scmp.eq.s32.totalorder %s22, 0
    %p85 = por %p83, %p84
    %p86 = scmp.ne.s32.totalorder %s74, %s75
    %p87 = scmp.eq.s32.totalorder %s23, 1
    %p88 = por %p86, %p87
    %p90 = scmp.ne.s32.totalorder %s75, %s89
    %p91 = scmp.eq.s32.totalorder %s23, 0
    %p92 = por %p90, %p91
    %s94 = sadd.s32 %s93, 1
    %p97 = scmp.eq.s32.totalorder %s17, 1
    %p98 = scmp.ne.s32.totalorder %s93, %s95
    %p99 = scmp.eq.s32.totalorder %s17, 0
    %p100 = por %p98, %p99
    %p101 = scmp.ne.s32.totalorder %s93, %s95
    %p102 = scmp.eq.s32.totalorder %s22, 1
    %p103 = por %p101, %p102
    %p104 = scmp.ne.s32.totalorder %s95, %s96
    %p105 = scmp.eq.s32.totalorder %s22, 0
    %p106 = por %p104, %p105
    %p107 = scmp.ne.s32.totalorder %s95, %s96
    %p108 = scmp.eq.s32.totalorder %s23, 1
    %p109 = por %p107, %p108
    %p111 = scmp.ne.s32.totalorder %s96, %s110
    %p112 = scmp.eq.s32.totalorder %s23, 0
    %p113 = por %p111, %p112
    %s115 = sadd.s32 %s114, 1
    %p118 = scmp.eq.s32.totalorder %s17, 1
    %p119 = scmp.ne.s32.totalorder %s114, %s116
    %p120 = scmp.eq.s32.totalorder %s17, 0
    %p121 = por %p119, %p120
    %p122 = scmp.ne.s32.totalorder %s114, %s116
    %p123 = scmp.eq.s32.totalorder %s22, 1
    %p124 = por %p122, %p123
    %p125 = scmp.ne.s32.totalorder %s116, %s117
    %p126 = scmp.eq.s32.totalorder %s22, 0
    %p127 = por %p125, %p126
    %p128 = scmp.ne.s32.totalorder %s116, %s117
    %p129 = scmp.eq.s32.totalorder %s23, 1
    %p130 = por %p128, %p129
    %p132 = scmp.ne.s32.totalorder %s117, %s131
    %p133 = scmp.eq.s32.totalorder %s23, 0
    %p134 = por %p132, %p133
    %s136 = sadd.s32 %s135, 1
    %p139 = scmp.eq.s32.totalorder %s17, 1
    %p140 = scmp.ne.s32.totalorder %s135, %s137
    %p141 = scmp.eq.s32.totalorder %s17, 0
    %p142 = por %p140, %p141
    %p143 = scmp.ne.s32.totalorder %s135, %s137
    %p144 = scmp.eq.s32.totalorder %s22, 1
    %p145 = por %p143, %p144
    %p146 = scmp.ne.s32.totalorder %s137, %s138
    %p147 = scmp.eq.s32.totalorder %s22, 0
    %p148 = por %p146, %p147
    %p149 = scmp.ne.s32.totalorder %s137, %s138
    %p150 = scmp.eq.s32.totalorder %s23, 1
    %p151 = por %p149, %p150
    %p153 = scmp.ne.s32.totalorder %s138, %s152
    %p154 = scmp.eq.s32.totalorder %s23, 0
    %p155 = por %p153, %p154
    %s157 = sadd.s32 %s156, 1
    %p160 = scmp.eq.s32.totalorder %s17, 1
    %p161 = scmp.ne.s32.totalorder %s156, %s158
    %p162 = scmp.eq.s32.totalorder %s17, 0
    %p163 = por %p161, %p162
    %p164 = scmp.ne.s32.totalorder %s156, %s158
    %p165 = scmp.eq.s32.totalorder %s22, 1
    %p166 = por %p164, %p165
    %p167 = scmp.ne.s32.totalorder %s158, %s159
    %p168 = scmp.eq.s32.totalorder %s22, 0
    %p169 = por %p167, %p168
    %p170 = scmp.ne.s32.totalorder %s158, %s159
    %p171 = scmp.eq.s32.totalorder %s23, 1
    %p172 = por %p170, %p171
    %p174 = scmp.ne.s32.totalorder %s159, %s173
    %p175 = scmp.eq.s32.totalorder %s23, 0
    %p176 = por %p174, %p175
    %s178 = sadd.s32 %s177, 1
    %p181 = scmp.eq.s32.totalorder %s17, 1
    %p182 = scmp.ne.s32.totalorder %s177, %s179
    %p183 = scmp.eq.s32.totalorder %s17, 0
    %p184 = por %p182, %p183
    %p185 = scmp.ne.s32.totalorder %s177, %s179
    %p186 = scmp.eq.s32.totalorder %s22, 1
    %p187 = por %p185, %p186
    %p188 = scmp.ne.s32.totalorder %s179, %s180
    %p189 = scmp.eq.s32.totalorder %s22, 0
    %p190 = por %p188, %p189
    %p191 = scmp.ne.s32.totalorder %s179, %s180
    %p192 = scmp.eq.s32.totalorder %s23, 1
    %p193 = por %p191, %p192
    %p195 = scmp.ne.s32.totalorder %s180, %s194
    %p196 = scmp.eq.s32.totalorder %s23, 0
    %p197 = por %p195, %p196
    %s199 = sadd.s32 %s198, 1
    %p202 = scmp.eq.s32.totalorder %s17, 1
    %p203 = scmp.ne.s32.totalorder %s198, %s200
    %p204 = scmp.eq.s32.totalorder %s17, 0
    %p205 = por %p203, %p204
    %p206 = scmp.ne.s32.totalorder %s198, %s200
    %p207 = scmp.eq.s32.totalorder %s22, 1
    %p208 = por %p206, %p207
    %p209 = scmp.ne.s32.totalorder %s200, %s201
    %p210 = scmp.eq.s32.totalorder %s22, 0
    %p211 = por %p209, %p210
    %p212 = scmp.ne.s32.totalorder %s200, %s201
    %p213 = scmp.eq.s32.totalorder %s23, 1
    %p214 = por %p212, %p213
    %p216 = scmp.ne.s32.totalorder %s201, %s215
    %p217 = scmp.eq.s32.totalorder %s23, 0
    %p218 = por %p216, %p217
    %s220 = sadd.s32 %s219, 1
    %p223 = scmp.eq.s32.totalorder %s17, 1
    %p224 = scmp.ne.s32.totalorder %s219, %s221
    %p225 = scmp.eq.s32.totalorder %s17, 0
    %p226 = por %p224, %p225
    %p227 = scmp.ne.s32.totalorder %s219, %s221
    %p228 = scmp.eq.s32.totalorder %s22, 1
    %p229 = por %p227, %p228
    %p230 = scmp.ne.s32.totalorder %s221, %s222
    %p231 = scmp.eq.s32.totalorder %s22, 0
    %p232 = por %p230, %p231
    %p233 = scmp.ne.s32.totalorder %s221, %s222
    %p234 = scmp.eq.s32.totalorder %s23, 1
    %p235 = por %p233, %p234
    %p237 = scmp.ne.s32.totalorder %s222, %s236
    %p238 = scmp.eq.s32.totalorder %s23, 0
    %p239 = por %p237, %p238
    %s241 = sadd.s32 %s240, 1
    %p244 = scmp.eq.s32.totalorder %s17, 1
    %p245 = scmp.ne.s32.totalorder %s240, %s242
    %p246 = scmp.eq.s32.totalorder %s17, 0
    %p247 = por %p245, %p246
    %p248 = scmp.ne.s32.totalorder %s240, %s242
    %p249 = scmp.eq.s32.totalorder %s22, 1
    %p250 = por %p248, %p249
    %p251 = scmp.ne.s32.totalorder %s242, %s243
    %p252 = scmp.eq.s32.totalorder %s22, 0
    %p253 = por %p251, %p252
    %p254 = scmp.ne.s32.totalorder %s242, %s243
    %p255 = scmp.eq.s32.totalorder %s23, 1
    %p256 = por %p254, %p255
    %p258 = scmp.ne.s32.totalorder %s243, %s257
    %p259 = scmp.eq.s32.totalorder %s23, 0
    %p260 = por %p258, %p259
    %s261 = ssub.s32 %s17, %s24
    %p262 = scmp.eq.s32.totalorder %s261, 0
    %s264 = sadd.s32 %s263, 1
    %s265 = scalar_select %p262, %s263, %s264
    %p268 = pneg %p262
    %p269 = scmp.eq.s32.totalorder %s17, 1
    %p270 = por %p268, %p269
    %p271 = scmp.ne.s32.totalorder %s263, %s266
    %p272 = scmp.eq.s32.totalorder %s17, 0
    %p273 = por %p271, %p272
    %p274 = scmp.ne.s32.totalorder %s263, %s266
    %p275 = scmp.eq.s32.totalorder %s22, 1
    %p276 = por %p274, %p275
    %p277 = scmp.ne.s32.totalorder %s266, %s267
    %p278 = scmp.eq.s32.totalorder %s22, 0
    %p279 = por %p277, %p278
    %p280 = scmp.ne.s32.totalorder %s266, %s267
    %p281 = scmp.eq.s32.totalorder %s23, 1
    %p282 = por %p280, %p281
    %p284 = scmp.ne.s32.totalorder %s267, %s283
    %p285 = scmp.eq.s32.totalorder %s23, 0
    %p286 = por %p284, %p285
    %p287 = scmp.le.s32.totalorder 1, %s17
    %p288 = scmp.lt.s32.totalorder %s17, 3
    %p289 = pnand %p287, %p288
    %p290 = pneg %p289
    // Predicated region
    $region9: #{tpu_custom_call.1} parent=5 // pred_check
      _
    $region10: #{tpu_custom_call.1} parent=5 // pred_check_branch
      %292 = sbr.rel (%p289) target = $region12
    $region11: #{tpu_custom_call.1} parent=5 // pred_region
      %s293 = ssub.s32 %s17, 1
      // Predicated region
      $region13: #{tpu_custom_call.1} parent=11 // pred_check
        %p294 = pneg %p64
      $region14: #{tpu_custom_call.1} parent=11 // pred_check_branch
        %296 = sbr.rel (%p294) target = $region16
      $region15: #{tpu_custom_call.1} parent=11 // pred_region
        _
      $region16: #{tpu_custom_call.1} parent=11 // pred_fallthru
        _
      // Predicated region
      $region17: #{tpu_custom_call.1} parent=11 // pred_check
        %p297 = pneg %p85
      $region18: #{tpu_custom_call.1} parent=11 // pred_check_branch
        %299 = sbr.rel (%p297) target = $region20
      $region19: #{tpu_custom_call.1} parent=11 // pred_region
        _
      $region20: #{tpu_custom_call.1} parent=11 // pred_fallthru
        _
      // Predicated region
      $region21: #{tpu_custom_call.1} parent=11 // pred_check
        %p300 = pneg %p106
      $region22: #{tpu_custom_call.1} parent=11 // pred_check_branch
        %302 = sbr.rel (%p300) target = $region24
      $region23: #{tpu_custom_call.1} parent=11 // pred_region
        _
      $region24: #{tpu_custom_call.1} parent=11 // pred_fallthru
        _
      // Predicated region
      $region25: #{tpu_custom_call.1} parent=11 // pred_check
        %p303 = pneg %p127
      $region26: #{tpu_custom_call.1} parent=11 // pred_check_branch
        %305 = sbr.rel (%p303) target = $region28
      $region27: #{tpu_custom_call.1} parent=11 // pred_region
        _
      $region28: #{tpu_custom_call.1} parent=11 // pred_fallthru
        _
      // Predicated region
      $region29: #{tpu_custom_call.1} parent=11 // pred_check
        %p306 = pneg %p148
      $region30: #{tpu_custom_call.1} parent=11 // pred_check_branch
        %308 = sbr.rel (%p306) target = $region32
      $region31: #{tpu_custom_call.1} parent=11 // pred_region
        _
      $region32: #{tpu_custom_call.1} parent=11 // pred_fallthru
        _
      // Predicated region
      $region33: #{tpu_custom_call.1} parent=11 // pred_check
        %p309 = pneg %p169
      $region34: #{tpu_custom_call.1} parent=11 // pred_check_branch
        %311 = sbr.rel (%p309) target = $region36
      $region35: #{tpu_custom_call.1} parent=11 // pred_region
        _
      $region36: #{tpu_custom_call.1} parent=11 // pred_fallthru
        _
      // Predicated region
      $region37: #{tpu_custom_call.1} parent=11 // pred_check
        %p312 = pneg %p190
      $region38: #{tpu_custom_call.1} parent=11 // pred_check_branch
        %314 = sbr.rel (%p312) target = $region40
      $region39: #{tpu_custom_call.1} parent=11 // pred_region
        _
      $region40: #{tpu_custom_call.1} parent=11 // pred_fallthru
        _
      // Predicated region
      $region41: #{tpu_custom_call.1} parent=11 // pred_check
        %p315 = pneg %p211
      $region42: #{tpu_custom_call.1} parent=11 // pred_check_branch
        %317 = sbr.rel (%p315) target = $region44
      $region43: #{tpu_custom_call.1} parent=11 // pred_region
        _
      $region44: #{tpu_custom_call.1} parent=11 // pred_fallthru
        _
      // Predicated region
      $region45: #{tpu_custom_call.1} parent=11 // pred_check
        %p318 = pneg %p232
      $region46: #{tpu_custom_call.1} parent=11 // pred_check_branch
        %320 = sbr.rel (%p318) target = $region48
      $region47: #{tpu_custom_call.1} parent=11 // pred_region
        _
      $region48: #{tpu_custom_call.1} parent=11 // pred_fallthru
        _
      // Predicated region
      $region49: #{tpu_custom_call.1} parent=11 // pred_check
        %p321 = pneg %p253
      $region50: #{tpu_custom_call.1} parent=11 // pred_check_branch
        %323 = sbr.rel (%p321) target = $region52
      $region51: #{tpu_custom_call.1} parent=11 // pred_region
        _
      $region52: #{tpu_custom_call.1} parent=11 // pred_fallthru
        _
    $region12: #{tpu_custom_call.1} parent=5 // pred_fallthru
      _
    %p324 = scmp.lt.s32.totalorder %s17, 2
    // Predicated region
    $region53: #{tpu_custom_call.1} parent=5 // pred_check
      %p325 = pneg %p324
    $region54: #{tpu_custom_call.1} parent=5 // pred_check_branch
      %327 = sbr.rel (%p325) target = $region56
    $region55: #{tpu_custom_call.1} parent=5 // pred_region
      // Predicated region
      $region57: #{tpu_custom_call.1} parent=55 // pred_check
        %p328 = pneg %p37
      $region58: #{tpu_custom_call.1} parent=55 // pred_check_branch
        %330 = sbr.rel (%p328) target = $region60
      $region59: #{tpu_custom_call.1} parent=55 // pred_region
        %p331 = scmp.lt.s32.totalorder %s17, 1
        %s332 = scalar_select %p331, %s17, 1
        %s333 = smul.addr %s332, 16
        %s334 = smul.addr %s333, 8
        %s335 = scalar_lea.vmem %s0, %s334
      $region60: #{tpu_custom_call.1} parent=55 // pred_fallthru
        _
    $region56: #{tpu_custom_call.1} parent=5 // pred_fallthru
      _
    %p336 = scmp.le.s32.totalorder 1, %s17
    %p337 = scmp.lt.s32.totalorder %s17, 3
    %p338 = pnand %p336, %p337
    %p339 = pneg %p338
    // Predicated region
    $region61: #{tpu_custom_call.1} parent=5 // pred_check
      _
    $region62: #{tpu_custom_call.1} parent=5 // pred_check_branch
      %341 = sbr.rel (%p338) target = $region64
    $region63: #{tpu_custom_call.1} parent=5 // pred_region
      %s342 = ssub.s32 %s17, 1
      %p343 = scmp.lt.s32.totalorder %s22, 1
      %s344 = scalar_select %p343, %s22, 1
      %s345 = smul.addr %s344, 16
      %s346 = smul.addr %s345, 8
      %s347 = scalar_lea.vmem %s0, %s346
      %p348 = pneg %p43
      %p349 = pneg %p40
      %p350 = pneg %p64
      %p351 = pneg %p61
      %p352 = pneg %p85
      %p353 = pneg %p82
      %p354 = pneg %p106
      %p355 = pneg %p103
      %p356 = pneg %p127
      %p357 = pneg %p124
      %p358 = pneg %p148
      %p359 = pneg %p145
      %p360 = pneg %p169
      %p361 = pneg %p166
      %p362 = pneg %p190
      %p363 = pneg %p187
      %p364 = pneg %p211
      %p365 = pneg %p208
      %p366 = pneg %p232
      %p367 = pneg %p229
      %p368 = pneg %p253
      %p369 = pneg %p250
      %p370 = pneg %p279
      %p371 = pneg %p276
      %p372 = scmp.lt.s32.totalorder %s22, 1
      %s373 = scalar_select %p372, %s22, 1
      %s374 = smul.addr %s373, 16
      %s375 = smul.addr %s374, 8
      %s376 = scalar_lea.vmem %s11, %s375
      %p377 = scmp.lt.s32.totalorder %s22, 1
      %s378 = scalar_select %p377, %s22, 1
      %s379 = smul.addr %s378, 16
      %s380 = smul.addr %s379, 8
      %s381 = scalar_lea.vmem %s0, %s380
      %p382 = scmp.lt.s32.totalorder %s22, 1
      %s383 = scalar_select %p382, %s22, 1
      %s384 = smul.addr %s383, 16
      %s385 = smul.addr %s384, 8
      %s386 = scalar_lea.vmem %s11, %s385
      %v388 = vld [vmem:[%s381] sm:$0xff]
      %v389 = vld [vmem:[%s381 + $0x8] sm:$0xff]
      %v390 = vld [vmem:[%s381 + $0x10] sm:$0xff]
      %v391 = vld [vmem:[%s381 + $0x18] sm:$0xff]
      %v392 = vld [vmem:[%s381 + $0x20] sm:$0xff]
      %v393 = vld [vmem:[%s381 + $0x28] sm:$0xff]
      %v394 = vld [vmem:[%s381 + $0x30] sm:$0xff]
      %v395 = vld [vmem:[%s381 + $0x38] sm:$0xff]
      %v396 = vld [vmem:[%s381 + $0x40] sm:$0xff]
      %v397 = vld [vmem:[%s381 + $0x48] sm:$0xff]
      %v398 = vld [vmem:[%s381 + $0x50] sm:$0xff]
      %v399 = vld [vmem:[%s381 + $0x58] sm:$0xff]
      %v400 = vld [vmem:[%s381 + $0x60] sm:$0xf]
      %v401 = vld [vmem:[%s381 + $0x68] sm:$0xf]
      %v402 = vld [vmem:[%s381 + $0x70] sm:$0xf]
      %v403 = vld [vmem:[%s381 + $0x78] sm:$0xf]
      %v404 = vadd.f32 %v388, %v392
      %v405 = vadd.f32 %v404, %v396
      %vm406 = vcmask 1043456
      %v407 = vsel %vm406, %v400, 0.0
      %v408 = vadd.f32 %v405, %v407
      %v409 = vrot.slane %v408, 4
      %v410 = vadd.f32 %v408, %v409
      %v411 = vrot.slane %v410, 2
      %v412 = vadd.f32 %v410, %v411
      %v413 = vrot.slane %v412, 1
      %v414 = vadd.f32 %v412, %v413
      %v415 = vadd.f32 %v389, %v393
      %v416 = vadd.f32 %v415, %v397
      %v417 = vsel %vm406, %v401, 0.0
      %v418 = vadd.f32 %v416, %v417
      %v419 = vrot.slane %v418, 4
      %v420 = vadd.f32 %v418, %v419
      %v421 = vrot.slane %v420, 2
      %v422 = vadd.f32 %v420, %v421
      %v423 = vrot.slane %v422, 1
      %v424 = vadd.f32 %v422, %v423
      %v425 = vadd.f32 %v390, %v394
      %v426 = vadd.f32 %v425, %v398
      %v427 = vsel %vm406, %v402, 0.0
      %v428 = vadd.f32 %v426, %v427
      %v429 = vrot.slane %v428, 4
      %v430 = vadd.f32 %v428, %v429
      %v431 = vrot.slane %v430, 2
      %v432 = vadd.f32 %v430, %v431
      %v433 = vrot.slane %v432, 1
      %v434 = vadd.f32 %v432, %v433
      %v435 = vadd.f32 %v391, %v395
      %v436 = vadd.f32 %v435, %v399
      %v437 = vsel %vm406, %v403, 0.0
      %v438 = vadd.f32 %v436, %v437
      %v439 = vrot.slane %v438, 4
      %v440 = vadd.f32 %v438, %v439
      %v441 = vrot.slane %v440, 2
      %v442 = vadd.f32 %v440, %v441
      %v443 = vrot.slane %v442, 1
      %v444 = vadd.f32 %v442, %v443
      %v445 = vrcp.pop 28.0
      %v446 = vmul.f32 %v414, %v445
      %v447 = vmul.f32 %v424, %v445
      %v448 = vmul.f32 %v434, %v445
      %v449 = vmul.f32 %v444, %v445
      %v450 = vsub.f32 %v388, %v446
      %v451 = vsub.f32 %v389, %v447
      %v452 = vsub.f32 %v390, %v448
      %v453 = vsub.f32 %v391, %v449
      %v454 = vsub.f32 %v392, %v446
      %v455 = vsub.f32 %v393, %v447
      %v456 = vsub.f32 %v394, %v448
      %v457 = vsub.f32 %v395, %v449
      %v458 = vsub.f32 %v396, %v446
      %v459 = vsub.f32 %v397, %v447
      %v460 = vsub.f32 %v398, %v448
      %v461 = vsub.f32 %v399, %v449
      %v462 = vsub.f32 %v400, %v446
      %v463 = vsub.f32 %v401, %v447
      %v464 = vsub.f32 %v402, %v448
      %v465 = vsub.f32 %v403, %v449
      %v466 = vmul.f32 %v450, %v450
      %v467 = vmul.f32 %v451, %v451
      %v468 = vmul.f32 %v452, %v452
      %v469 = vmul.f32 %v453, %v453
      %v470 = vmul.f32 %v454, %v454
      %v471 = vmul.f32 %v455, %v455
      %v472 = vmul.f32 %v456, %v456
      %v473 = vmul.f32 %v457, %v457
      %v474 = vmul.f32 %v458, %v458
      %v475 = vmul.f32 %v459, %v459
      %v476 = vmul.f32 %v460, %v460
      %v477 = vmul.f32 %v461, %v461
      %v478 = vmul.f32 %v462, %v462
      %v479 = vmul.f32 %v463, %v463
      %v480 = vmul.f32 %v464, %v464
      %v481 = vmul.f32 %v465, %v465
      %v482 = vadd.f32 %v466, %v470
      %v483 = vadd.f32 %v482, %v474
      %v484 = vsel %vm406, %v478, 0.0
      %v485 = vadd.f32 %v483, %v484
      %v486 = vrot.slane %v485, 4
      %v487 = vadd.f32 %v485, %v486
      %v488 = vrot.slane %v487, 2
      %v489 = vadd.f32 %v487, %v488
      %v490 = vrot.slane %v489, 1
      %v491 = vadd.f32 %v489, %v490
      %v492 = vadd.f32 %v467, %v471
      %v493 = vadd.f32 %v492, %v475
      %v494 = vsel %vm406, %v479, 0.0
      %v495 = vadd.f32 %v493, %v494
      %v496 = vrot.slane %v495, 4
      %v497 = vadd.f32 %v495, %v496
      %v498 = vrot.slane %v497, 2
      %v499 = vadd.f32 %v497, %v498
      %v500 = vrot.slane %v499, 1
      %v501 = vadd.f32 %v499, %v500
      %v502 = vadd.f32 %v468, %v472
      %v503 = vadd.f32 %v502, %v476
      %v504 = vsel %vm406, %v480, 0.0
      %v505 = vadd.f32 %v503, %v504
      %v506 = vrot.slane %v505, 4
      %v507 = vadd.f32 %v505, %v506
      %v508 = vrot.slane %v507, 2
      %v509 = vadd.f32 %v507, %v508
      %v510 = vrot.slane %v509, 1
      %v511 = vadd.f32 %v509, %v510
      %v512 = vadd.f32 %v469, %v473
      %v513 = vadd.f32 %v512, %v477
      %v514 = vsel %vm406, %v481, 0.0
      %v515 = vadd.f32 %v513, %v514
      %v516 = vrot.slane %v515, 4
      %v517 = vadd.f32 %v515, %v516
      %v518 = vrot.slane %v517, 2
      %v519 = vadd.f32 %v517, %v518
      %v520 = vrot.slane %v519, 1
      %v521 = vadd.f32 %v519, %v520
      %v522 = vmul.f32 %v491, %v445
      %v523 = vmul.f32 %v501, %v445
      %v524 = vmul.f32 %v511, %v445
      %v525 = vmul.f32 %v521, %v445
      %v526 = vadd.f32 %v522, 1e-05
      %v527 = vadd.f32 %v523, 1e-05
      %v528 = vadd.f32 %v524, 1e-05
      %v529 = vadd.f32 %v525, 1e-05
      %v530 = vrsqrt.pop %v526
      %v531 = vrsqrt.pop %v527
      %v532 = vrsqrt.pop %v528
      %v533 = vrsqrt.pop %v529
      %v534 = vmul.f32 %v450, %v530
      %v535 = vmul.f32 %v451, %v531
      %v536 = vmul.f32 %v452, %v532
      %v537 = vmul.f32 %v453, %v533
      %v538 = vmul.f32 %v454, %v530
      %v539 = vmul.f32 %v455, %v531
      %v540 = vmul.f32 %v456, %v532
      %v541 = vmul.f32 %v457, %v533
      %v542 = vmul.f32 %v458, %v530
      %v543 = vmul.f32 %v459, %v531
      %v544 = vmul.f32 %v460, %v532
      %v545 = vmul.f32 %v461, %v533
      %v546 = vmul.f32 %v462, %v530
      %v547 = vmul.f32 %v463, %v531
      %v548 = vmul.f32 %v464, %v532
      %v549 = vmul.f32 %v465, %v533
      %v550 = vld [vmem:[%s1] sm:$0xff]
      %v551 = vld [vmem:[%s1 + $0x8] sm:$0xff]
      %v552 = vld [vmem:[%s1 + $0x10] sm:$0xff]
      %v553 = vld [vmem:[%s1 + $0x18] sm:$0xf]
      %555 = vset.pattern.permute.xlu0 0
      %556 = vperm.xlu0 %555, %v550
      %v557 = vpop.permute.xlu0 %556
      %560 = vset.pattern.permute.xlu0 0
      %561 = vperm.xlu0 %560, %v551
      %v562 = vpop.permute.xlu0 %561
      %565 = vset.pattern.permute.xlu0 0
      %566 = vperm.xlu0 %565, %v552
      %v567 = vpop.permute.xlu0 %566
      %570 = vset.pattern.permute.xlu0 0
      %571 = vperm.xlu0 %570, %v553
      %v572 = vpop.permute.xlu0 %571
      %v574 = vmul.f32 %v534, %v557
      %v575 = vmul.f32 %v535, %v557
      %v576 = vmul.f32 %v536, %v557
      %v577 = vmul.f32 %v537, %v557
      %v578 = vmul.f32 %v538, %v562
      %v579 = vmul.f32 %v539, %v562
      %v580 = vmul.f32 %v540, %v562
      %v581 = vmul.f32 %v541, %v562
      %v582 = vmul.f32 %v542, %v567
      %v583 = vmul.f32 %v543, %v567
      %v584 = vmul.f32 %v544, %v567
      %v585 = vmul.f32 %v545, %v567
      %v586 = vmul.f32 %v546, %v572
      %v587 = vmul.f32 %v547, %v572
      %v588 = vmul.f32 %v548, %v572
      %v589 = vmul.f32 %v549, %v572
      %v590 = vld [vmem:[%s2] sm:$0xff]
      %v591 = vld [vmem:[%s2 + $0x8] sm:$0xff]
      %v592 = vld [vmem:[%s2 + $0x10] sm:$0xff]
      %v593 = vld [vmem:[%s2 + $0x18] sm:$0xf]
      %595 = vset.pattern.permute.xlu0 0
      %596 = vperm.xlu0 %595, %v590
      %v597 = vpop.permute.xlu0 %596
      %600 = vset.pattern.permute.xlu0 0
      %601 = vperm.xlu0 %600, %v591
      %v602 = vpop.permute.xlu0 %601
      %605 = vset.pattern.permute.xlu0 0
      %606 = vperm.xlu0 %605, %v592
      %v607 = vpop.permute.xlu0 %606
      %610 = vset.pattern.permute.xlu0 0
      %611 = vperm.xlu0 %610, %v593
      %v612 = vpop.permute.xlu0 %611
      %v614 = vadd.f32 %v574, %v597
      %v615 = vadd.f32 %v575, %v597
      %v616 = vadd.f32 %v576, %v597
      %v617 = vadd.f32 %v577, %v597
      %v618 = vadd.f32 %v578, %v602
      %v619 = vadd.f32 %v579, %v602
      %v620 = vadd.f32 %v580, %v602
      %v621 = vadd.f32 %v581, %v602
      %v622 = vadd.f32 %v582, %v607
      %v623 = vadd.f32 %v583, %v607
      %v624 = vadd.f32 %v584, %v607
      %v625 = vadd.f32 %v585, %v607
      %v626 = vadd.f32 %v586, %v612
      %v627 = vadd.f32 %v587, %v612
      %v628 = vadd.f32 %v588, %v612
      %v629 = vadd.f32 %v589, %v612
      %v630 = vld [vmem:[%s3] sm:$0xf]
      %v631 = vld [vmem:[%s3 + $0x4] sm:$0xf]
      %v632 = vld [vmem:[%s3 + $0x8] sm:$0xf]
      %v633 = vld [vmem:[%s3 + $0xc] sm:$0xf]
      %v634 = vld [vmem:[%s3 + $0x10] sm:$0xf]
      %v635 = vld [vmem:[%s3 + $0x14] sm:$0xf]
      %v636 = vld [vmem:[%s3 + $0x18] sm:$0xf]
      %v637 = vld [vmem:[%s3 + $0x1c] sm:$0xf]
      %v638 = vld [vmem:[%s3 + $0x20] sm:$0xf]
      %v639 = vld [vmem:[%s3 + $0x24] sm:$0xf]
      %v640 = vld [vmem:[%s3 + $0x28] sm:$0xf]
      %v641 = vld [vmem:[%s3 + $0x2c] sm:$0xf]
      %v642 = vld [vmem:[%s3 + $0x30] sm:$0xf]
      %v643 = vld [vmem:[%s3 + $0x34] sm:$0xf]
      %v644 = vpack.c.bf16 %v618, %v614
      %v645 = vpack.c.bf16 %v619, %v615
      %v646 = vpack.c.bf16 %v620, %v616
      %v647 = vpack.c.bf16 %v621, %v617
      %v648 = vpack.c.bf16 %v626, %v622
      %v649 = vpack.c.bf16 %v627, %v623
      %v650 = vpack.c.bf16 %v628, %v624
      %v651 = vpack.c.bf16 %v629, %v625
      %v666 = vunpack.c.l.b16 %v630
      %v667 = vunpack.c.l.b16 %v631
      %v668 = vunpack.c.l.b16 %v632
      %v669 = vunpack.c.l.b16 %v633
      %v670 = vunpack.c.l.b16 %v634
      %v671 = vunpack.c.l.b16 %v635
      %v672 = vunpack.c.l.b16 %v636
      %v673 = vunpack.c.l.b16 %v637
      %v674 = vunpack.c.l.b16 %v638
      %v675 = vunpack.c.l.b16 %v639
      %v676 = vunpack.c.l.b16 %v640
      %v677 = vunpack.c.l.b16 %v641
      %v678 = vunpack.c.l.b16 %v642
      %v679 = vunpack.c.l.b16 %v643
      %v680 = vpack.c.b16 %v667, %v666
      %v681 = vpack.c.b16 %v669, %v668
      %v682 = vpack.c.b16 %v671, %v670
      %v683 = vpack.c.b16 %v673, %v672
      %v684 = vpack.c.b16 %v675, %v674
      %v685 = vpack.c.b16 %v677, %v676
      %v686 = vpack.c.b16 %v679, %v678
      %vm687 = vcmask 228352
      %v689 = vsel %vm687, %v680, 0
      %v692 = vsel %vm687, %v681, 0
      %v695 = vsel %vm687, %v682, 0
      %v698 = vsel %vm687, %v683, 0
      %v701 = vsel %vm687, %v684, 0
      %v704 = vsel %vm687, %v685, 0
      %v707 = vsel %vm687, %v686, 0
      %vm709 = vcmask 1045504
      %v711 = vsel %vm709, %v648, 0
      %v714 = vsel %vm709, %v649, 0
      %v717 = vsel %vm709, %v650, 0
      %v720 = vsel %vm709, %v651, 0
      %722 = vmatprep.subr.bf16.mxu0 %v645
      %723 = vmatpush1.bf16.msra.mxu0 %v644
      %724 = vmatprep.subr.bf16.mxu0 %v714
      %725 = vmatpush1.bf16.msra.mxu0 %v711
      %726 = vmatprep.subr.bf16.mxu0 0
      %727 = vmatpush1.bf16.msra.mxu0 0
      %728 = vmatprep.subr.bf16.mxu0 0
      %729 = vmatpush1.bf16.msra.mxu0 0
      %730 = vmatprep.subr.bf16.mxu0 0
      %731 = vmatpush1.bf16.msra.mxu0 0
      %732 = vmatprep.subr.bf16.mxu0 0
      %733 = vmatpush1.bf16.msra.mxu0 0
      %734 = vmatprep.subr.bf16.mxu0 0
      %735 = vmatpush1.bf16.msra.mxu0 0
      %736 = vmatprep.subr.bf16.mxu0 0
      %737 = vmatpush1.bf16.msra.mxu0 0
      %738 = vmatprep.subr.bf16.mxu0 0
      %739 = vmatpush1.bf16.msra.mxu0 0
      %740 = vmatprep.subr.bf16.mxu0 0
      %741 = vmatpush1.bf16.msra.mxu0 0
      %742 = vmatprep.subr.bf16.mxu0 0
      %743 = vmatpush1.bf16.msra.mxu0 0
      %744 = vmatprep.subr.bf16.mxu0 0
      %745 = vmatpush1.bf16.msra.mxu0 0
      %746 = vmatprep.subr.bf16.mxu0 0
      %747 = vmatpush1.bf16.msra.mxu0 0
      %748 = vmatprep.subr.bf16.mxu0 0
      %749 = vmatpush1.bf16.msra.mxu0 0
      %750 = vmatprep.subr.bf16.mxu0 0
      %751 = vmatpush1.bf16.msra.mxu0 0
      %752 = vmatprep.subr.bf16.mxu0 0
      %753 = vmatpush1.bf16.msra.mxu0 0
      %754 = vmatprep.mubr.bf16.mxu0 0
      %755 = vmatmul.mubr.bf16.gmra.mrb[0].mxu0 %v689
      %v756 = vpop.f32.mrb[0].mxu0
      %v757 = vadd.f32 0.0, %v756
      %v758 = vpop.f32.mrb[0].mxu0
      %v759 = vadd.f32 0.0, %v758
      %v760 = vpop.f32.mrb[0].mxu0
      %v761 = vadd.f32 0.0, %v760
      %v762 = vpop.f32.mrb[0].mxu0
      %v763 = vadd.f32 0.0, %v762
      %764 = vmatprep.mubr.bf16.mxu0 0
      %765 = vmatmul.mubr.bf16.gmra.mrb[0].mxu0 %v692
      %v766 = vpop.f32.mrb[0].mxu0
      %v767 = vadd.f32 0.0, %v766
      %v768 = vpop.f32.mrb[0].mxu0
      %v769 = vadd.f32 0.0, %v768
      %v770 = vpop.f32.mrb[0].mxu0
      %v771 = vadd.f32 0.0, %v770
      %v772 = vpop.f32.mrb[0].mxu0
      %v773 = vadd.f32 0.0, %v772
      %774 = vmatprep.mubr.bf16.mxu0 0
      %775 = vmatmul.mubr.bf16.gmra.mrb[0].mxu0 %v695
      %v776 = vpop.f32.mrb[0].mxu0
      %v777 = vadd.f32 0.0, %v776
      %v778 = vpop.f32.mrb[0].mxu0
      %v779 = vadd.f32 0.0, %v778
      %v780 = vpop.f32.mrb[0].mxu0
      %v781 = vadd.f32 0.0, %v780
      %v782 = vpop.f32.mrb[0].mxu0
      %v783 = vadd.f32 0.0, %v782
      %784 = vmatprep.mubr.bf16.mxu0 0
      %785 = vmatmul.mubr.bf16.gmra.mrb[0].mxu0 %v698
      %v786 = vpop.f32.mrb[0].mxu0
      %v787 = vadd.f32 0.0, %v786
      %v788 = vpop.f32.mrb[0].mxu0
      %v789 = vadd.f32 0.0, %v788
      %v790 = vpop.f32.mrb[0].mxu0
      %v791 = vadd.f32 0.0, %v790
      %v792 = vpop.f32.mrb[0].mxu0
      %v793 = vadd.f32 0.0, %v792
      %794 = vmatprep.mubr.bf16.mxu0 0
      %795 = vmatmul.mubr.bf16.gmra.mrb[0].mxu0 %v701
      %v796 = vpop.f32.mrb[0].mxu0
      %v797 = vadd.f32 0.0, %v796
      %v798 = vpop.f32.mrb[0].mxu0
      %v799 = vadd.f32 0.0, %v798
      %v800 = vpop.f32.mrb[0].mxu0
      %v801 = vadd.f32 0.0, %v800
      %v802 = vpop.f32.mrb[0].mxu0
      %v803 = vadd.f32 0.0, %v802
      %804 = vmatprep.mubr.bf16.mxu0 0
      %805 = vmatmul.mubr.bf16.gmra.mrb[0].mxu0 %v704
      %v806 = vpop.f32.mrb[0].mxu0
      %v807 = vadd.f32 0.0, %v806
      %v808 = vpop.f32.mrb[0].mxu0
      %v809 = vadd.f32 0.0, %v808
      %v810 = vpop.f32.mrb[0].mxu0
      %v811 = vadd.f32 0.0, %v810
      %v812 = vpop.f32.mrb[0].mxu0
      %v813 = vadd.f32 0.0, %v812
      %814 = vmatprep.mubr.bf16.mxu0 0
      %815 = vmatmul.mubr.bf16.gmra.mrb[0].mxu0 %v707
      %v816 = vpop.f32.mrb[0].mxu0
      %v817 = vadd.f32 0.0, %v816
      %v818 = vpop.f32.mrb[0].mxu0
      %v819 = vadd.f32 0.0, %v818
      %v820 = vpop.f32.mrb[0].mxu0
      %v821 = vadd.f32 0.0, %v820
      %v822 = vpop.f32.mrb[0].mxu0
      %v823 = vadd.f32 0.0, %v822
      %824 = vdwg.mxu0
      %825 = vmatprep.subr.bf16.mxu0 %v647
      %826 = vmatpush1.bf16.msra.mxu0 %v646
      %827 = vmatprep.subr.bf16.mxu0 %v720
      %828 = vmatpush1.bf16.msra.mxu0 %v717
      %829 = vmatprep.subr.bf16.mxu0 0
      %830 = vmatpush1.bf16.msra.mxu0 0
      %831 = vmatprep.subr.bf16.mxu0 0
      %832 = vmatpush1.bf16.msra.mxu0 0
      %833 = vmatprep.subr.bf16.mxu0 0
      %834 = vmatpush1.bf16.msra.mxu0 0
      %835 = vmatprep.subr.bf16.mxu0 0
      %836 = vmatpush1.bf16.msra.mxu0 0
      %837 = vmatprep.subr.bf16.mxu0 0
      %838 = vmatpush1.bf16.msra.mxu0 0
      %839 = vmatprep.subr.bf16.mxu0 0
      %840 = vmatpush1.bf16.msra.mxu0 0
      %841 = vmatprep.subr.bf16.mxu0 0
      %842 = vmatpush1.bf16.msra.mxu0 0
      %843 = vmatprep.subr.bf16.mxu0 0
      %844 = vmatpush1.bf16.msra.mxu0 0
      %845 = vmatprep.subr.bf16.mxu0 0
      %846 = vmatpush1.bf16.msra.mxu0 0
      %847 = vmatprep.subr.bf16.mxu0 0
      %848 = vmatpush1.bf16.msra.mxu0 0
      %849 = vmatprep.subr.bf16.mxu0 0
      %850 = vmatpush1.bf16.msra.mxu0 0
      %851 = vmatprep.subr.bf16.mxu0 0
      %852 = vmatpush1.bf16.msra.mxu0 0
      %853 = vmatprep.subr.bf16.mxu0 0
      %854 = vmatpush1.bf16.msra.mxu0 0
      %855 = vmatprep.subr.bf16.mxu0 0
      %856 = vmatpush1.bf16.msra.mxu0 0
      %857 = vmatprep.mubr.bf16.mxu0 0
      %858 = vmatmul.mubr.bf16.gmra.mrb[0].mxu0 %v689
      %v859 = vpop.f32.mrb[0].mxu0
      %v860 = vadd.f32 0.0, %v859
      %v861 = vpop.f32.mrb[0].mxu0
      %v862 = vadd.f32 0.0, %v861
      %v863 = vpop.f32.mrb[0].mxu0
      %v864 = vadd.f32 0.0, %v863
      %v865 = vpop.f32.mrb[0].mxu0
      %v866 = vadd.f32 0.0, %v865
      %867 = vmatprep.mubr.bf16.mxu0 0
      %868 = vmatmul.mubr.bf16.gmra.mrb[0].mxu0 %v692
      %v869 = vpop.f32.mrb[0].mxu0
      %v870 = vadd.f32 0.0, %v869
      %v871 = vpop.f32.mrb[0].mxu0
      %v872 = vadd.f32 0.0, %v871
      %v873 = vpop.f32.mrb[0].mxu0
      %v874 = vadd.f32 0.0, %v873
      %v875 = vpop.f32.mrb[0].mxu0
      %v876 = vadd.f32 0.0, %v875
      %877 = vmatprep.mubr.bf16.mxu0 0
      %878 = vmatmul.mubr.bf16.gmra.mrb[0].mxu0 %v695
      %v879 = vpop.f32.mrb[0].mxu0
      %v880 = vadd.f32 0.0, %v879
      %v881 = vpop.f32.mrb[0].mxu0
      %v882 = vadd.f32 0.0, %v881
      %v883 = vpop.f32.mrb[0].mxu0
      %v884 = vadd.f32 0.0, %v883
      %v885 = vpop.f32.mrb[0].mxu0
      %v886 = vadd.f32 0.0, %v885
      %887 = vmatprep.mubr.bf16.mxu0 0
      %888 = vmatmul.mubr.bf16.gmra.mrb[0].mxu0 %v698
      %v889 = vpop.f32.mrb[0].mxu0
      %v890 = vadd.f32 0.0, %v889
      %v891 = vpop.f32.mrb[0].mxu0
      %v892 = vadd.f32 0.0, %v891
      %v893 = vpop.f32.mrb[0].mxu0
      %v894 = vadd.f32 0.0, %v893
      %v895 = vpop.f32.mrb[0].mxu0
      %v896 = vadd.f32 0.0, %v895
      %897 = vmatprep.mubr.bf16.mxu0 0
      %898 = vmatmul.mubr.bf16.gmra.mrb[0].mxu0 %v701
      %v899 = vpop.f32.mrb[0].mxu0
      %v900 = vadd.f32 0.0, %v899
      %v901 = vpop.f32.mrb[0].mxu0
      %v902 = vadd.f32 0.0, %v901
      %v903 = vpop.f32.mrb[0].mxu0
      %v904 = vadd.f32 0.0, %v903
      %v905 = vpop.f32.mrb[0].mxu0
      %v906 = vadd.f32 0.0, %v905
      %907 = vmatprep.mubr.bf16.mxu0 0
      %908 = vmatmul.mubr.bf16.gmra.mrb[0].mxu0 %v704
      %v909 = vpop.f32.mrb[0].mxu0
      %v910 = vadd.f32 0.0, %v909
      %v911 = vpop.f32.mrb[0].mxu0
      %v912 = vadd.f32 0.0, %v911
      %v913 = vpop.f32.mrb[0].mxu0
      %v914 = vadd.f32 0.0, %v913
      %v915 = vpop.f32.mrb[0].mxu0
      %v916 = vadd.f32 0.0, %v915
      %917 = vmatprep.mubr.bf16.mxu0 0
      %918 = vmatmul.mubr.bf16.gmra.mrb[0].mxu0 %v707
      %v919 = vpop.f32.mrb[0].mxu0
      %v920 = vadd.f32 0.0, %v919
      %v921 = vpop.f32.mrb[0].mxu0
      %v922 = vadd.f32 0.0, %v921
      %v923 = vpop.f32.mrb[0].mxu0
      %v924 = vadd.f32 0.0, %v923
      %v925 = vpop.f32.mrb[0].mxu0
      %v926 = vadd.f32 0.0, %v925
      %927 = vdwg.mxu0
      %v928 = vlaneseq
      %v929 = vand.u32 %v928, 127
      %v930 = vadd.s32 %v929, 128
      %v931 = vadd.s32 %v929, 256
      %v932 = vadd.s32 %v929, 384
      %v933 = vld [vmem:[%s4] sm:$0xff]
      %v934 = vld [vmem:[%s4 + $0x8] sm:$0xff]
      %v935 = vld [vmem:[%s4 + $0x10] sm:$0xff]
      %v936 = vld [vmem:[%s4 + $0x18] sm:$0xff]
      %v937 = vld [vmem:[%s4 + $0x20] sm:$0xff]
      %v938 = vld [vmem:[%s4 + $0x28] sm:$0xff]
      %v939 = vld [vmem:[%s4 + $0x30] sm:$0xff]
      %941 = vset.pattern.permute.xlu0 3
      %942 = vperm.xlu0 %941, %v933
      %v943 = vpop.permute.xlu0 %942
      %946 = vset.pattern.permute.xlu0 3
      %947 = vperm.xlu0 %946, %v934
      %v948 = vpop.permute.xlu0 %947
      %951 = vset.pattern.permute.xlu0 3
      %952 = vperm.xlu0 %951, %v935
      %v953 = vpop.permute.xlu0 %952
      %956 = vset.pattern.permute.xlu0 3
      %957 = vperm.xlu0 %956, %v936
      %v958 = vpop.permute.xlu0 %957
      %961 = vset.pattern.permute.xlu0 3
      %962 = vperm.xlu0 %961, %v937
      %v963 = vpop.permute.xlu0 %962
      %966 = vset.pattern.permute.xlu0 3
      %967 = vperm.xlu0 %966, %v938
      %v968 = vpop.permute.xlu0 %967
      %971 = vset.pattern.permute.xlu0 3
      %972 = vperm.xlu0 %971, %v939
      %v973 = vpop.permute.xlu0 %972
      %v975 = vmul.f32 %v943, %v757
      %v976 = vmul.f32 %v943, %v759
      %v977 = vmul.f32 %v943, %v860
      %v978 = vmul.f32 %v943, %v862
      %v979 = vmul.f32 %v948, %v761
      %v980 = vmul.f32 %v948, %v763
      %v981 = vmul.f32 %v948, %v864
      %v982 = vmul.f32 %v948, %v866
      %v983 = vmul.f32 %v953, %v767
      %v984 = vmul.f32 %v953, %v769
      %v985 = vmul.f32 %v953, %v870
      %v986 = vmul.f32 %v953, %v872
      %v987 = vmul.f32 %v958, %v771
      %v988 = vmul.f32 %v958, %v773
      %v989 = vmul.f32 %v958, %v874
      %v990 = vmul.f32 %v958, %v876
      %v991 = vmul.f32 %v963, %v777
      %v992 = vmul.f32 %v963, %v779
      %v993 = vmul.f32 %v963, %v880
      %v994 = vmul.f32 %v963, %v882
      %v995 = vmul.f32 %v968, %v781
      %v996 = vmul.f32 %v968, %v783
      %v997 = vmul.f32 %v968, %v884
      %v998 = vmul.f32 %v968, %v886
      %v999 = vmul.f32 %v973, %v787
      %v1000 = vmul.f32 %v973, %v789
      %v1001 = vmul.f32 %v973, %v890
      %v1002 = vmul.f32 %v973, %v892
      %1003 = vrot.lane.b32.xlu0 %v757, 3
      %v1004 = vpop.permute.xlu0 %1003
      %1005 = vrot.lane.b32.xlu0 %v761, 3
      %v1006 = vpop.permute.xlu0 %1005
      %1007 = vrot.lane.b32.xlu0 %v767, 3
      %v1008 = vpop.permute.xlu0 %1007
      %1009 = vrot.lane.b32.xlu0 %v771, 3
      %v1010 = vpop.permute.xlu0 %1009
      %1011 = vrot.lane.b32.xlu0 %v777, 3
      %v1012 = vpop.permute.xlu0 %1011
      %1013 = vrot.lane.b32.xlu0 %v781, 3
      %v1014 = vpop.permute.xlu0 %1013
      %1015 = vrot.lane.b32.xlu0 %v787, 3
      %v1016 = vpop.permute.xlu0 %1015
      %1017 = vrot.lane.b32.xlu0 %v759, 3
      %v1018 = vpop.permute.xlu0 %1017
      %1019 = vrot.lane.b32.xlu0 %v763, 3
      %v1020 = vpop.permute.xlu0 %1019
      %1021 = vrot.lane.b32.xlu0 %v769, 3
      %v1022 = vpop.permute.xlu0 %1021
      %1023 = vrot.lane.b32.xlu0 %v773, 3
      %v1024 = vpop.permute.xlu0 %1023
      %1025 = vrot.lane.b32.xlu0 %v779, 3
      %v1026 = vpop.permute.xlu0 %1025
      %1027 = vrot.lane.b32.xlu0 %v783, 3
      %v1028 = vpop.permute.xlu0 %1027
      %1029 = vrot.lane.b32.xlu0 %v789, 3
      %v1030 = vpop.permute.xlu0 %1029
      %1031 = vrot.lane.b32.xlu0 %v860, 3
      %v1032 = vpop.permute.xlu0 %1031
      %1033 = vrot.lane.b32.xlu0 %v864, 3
      %v1034 = vpop.permute.xlu0 %1033
      %1035 = vrot.lane.b32.xlu0 %v870, 3
      %v1036 = vpop.permute.xlu0 %1035
      %1037 = vrot.lane.b32.xlu0 %v874, 3
      %v1038 = vpop.permute.xlu0 %1037
      %1039 = vrot.lane.b32.xlu0 %v880, 3
      %v1040 = vpop.permute.xlu0 %1039
      %1041 = vrot.lane.b32.xlu0 %v884, 3
      %v1042 = vpop.permute.xlu0 %1041
      %1043 = vrot.lane.b32.xlu0 %v890, 3
      %v1044 = vpop.permute.xlu0 %1043
      %1045 = vrot.lane.b32.xlu0 %v862, 3
      %v1046 = vpop.permute.xlu0 %1045
      %1047 = vrot.lane.b32.xlu0 %v866, 3
      %v1048 = vpop.permute.xlu0 %1047
      %1049 = vrot.lane.b32.xlu0 %v872, 3
      %v1050 = vpop.permute.xlu0 %1049
      %1051 = vrot.lane.b32.xlu0 %v876, 3
      %v1052 = vpop.permute.xlu0 %1051
      %1053 = vrot.lane.b32.xlu0 %v882, 3
      %v1054 = vpop.permute.xlu0 %1053
      %1055 = vrot.lane.b32.xlu0 %v886, 3
      %v1056 = vpop.permute.xlu0 %1055
      %1057 = vrot.lane.b32.xlu0 %v892, 3
      %v1058 = vpop.permute.xlu0 %1057
      %vm1059 = vcmp.lt.s32.totalorder %v929, 3
      %v1060 = vsel %vm1059, %v1032, %v1046
      %v1061 = vsel %vm1059, %v1034, %v1048
      %v1062 = vsel %vm1059, %v1036, %v1050
      %v1063 = vsel %vm1059, %v1038, %v1052
      %v1064 = vsel %vm1059, %v1040, %v1054
      %v1065 = vsel %vm1059, %v1042, %v1056
      %v1066 = vsel %vm1059, %v1044, %v1058
      %v1067 = vsel %vm1059, %v1018, %v1032
      %v1068 = vsel %vm1059, %v1020, %v1034
      %v1069 = vsel %vm1059, %v1022, %v1036
      %v1070 = vsel %vm1059, %v1024, %v1038
      %v1071 = vsel %vm1059, %v1026, %v1040
      %v1072 = vsel %vm1059, %v1028, %v1042
      %v1073 = vsel %vm1059, %v1030, %v1044
      %v1074 = vsel %vm1059, %v1004, %v1018
      %v1075 = vsel %vm1059, %v1006, %v1020
      %v1076 = vsel %vm1059, %v1008, %v1022
      %v1077 = vsel %vm1059, %v1010, %v1024
      %v1078 = vsel %vm1059, %v1012, %v1026
      %v1079 = vsel %vm1059, %v1014, %v1028
      %v1080 = vsel %vm1059, %v1016, %v1030
      %v1081 = vsel %vm1059, %v1046, %v1004
      %v1082 = vsel %vm1059, %v1048, %v1006
      %v1083 = vsel %vm1059, %v1050, %v1008
      %v1084 = vsel %vm1059, %v1052, %v1010
      %v1085 = vsel %vm1059, %v1054, %v1012
      %v1086 = vsel %vm1059, %v1056, %v1014
      %v1087 = vsel %vm1059, %v1058, %v1016
      %vm1088 = vcmp.ge.s32.totalorder %v929, 3
      %vm1089 = vcmp.ge.s32.totalorder %v930, 3
      %vm1090 = vcmp.ge.s32.totalorder %v931, 3
      %vm1091 = vcmp.ge.s32.totalorder %v932, 3
      %v1092 = vsel %vm1088, 1, 0
      %v1093 = vsel %vm1089, 1, 0
      %v1094 = vsel %vm1090, 1, 0
      %v1095 = vsel %vm1091, 1, 0
      %vm1096 = vcmp.eq.s32.totalorder %v1092, 1
      %vm1097 = vcmp.eq.s32.totalorder %v1093, 1
      %vm1098 = vcmp.eq.s32.totalorder %v1094, 1
      %vm1099 = vcmp.eq.s32.totalorder %v1095, 1
      %v1100 = vsel %vm1096, %v1081, 0.0
      %v1101 = vsel %vm1097, %v1074, 0.0
      %v1102 = vsel %vm1098, %v1067, 0.0
      %v1103 = vsel %vm1099, %v1060, 0.0
      %v1104 = vsel %vm1096, %v1082, 0.0
      %v1105 = vsel %vm1097, %v1075, 0.0
      %v1106 = vsel %vm1098, %v1068, 0.0
      %v1107 = vsel %vm1099, %v1061, 0.0
      %v1108 = vsel %vm1096, %v1083, 0.0
      %v1109 = vsel %vm1097, %v1076, 0.0
      %v1110 = vsel %vm1098, %v1069, 0.0
      %v1111 = vsel %vm1099, %v1062, 0.0
      %v1112 = vsel %vm1096, %v1084, 0.0
      %v1113 = vsel %vm1097, %v1077, 0.0
      %v1114 = vsel %vm1098, %v1070, 0.0
      %v1115 = vsel %vm1099, %v1063, 0.0
      %v1116 = vsel %vm1096, %v1085, 0.0
      %v1117 = vsel %vm1097, %v1078, 0.0
      %v1118 = vsel %vm1098, %v1071, 0.0
      %v1119 = vsel %vm1099, %v1064, 0.0
      %v1120 = vsel %vm1096, %v1086, 0.0
      %v1121 = vsel %vm1097, %v1079, 0.0
      %v1122 = vsel %vm1098, %v1072, 0.0
      %v1123 = vsel %vm1099, %v1065, 0.0
      %v1124 = vsel %vm1096, %v1087, 0.0
      %v1125 = vsel %vm1097, %v1080, 0.0
      %v1126 = vsel %vm1098, %v1073, 0.0
      %v1127 = vsel %vm1099, %v1066, 0.0
      %1128 = vset.pattern.permute.xlu0 0
      %1129 = vperm.xlu0 %1128, %v933
      %v1130 = vpop.permute.xlu0 %1129
      %1132 = vset.pattern.permute.xlu0 0
      %1133 = vperm.xlu0 %1132, %v934
      %v1134 = vpop.permute.xlu0 %1133
      %1136 = vset.pattern.permute.xlu0 0
      %1137 = vperm.xlu0 %1136, %v935
      %v1138 = vpop.permute.xlu0 %1137
      %1140 = vset.pattern.permute.xlu0 0
      %1141 = vperm.xlu0 %1140, %v936
      %v1142 = vpop.permute.xlu0 %1141
      %1144 = vset.pattern.permute.xlu0 0
      %1145 = vperm.xlu0 %1144, %v937
      %v1146 = vpop.permute.xlu0 %1145
      %1148 = vset.pattern.permute.xlu0 0
      %1149 = vperm.xlu0 %1148, %v938
      %v1150 = vpop.permute.xlu0 %1149
      %1152 = vset.pattern.permute.xlu0 0
      %1153 = vperm.xlu0 %1152, %v939
      %v1154 = vpop.permute.xlu0 %1153
      %v1156 = vmul.f32 %v1130, %v1100
      %v1157 = vmul.f32 %v1130, %v1101
      %v1158 = vmul.f32 %v1130, %v1102
      %v1159 = vmul.f32 %v1130, %v1103
      %v1160 = vmul.f32 %v1134, %v1104
      %v1161 = vmul.f32 %v1134, %v1105
      %v1162 = vmul.f32 %v1134, %v1106
      %v1163 = vmul.f32 %v1134, %v1107
      %v1164 = vmul.f32 %v1138, %v1108
      %v1165 = vmul.f32 %v1138, %v1109
      %v1166 = vmul.f32 %v1138, %v1110
      %v1167 = vmul.f32 %v1138, %v1111
      %v1168 = vmul.f32 %v1142, %v1112
      %v1169 = vmul.f32 %v1142, %v1113
      %v1170 = vmul.f32 %v1142, %v1114
      %v1171 = vmul.f32 %v1142, %v1115
      %v1172 = vmul.f32 %v1146, %v1116
      %v1173 = vmul.f32 %v1146, %v1117
      %v1174 = vmul.f32 %v1146, %v1118
      %v1175 = vmul.f32 %v1146, %v1119
      %v1176 = vmul.f32 %v1150, %v1120
      %v1177 = vmul.f32 %v1150, %v1121
      %v1178 = vmul.f32 %v1150, %v1122
      %v1179 = vmul.f32 %v1150, %v1123
      %v1180 = vmul.f32 %v1154, %v1124
      %v1181 = vmul.f32 %v1154, %v1125
      %v1182 = vmul.f32 %v1154, %v1126
      %v1183 = vmul.f32 %v1154, %v1127
      %v1184 = vadd.f32 %v975, %v1156
      %v1185 = vadd.f32 %v976, %v1157
      %v1186 = vadd.f32 %v977, %v1158
      %v1187 = vadd.f32 %v978, %v1159
      %v1188 = vadd.f32 %v979, %v1160
      %v1189 = vadd.f32 %v980, %v1161
      %v1190 = vadd.f32 %v981, %v1162
      %v1191 = vadd.f32 %v982, %v1163
      %v1192 = vadd.f32 %v983, %v1164
      %v1193 = vadd.f32 %v984, %v1165
      %v1194 = vadd.f32 %v985, %v1166
      %v1195 = vadd.f32 %v986, %v1167
      %v1196 = vadd.f32 %v987, %v1168
      %v1197 = vadd.f32 %v988, %v1169
      %v1198 = vadd.f32 %v989, %v1170
      %v1199 = vadd.f32 %v990, %v1171
      %v1200 = vadd.f32 %v991, %v1172
      %v1201 = vadd.f32 %v992, %v1173
      %v1202 = vadd.f32 %v993, %v1174
      %v1203 = vadd.f32 %v994, %v1175
      %v1204 = vadd.f32 %v995, %v1176
      %v1205 = vadd.f32 %v996, %v1177
      %v1206 = vadd.f32 %v997, %v1178
      %v1207 = vadd.f32 %v998, %v1179
      %v1208 = vadd.f32 %v999, %v1180
      %v1209 = vadd.f32 %v1000, %v1181
      %v1210 = vadd.f32 %v1001, %v1182
      %v1211 = vadd.f32 %v1002, %v1183
      %1212 = vrot.lane.b32.xlu0 %v757, 2
      %v1213 = vpop.permute.xlu0 %1212
      %1214 = vrot.lane.b32.xlu0 %v761, 2
      %v1215 = vpop.permute.xlu0 %1214
      %1216 = vrot.lane.b32.xlu0 %v767, 2
      %v1217 = vpop.permute.xlu0 %1216
      %1218 = vrot.lane.b32.xlu0 %v771, 2
      %v1219 = vpop.permute.xlu0 %1218
      %1220 = vrot.lane.b32.xlu0 %v777, 2
      %v1221 = vpop.permute.xlu0 %1220
      %1222 = vrot.lane.b32.xlu0 %v781, 2
      %v1223 = vpop.permute.xlu0 %1222
      %1224 = vrot.lane.b32.xlu0 %v787, 2
      %v1225 = vpop.permute.xlu0 %1224
      %1226 = vrot.lane.b32.xlu0 %v759, 2
      %v1227 = vpop.permute.xlu0 %1226
      %1228 = vrot.lane.b32.xlu0 %v763, 2
      %v1229 = vpop.permute.xlu0 %1228
      %1230 = vrot.lane.b32.xlu0 %v769, 2
      %v1231 = vpop.permute.xlu0 %1230
      %1232 = vrot.lane.b32.xlu0 %v773, 2
      %v1233 = vpop.permute.xlu0 %1232
      %1234 = vrot.lane.b32.xlu0 %v779, 2
      %v1235 = vpop.permute.xlu0 %1234
      %1236 = vrot.lane.b32.xlu0 %v783, 2
      %v1237 = vpop.permute.xlu0 %1236
      %1238 = vrot.lane.b32.xlu0 %v789, 2
      %v1239 = vpop.permute.xlu0 %1238
      %1240 = vrot.lane.b32.xlu0 %v860, 2
      %v1241 = vpop.permute.xlu0 %1240
      %1242 = vrot.lane.b32.xlu0 %v864, 2
      %v1243 = vpop.permute.xlu0 %1242
      %1244 = vrot.lane.b32.xlu0 %v870, 2
      %v1245 = vpop.permute.xlu0 %1244
      %1246 = vrot.lane.b32.xlu0 %v874, 2
      %v1247 = vpop.permute.xlu0 %1246
      %1248 = vrot.lane.b32.xlu0 %v880, 2
      %v1249 = vpop.permute.xlu0 %1248
      %1250 = vrot.lane.b32.xlu0 %v884, 2
      %v1251 = vpop.permute.xlu0 %1250
      %1252 = vrot.lane.b32.xlu0 %v890, 2
      %v1253 = vpop.permute.xlu0 %1252
      %1254 = vrot.lane.b32.xlu0 %v862, 2
      %v1255 = vpop.permute.xlu0 %1254
      %1256 = vrot.lane.b32.xlu0 %v866, 2
      %v1257 = vpop.permute.xlu0 %1256
      %1258 = vrot.lane.b32.xlu0 %v872, 2
      %v1259 = vpop.permute.xlu0 %1258
      %1260 = vrot.lane.b32.xlu0 %v876, 2
      %v1261 = vpop.permute.xlu0 %1260
      %1262 = vrot.lane.b32.xlu0 %v882, 2
      %v1263 = vpop.permute.xlu0 %1262
      %1264 = vrot.lane.b32.xlu0 %v886, 2
      %v1265 = vpop.permute.xlu0 %1264
      %1266 = vrot.lane.b32.xlu0 %v892, 2
      %v1267 = vpop.permute.xlu0 %1266
      %vm1268 = vcmp.lt.s32.totalorder %v929, 2
      %v1269 = vsel %vm1268, %v1241, %v1255
      %v1270 = vsel %vm1268, %v1243, %v1257
      %v1271 = vsel %vm1268, %v1245, %v1259
      %v1272 = vsel %vm1268, %v1247, %v1261
      %v1273 = vsel %vm1268, %v1249, %v1263
      %v1274 = vsel %vm1268, %v1251, %v1265
      %v1275 = vsel %vm1268, %v1253, %v1267
      %v1276 = vsel %vm1268, %v1227, %v1241
      %v1277 = vsel %vm1268, %v1229, %v1243
      %v1278 = vsel %vm1268, %v1231, %v1245
      %v1279 = vsel %vm1268, %v1233, %v1247
      %v1280 = vsel %vm1268, %v1235, %v1249
      %v1281 = vsel %vm1268, %v1237, %v1251
      %v1282 = vsel %vm1268, %v1239, %v1253
      %v1283 = vsel %vm1268, %v1213, %v1227
      %v1284 = vsel %vm1268, %v1215, %v1229
      %v1285 = vsel %vm1268, %v1217, %v1231
      %v1286 = vsel %vm1268, %v1219, %v1233
      %v1287 = vsel %vm1268, %v1221, %v1235
      %v1288 = vsel %vm1268, %v1223, %v1237
      %v1289 = vsel %vm1268, %v1225, %v1239
      %v1290 = vsel %vm1268, %v1255, %v1213
      %v1291 = vsel %vm1268, %v1257, %v1215
      %v1292 = vsel %vm1268, %v1259, %v1217
      %v1293 = vsel %vm1268, %v1261, %v1219
      %v1294 = vsel %vm1268, %v1263, %v1221
      %v1295 = vsel %vm1268, %v1265, %v1223
      %v1296 = vsel %vm1268, %v1267, %v1225
      %vm1297 = vcmp.ge.s32.totalorder %v929, 2
      %vm1298 = vcmp.ge.s32.totalorder %v930, 2
      %vm1299 = vcmp.ge.s32.totalorder %v931, 2
      %vm1300 = vcmp.ge.s32.totalorder %v932, 2
      %v1301 = vsel %vm1297, 1, 0
      %v1302 = vsel %vm1298, 1, 0
      %v1303 = vsel %vm1299, 1, 0
      %v1304 = vsel %vm1300, 1, 0
      %vm1305 = vcmp.eq.s32.totalorder %v1301, 1
      %vm1306 = vcmp.eq.s32.totalorder %v1302, 1
      %vm1307 = vcmp.eq.s32.totalorder %v1303, 1
      %vm1308 = vcmp.eq.s32.totalorder %v1304, 1
      %v1309 = vsel %vm1305, %v1290, 0.0
      %v1310 = vsel %vm1306, %v1283, 0.0
      %v1311 = vsel %vm1307, %v1276, 0.0
      %v1312 = vsel %vm1308, %v1269, 0.0
      %v1313 = vsel %vm1305, %v1291, 0.0
      %v1314 = vsel %vm1306, %v1284, 0.0
      %v1315 = vsel %vm1307, %v1277, 0.0
      %v1316 = vsel %vm1308, %v1270, 0.0
      %v1317 = vsel %vm1305, %v1292, 0.0
      %v1318 = vsel %vm1306, %v1285, 0.0
      %v1319 = vsel %vm1307, %v1278, 0.0
      %v1320 = vsel %vm1308, %v1271, 0.0
      %v1321 = vsel %vm1305, %v1293, 0.0
      %v1322 = vsel %vm1306, %v1286, 0.0
      %v1323 = vsel %vm1307, %v1279, 0.0
      %v1324 = vsel %vm1308, %v1272, 0.0
      %v1325 = vsel %vm1305, %v1294, 0.0
      %v1326 = vsel %vm1306, %v1287, 0.0
      %v1327 = vsel %vm1307, %v1280, 0.0
      %v1328 = vsel %vm1308, %v1273, 0.0
      %v1329 = vsel %vm1305, %v1295, 0.0
      %v1330 = vsel %vm1306, %v1288, 0.0
      %v1331 = vsel %vm1307, %v1281, 0.0
      %v1332 = vsel %vm1308, %v1274, 0.0
      %v1333 = vsel %vm1305, %v1296, 0.0
      %v1334 = vsel %vm1306, %v1289, 0.0
      %v1335 = vsel %vm1307, %v1282, 0.0
      %v1336 = vsel %vm1308, %v1275, 0.0
      %1337 = vset.pattern.permute.xlu0 1
      %1338 = vperm.xlu0 %1337, %v933
      %v1339 = vpop.permute.xlu0 %1338
      %1341 = vset.pattern.permute.xlu0 1
      %1342 = vperm.xlu0 %1341, %v934
      %v1343 = vpop.permute.xlu0 %1342
      %1345 = vset.pattern.permute.xlu0 1
      %1346 = vperm.xlu0 %1345, %v935
      %v1347 = vpop.permute.xlu0 %1346
      %1349 = vset.pattern.permute.xlu0 1
      %1350 = vperm.xlu0 %1349, %v936
      %v1351 = vpop.permute.xlu0 %1350
      %1353 = vset.pattern.permute.xlu0 1
      %1354 = vperm.xlu0 %1353, %v937
      %v1355 = vpop.permute.xlu0 %1354
      %1357 = vset.pattern.permute.xlu0 1
      %1358 = vperm.xlu0 %1357, %v938
      %v1359 = vpop.permute.xlu0 %1358
      %1361 = vset.pattern.permute.xlu0 1
      %1362 = vperm.xlu0 %1361, %v939
      %v1363 = vpop.permute.xlu0 %1362
      %v1365 = vmul.f32 %v1339, %v1309
      %v1366 = vmul.f32 %v1339, %v1310
      %v1367 = vmul.f32 %v1339, %v1311
      %v1368 = vmul.f32 %v1339, %v1312
      %v1369 = vmul.f32 %v1343, %v1313
      %v1370 = vmul.f32 %v1343, %v1314
      %v1371 = vmul.f32 %v1343, %v1315
      %v1372 = vmul.f32 %v1343, %v1316
      %v1373 = vmul.f32 %v1347, %v1317
      %v1374 = vmul.f32 %v1347, %v1318
      %v1375 = vmul.f32 %v1347, %v1319
      %v1376 = vmul.f32 %v1347, %v1320
      %v1377 = vmul.f32 %v1351, %v1321
      %v1378 = vmul.f32 %v1351, %v1322
      %v1379 = vmul.f32 %v1351, %v1323
      %v1380 = vmul.f32 %v1351, %v1324
      %v1381 = vmul.f32 %v1355, %v1325
      %v1382 = vmul.f32 %v1355, %v1326
      %v1383 = vmul.f32 %v1355, %v1327
      %v1384 = vmul.f32 %v1355, %v1328
      %v1385 = vmul.f32 %v1359, %v1329
      %v1386 = vmul.f32 %v1359, %v1330
      %v1387 = vmul.f32 %v1359, %v1331
      %v1388 = vmul.f32 %v1359, %v1332
      %v1389 = vmul.f32 %v1363, %v1333
      %v1390 = vmul.f32 %v1363, %v1334
      %v1391 = vmul.f32 %v1363, %v1335
      %v1392 = vmul.f32 %v1363, %v1336
      %v1393 = vadd.f32 %v1184, %v1365
      %v1394 = vadd.f32 %v1185, %v1366
      %v1395 = vadd.f32 %v1186, %v1367
      %v1396 = vadd.f32 %v1187, %v1368
      %v1397 = vadd.f32 %v1188, %v1369
      %v1398 = vadd.f32 %v1189, %v1370
      %v1399 = vadd.f32 %v1190, %v1371
      %v1400 = vadd.f32 %v1191, %v1372
      %v1401 = vadd.f32 %v1192, %v1373
      %v1402 = vadd.f32 %v1193, %v1374
      %v1403 = vadd.f32 %v1194, %v1375
      %v1404 = vadd.f32 %v1195, %v1376
      %v1405 = vadd.f32 %v1196, %v1377
      %v1406 = vadd.f32 %v1197, %v1378
      %v1407 = vadd.f32 %v1198, %v1379
      %v1408 = vadd.f32 %v1199, %v1380
      %v1409 = vadd.f32 %v1200, %v1381
      %v1410 = vadd.f32 %v1201, %v1382
      %v1411 = vadd.f32 %v1202, %v1383
      %v1412 = vadd.f32 %v1203, %v1384
      %v1413 = vadd.f32 %v1204, %v1385
      %v1414 = vadd.f32 %v1205, %v1386
      %v1415 = vadd.f32 %v1206, %v1387
      %v1416 = vadd.f32 %v1207, %v1388
      %v1417 = vadd.f32 %v1208, %v1389
      %v1418 = vadd.f32 %v1209, %v1390
      %v1419 = vadd.f32 %v1210, %v1391
      %v1420 = vadd.f32 %v1211, %v1392
      %1421 = vrot.lane.b32.xlu0 %v757, 1
      %v1422 = vpop.permute.xlu0 %1421
      %1423 = vrot.lane.b32.xlu0 %v761, 1
      %v1424 = vpop.permute.xlu0 %1423
      %1425 = vrot.lane.b32.xlu0 %v767, 1
      %v1426 = vpop.permute.xlu0 %1425
      %1427 = vrot.lane.b32.xlu0 %v771, 1
      %v1428 = vpop.permute.xlu0 %1427
      %1429 = vrot.lane.b32.xlu0 %v777, 1
      %v1430 = vpop.permute.xlu0 %1429
      %1431 = vrot.lane.b32.xlu0 %v781, 1
      %v1432 = vpop.permute.xlu0 %1431
      %1433 = vrot.lane.b32.xlu0 %v787, 1
      %v1434 = vpop.permute.xlu0 %1433
      %1435 = vrot.lane.b32.xlu0 %v759, 1
      %v1436 = vpop.permute.xlu0 %1435
      %1437 = vrot.lane.b32.xlu0 %v763, 1
      %v1438 = vpop.permute.xlu0 %1437
      %1439 = vrot.lane.b32.xlu0 %v769, 1
      %v1440 = vpop.permute.xlu0 %1439
      %1441 = vrot.lane.b32.xlu0 %v773, 1
      %v1442 = vpop.permute.xlu0 %1441
      %1443 = vrot.lane.b32.xlu0 %v779, 1
      %v1444 = vpop.permute.xlu0 %1443
      %1445 = vrot.lane.b32.xlu0 %v783, 1
      %v1446 = vpop.permute.xlu0 %1445
      %1447 = vrot.lane.b32.xlu0 %v789, 1
      %v1448 = vpop.permute.xlu0 %1447
      %1449 = vrot.lane.b32.xlu0 %v860, 1
      %v1450 = vpop.permute.xlu0 %1449
      %1451 = vrot.lane.b32.xlu0 %v864, 1
      %v1452 = vpop.permute.xlu0 %1451
      %1453 = vrot.lane.b32.xlu0 %v870, 1
      %v1454 = vpop.permute.xlu0 %1453
      %1455 = vrot.lane.b32.xlu0 %v874, 1
      %v1456 = vpop.permute.xlu0 %1455
      %1457 = vrot.lane.b32.xlu0 %v880, 1
      %v1458 = vpop.permute.xlu0 %1457
      %1459 = vrot.lane.b32.xlu0 %v884, 1
      %v1460 = vpop.permute.xlu0 %1459
      %1461 = vrot.lane.b32.xlu0 %v890, 1
      %v1462 = vpop.permute.xlu0 %1461
      %1463 = vrot.lane.b32.xlu0 %v862, 1
      %v1464 = vpop.permute.xlu0 %1463
      %1465 = vrot.lane.b32.xlu0 %v866, 1
      %v1466 = vpop.permute.xlu0 %1465
      %1467 = vrot.lane.b32.xlu0 %v872, 1
      %v1468 = vpop.permute.xlu0 %1467
      %1469 = vrot.lane.b32.xlu0 %v876, 1
      %v1470 = vpop.permute.xlu0 %1469
      %1471 = vrot.lane.b32.xlu0 %v882, 1
      %v1472 = vpop.permute.xlu0 %1471
      %1473 = vrot.lane.b32.xlu0 %v886, 1
      %v1474 = vpop.permute.xlu0 %1473
      %1475 = vrot.lane.b32.xlu0 %v892, 1
      %v1476 = vpop.permute.xlu0 %1475
      %vm1477 = vcmp.lt.s32.totalorder %v929, 1
      %v1478 = vsel %vm1477, %v1450, %v1464
      %v1479 = vsel %vm1477, %v1452, %v1466
      %v1480 = vsel %vm1477, %v1454, %v1468
      %v1481 = vsel %vm1477, %v1456, %v1470
      %v1482 = vsel %vm1477, %v1458, %v1472
      %v1483 = vsel %vm1477, %v1460, %v1474
      %v1484 = vsel %vm1477, %v1462, %v1476
      %v1485 = vsel %vm1477, %v1436, %v1450
      %v1486 = vsel %vm1477, %v1438, %v1452
      %v1487 = vsel %vm1477, %v1440, %v1454
      %v1488 = vsel %vm1477, %v1442, %v1456
      %v1489 = vsel %vm1477, %v1444, %v1458
      %v1490 = vsel %vm1477, %v1446, %v1460
      %v1491 = vsel %vm1477, %v1448, %v1462
      %v1492 = vsel %vm1477, %v1422, %v1436
      %v1493 = vsel %vm1477, %v1424, %v1438
      %v1494 = vsel %vm1477, %v1426, %v1440
      %v1495 = vsel %vm1477, %v1428, %v1442
      %v1496 = vsel %vm1477, %v1430, %v1444
      %v1497 = vsel %vm1477, %v1432, %v1446
      %v1498 = vsel %vm1477, %v1434, %v1448
      %v1499 = vsel %vm1477, %v1464, %v1422
      %v1500 = vsel %vm1477, %v1466, %v1424
      %v1501 = vsel %vm1477, %v1468, %v1426
      %v1502 = vsel %vm1477, %v1470, %v1428
      %v1503 = vsel %vm1477, %v1472, %v1430
      %v1504 = vsel %vm1477, %v1474, %v1432
      %v1505 = vsel %vm1477, %v1476, %v1434
      %vm1506 = vcmp.ge.s32.totalorder %v929, 1
      %vm1507 = vcmp.ge.s32.totalorder %v930, 1
      %vm1508 = vcmp.ge.s32.totalorder %v931, 1
      %vm1509 = vcmp.ge.s32.totalorder %v932, 1
      %v1510 = vsel %vm1506, 1, 0
      %v1511 = vsel %vm1507, 1, 0
      %v1512 = vsel %vm1508, 1, 0
      %v1513 = vsel %vm1509, 1, 0
      %vm1514 = vcmp.eq.s32.totalorder %v1510, 1
      %vm1515 = vcmp.eq.s32.totalorder %v1511, 1
      %vm1516 = vcmp.eq.s32.totalorder %v1512, 1
      %vm1517 = vcmp.eq.s32.totalorder %v1513, 1
      %v1518 = vsel %vm1514, %v1499, 0.0
      %v1519 = vsel %vm1515, %v1492, 0.0
      %v1520 = vsel %vm1516, %v1485, 0.0
      %v1521 = vsel %vm1517, %v1478, 0.0
      %v1522 = vsel %vm1514, %v1500, 0.0
      %v1523 = vsel %vm1515, %v1493, 0.0
      %v1524 = vsel %vm1516, %v1486, 0.0
      %v1525 = vsel %vm1517, %v1479, 0.0
      %v1526 = vsel %vm1514, %v1501, 0.0
      %v1527 = vsel %vm1515, %v1494, 0.0
      %v1528 = vsel %vm1516, %v1487, 0.0
      %v1529 = vsel %vm1517, %v1480, 0.0
      %v1530 = vsel %vm1514, %v1502, 0.0
      %v1531 = vsel %vm1515, %v1495, 0.0
      %v1532 = vsel %vm1516, %v1488, 0.0
      %v1533 = vsel %vm1517, %v1481, 0.0
      %v1534 = vsel %vm1514, %v1503, 0.0
      %v1535 = vsel %vm1515, %v1496, 0.0
      %v1536 = vsel %vm1516, %v1489, 0.0
      %v1537 = vsel %vm1517, %v1482, 0.0
      %v1538 = vsel %vm1514, %v1504, 0.0
      %v1539 = vsel %vm1515, %v1497, 0.0
      %v1540 = vsel %vm1516, %v1490, 0.0
      %v1541 = vsel %vm1517, %v1483, 0.0
      %v1542 = vsel %vm1514, %v1505, 0.0
      %v1543 = vsel %vm1515, %v1498, 0.0
      %v1544 = vsel %vm1516, %v1491, 0.0
      %v1545 = vsel %vm1517, %v1484, 0.0
      %1546 = vset.pattern.permute.xlu0 2
      %1547 = vperm.xlu0 %1546, %v933
      %v1548 = vpop.permute.xlu0 %1547
      %1550 = vset.pattern.permute.xlu0 2
      %1551 = vperm.xlu0 %1550, %v934
      %v1552 = vpop.permute.xlu0 %1551
      %1554 = vset.pattern.permute.xlu0 2
      %1555 = vperm.xlu0 %1554, %v935
      %v1556 = vpop.permute.xlu0 %1555
      %1558 = vset.pattern.permute.xlu0 2
      %1559 = vperm.xlu0 %1558, %v936
      %v1560 = vpop.permute.xlu0 %1559
      %1562 = vset.pattern.permute.xlu0 2
      %1563 = vperm.xlu0 %1562, %v937
      %v1564 = vpop.permute.xlu0 %1563
      %1566 = vset.pattern.permute.xlu0 2
      %1567 = vperm.xlu0 %1566, %v938
      %v1568 = vpop.permute.xlu0 %1567
      %1570 = vset.pattern.permute.xlu0 2
      %1571 = vperm.xlu0 %1570, %v939
      %v1572 = vpop.permute.xlu0 %1571
      %v1574 = vmul.f32 %v1548, %v1518
      %v1575 = vmul.f32 %v1548, %v1519
      %v1576 = vmul.f32 %v1548, %v1520
      %v1577 = vmul.f32 %v1548, %v1521
      %v1578 = vmul.f32 %v1552, %v1522
      %v1579 = vmul.f32 %v1552, %v1523
      %v1580 = vmul.f32 %v1552, %v1524
      %v1581 = vmul.f32 %v1552, %v1525
      %v1582 = vmul.f32 %v1556, %v1526
      %v1583 = vmul.f32 %v1556, %v1527
      %v1584 = vmul.f32 %v1556, %v1528
      %v1585 = vmul.f32 %v1556, %v1529
      %v1586 = vmul.f32 %v1560, %v1530
      %v1587 = vmul.f32 %v1560, %v1531
      %v1588 = vmul.f32 %v1560, %v1532
      %v1589 = vmul.f32 %v1560, %v1533
      %v1590 = vmul.f32 %v1564, %v1534
      %v1591 = vmul.f32 %v1564, %v1535
      %v1592 = vmul.f32 %v1564, %v1536
      %v1593 = vmul.f32 %v1564, %v1537
      %v1594 = vmul.f32 %v1568, %v1538
      %v1595 = vmul.f32 %v1568, %v1539
      %v1596 = vmul.f32 %v1568, %v1540
      %v1597 = vmul.f32 %v1568, %v1541
      %v1598 = vmul.f32 %v1572, %v1542
      %v1599 = vmul.f32 %v1572, %v1543
      %v1600 = vmul.f32 %v1572, %v1544
      %v1601 = vmul.f32 %v1572, %v1545
      %v1602 = vadd.f32 %v1393, %v1574
      %v1603 = vadd.f32 %v1394, %v1575
      %v1604 = vadd.f32 %v1395, %v1576
      %v1605 = vadd.f32 %v1396, %v1577
      %v1606 = vadd.f32 %v1397, %v1578
      %v1607 = vadd.f32 %v1398, %v1579
      %v1608 = vadd.f32 %v1399, %v1580
      %v1609 = vadd.f32 %v1400, %v1581
      %v1610 = vadd.f32 %v1401, %v1582
      %v1611 = vadd.f32 %v1402, %v1583
      %v1612 = vadd.f32 %v1403, %v1584
      %v1613 = vadd.f32 %v1404, %v1585
      %v1614 = vadd.f32 %v1405, %v1586
      %v1615 = vadd.f32 %v1406, %v1587
      %v1616 = vadd.f32 %v1407, %v1588
      %v1617 = vadd.f32 %v1408, %v1589
      %v1618 = vadd.f32 %v1409, %v1590
      %v1619 = vadd.f32 %v1410, %v1591
      %v1620 = vadd.f32 %v1411, %v1592
      %v1621 = vadd.f32 %v1412, %v1593
      %v1622 = vadd.f32 %v1413, %v1594
      %v1623 = vadd.f32 %v1414, %v1595
      %v1624 = vadd.f32 %v1415, %v1596
      %v1625 = vadd.f32 %v1416, %v1597
      %v1626 = vadd.f32 %v1417, %v1598
      %v1627 = vadd.f32 %v1418, %v1599
      %v1628 = vadd.f32 %v1419, %v1600
      %v1629 = vadd.f32 %v1420, %v1601
      %v1630 = vld [vmem:[%s5] sm:$0xff]
      %v1631 = vld [vmem:[%s5 + $0x8] sm:$0xff]
      %v1632 = vld [vmem:[%s5 + $0x10] sm:$0xff]
      %v1633 = vld [vmem:[%s5 + $0x18] sm:$0xff]
      %v1634 = vld [vmem:[%s5 + $0x20] sm:$0xff]
      %v1635 = vld [vmem:[%s5 + $0x28] sm:$0xff]
      %v1636 = vld [vmem:[%s5 + $0x30] sm:$0xff]
      %1638 = vset.pattern.permute.xlu0 0
      %1639 = vperm.xlu0 %1638, %v1630
      %v1640 = vpop.permute.xlu0 %1639
      %1643 = vset.pattern.permute.xlu0 0
      %1644 = vperm.xlu0 %1643, %v1631
      %v1645 = vpop.permute.xlu0 %1644
      %1648 = vset.pattern.permute.xlu0 0
      %1649 = vperm.xlu0 %1648, %v1632
      %v1650 = vpop.permute.xlu0 %1649
      %1653 = vset.pattern.permute.xlu0 0
      %1654 = vperm.xlu0 %1653, %v1633
      %v1655 = vpop.permute.xlu0 %1654
      %1658 = vset.pattern.permute.xlu0 0
      %1659 = vperm.xlu0 %1658, %v1634
      %v1660 = vpop.permute.xlu0 %1659
      %1663 = vset.pattern.permute.xlu0 0
      %1664 = vperm.xlu0 %1663, %v1635
      %v1665 = vpop.permute.xlu0 %1664
      %1668 = vset.pattern.permute.xlu0 0
      %1669 = vperm.xlu0 %1668, %v1636
      %v1670 = vpop.permute.xlu0 %1669
      %v1672 = vadd.f32 %v1602, %v1640
      %v1673 = vadd.f32 %v1603, %v1640
      %v1674 = vadd.f32 %v1604, %v1640
      %v1675 = vadd.f32 %v1605, %v1640
      %v1676 = vadd.f32 %v1606, %v1645
      %v1677 = vadd.f32 %v1607, %v1645
      %v1678 = vadd.f32 %v1608, %v1645
      %v1679 = vadd.f32 %v1609, %v1645
      %v1680 = vadd.f32 %v1610, %v1650
      %v1681 = vadd.f32 %v1611, %v1650
      %v1682 = vadd.f32 %v1612, %v1650
      %v1683 = vadd.f32 %v1613, %v1650
      %v1684 = vadd.f32 %v1614, %v1655
      %v1685 = vadd.f32 %v1615, %v1655
      %v1686 = vadd.f32 %v1616, %v1655
      %v1687 = vadd.f32 %v1617, %v1655
      %v1688 = vadd.f32 %v1618, %v1660
      %v1689 = vadd.f32 %v1619, %v1660
      %v1690 = vadd.f32 %v1620, %v1660
      %v1691 = vadd.f32 %v1621, %v1660
      %v1692 = vadd.f32 %v1622, %v1665
      %v1693 = vadd.f32 %v1623, %v1665
      %v1694 = vadd.f32 %v1624, %v1665
      %v1695 = vadd.f32 %v1625, %v1665
      %v1696 = vadd.f32 %v1626, %v1670
      %v1697 = vadd.f32 %v1627, %v1670
      %v1698 = vadd.f32 %v1628, %v1670
      %v1699 = vadd.f32 %v1629, %v1670
      %v1700 = vsub.f32 0.0, %v1672
      %v1701 = vsub.f32 0.0, %v1673
      %v1702 = vsub.f32 0.0, %v1674
      %v1703 = vsub.f32 0.0, %v1675
      %v1704 = vsub.f32 0.0, %v1676
      %v1705 = vsub.f32 0.0, %v1677
      %v1706 = vsub.f32 0.0, %v1678
      %v1707 = vsub.f32 0.0, %v1679
      %v1708 = vsub.f32 0.0, %v1680
      %v1709 = vsub.f32 0.0, %v1681
      %v1710 = vsub.f32 0.0, %v1682
      %v1711 = vsub.f32 0.0, %v1683
      %v1712 = vsub.f32 0.0, %v1684
      %v1713 = vsub.f32 0.0, %v1685
      %v1714 = vsub.f32 0.0, %v1686
      %v1715 = vsub.f32 0.0, %v1687
      %v1716 = vsub.f32 0.0, %v1688
      %v1717 = vsub.f32 0.0, %v1689
      %v1718 = vsub.f32 0.0, %v1690
      %v1719 = vsub.f32 0.0, %v1691
      %v1720 = vsub.f32 0.0, %v1692
      %v1721 = vsub.f32 0.0, %v1693
      %v1722 = vsub.f32 0.0, %v1694
      %v1723 = vsub.f32 0.0, %v1695
      %v1724 = vsub.f32 0.0, %v1696
      %v1725 = vsub.f32 0.0, %v1697
      %v1726 = vsub.f32 0.0, %v1698
      %v1727 = vsub.f32 0.0, %v1699
      %v1728 = vmul.f32 %v1700, 1.442695
      %v1729 = vpow.pop %v1728
      %v1730 = vmul.f32 %v1701, 1.442695
      %v1731 = vpow.pop %v1730
      %v1732 = vmul.f32 %v1702, 1.442695
      %v1733 = vpow.pop %v1732
      %v1734 = vmul.f32 %v1703, 1.442695
      %v1735 = vpow.pop %v1734
      %v1736 = vmul.f32 %v1704, 1.442695
      %v1737 = vpow.pop %v1736
      %v1738 = vmul.f32 %v1705, 1.442695
      %v1739 = vpow.pop %v1738
      %v1740 = vmul.f32 %v1706, 1.442695
      %v1741 = vpow.pop %v1740
      %v1742 = vmul.f32 %v1707, 1.442695
      %v1743 = vpow.pop %v1742
      %v1744 = vmul.f32 %v1708, 1.442695
      %v1745 = vpow.pop %v1744
      %v1746 = vmul.f32 %v1709, 1.442695
      %v1747 = vpow.pop %v1746
      %v1748 = vmul.f32 %v1710, 1.442695
      %v1749 = vpow.pop %v1748
      %v1750 = vmul.f32 %v1711, 1.442695
      %v1751 = vpow.pop %v1750
      %v1752 = vmul.f32 %v1712, 1.442695
      %v1753 = vpow.pop %v1752
      %v1754 = vmul.f32 %v1713, 1.442695
      %v1755 = vpow.pop %v1754
      %v1756 = vmul.f32 %v1714, 1.442695
      %v1757 = vpow.pop %v1756
      %v1758 = vmul.f32 %v1715, 1.442695
      %v1759 = vpow.pop %v1758
      %v1760 = vmul.f32 %v1716, 1.442695
      %v1761 = vpow.pop %v1760
      %v1762 = vmul.f32 %v1717, 1.442695
      %v1763 = vpow.pop %v1762
      %v1764 = vmul.f32 %v1718, 1.442695
      %v1765 = vpow.pop %v1764
      %v1766 = vmul.f32 %v1719, 1.442695
      %v1767 = vpow.pop %v1766
      %v1768 = vmul.f32 %v1720, 1.442695
      %v1769 = vpow.pop %v1768
      %v1770 = vmul.f32 %v1721, 1.442695
      %v1771 = vpow.pop %v1770
      %v1772 = vmul.f32 %v1722, 1.442695
      %v1773 = vpow.pop %v1772
      %v1774 = vmul.f32 %v1723, 1.442695
      %v1775 = vpow.pop %v1774
      %v1776 = vmul.f32 %v1724, 1.442695
      %v1777 = vpow.pop %v1776
      %v1778 = vmul.f32 %v1725, 1.442695
      %v1779 = vpow.pop %v1778
      %v1780 = vmul.f32 %v1726, 1.442695
      %v1781 = vpow.pop %v1780
      %v1782 = vmul.f32 %v1727, 1.442695
      %v1783 = vpow.pop %v1782
      %v1784 = vadd.f32 %v1729, 1.0
      %v1785 = vadd.f32 %v1731, 1.0
      %v1786 = vadd.f32 %v1733, 1.0
      %v1787 = vadd.f32 %v1735, 1.0
      %v1788 = vadd.f32 %v1737, 1.0
      %v1789 = vadd.f32 %v1739, 1.0
      %v1790 = vadd.f32 %v1741, 1.0
      %v1791 = vadd.f32 %v1743, 1.0
      %v1792 = vadd.f32 %v1745, 1.0
      %v1793 = vadd.f32 %v1747, 1.0
      %v1794 = vadd.f32 %v1749, 1.0
      %v1795 = vadd.f32 %v1751, 1.0
      %v1796 = vadd.f32 %v1753, 1.0
      %v1797 = vadd.f32 %v1755, 1.0
      %v1798 = vadd.f32 %v1757, 1.0
      %v1799 = vadd.f32 %v1759, 1.0
      %v1800 = vadd.f32 %v1761, 1.0
      %v1801 = vadd.f32 %v1763, 1.0
      %v1802 = vadd.f32 %v1765, 1.0
      %v1803 = vadd.f32 %v1767, 1.0
      %v1804 = vadd.f32 %v1769, 1.0
      %v1805 = vadd.f32 %v1771, 1.0
      %v1806 = vadd.f32 %v1773, 1.0
      %v1807 = vadd.f32 %v1775, 1.0
      %v1808 = vadd.f32 %v1777, 1.0
      %v1809 = vadd.f32 %v1779, 1.0
      %v1810 = vadd.f32 %v1781, 1.0
      %v1811 = vadd.f32 %v1783, 1.0
      %v1812 = vrcp.pop %v1784
      %v1813 = vrcp.pop %v1785
      %v1814 = vrcp.pop %v1786
      %v1815 = vrcp.pop %v1787
      %v1816 = vrcp.pop %v1788
      %v1817 = vrcp.pop %v1789
      %v1818 = vrcp.pop %v1790
      %v1819 = vrcp.pop %v1791
      %v1820 = vrcp.pop %v1792
      %v1821 = vrcp.pop %v1793
      %v1822 = vrcp.pop %v1794
      %v1823 = vrcp.pop %v1795
      %v1824 = vrcp.pop %v1796
      %v1825 = vrcp.pop %v1797
      %v1826 = vrcp.pop %v1798
      %v1827 = vrcp.pop %v1799
      %v1828 = vrcp.pop %v1800
      %v1829 = vrcp.pop %v1801
      %v1830 = vrcp.pop %v1802
      %v1831 = vrcp.pop %v1803
      %v1832 = vrcp.pop %v1804
      %v1833 = vrcp.pop %v1805
      %v1834 = vrcp.pop %v1806
      %v1835 = vrcp.pop %v1807
      %v1836 = vrcp.pop %v1808
      %v1837 = vrcp.pop %v1809
      %v1838 = vrcp.pop %v1810
      %v1839 = vrcp.pop %v1811
      %v1840 = vmul.f32 %v1672, %v1812
      %v1841 = vmul.f32 %v1673, %v1813
      %v1842 = vmul.f32 %v1674, %v1814
      %v1843 = vmul.f32 %v1675, %v1815
      %v1844 = vmul.f32 %v1676, %v1816
      %v1845 = vmul.f32 %v1677, %v1817
      %v1846 = vmul.f32 %v1678, %v1818
      %v1847 = vmul.f32 %v1679, %v1819
      %v1848 = vmul.f32 %v1680, %v1820
      %v1849 = vmul.f32 %v1681, %v1821
      %v1850 = vmul.f32 %v1682, %v1822
      %v1851 = vmul.f32 %v1683, %v1823
      %v1852 = vmul.f32 %v1684, %v1824
      %v1853 = vmul.f32 %v1685, %v1825
      %v1854 = vmul.f32 %v1686, %v1826
      %v1855 = vmul.f32 %v1687, %v1827
      %v1856 = vmul.f32 %v1688, %v1828
      %v1857 = vmul.f32 %v1689, %v1829
      %v1858 = vmul.f32 %v1690, %v1830
      %v1859 = vmul.f32 %v1691, %v1831
      %v1860 = vmul.f32 %v1692, %v1832
      %v1861 = vmul.f32 %v1693, %v1833
      %v1862 = vmul.f32 %v1694, %v1834
      %v1863 = vmul.f32 %v1695, %v1835
      %v1864 = vmul.f32 %v1696, %v1836
      %v1865 = vmul.f32 %v1697, %v1837
      %v1866 = vmul.f32 %v1698, %v1838
      %v1867 = vmul.f32 %v1699, %v1839
      %v1868 = vld [vmem:[%s6] sm:$0xf]
      %v1869 = vld [vmem:[%s6 + $0x4] sm:$0xf]
      %v1870 = vld [vmem:[%s6 + $0x8] sm:$0xf]
      %v1871 = vld [vmem:[%s6 + $0xc] sm:$0xf]
      %v1872 = vld [vmem:[%s6 + $0x10] sm:$0xf]
      %v1873 = vld [vmem:[%s6 + $0x14] sm:$0xf]
      %v1874 = vld [vmem:[%s6 + $0x18] sm:$0xf]
      %v1875 = vld [vmem:[%s6 + $0x1c] sm:$0xf]
      %v1876 = vld [vmem:[%s6 + $0x20] sm:$0xf]
      %v1877 = vld [vmem:[%s6 + $0x24] sm:$0xf]
      %v1878 = vld [vmem:[%s6 + $0x28] sm:$0xf]
      %v1879 = vpack.c.bf16 %v1844, %v1840
      %v1880 = vpack.c.bf16 %v1845, %v1841
      %v1881 = vpack.c.bf16 %v1846, %v1842
      %v1882 = vpack.c.bf16 %v1847, %v1843
      %v1883 = vpack.c.bf16 %v1852, %v1848
      %v1884 = vpack.c.bf16 %v1853, %v1849
      %v1885 = vpack.c.bf16 %v1854, %v1850
      %v1886 = vpack.c.bf16 %v1855, %v1851
      %v1887 = vpack.c.bf16 %v1860, %v1856
      %v1888 = vpack.c.bf16 %v1861, %v1857
      %v1889 = vpack.c.bf16 %v1862, %v1858
      %v1890 = vpack.c.bf16 %v1863, %v1859
      %v1891 = vpack.c.bf16 %v1864, %v1864
      %v1892 = vpack.c.bf16 %v1865, %v1865
      %v1893 = vpack.c.bf16 %v1866, %v1866
      %v1894 = vpack.c.bf16 %v1867, %v1867
      %v1906 = vunpack.c.l.b16 %v1868
      %v1907 = vunpack.c.l.b16 %v1869
      %v1908 = vunpack.c.l.b16 %v1870
      %v1909 = vunpack.c.l.b16 %v1871
      %v1910 = vunpack.c.l.b16 %v1872
      %v1911 = vunpack.c.l.b16 %v1873
      %v1912 = vunpack.c.l.b16 %v1874
      %v1913 = vunpack.c.l.b16 %v1875
      %v1914 = vunpack.c.l.b16 %v1876
      %v1915 = vunpack.c.l.b16 %v1877
      %v1916 = vunpack.c.l.b16 %v1878
      %v1917 = vpack.c.b16 %v1907, %v1906
      %v1918 = vpack.c.b16 %v1909, %v1908
      %v1919 = vpack.c.b16 %v1911, %v1910
      %v1920 = vpack.c.b16 %v1913, %v1912
      %v1921 = vpack.c.b16 %v1915, %v1914
      %v1922 = vpack.c.b16 %v1916, %v1916
      %vm1923 = vcmask 457728
      %v1925 = vsel %vm1923, %v1917, 0
      %v1928 = vsel %vm1923, %v1918, 0
      %v1931 = vsel %vm1923, %v1919, 0
      %v1934 = vsel %vm1923, %v1920, 0
      %v1937 = vsel %vm1923, %v1921, 0
      %v1940 = vsel %vm1923, %v1922, 0
      %v1943 = vsel %vm406, %v1891, 0
      %v1946 = vsel %vm406, %v1892, 0
      %v1949 = vsel %vm406, %v1893, 0
      %v1952 = vsel %vm406, %v1894, 0
      %1954 = vmatprep.subr.bf16.mxu0 %v1880
      %1955 = vmatpush1.bf16.msra.mxu0 %v1879
      %1956 = vmatprep.subr.bf16.mxu0 %v1884
      %1957 = vmatpush1.bf16.msra.mxu0 %v1883
      %1958 = vmatprep.subr.bf16.mxu0 %v1888
      %1959 = vmatpush1.bf16.msra.mxu0 %v1887
      %1960 = vmatprep.subr.bf16.mxu0 %v1946
      %1961 = vmatpush1.bf16.msra.mxu0 %v1943
      %1962 = vmatprep.subr.bf16.mxu0 0
      %1963 = vmatpush1.bf16.msra.mxu0 0
      %1964 = vmatprep.subr.bf16.mxu0 0
      %1965 = vmatpush1.bf16.msra.mxu0 0
      %1966 = vmatprep.subr.bf16.mxu0 0
      %1967 = vmatpush1.bf16.msra.mxu0 0
      %1968 = vmatprep.subr.bf16.mxu0 0
      %1969 = vmatpush1.bf16.msra.mxu0 0
      %1970 = vmatprep.subr.bf16.mxu0 0
      %1971 = vmatpush1.bf16.msra.mxu0 0
      %1972 = vmatprep.subr.bf16.mxu0 0
      %1973 = vmatpush1.bf16.msra.mxu0 0
      %1974 = vmatprep.subr.bf16.mxu0 0
      %1975 = vmatpush1.bf16.msra.mxu0 0
      %1976 = vmatprep.subr.bf16.mxu0 0
      %1977 = vmatpush1.bf16.msra.mxu0 0
      %1978 = vmatprep.subr.bf16.mxu0 0
      %1979 = vmatpush1.bf16.msra.mxu0 0
      %1980 = vmatprep.subr.bf16.mxu0 0
      %1981 = vmatpush1.bf16.msra.mxu0 0
      %1982 = vmatprep.subr.bf16.mxu0 0
      %1983 = vmatpush1.bf16.msra.mxu0 0
      %1984 = vmatprep.subr.bf16.mxu0 0
      %1985 = vmatpush1.bf16.msra.mxu0 0
      %1986 = vmatprep.mubr.bf16.mxu0 0
      %1987 = vmatmul.mubr.bf16.gmra.mrb[0].mxu0 %v1925
      %v1988 = vpop.f32.mrb[0].mxu0
      %v1989 = vadd.f32 0.0, %v1988
      %v1990 = vpop.f32.mrb[0].mxu0
      %v1991 = vadd.f32 0.0, %v1990
      %v1992 = vpop.f32.mrb[0].mxu0
      %v1993 = vadd.f32 0.0, %v1992
      %v1994 = vpop.f32.mrb[0].mxu0
      %v1995 = vadd.f32 0.0, %v1994
      %1996 = vmatprep.mubr.bf16.mxu0 0
      %1997 = vmatmul.mubr.bf16.gmra.mrb[0].mxu0 %v1928
      %v1998 = vpop.f32.mrb[0].mxu0
      %v1999 = vadd.f32 0.0, %v1998
      %v2000 = vpop.f32.mrb[0].mxu0
      %v2001 = vadd.f32 0.0, %v2000
      %v2002 = vpop.f32.mrb[0].mxu0
      %v2003 = vadd.f32 0.0, %v2002
      %v2004 = vpop.f32.mrb[0].mxu0
      %v2005 = vadd.f32 0.0, %v2004
      %2006 = vmatprep.mubr.bf16.mxu0 0
      %2007 = vmatmul.mubr.bf16.gmra.mrb[0].mxu0 %v1931
      %v2008 = vpop.f32.mrb[0].mxu0
      %v2009 = vadd.f32 0.0, %v2008
      %v2010 = vpop.f32.mrb[0].mxu0
      %v2011 = vadd.f32 0.0, %v2010
      %v2012 = vpop.f32.mrb[0].mxu0
      %v2013 = vadd.f32 0.0, %v2012
      %v2014 = vpop.f32.mrb[0].mxu0
      %v2015 = vadd.f32 0.0, %v2014
      %2016 = vmatprep.mubr.bf16.mxu0 0
      %2017 = vmatmul.mubr.bf16.gmra.mrb[0].mxu0 %v1934
      %v2018 = vpop.f32.mrb[0].mxu0
      %v2019 = vadd.f32 0.0, %v2018
      %v2020 = vpop.f32.mrb[0].mxu0
      %v2021 = vadd.f32 0.0, %v2020
      %v2022 = vpop.f32.mrb[0].mxu0
      %v2023 = vadd.f32 0.0, %v2022
      %v2024 = vpop.f32.mrb[0].mxu0
      %v2025 = vadd.f32 0.0, %v2024
      %2026 = vmatprep.mubr.bf16.mxu0 0
      %2027 = vmatmul.mubr.bf16.gmra.mrb[0].mxu0 %v1937
      %v2028 = vpop.f32.mrb[0].mxu0
      %v2029 = vadd.f32 0.0, %v2028
      %v2030 = vpop.f32.mrb[0].mxu0
      %v2031 = vadd.f32 0.0, %v2030
      %v2032 = vpop.f32.mrb[0].mxu0
      %v2033 = vadd.f32 0.0, %v2032
      %v2034 = vpop.f32.mrb[0].mxu0
      %v2035 = vadd.f32 0.0, %v2034
      %2036 = vmatprep.mubr.bf16.mxu0 0
      %2037 = vmatmul.mubr.bf16.gmra.mrb[0].mxu0 %v1940
      %v2038 = vpop.f32.mrb[0].mxu0
      %v2039 = vadd.f32 0.0, %v2038
      %v2040 = vpop.f32.mrb[0].mxu0
      %v2041 = vadd.f32 0.0, %v2040
      %v2042 = vpop.f32.mrb[0].mxu0
      %v2043 = vpop.f32.mrb[0].mxu0
      %2044 = vdwg.mxu0
      %2045 = vmatprep.subr.bf16.mxu0 %v1882
      %2046 = vmatpush1.bf16.msra.mxu0 %v1881
      %2047 = vmatprep.subr.bf16.mxu0 %v1886
      %2048 = vmatpush1.bf16.msra.mxu0 %v1885
      %2049 = vmatprep.subr.bf16.mxu0 %v1890
      %2050 = vmatpush1.bf16.msra.mxu0 %v1889
      %2051 = vmatprep.subr.bf16.mxu0 %v1952
      %2052 = vmatpush1.bf16.msra.mxu0 %v1949
      %2053 = vmatprep.subr.bf16.mxu0 0
      %2054 = vmatpush1.bf16.msra.mxu0 0
      %2055 = vmatprep.subr.bf16.mxu0 0
      %2056 = vmatpush1.bf16.msra.mxu0 0
      %2057 = vmatprep.subr.bf16.mxu0 0
      %2058 = vmatpush1.bf16.msra.mxu0 0
      %2059 = vmatprep.subr.bf16.mxu0 0
      %2060 = vmatpush1.bf16.msra.mxu0 0
      %2061 = vmatprep.subr.bf16.mxu0 0
      %2062 = vmatpush1.bf16.msra.mxu0 0
      %2063 = vmatprep.subr.bf16.mxu0 0
      %2064 = vmatpush1.bf16.msra.mxu0 0
      %2065 = vmatprep.subr.bf16.mxu0 0
      %2066 = vmatpush1.bf16.msra.mxu0 0
      %2067 = vmatprep.subr.bf16.mxu0 0
      %2068 = vmatpush1.bf16.msra.mxu0 0
      %2069 = vmatprep.subr.bf16.mxu0 0
      %2070 = vmatpush1.bf16.msra.mxu0 0
      %2071 = vmatprep.subr.bf16.mxu0 0
      %2072 = vmatpush1.bf16.msra.mxu0 0
      %2073 = vmatprep.subr.bf16.mxu0 0
      %2074 = vmatpush1.bf16.msra.mxu0 0
      %2075 = vmatprep.subr.bf16.mxu0 0
      %2076 = vmatpush1.bf16.msra.mxu0 0
      %2077 = vmatprep.mubr.bf16.mxu0 0
      %2078 = vmatmul.mubr.bf16.gmra.mrb[0].mxu0 %v1925
      %v2079 = vpop.f32.mrb[0].mxu0
      %v2080 = vadd.f32 0.0, %v2079
      %v2081 = vpop.f32.mrb[0].mxu0
      %v2082 = vadd.f32 0.0, %v2081
      %v2083 = vpop.f32.mrb[0].mxu0
      %v2084 = vadd.f32 0.0, %v2083
      %v2085 = vpop.f32.mrb[0].mxu0
      %v2086 = vadd.f32 0.0, %v2085
      %2087 = vmatprep.mubr.bf16.mxu0 0
      %2088 = vmatmul.mubr.bf16.gmra.mrb[0].mxu0 %v1928
      %v2089 = vpop.f32.mrb[0].mxu0
      %v2090 = vadd.f32 0.0, %v2089
      %v2091 = vpop.f32.mrb[0].mxu0
      %v2092 = vadd.f32 0.0, %v2091
      %v2093 = vpop.f32.mrb[0].mxu0
      %v2094 = vadd.f32 0.0, %v2093
      %v2095 = vpop.f32.mrb[0].mxu0
      %v2096 = vadd.f32 0.0, %v2095
      %2097 = vmatprep.mubr.bf16.mxu0 0
      %2098 = vmatmul.mubr.bf16.gmra.mrb[0].mxu0 %v1931
      %v2099 = vpop.f32.mrb[0].mxu0
      %v2100 = vadd.f32 0.0, %v2099
      %v2101 = vpop.f32.mrb[0].mxu0
      %v2102 = vadd.f32 0.0, %v2101
      %v2103 = vpop.f32.mrb[0].mxu0
      %v2104 = vadd.f32 0.0, %v2103
      %v2105 = vpop.f32.mrb[0].mxu0
      %v2106 = vadd.f32 0.0, %v2105
      %2107 = vmatprep.mubr.bf16.mxu0 0
      %2108 = vmatmul.mubr.bf16.gmra.mrb[0].mxu0 %v1934
      %v2109 = vpop.f32.mrb[0].mxu0
      %v2110 = vadd.f32 0.0, %v2109
      %v2111 = vpop.f32.mrb[0].mxu0
      %v2112 = vadd.f32 0.0, %v2111
      %v2113 = vpop.f32.mrb[0].mxu0
      %v2114 = vadd.f32 0.0, %v2113
      %v2115 = vpop.f32.mrb[0].mxu0
      %v2116 = vadd.f32 0.0, %v2115
      %2117 = vmatprep.mubr.bf16.mxu0 0
      %2118 = vmatmul.mubr.bf16.gmra.mrb[0].mxu0 %v1937
      %v2119 = vpop.f32.mrb[0].mxu0
      %v2120 = vadd.f32 0.0, %v2119
      %v2121 = vpop.f32.mrb[0].mxu0
      %v2122 = vadd.f32 0.0, %v2121
      %v2123 = vpop.f32.mrb[0].mxu0
      %v2124 = vadd.f32 0.0, %v2123
      %v2125 = vpop.f32.mrb[0].mxu0
      %v2126 = vadd.f32 0.0, %v2125
      %2127 = vmatprep.mubr.bf16.mxu0 0
      %2128 = vmatmul.mubr.bf16.gmra.mrb[0].mxu0 %v1940
      %v2129 = vpop.f32.mrb[0].mxu0
      %v2130 = vadd.f32 0.0, %v2129
      %v2131 = vpop.f32.mrb[0].mxu0
      %v2132 = vadd.f32 0.0, %v2131
      %v2133 = vpop.f32.mrb[0].mxu0
      %v2134 = vpop.f32.mrb[0].mxu0
      %2135 = vdwg.mxu0
      %v2136 = vld [vmem:[%s7] sm:$0xff]
      %v2137 = vld [vmem:[%s7 + $0x8] sm:$0xff]
      %v2138 = vld [vmem:[%s7 + $0x10] sm:$0xff]
      %v2139 = vld [vmem:[%s7 + $0x18] sm:$0xff]
      %v2140 = vld [vmem:[%s7 + $0x20] sm:$0xff]
      %v2141 = vld [vmem:[%s7 + $0x28] sm:$0xff]
      %v2142 = vld [vmem:[%s7 + $0x30] sm:$0xff]
      %2144 = vset.pattern.permute.xlu0 0
      %2145 = vperm.xlu0 %2144, %v2136
      %v2146 = vpop.permute.xlu0 %2145
      %2149 = vset.pattern.permute.xlu0 0
      %2150 = vperm.xlu0 %2149, %v2137
      %v2151 = vpop.permute.xlu0 %2150
      %2154 = vset.pattern.permute.xlu0 0
      %2155 = vperm.xlu0 %2154, %v2138
      %v2156 = vpop.permute.xlu0 %2155
      %2159 = vset.pattern.permute.xlu0 0
      %2160 = vperm.xlu0 %2159, %v2139
      %v2161 = vpop.permute.xlu0 %2160
      %2164 = vset.pattern.permute.xlu0 0
      %2165 = vperm.xlu0 %2164, %v2140
      %v2166 = vpop.permute.xlu0 %2165
      %2169 = vset.pattern.permute.xlu0 0
      %2170 = vperm.xlu0 %2169, %v2141
      %v2171 = vpop.permute.xlu0 %2170
      %2174 = vset.pattern.permute.xlu0 0
      %2175 = vperm.xlu0 %2174, %v2142
      %v2176 = vpop.permute.xlu0 %2175
      %v2178 = vadd.f32 %v2009, %v2146
      %v2179 = vadd.f32 %v2011, %v2146
      %v2180 = vadd.f32 %v2100, %v2146
      %v2181 = vadd.f32 %v2102, %v2146
      %v2182 = vadd.f32 %v2013, %v2151
      %v2183 = vadd.f32 %v2015, %v2151
      %v2184 = vadd.f32 %v2104, %v2151
      %v2185 = vadd.f32 %v2106, %v2151
      %v2186 = vadd.f32 %v2019, %v2156
      %v2187 = vadd.f32 %v2021, %v2156
      %v2188 = vadd.f32 %v2110, %v2156
      %v2189 = vadd.f32 %v2112, %v2156
      %v2190 = vadd.f32 %v2023, %v2161
      %v2191 = vadd.f32 %v2025, %v2161
      %v2192 = vadd.f32 %v2114, %v2161
      %v2193 = vadd.f32 %v2116, %v2161
      %v2194 = vadd.f32 %v2029, %v2166
      %v2195 = vadd.f32 %v2031, %v2166
      %v2196 = vadd.f32 %v2120, %v2166
      %v2197 = vadd.f32 %v2122, %v2166
      %v2198 = vadd.f32 %v2033, %v2171
      %v2199 = vadd.f32 %v2035, %v2171
      %v2200 = vadd.f32 %v2124, %v2171
      %v2201 = vadd.f32 %v2126, %v2171
      %v2202 = vadd.f32 %v2039, %v2176
      %v2203 = vadd.f32 %v2041, %v2176
      %v2204 = vadd.f32 %v2130, %v2176
      %v2205 = vadd.f32 %v2132, %v2176
      %vm2206 = vcmp.gt.f32.partialorder %v2178, 20.0
      %vm2207 = vcmp.gt.f32.partialorder %v2179, 20.0
      %vm2208 = vcmp.gt.f32.partialorder %v2180, 20.0
      %vm2209 = vcmp.gt.f32.partialorder %v2181, 20.0
      %vm2210 = vcmp.gt.f32.partialorder %v2182, 20.0
      %vm2211 = vcmp.gt.f32.partialorder %v2183, 20.0
      %vm2212 = vcmp.gt.f32.partialorder %v2184, 20.0
      %vm2213 = vcmp.gt.f32.partialorder %v2185, 20.0
      %vm2214 = vcmp.gt.f32.partialorder %v2186, 20.0
      %vm2215 = vcmp.gt.f32.partialorder %v2187, 20.0
      %vm2216 = vcmp.gt.f32.partialorder %v2188, 20.0
      %vm2217 = vcmp.gt.f32.partialorder %v2189, 20.0
      %vm2218 = vcmp.gt.f32.partialorder %v2190, 20.0
      %vm2219 = vcmp.gt.f32.partialorder %v2191, 20.0
      %vm2220 = vcmp.gt.f32.partialorder %v2192, 20.0
      %vm2221 = vcmp.gt.f32.partialorder %v2193, 20.0
      %vm2222 = vcmp.gt.f32.partialorder %v2194, 20.0
      %vm2223 = vcmp.gt.f32.partialorder %v2195, 20.0
      %vm2224 = vcmp.gt.f32.partialorder %v2196, 20.0
      %vm2225 = vcmp.gt.f32.partialorder %v2197, 20.0
      %vm2226 = vcmp.gt.f32.partialorder %v2198, 20.0
      %vm2227 = vcmp.gt.f32.partialorder %v2199, 20.0
      %vm2228 = vcmp.gt.f32.partialorder %v2200, 20.0
      %vm2229 = vcmp.gt.f32.partialorder %v2201, 20.0
      %vm2230 = vcmp.gt.f32.partialorder %v2202, 20.0
      %vm2231 = vcmp.gt.f32.partialorder %v2203, 20.0
      %vm2232 = vcmp.gt.f32.partialorder %v2204, 20.0
      %vm2233 = vcmp.gt.f32.partialorder %v2205, 20.0
      %v2234 = vmin.f32 %v2178, 20.0
      %v2235 = vmin.f32 %v2179, 20.0
      %v2236 = vmin.f32 %v2180, 20.0
      %v2237 = vmin.f32 %v2181, 20.0
      %v2238 = vmin.f32 %v2182, 20.0
      %v2239 = vmin.f32 %v2183, 20.0
      %v2240 = vmin.f32 %v2184, 20.0
      %v2241 = vmin.f32 %v2185, 20.0
      %v2242 = vmin.f32 %v2186, 20.0
      %v2243 = vmin.f32 %v2187, 20.0
      %v2244 = vmin.f32 %v2188, 20.0
      %v2245 = vmin.f32 %v2189, 20.0
      %v2246 = vmin.f32 %v2190, 20.0
      %v2247 = vmin.f32 %v2191, 20.0
      %v2248 = vmin.f32 %v2192, 20.0
      %v2249 = vmin.f32 %v2193, 20.0
      %v2250 = vmin.f32 %v2194, 20.0
      %v2251 = vmin.f32 %v2195, 20.0
      %v2252 = vmin.f32 %v2196, 20.0
      %v2253 = vmin.f32 %v2197, 20.0
      %v2254 = vmin.f32 %v2198, 20.0
      %v2255 = vmin.f32 %v2199, 20.0
      %v2256 = vmin.f32 %v2200, 20.0
      %v2257 = vmin.f32 %v2201, 20.0
      %v2258 = vmin.f32 %v2202, 20.0
      %v2259 = vmin.f32 %v2203, 20.0
      %v2260 = vmin.f32 %v2204, 20.0
      %v2261 = vmin.f32 %v2205, 20.0
      %v2262 = vmul.f32 %v2234, 1.442695
      %v2263 = vpow.pop %v2262
      %v2264 = vmul.f32 %v2235, 1.442695
      %v2265 = vpow.pop %v2264
      %v2266 = vmul.f32 %v2236, 1.442695
      %v2267 = vpow.pop %v2266
      %v2268 = vmul.f32 %v2237, 1.442695
      %v2269 = vpow.pop %v2268
      %v2270 = vmul.f32 %v2238, 1.442695
      %v2271 = vpow.pop %v2270
      %v2272 = vmul.f32 %v2239, 1.442695
      %v2273 = vpow.pop %v2272
      %v2274 = vmul.f32 %v2240, 1.442695
      %v2275 = vpow.pop %v2274
      %v2276 = vmul.f32 %v2241, 1.442695
      %v2277 = vpow.pop %v2276
      %v2278 = vmul.f32 %v2242, 1.442695
      %v2279 = vpow.pop %v2278
      %v2280 = vmul.f32 %v2243, 1.442695
      %v2281 = vpow.pop %v2280
      %v2282 = vmul.f32 %v2244, 1.442695
      %v2283 = vpow.pop %v2282
      %v2284 = vmul.f32 %v2245, 1.442695
      %v2285 = vpow.pop %v2284
      %v2286 = vmul.f32 %v2246, 1.442695
      %v2287 = vpow.pop %v2286
      %v2288 = vmul.f32 %v2247, 1.442695
      %v2289 = vpow.pop %v2288
      %v2290 = vmul.f32 %v2248, 1.442695
      %v2291 = vpow.pop %v2290
      %v2292 = vmul.f32 %v2249, 1.442695
      %v2293 = vpow.pop %v2292
      %v2294 = vmul.f32 %v2250, 1.442695
      %v2295 = vpow.pop %v2294
      %v2296 = vmul.f32 %v2251, 1.442695
      %v2297 = vpow.pop %v2296
      %v2298 = vmul.f32 %v2252, 1.442695
      %v2299 = vpow.pop %v2298
      %v2300 = vmul.f32 %v2253, 1.442695
      %v2301 = vpow.pop %v2300
      %v2302 = vmul.f32 %v2254, 1.442695
      %v2303 = vpow.pop %v2302
      %v2304 = vmul.f32 %v2255, 1.442695
      %v2305 = vpow.pop %v2304
      %v2306 = vmul.f32 %v2256, 1.442695
      %v2307 = vpow.pop %v2306
      %v2308 = vmul.f32 %v2257, 1.442695
      %v2309 = vpow.pop %v2308
      %v2310 = vmul.f32 %v2258, 1.442695
      %v2311 = vpow.pop %v2310
      %v2312 = vmul.f32 %v2259, 1.442695
      %v2313 = vpow.pop %v2312
      %v2314 = vmul.f32 %v2260, 1.442695
      %v2315 = vpow.pop %v2314
      %v2316 = vmul.f32 %v2261, 1.442695
      %v2317 = vpow.pop %v2316
      %v2318 = vadd.f32 %v2263, 1.0
      %v2319 = vlog2.pop %v2318
      %v2320 = vmul.f32 %v2319, 0.6931472
      %v2321 = vmul.f32 -0.5, %v2263
      %v2322 = vadd.f32 %v2321, 1.0
      %v2323 = vmul.f32 %v2322, %v2263
      %v2324 = vand.u32 2147483647, %v2263
      %vm2325 = vcmp.lt.f32.partialorder %v2324, 0.0004427343
      %v2326 = vsel %vm2325, %v2323, %v2320
      %v2327 = vadd.f32 %v2265, 1.0
      %v2328 = vlog2.pop %v2327
      %v2329 = vmul.f32 %v2328, 0.6931472
      %v2330 = vmul.f32 -0.5, %v2265
      %v2331 = vadd.f32 %v2330, 1.0
      %v2332 = vmul.f32 %v2331, %v2265
      %v2333 = vand.u32 2147483647, %v2265
      %vm2334 = vcmp.lt.f32.partialorder %v2333, 0.0004427343
      %v2335 = vsel %vm2334, %v2332, %v2329
      %v2336 = vadd.f32 %v2267, 1.0
      %v2337 = vlog2.pop %v2336
      %v2338 = vmul.f32 %v2337, 0.6931472
      %v2339 = vmul.f32 -0.5, %v2267
      %v2340 = vadd.f32 %v2339, 1.0
      %v2341 = vmul.f32 %v2340, %v2267
      %v2342 = vand.u32 2147483647, %v2267
      %vm2343 = vcmp.lt.f32.partialorder %v2342, 0.0004427343
      %v2344 = vsel %vm2343, %v2341, %v2338
      %v2345 = vadd.f32 %v2269, 1.0
      %v2346 = vlog2.pop %v2345
      %v2347 = vmul.f32 %v2346, 0.6931472
      %v2348 = vmul.f32 -0.5, %v2269
      %v2349 = vadd.f32 %v2348, 1.0
      %v2350 = vmul.f32 %v2349, %v2269
      %v2351 = vand.u32 2147483647, %v2269
      %vm2352 = vcmp.lt.f32.partialorder %v2351, 0.0004427343
      %v2353 = vsel %vm2352, %v2350, %v2347
      %v2354 = vadd.f32 %v2271, 1.0
      %v2355 = vlog2.pop %v2354
      %v2356 = vmul.f32 %v2355, 0.6931472
      %v2357 = vmul.f32 -0.5, %v2271
      %v2358 = vadd.f32 %v2357, 1.0
      %v2359 = vmul.f32 %v2358, %v2271
      %v2360 = vand.u32 2147483647, %v2271
      %vm2361 = vcmp.lt.f32.partialorder %v2360, 0.0004427343
      %v2362 = vsel %vm2361, %v2359, %v2356
      %v2363 = vadd.f32 %v2273, 1.0
      %v2364 = vlog2.pop %v2363
      %v2365 = vmul.f32 %v2364, 0.6931472
      %v2366 = vmul.f32 -0.5, %v2273
      %v2367 = vadd.f32 %v2366, 1.0
      %v2368 = vmul.f32 %v2367, %v2273
      %v2369 = vand.u32 2147483647, %v2273
      %vm2370 = vcmp.lt.f32.partialorder %v2369, 0.0004427343
      %v2371 = vsel %vm2370, %v2368, %v2365
      %v2372 = vadd.f32 %v2275, 1.0
      %v2373 = vlog2.pop %v2372
      %v2374 = vmul.f32 %v2373, 0.6931472
      %v2375 = vmul.f32 -0.5, %v2275
      %v2376 = vadd.f32 %v2375, 1.0
      %v2377 = vmul.f32 %v2376, %v2275
      %v2378 = vand.u32 2147483647, %v2275
      %vm2379 = vcmp.lt.f32.partialorder %v2378, 0.0004427343
      %v2380 = vsel %vm2379, %v2377, %v2374
      %v2381 = vadd.f32 %v2277, 1.0
      %v2382 = vlog2.pop %v2381
      %v2383 = vmul.f32 %v2382, 0.6931472
      %v2384 = vmul.f32 -0.5, %v2277
      %v2385 = vadd.f32 %v2384, 1.0
      %v2386 = vmul.f32 %v2385, %v2277
      %v2387 = vand.u32 2147483647, %v2277
      %vm2388 = vcmp.lt.f32.partialorder %v2387, 0.0004427343
      %v2389 = vsel %vm2388, %v2386, %v2383
      %v2390 = vadd.f32 %v2279, 1.0
      %v2391 = vlog2.pop %v2390
      %v2392 = vmul.f32 %v2391, 0.6931472
      %v2393 = vmul.f32 -0.5, %v2279
      %v2394 = vadd.f32 %v2393, 1.0
      %v2395 = vmul.f32 %v2394, %v2279
      %v2396 = vand.u32 2147483647, %v2279
      %vm2397 = vcmp.lt.f32.partialorder %v2396, 0.0004427343
      %v2398 = vsel %vm2397, %v2395, %v2392
      %v2399 = vadd.f32 %v2281, 1.0
      %v2400 = vlog2.pop %v2399
      %v2401 = vmul.f32 %v2400, 0.6931472
      %v2402 = vmul.f32 -0.5, %v2281
      %v2403 = vadd.f32 %v2402, 1.0
      %v2404 = vmul.f32 %v2403, %v2281
      %v2405 = vand.u32 2147483647, %v2281
      %vm2406 = vcmp.lt.f32.partialorder %v2405, 0.0004427343
      %v2407 = vsel %vm2406, %v2404, %v2401
      %v2408 = vadd.f32 %v2283, 1.0
      %v2409 = vlog2.pop %v2408
      %v2410 = vmul.f32 %v2409, 0.6931472
      %v2411 = vmul.f32 -0.5, %v2283
      %v2412 = vadd.f32 %v2411, 1.0
      %v2413 = vmul.f32 %v2412, %v2283
      %v2414 = vand.u32 2147483647, %v2283
      %vm2415 = vcmp.lt.f32.partialorder %v2414, 0.0004427343
      %v2416 = vsel %vm2415, %v2413, %v2410
      %v2417 = vadd.f32 %v2285, 1.0
      %v2418 = vlog2.pop %v2417
      %v2419 = vmul.f32 %v2418, 0.6931472
      %v2420 = vmul.f32 -0.5, %v2285
      %v2421 = vadd.f32 %v2420, 1.0
      %v2422 = vmul.f32 %v2421, %v2285
      %v2423 = vand.u32 2147483647, %v2285
      %vm2424 = vcmp.lt.f32.partialorder %v2423, 0.0004427343
      %v2425 = vsel %vm2424, %v2422, %v2419
      %v2426 = vadd.f32 %v2287, 1.0
      %v2427 = vlog2.pop %v2426
      %v2428 = vmul.f32 %v2427, 0.6931472
      %v2429 = vmul.f32 -0.5, %v2287
      %v2430 = vadd.f32 %v2429, 1.0
      %v2431 = vmul.f32 %v2430, %v2287
      %v2432 = vand.u32 2147483647, %v2287
      %vm2433 = vcmp.lt.f32.partialorder %v2432, 0.0004427343
      %v2434 = vsel %vm2433, %v2431, %v2428
      %v2435 = vadd.f32 %v2289, 1.0
      %v2436 = vlog2.pop %v2435
      %v2437 = vmul.f32 %v2436, 0.6931472
      %v2438 = vmul.f32 -0.5, %v2289
      %v2439 = vadd.f32 %v2438, 1.0
      %v2440 = vmul.f32 %v2439, %v2289
      %v2441 = vand.u32 2147483647, %v2289
      %vm2442 = vcmp.lt.f32.partialorder %v2441, 0.0004427343
      %v2443 = vsel %vm2442, %v2440, %v2437
      %v2444 = vadd.f32 %v2291, 1.0
      %v2445 = vlog2.pop %v2444
      %v2446 = vmul.f32 %v2445, 0.6931472
      %v2447 = vmul.f32 -0.5, %v2291
      %v2448 = vadd.f32 %v2447, 1.0
      %v2449 = vmul.f32 %v2448, %v2291
      %v2450 = vand.u32 2147483647, %v2291
      %vm2451 = vcmp.lt.f32.partialorder %v2450, 0.0004427343
      %v2452 = vsel %vm2451, %v2449, %v2446
      %v2453 = vadd.f32 %v2293, 1.0
      %v2454 = vlog2.pop %v2453
      %v2455 = vmul.f32 %v2454, 0.6931472
      %v2456 = vmul.f32 -0.5, %v2293
      %v2457 = vadd.f32 %v2456, 1.0
      %v2458 = vmul.f32 %v2457, %v2293
      %v2459 = vand.u32 2147483647, %v2293
      %vm2460 = vcmp.lt.f32.partialorder %v2459, 0.0004427343
      %v2461 = vsel %vm2460, %v2458, %v2455
      %v2462 = vadd.f32 %v2295, 1.0
      %v2463 = vlog2.pop %v2462
      %v2464 = vmul.f32 %v2463, 0.6931472
      %v2465 = vmul.f32 -0.5, %v2295
      %v2466 = vadd.f32 %v2465, 1.0
      %v2467 = vmul.f32 %v2466, %v2295
      %v2468 = vand.u32 2147483647, %v2295
      %vm2469 = vcmp.lt.f32.partialorder %v2468, 0.0004427343
      %v2470 = vsel %vm2469, %v2467, %v2464
      %v2471 = vadd.f32 %v2297, 1.0
      %v2472 = vlog2.pop %v2471
      %v2473 = vmul.f32 %v2472, 0.6931472
      %v2474 = vmul.f32 -0.5, %v2297
      %v2475 = vadd.f32 %v2474, 1.0
      %v2476 = vmul.f32 %v2475, %v2297
      %v2477 = vand.u32 2147483647, %v2297
      %vm2478 = vcmp.lt.f32.partialorder %v2477, 0.0004427343
      %v2479 = vsel %vm2478, %v2476, %v2473
      %v2480 = vadd.f32 %v2299, 1.0
      %v2481 = vlog2.pop %v2480
      %v2482 = vmul.f32 %v2481, 0.6931472
      %v2483 = vmul.f32 -0.5, %v2299
      %v2484 = vadd.f32 %v2483, 1.0
      %v2485 = vmul.f32 %v2484, %v2299
      %v2486 = vand.u32 2147483647, %v2299
      %vm2487 = vcmp.lt.f32.partialorder %v2486, 0.0004427343
      %v2488 = vsel %vm2487, %v2485, %v2482
      %v2489 = vadd.f32 %v2301, 1.0
      %v2490 = vlog2.pop %v2489
      %v2491 = vmul.f32 %v2490, 0.6931472
      %v2492 = vmul.f32 -0.5, %v2301
      %v2493 = vadd.f32 %v2492, 1.0
      %v2494 = vmul.f32 %v2493, %v2301
      %v2495 = vand.u32 2147483647, %v2301
      %vm2496 = vcmp.lt.f32.partialorder %v2495, 0.0004427343
      %v2497 = vsel %vm2496, %v2494, %v2491
      %v2498 = vadd.f32 %v2303, 1.0
      %v2499 = vlog2.pop %v2498
      %v2500 = vmul.f32 %v2499, 0.6931472
      %v2501 = vmul.f32 -0.5, %v2303
      %v2502 = vadd.f32 %v2501, 1.0
      %v2503 = vmul.f32 %v2502, %v2303
      %v2504 = vand.u32 2147483647, %v2303
      %vm2505 = vcmp.lt.f32.partialorder %v2504, 0.0004427343
      %v2506 = vsel %vm2505, %v2503, %v2500
      %v2507 = vadd.f32 %v2305, 1.0
      %v2508 = vlog2.pop %v2507
      %v2509 = vmul.f32 %v2508, 0.6931472
      %v2510 = vmul.f32 -0.5, %v2305
      %v2511 = vadd.f32 %v2510, 1.0
      %v2512 = vmul.f32 %v2511, %v2305
      %v2513 = vand.u32 2147483647, %v2305
      %vm2514 = vcmp.lt.f32.partialorder %v2513, 0.0004427343
      %v2515 = vsel %vm2514, %v2512, %v2509
      %v2516 = vadd.f32 %v2307, 1.0
      %v2517 = vlog2.pop %v2516
      %v2518 = vmul.f32 %v2517, 0.6931472
      %v2519 = vmul.f32 -0.5, %v2307
      %v2520 = vadd.f32 %v2519, 1.0
      %v2521 = vmul.f32 %v2520, %v2307
      %v2522 = vand.u32 2147483647, %v2307
      %vm2523 = vcmp.lt.f32.partialorder %v2522, 0.0004427343
      %v2524 = vsel %vm2523, %v2521, %v2518
      %v2525 = vadd.f32 %v2309, 1.0
      %v2526 = vlog2.pop %v2525
      %v2527 = vmul.f32 %v2526, 0.6931472
      %v2528 = vmul.f32 -0.5, %v2309
      %v2529 = vadd.f32 %v2528, 1.0
      %v2530 = vmul.f32 %v2529, %v2309
      %v2531 = vand.u32 2147483647, %v2309
      %vm2532 = vcmp.lt.f32.partialorder %v2531, 0.0004427343
      %v2533 = vsel %vm2532, %v2530, %v2527
      %v2534 = vadd.f32 %v2311, 1.0
      %v2535 = vlog2.pop %v2534
      %v2536 = vmul.f32 %v2535, 0.6931472
      %v2537 = vmul.f32 -0.5, %v2311
      %v2538 = vadd.f32 %v2537, 1.0
      %v2539 = vmul.f32 %v2538, %v2311
      %v2540 = vand.u32 2147483647, %v2311
      %vm2541 = vcmp.lt.f32.partialorder %v2540, 0.0004427343
      %v2542 = vsel %vm2541, %v2539, %v2536
      %v2543 = vadd.f32 %v2313, 1.0
      %v2544 = vlog2.pop %v2543
      %v2545 = vmul.f32 %v2544, 0.6931472
      %v2546 = vmul.f32 -0.5, %v2313
      %v2547 = vadd.f32 %v2546, 1.0
      %v2548 = vmul.f32 %v2547, %v2313
      %v2549 = vand.u32 2147483647, %v2313
      %vm2550 = vcmp.lt.f32.partialorder %v2549, 0.0004427343
      %v2551 = vsel %vm2550, %v2548, %v2545
      %v2552 = vadd.f32 %v2315, 1.0
      %v2553 = vlog2.pop %v2552
      %v2554 = vmul.f32 %v2553, 0.6931472
      %v2555 = vmul.f32 -0.5, %v2315
      %v2556 = vadd.f32 %v2555, 1.0
      %v2557 = vmul.f32 %v2556, %v2315
      %v2558 = vand.u32 2147483647, %v2315
      %vm2559 = vcmp.lt.f32.partialorder %v2558, 0.0004427343
      %v2560 = vsel %vm2559, %v2557, %v2554
      %v2561 = vadd.f32 %v2317, 1.0
      %v2562 = vlog2.pop %v2561
      %v2563 = vmul.f32 %v2562, 0.6931472
      %v2564 = vmul.f32 -0.5, %v2317
      %v2565 = vadd.f32 %v2564, 1.0
      %v2566 = vmul.f32 %v2565, %v2317
      %v2567 = vand.u32 2147483647, %v2317
      %vm2568 = vcmp.lt.f32.partialorder %v2567, 0.0004427343
      %v2569 = vsel %vm2568, %v2566, %v2563
      %v2570 = vsel %vm2206, %v2178, %v2326
      %v2571 = vsel %vm2207, %v2179, %v2335
      %v2572 = vsel %vm2208, %v2180, %v2344
      %v2573 = vsel %vm2209, %v2181, %v2353
      %v2574 = vsel %vm2210, %v2182, %v2362
      %v2575 = vsel %vm2211, %v2183, %v2371
      %v2576 = vsel %vm2212, %v2184, %v2380
      %v2577 = vsel %vm2213, %v2185, %v2389
      %v2578 = vsel %vm2214, %v2186, %v2398
      %v2579 = vsel %vm2215, %v2187, %v2407
      %v2580 = vsel %vm2216, %v2188, %v2416
      %v2581 = vsel %vm2217, %v2189, %v2425
      %v2582 = vsel %vm2218, %v2190, %v2434
      %v2583 = vsel %vm2219, %v2191, %v2443
      %v2584 = vsel %vm2220, %v2192, %v2452
      %v2585 = vsel %vm2221, %v2193, %v2461
      %v2586 = vsel %vm2222, %v2194, %v2470
      %v2587 = vsel %vm2223, %v2195, %v2479
      %v2588 = vsel %vm2224, %v2196, %v2488
      %v2589 = vsel %vm2225, %v2197, %v2497
      %v2590 = vsel %vm2226, %v2198, %v2506
      %v2591 = vsel %vm2227, %v2199, %v2515
      %v2592 = vsel %vm2228, %v2200, %v2524
      %v2593 = vsel %vm2229, %v2201, %v2533
      %v2594 = vsel %vm2230, %v2202, %v2542
      %v2595 = vsel %vm2231, %v2203, %v2551
      %v2596 = vsel %vm2232, %v2204, %v2560
      %v2597 = vsel %vm2233, %v2205, %v2569
      %2598 = vxpose.xlu0.b32.start [1/16] %v1840, 128
      %2599 = vxpose.xlu0.b32.cont [2/16] %v1844, 128
      %2600 = vxpose.xlu0.b32.cont [3/16] %v1848, 128
      %2601 = vxpose.xlu0.b32.cont [4/16] %v1852, 128
      %2602 = vxpose.xlu0.b32.cont [5/16] %v1856, 128
      %2603 = vxpose.xlu0.b32.cont [6/16] %v1860, 128
      %2604 = vxpose.xlu0.b32.cont [7/16] %v1864, 128
      %2605 = vxpose.xlu0.b32.cont [8/16] 0.0, 128
      %2606 = vxpose.xlu0.b32.cont [9/16] 0.0, 128
      %2607 = vxpose.xlu0.b32.cont [10/16] 0.0, 128
      %2608 = vxpose.xlu0.b32.cont [11/16] 0.0, 128
      %2609 = vxpose.xlu0.b32.cont [12/16] 0.0, 128
      %2610 = vxpose.xlu0.b32.cont [13/16] 0.0, 128
      %2611 = vxpose.xlu0.b32.cont [14/16] 0.0, 128
      %2612 = vxpose.xlu0.b32.cont [15/16] 0.0, 128
      %2613 = vxpose.xlu0.b32.end [16/16] 0.0, 128
      %v2614 = vpop.trf.xlu0
      %v2615 = vpop.trf.xlu0
      %v2616 = vpop.trf.xlu0
      %v2617 = vpop.trf.xlu0
      %v2618 = vpop.trf.xlu0
      %v2619 = vpop.trf.xlu0
      %v2620 = vpop.trf.xlu0
      %v2621 = vpop.trf.xlu0
      %v2622 = vpop.trf.xlu0
      %v2623 = vpop.trf.xlu0
      %v2624 = vpop.trf.xlu0
      %v2625 = vpop.trf.xlu0
      %v2626 = vpop.trf.xlu0
      %v2627 = vpop.trf.xlu0
      %v2628 = vpop.trf.xlu0
      %v2629 = vpop.trf.xlu0
      %2630 = vxpose.xlu0.b32.start [1/16] %v1841, 128
      %2631 = vxpose.xlu0.b32.cont [2/16] %v1845, 128
      %2632 = vxpose.xlu0.b32.cont [3/16] %v1849, 128
      %2633 = vxpose.xlu0.b32.cont [4/16] %v1853, 128
      %2634 = vxpose.xlu0.b32.cont [5/16] %v1857, 128
      %2635 = vxpose.xlu0.b32.cont [6/16] %v1861, 128
      %2636 = vxpose.xlu0.b32.cont [7/16] %v1865, 128
      %2637 = vxpose.xlu0.b32.cont [8/16] 0.0, 128
      %2638 = vxpose.xlu0.b32.cont [9/16] 0.0, 128
      %2639 = vxpose.xlu0.b32.cont [10/16] 0.0, 128
      %2640 = vxpose.xlu0.b32.cont [11/16] 0.0, 128
      %2641 = vxpose.xlu0.b32.cont [12/16] 0.0, 128
      %2642 = vxpose.xlu0.b32.cont [13/16] 0.0, 128
      %2643 = vxpose.xlu0.b32.cont [14/16] 0.0, 128
      %2644 = vxpose.xlu0.b32.cont [15/16] 0.0, 128
      %2645 = vxpose.xlu0.b32.end [16/16] 0.0, 128
      %v2646 = vpop.trf.xlu0
      %v2647 = vpop.trf.xlu0
      %v2648 = vpop.trf.xlu0
      %v2649 = vpop.trf.xlu0
      %v2650 = vpop.trf.xlu0
      %v2651 = vpop.trf.xlu0
      %v2652 = vpop.trf.xlu0
      %v2653 = vpop.trf.xlu0
      %v2654 = vpop.trf.xlu0
      %v2655 = vpop.trf.xlu0
      %v2656 = vpop.trf.xlu0
      %v2657 = vpop.trf.xlu0
      %v2658 = vpop.trf.xlu0
      %v2659 = vpop.trf.xlu0
      %v2660 = vpop.trf.xlu0
      %v2661 = vpop.trf.xlu0
      %2662 = vxpose.xlu0.b32.start [1/16] %v1842, 128
      %2663 = vxpose.xlu0.b32.cont [2/16] %v1846, 128
      %2664 = vxpose.xlu0.b32.cont [3/16] %v1850, 128
      %2665 = vxpose.xlu0.b32.cont [4/16] %v1854, 128
      %2666 = vxpose.xlu0.b32.cont [5/16] %v1858, 128
      %2667 = vxpose.xlu0.b32.cont [6/16] %v1862, 128
      %2668 = vxpose.xlu0.b32.cont [7/16] %v1866, 128
      %2669 = vxpose.xlu0.b32.cont [8/16] 0.0, 128
      %2670 = vxpose.xlu0.b32.cont [9/16] 0.0, 128
      %2671 = vxpose.xlu0.b32.cont [10/16] 0.0, 128
      %2672 = vxpose.xlu0.b32.cont [11/16] 0.0, 128
      %2673 = vxpose.xlu0.b32.cont [12/16] 0.0, 128
      %2674 = vxpose.xlu0.b32.cont [13/16] 0.0, 128
      %2675 = vxpose.xlu0.b32.cont [14/16] 0.0, 128
      %2676 = vxpose.xlu0.b32.cont [15/16] 0.0, 128
      %2677 = vxpose.xlu0.b32.end [16/16] 0.0, 128
      %v2678 = vpop.trf.xlu0
      %v2679 = vpop.trf.xlu0
      %v2680 = vpop.trf.xlu0
      %v2681 = vpop.trf.xlu0
      %v2682 = vpop.trf.xlu0
      %v2683 = vpop.trf.xlu0
      %v2684 = vpop.trf.xlu0
      %v2685 = vpop.trf.xlu0
      %v2686 = vpop.trf.xlu0
      %v2687 = vpop.trf.xlu0
      %v2688 = vpop.trf.xlu0
      %v2689 = vpop.trf.xlu0
      %v2690 = vpop.trf.xlu0
      %v2691 = vpop.trf.xlu0
      %v2692 = vpop.trf.xlu0
      %v2693 = vpop.trf.xlu0
      %2694 = vxpose.xlu0.b32.start [1/16] %v1843, 128
      %2695 = vxpose.xlu0.b32.cont [2/16] %v1847, 128
      %2696 = vxpose.xlu0.b32.cont [3/16] %v1851, 128
      %2697 = vxpose.xlu0.b32.cont [4/16] %v1855, 128
      %2698 = vxpose.xlu0.b32.cont [5/16] %v1859, 128
      %2699 = vxpose.xlu0.b32.cont [6/16] %v1863, 128
      %2700 = vxpose.xlu0.b32.cont [7/16] %v1867, 128
      %2701 = vxpose.xlu0.b32.cont [8/16] 0.0, 128
      %2702 = vxpose.xlu0.b32.cont [9/16] 0.0, 128
      %2703 = vxpose.xlu0.b32.cont [10/16] 0.0, 128
      %2704 = vxpose.xlu0.b32.cont [11/16] 0.0, 128
      %2705 = vxpose.xlu0.b32.cont [12/16] 0.0, 128
      %2706 = vxpose.xlu0.b32.cont [13/16] 0.0, 128
      %2707 = vxpose.xlu0.b32.cont [14/16] 0.0, 128
      %2708 = vxpose.xlu0.b32.cont [15/16] 0.0, 128
      %2709 = vxpose.xlu0.b32.end [16/16] 0.0, 128
      %v2710 = vpop.trf.xlu0
      %v2711 = vpop.trf.xlu0
      %v2712 = vpop.trf.xlu0
      %v2713 = vpop.trf.xlu0
      %v2714 = vpop.trf.xlu0
      %v2715 = vpop.trf.xlu0
      %v2716 = vpop.trf.xlu0
      %v2717 = vpop.trf.xlu0
      %v2718 = vpop.trf.xlu0
      %v2719 = vpop.trf.xlu0
      %v2720 = vpop.trf.xlu0
      %v2721 = vpop.trf.xlu0
      %v2722 = vpop.trf.xlu0
      %v2723 = vpop.trf.xlu0
      %v2724 = vpop.trf.xlu0
      %v2725 = vpop.trf.xlu0
      %2726 = vst.msk [vmem:[#allocation2] sm:$0xff] %vm1923, %v2614
      %2727 = vst.msk [vmem:[#allocation2 + $0x8] sm:$0xff] %vm1923, %v2615
      %2728 = vst.msk [vmem:[#allocation2 + $0x10] sm:$0xff] %vm1923, %v2616
      %2729 = vst.msk [vmem:[#allocation2 + $0x18] sm:$0xff] %vm1923, %v2617
      %2730 = vst.msk [vmem:[#allocation2 + $0x20] sm:$0xff] %vm1923, %v2618
      %2731 = vst.msk [vmem:[#allocation2 + $0x28] sm:$0xff] %vm1923, %v2619
      %2732 = vst.msk [vmem:[#allocation2 + $0x30] sm:$0xff] %vm1923, %v2620
      %2733 = vst.msk [vmem:[#allocation2 + $0x38] sm:$0xff] %vm1923, %v2621
      %2734 = vst.msk [vmem:[#allocation2 + $0x40] sm:$0xff] %vm1923, %v2622
      %2735 = vst.msk [vmem:[#allocation2 + $0x48] sm:$0xff] %vm1923, %v2623
      %2736 = vst.msk [vmem:[#allocation2 + $0x50] sm:$0xff] %vm1923, %v2624
      %2737 = vst.msk [vmem:[#allocation2 + $0x58] sm:$0xff] %vm1923, %v2625
      %2738 = vst.msk [vmem:[#allocation2 + $0x60] sm:$0xff] %vm1923, %v2626
      %2739 = vst.msk [vmem:[#allocation2 + $0x68] sm:$0xff] %vm1923, %v2627
      %2740 = vst.msk [vmem:[#allocation2 + $0x70] sm:$0xff] %vm1923, %v2628
      %2741 = vst.msk [vmem:[#allocation2 + $0x78] sm:$0xff] %vm1923, %v2629
      %2742 = vst.msk [vmem:[#allocation2 + $0x80] sm:$0xff] %vm1923, %v2646
      %2743 = vst.msk [vmem:[#allocation2 + $0x88] sm:$0xff] %vm1923, %v2647
      %2744 = vst.msk [vmem:[#allocation2 + $0x90] sm:$0xff] %vm1923, %v2648
      %2745 = vst.msk [vmem:[#allocation2 + $0x98] sm:$0xff] %vm1923, %v2649
      %2746 = vst.msk [vmem:[#allocation2 + $0xa0] sm:$0xff] %vm1923, %v2650
      %2747 = vst.msk [vmem:[#allocation2 + $0xa8] sm:$0xff] %vm1923, %v2651
      %2748 = vst.msk [vmem:[#allocation2 + $0xb0] sm:$0xff] %vm1923, %v2652
      %2749 = vst.msk [vmem:[#allocation2 + $0xb8] sm:$0xff] %vm1923, %v2653
      %2750 = vst.msk [vmem:[#allocation2 + $0xc0] sm:$0xff] %vm1923, %v2654
      %2751 = vst.msk [vmem:[#allocation2 + $0xc8] sm:$0xff] %vm1923, %v2655
      %2752 = vst.msk [vmem:[#allocation2 + $0xd0] sm:$0xff] %vm1923, %v2656
      %2753 = vst.msk [vmem:[#allocation2 + $0xd8] sm:$0xff] %vm1923, %v2657
      %2754 = vst.msk [vmem:[#allocation2 + $0xe0] sm:$0xff] %vm1923, %v2658
      %2755 = vst.msk [vmem:[#allocation2 + $0xe8] sm:$0xff] %vm1923, %v2659
      %2756 = vst.msk [vmem:[#allocation2 + $0xf0] sm:$0xff] %vm1923, %v2660
      %2757 = vst.msk [vmem:[#allocation2 + $0xf8] sm:$0xff] %vm1923, %v2661
      %2758 = vst.msk [vmem:[#allocation2 + $0x100] sm:$0xff] %vm1923, %v2678
      %2759 = vst.msk [vmem:[#allocation2 + $0x108] sm:$0xff] %vm1923, %v2679
      %2760 = vst.msk [vmem:[#allocation2 + $0x110] sm:$0xff] %vm1923, %v2680
      %2761 = vst.msk [vmem:[#allocation2 + $0x118] sm:$0xff] %vm1923, %v2681
      %2762 = vst.msk [vmem:[#allocation2 + $0x120] sm:$0xff] %vm1923, %v2682
      %2763 = vst.msk [vmem:[#allocation2 + $0x128] sm:$0xff] %vm1923, %v2683
      %2764 = vst.msk [vmem:[#allocation2 + $0x130] sm:$0xff] %vm1923, %v2684
      %2765 = vst.msk [vmem:[#allocation2 + $0x138] sm:$0xff] %vm1923, %v2685
      %2766 = vst.msk [vmem:[#allocation2 + $0x140] sm:$0xff] %vm1923, %v2686
      %2767 = vst.msk [vmem:[#allocation2 + $0x148] sm:$0xff] %vm1923, %v2687
      %2768 = vst.msk [vmem:[#allocation2 + $0x150] sm:$0xff] %vm1923, %v2688
      %2769 = vst.msk [vmem:[#allocation2 + $0x158] sm:$0xff] %vm1923, %v2689
      %2770 = vst.msk [vmem:[#allocation2 + $0x160] sm:$0xff] %vm1923, %v2690
      %2771 = vst.msk [vmem:[#allocation2 + $0x168] sm:$0xff] %vm1923, %v2691
      %2772 = vst.msk [vmem:[#allocation2 + $0x170] sm:$0xff] %vm1923, %v2692
      %2773 = vst.msk [vmem:[#allocation2 + $0x178] sm:$0xff] %vm1923, %v2693
      %2774 = vst.msk [vmem:[#allocation2 + $0x180] sm:$0xff] %vm1923, %v2710
      %2775 = vst.msk [vmem:[#allocation2 + $0x188] sm:$0xff] %vm1923, %v2711
      %2776 = vst.msk [vmem:[#allocation2 + $0x190] sm:$0xff] %vm1923, %v2712
      %2777 = vst.msk [vmem:[#allocation2 + $0x198] sm:$0xff] %vm1923, %v2713
      %2778 = vst.msk [vmem:[#allocation2 + $0x1a0] sm:$0xff] %vm1923, %v2714
      %2779 = vst.msk [vmem:[#allocation2 + $0x1a8] sm:$0xff] %vm1923, %v2715
      %2780 = vst.msk [vmem:[#allocation2 + $0x1b0] sm:$0xff] %vm1923, %v2716
      %2781 = vst.msk [vmem:[#allocation2 + $0x1b8] sm:$0xff] %vm1923, %v2717
      %2782 = vst.msk [vmem:[#allocation2 + $0x1c0] sm:$0xff] %vm1923, %v2718
      %2783 = vst.msk [vmem:[#allocation2 + $0x1c8] sm:$0xff] %vm1923, %v2719
      %2784 = vst.msk [vmem:[#allocation2 + $0x1d0] sm:$0xff] %vm1923, %v2720
      %2785 = vst.msk [vmem:[#allocation2 + $0x1d8] sm:$0xff] %vm1923, %v2721
      %2786 = vst.msk [vmem:[#allocation2 + $0x1e0] sm:$0xff] %vm1923, %v2722
      %2787 = vst.msk [vmem:[#allocation2 + $0x1e8] sm:$0xff] %vm1923, %v2723
      %2788 = vst.msk [vmem:[#allocation2 + $0x1f0] sm:$0xff] %vm1923, %v2724
      %2789 = vst.msk [vmem:[#allocation2 + $0x1f8] sm:$0xff] %vm1923, %v2725
      %2790 = vxpose.xlu0.b32.start [1/16] %v2570, 128
      %2791 = vxpose.xlu0.b32.cont [2/16] %v2574, 128
      %2792 = vxpose.xlu0.b32.cont [3/16] %v2578, 128
      %2793 = vxpose.xlu0.b32.cont [4/16] %v2582, 128
      %2794 = vxpose.xlu0.b32.cont [5/16] %v2586, 128
      %2795 = vxpose.xlu0.b32.cont [6/16] %v2590, 128
      %2796 = vxpose.xlu0.b32.cont [7/16] %v2594, 128
      %2797 = vxpose.xlu0.b32.cont [8/16] 0.0, 128
      %2798 = vxpose.xlu0.b32.cont [9/16] 0.0, 128
      %2799 = vxpose.xlu0.b32.cont [10/16] 0.0, 128
      %2800 = vxpose.xlu0.b32.cont [11/16] 0.0, 128
      %2801 = vxpose.xlu0.b32.cont [12/16] 0.0, 128
      %2802 = vxpose.xlu0.b32.cont [13/16] 0.0, 128
      %2803 = vxpose.xlu0.b32.cont [14/16] 0.0, 128
      %2804 = vxpose.xlu0.b32.cont [15/16] 0.0, 128
      %2805 = vxpose.xlu0.b32.end [16/16] 0.0, 128
      %v2806 = vpop.trf.xlu0
      %v2807 = vpop.trf.xlu0
      %v2808 = vpop.trf.xlu0
      %v2809 = vpop.trf.xlu0
      %v2810 = vpop.trf.xlu0
      %v2811 = vpop.trf.xlu0
      %v2812 = vpop.trf.xlu0
      %v2813 = vpop.trf.xlu0
      %v2814 = vpop.trf.xlu0
      %v2815 = vpop.trf.xlu0
      %v2816 = vpop.trf.xlu0
      %v2817 = vpop.trf.xlu0
      %v2818 = vpop.trf.xlu0
      %v2819 = vpop.trf.xlu0
      %v2820 = vpop.trf.xlu0
      %v2821 = vpop.trf.xlu0
      %2822 = vxpose.xlu0.b32.start [1/16] %v2571, 128
      %2823 = vxpose.xlu0.b32.cont [2/16] %v2575, 128
      %2824 = vxpose.xlu0.b32.cont [3/16] %v2579, 128
      %2825 = vxpose.xlu0.b32.cont [4/16] %v2583, 128
      %2826 = vxpose.xlu0.b32.cont [5/16] %v2587, 128
      %2827 = vxpose.xlu0.b32.cont [6/16] %v2591, 128
      %2828 = vxpose.xlu0.b32.cont [7/16] %v2595, 128
      %2829 = vxpose.xlu0.b32.cont [8/16] 0.0, 128
      %2830 = vxpose.xlu0.b32.cont [9/16] 0.0, 128
      %2831 = vxpose.xlu0.b32.cont [10/16] 0.0, 128
      %2832 = vxpose.xlu0.b32.cont [11/16] 0.0, 128
      %2833 = vxpose.xlu0.b32.cont [12/16] 0.0, 128
      %2834 = vxpose.xlu0.b32.cont [13/16] 0.0, 128
      %2835 = vxpose.xlu0.b32.cont [14/16] 0.0, 128
      %2836 = vxpose.xlu0.b32.cont [15/16] 0.0, 128
      %2837 = vxpose.xlu0.b32.end [16/16] 0.0, 128
      %v2838 = vpop.trf.xlu0
      %v2839 = vpop.trf.xlu0
      %v2840 = vpop.trf.xlu0
      %v2841 = vpop.trf.xlu0
      %v2842 = vpop.trf.xlu0
      %v2843 = vpop.trf.xlu0
      %v2844 = vpop.trf.xlu0
      %v2845 = vpop.trf.xlu0
      %v2846 = vpop.trf.xlu0
      %v2847 = vpop.trf.xlu0
      %v2848 = vpop.trf.xlu0
      %v2849 = vpop.trf.xlu0
      %v2850 = vpop.trf.xlu0
      %v2851 = vpop.trf.xlu0
      %v2852 = vpop.trf.xlu0
      %v2853 = vpop.trf.xlu0
      %2854 = vxpose.xlu0.b32.start [1/16] %v2572, 128
      %2855 = vxpose.xlu0.b32.cont [2/16] %v2576, 128
      %2856 = vxpose.xlu0.b32.cont [3/16] %v2580, 128
      %2857 = vxpose.xlu0.b32.cont [4/16] %v2584, 128
      %2858 = vxpose.xlu0.b32.cont [5/16] %v2588, 128
      %2859 = vxpose.xlu0.b32.cont [6/16] %v2592, 128
      %2860 = vxpose.xlu0.b32.cont [7/16] %v2596, 128
      %2861 = vxpose.xlu0.b32.cont [8/16] 0.0, 128
      %2862 = vxpose.xlu0.b32.cont [9/16] 0.0, 128
      %2863 = vxpose.xlu0.b32.cont [10/16] 0.0, 128
      %2864 = vxpose.xlu0.b32.cont [11/16] 0.0, 128
      %2865 = vxpose.xlu0.b32.cont [12/16] 0.0, 128
      %2866 = vxpose.xlu0.b32.cont [13/16] 0.0, 128
      %2867 = vxpose.xlu0.b32.cont [14/16] 0.0, 128
      %2868 = vxpose.xlu0.b32.cont [15/16] 0.0, 128
      %2869 = vxpose.xlu0.b32.end [16/16] 0.0, 128
      %v2870 = vpop.trf.xlu0
      %v2871 = vpop.trf.xlu0
      %v2872 = vpop.trf.xlu0
      %v2873 = vpop.trf.xlu0
      %v2874 = vpop.trf.xlu0
      %v2875 = vpop.trf.xlu0
      %v2876 = vpop.trf.xlu0
      %v2877 = vpop.trf.xlu0
      %v2878 = vpop.trf.xlu0
      %v2879 = vpop.trf.xlu0
      %v2880 = vpop.trf.xlu0
      %v2881 = vpop.trf.xlu0
      %v2882 = vpop.trf.xlu0
      %v2883 = vpop.trf.xlu0
      %v2884 = vpop.trf.xlu0
      %v2885 = vpop.trf.xlu0
      %2886 = vxpose.xlu0.b32.start [1/16] %v2573, 128
      %2887 = vxpose.xlu0.b32.cont [2/16] %v2577, 128
      %2888 = vxpose.xlu0.b32.cont [3/16] %v2581, 128
      %2889 = vxpose.xlu0.b32.cont [4/16] %v2585, 128
      %2890 = vxpose.xlu0.b32.cont [5/16] %v2589, 128
      %2891 = vxpose.xlu0.b32.cont [6/16] %v2593, 128
      %2892 = vxpose.xlu0.b32.cont [7/16] %v2597, 128
      %2893 = vxpose.xlu0.b32.cont [8/16] 0.0, 128
      %2894 = vxpose.xlu0.b32.cont [9/16] 0.0, 128
      %2895 = vxpose.xlu0.b32.cont [10/16] 0.0, 128
      %2896 = vxpose.xlu0.b32.cont [11/16] 0.0, 128
      %2897 = vxpose.xlu0.b32.cont [12/16] 0.0, 128
      %2898 = vxpose.xlu0.b32.cont [13/16] 0.0, 128
      %2899 = vxpose.xlu0.b32.cont [14/16] 0.0, 128
      %2900 = vxpose.xlu0.b32.cont [15/16] 0.0, 128
      %2901 = vxpose.xlu0.b32.end [16/16] 0.0, 128
      %v2902 = vpop.trf.xlu0
      %v2903 = vpop.trf.xlu0
      %v2904 = vpop.trf.xlu0
      %v2905 = vpop.trf.xlu0
      %v2906 = vpop.trf.xlu0
      %v2907 = vpop.trf.xlu0
      %v2908 = vpop.trf.xlu0
      %v2909 = vpop.trf.xlu0
      %v2910 = vpop.trf.xlu0
      %v2911 = vpop.trf.xlu0
      %v2912 = vpop.trf.xlu0
      %v2913 = vpop.trf.xlu0
      %v2914 = vpop.trf.xlu0
      %v2915 = vpop.trf.xlu0
      %v2916 = vpop.trf.xlu0
      %v2917 = vpop.trf.xlu0
      %2918 = vst.msk [vmem:[#allocation3] sm:$0xff] %vm1923, %v2806
      %2919 = vst.msk [vmem:[#allocation3 + $0x8] sm:$0xff] %vm1923, %v2807
      %2920 = vst.msk [vmem:[#allocation3 + $0x10] sm:$0xff] %vm1923, %v2808
      %2921 = vst.msk [vmem:[#allocation3 + $0x18] sm:$0xff] %vm1923, %v2809
      %2922 = vst.msk [vmem:[#allocation3 + $0x20] sm:$0xff] %vm1923, %v2810
      %2923 = vst.msk [vmem:[#allocation3 + $0x28] sm:$0xff] %vm1923, %v2811
      %2924 = vst.msk [vmem:[#allocation3 + $0x30] sm:$0xff] %vm1923, %v2812
      %2925 = vst.msk [vmem:[#allocation3 + $0x38] sm:$0xff] %vm1923, %v2813
      %2926 = vst.msk [vmem:[#allocation3 + $0x40] sm:$0xff] %vm1923, %v2814
      %2927 = vst.msk [vmem:[#allocation3 + $0x48] sm:$0xff] %vm1923, %v2815
      %2928 = vst.msk [vmem:[#allocation3 + $0x50] sm:$0xff] %vm1923, %v2816
      %2929 = vst.msk [vmem:[#allocation3 + $0x58] sm:$0xff] %vm1923, %v2817
      %2930 = vst.msk [vmem:[#allocation3 + $0x60] sm:$0xff] %vm1923, %v2818
      %2931 = vst.msk [vmem:[#allocation3 + $0x68] sm:$0xff] %vm1923, %v2819
      %2932 = vst.msk [vmem:[#allocation3 + $0x70] sm:$0xff] %vm1923, %v2820
      %2933 = vst.msk [vmem:[#allocation3 + $0x78] sm:$0xff] %vm1923, %v2821
      %2934 = vst.msk [vmem:[#allocation3 + $0x80] sm:$0xff] %vm1923, %v2838
      %2935 = vst.msk [vmem:[#allocation3 + $0x88] sm:$0xff] %vm1923, %v2839
      %2936 = vst.msk [vmem:[#allocation3 + $0x90] sm:$0xff] %vm1923, %v2840
      %2937 = vst.msk [vmem:[#allocation3 + $0x98] sm:$0xff] %vm1923, %v2841
      %2938 = vst.msk [vmem:[#allocation3 + $0xa0] sm:$0xff] %vm1923, %v2842
      %2939 = vst.msk [vmem:[#allocation3 + $0xa8] sm:$0xff] %vm1923, %v2843
      %2940 = vst.msk [vmem:[#allocation3 + $0xb0] sm:$0xff] %vm1923, %v2844
      %2941 = vst.msk [vmem:[#allocation3 + $0xb8] sm:$0xff] %vm1923, %v2845
      %2942 = vst.msk [vmem:[#allocation3 + $0xc0] sm:$0xff] %vm1923, %v2846
      %2943 = vst.msk [vmem:[#allocation3 + $0xc8] sm:$0xff] %vm1923, %v2847
      %2944 = vst.msk [vmem:[#allocation3 + $0xd0] sm:$0xff] %vm1923, %v2848
      %2945 = vst.msk [vmem:[#allocation3 + $0xd8] sm:$0xff] %vm1923, %v2849
      %2946 = vst.msk [vmem:[#allocation3 + $0xe0] sm:$0xff] %vm1923, %v2850
      %2947 = vst.msk [vmem:[#allocation3 + $0xe8] sm:$0xff] %vm1923, %v2851
      %2948 = vst.msk [vmem:[#allocation3 + $0xf0] sm:$0xff] %vm1923, %v2852
      %2949 = vst.msk [vmem:[#allocation3 + $0xf8] sm:$0xff] %vm1923, %v2853
      %2950 = vst.msk [vmem:[#allocation3 + $0x100] sm:$0xff] %vm1923, %v2870
      %2951 = vst.msk [vmem:[#allocation3 + $0x108] sm:$0xff] %vm1923, %v2871
      %2952 = vst.msk [vmem:[#allocation3 + $0x110] sm:$0xff] %vm1923, %v2872
      %2953 = vst.msk [vmem:[#allocation3 + $0x118] sm:$0xff] %vm1923, %v2873
      %2954 = vst.msk [vmem:[#allocation3 + $0x120] sm:$0xff] %vm1923, %v2874
      %2955 = vst.msk [vmem:[#allocation3 + $0x128] sm:$0xff] %vm1923, %v2875
      %2956 = vst.msk [vmem:[#allocation3 + $0x130] sm:$0xff] %vm1923, %v2876
      %2957 = vst.msk [vmem:[#allocation3 + $0x138] sm:$0xff] %vm1923, %v2877
      %2958 = vst.msk [vmem:[#allocation3 + $0x140] sm:$0xff] %vm1923, %v2878
      %2959 = vst.msk [vmem:[#allocation3 + $0x148] sm:$0xff] %vm1923, %v2879
      %2960 = vst.msk [vmem:[#allocation3 + $0x150] sm:$0xff] %vm1923, %v2880
      %2961 = vst.msk [vmem:[#allocation3 + $0x158] sm:$0xff] %vm1923, %v2881
      %2962 = vst.msk [vmem:[#allocation3 + $0x160] sm:$0xff] %vm1923, %v2882
      %2963 = vst.msk [vmem:[#allocation3 + $0x168] sm:$0xff] %vm1923, %v2883
      %2964 = vst.msk [vmem:[#allocation3 + $0x170] sm:$0xff] %vm1923, %v2884
      %2965 = vst.msk [vmem:[#allocation3 + $0x178] sm:$0xff] %vm1923, %v2885
      %2966 = vst.msk [vmem:[#allocation3 + $0x180] sm:$0xff] %vm1923, %v2902
      %2967 = vst.msk [vmem:[#allocation3 + $0x188] sm:$0xff] %vm1923, %v2903
      %2968 = vst.msk [vmem:[#allocation3 + $0x190] sm:$0xff] %vm1923, %v2904
      %2969 = vst.msk [vmem:[#allocation3 + $0x198] sm:$0xff] %vm1923, %v2905
      %2970 = vst.msk [vmem:[#allocation3 + $0x1a0] sm:$0xff] %vm1923, %v2906
      %2971 = vst.msk [vmem:[#allocation3 + $0x1a8] sm:$0xff] %vm1923, %v2907
      %2972 = vst.msk [vmem:[#allocation3 + $0x1b0] sm:$0xff] %vm1923, %v2908
      %2973 = vst.msk [vmem:[#allocation3 + $0x1b8] sm:$0xff] %vm1923, %v2909
      %2974 = vst.msk [vmem:[#allocation3 + $0x1c0] sm:$0xff] %vm1923, %v2910
      %2975 = vst.msk [vmem:[#allocation3 + $0x1c8] sm:$0xff] %vm1923, %v2911
      %2976 = vst.msk [vmem:[#allocation3 + $0x1d0] sm:$0xff] %vm1923, %v2912
      %2977 = vst.msk [vmem:[#allocation3 + $0x1d8] sm:$0xff] %vm1923, %v2913
      %2978 = vst.msk [vmem:[#allocation3 + $0x1e0] sm:$0xff] %vm1923, %v2914
      %2979 = vst.msk [vmem:[#allocation3 + $0x1e8] sm:$0xff] %vm1923, %v2915
      %2980 = vst.msk [vmem:[#allocation3 + $0x1f0] sm:$0xff] %vm1923, %v2916
      %2981 = vst.msk [vmem:[#allocation3 + $0x1f8] sm:$0xff] %vm1923, %v2917
      %v2982 = vsub.f32 0.0, %v791
      %v2983 = vsub.f32 0.0, %v793
      %v2984 = vsub.f32 0.0, %v894
      %v2985 = vsub.f32 0.0, %v896
      %v2986 = vsub.f32 0.0, %v797
      %v2987 = vsub.f32 0.0, %v799
      %v2988 = vsub.f32 0.0, %v900
      %v2989 = vsub.f32 0.0, %v902
      %v2990 = vsub.f32 0.0, %v801
      %v2991 = vsub.f32 0.0, %v803
      %v2992 = vsub.f32 0.0, %v904
      %v2993 = vsub.f32 0.0, %v906
      %v2994 = vsub.f32 0.0, %v807
      %v2995 = vsub.f32 0.0, %v809
      %v2996 = vsub.f32 0.0, %v910
      %v2997 = vsub.f32 0.0, %v912
      %v2998 = vsub.f32 0.0, %v811
      %v2999 = vsub.f32 0.0, %v813
      %v3000 = vsub.f32 0.0, %v914
      %v3001 = vsub.f32 0.0, %v916
      %v3002 = vsub.f32 0.0, %v817
      %v3003 = vsub.f32 0.0, %v819
      %v3004 = vsub.f32 0.0, %v920
      %v3005 = vsub.f32 0.0, %v922
      %v3006 = vsub.f32 0.0, %v821
      %v3007 = vsub.f32 0.0, %v823
      %v3008 = vsub.f32 0.0, %v924
      %v3009 = vsub.f32 0.0, %v926
      %v3010 = vmul.f32 %v2982, 1.442695
      %v3011 = vpow.pop %v3010
      %v3012 = vmul.f32 %v2983, 1.442695
      %v3013 = vpow.pop %v3012
      %v3014 = vmul.f32 %v2984, 1.442695
      %v3015 = vpow.pop %v3014
      %v3016 = vmul.f32 %v2985, 1.442695
      %v3017 = vpow.pop %v3016
      %v3018 = vmul.f32 %v2986, 1.442695
      %v3019 = vpow.pop %v3018
      %v3020 = vmul.f32 %v2987, 1.442695
      %v3021 = vpow.pop %v3020
      %v3022 = vmul.f32 %v2988, 1.442695
      %v3023 = vpow.pop %v3022
      %v3024 = vmul.f32 %v2989, 1.442695
      %v3025 = vpow.pop %v3024
      %v3026 = vmul.f32 %v2990, 1.442695
      %v3027 = vpow.pop %v3026
      %v3028 = vmul.f32 %v2991, 1.442695
      %v3029 = vpow.pop %v3028
      %v3030 = vmul.f32 %v2992, 1.442695
      %v3031 = vpow.pop %v3030
      %v3032 = vmul.f32 %v2993, 1.442695
      %v3033 = vpow.pop %v3032
      %v3034 = vmul.f32 %v2994, 1.442695
      %v3035 = vpow.pop %v3034
      %v3036 = vmul.f32 %v2995, 1.442695
      %v3037 = vpow.pop %v3036
      %v3038 = vmul.f32 %v2996, 1.442695
      %v3039 = vpow.pop %v3038
      %v3040 = vmul.f32 %v2997, 1.442695
      %v3041 = vpow.pop %v3040
      %v3042 = vmul.f32 %v2998, 1.442695
      %v3043 = vpow.pop %v3042
      %v3044 = vmul.f32 %v2999, 1.442695
      %v3045 = vpow.pop %v3044
      %v3046 = vmul.f32 %v3000, 1.442695
      %v3047 = vpow.pop %v3046
      %v3048 = vmul.f32 %v3001, 1.442695
      %v3049 = vpow.pop %v3048
      %v3050 = vmul.f32 %v3002, 1.442695
      %v3051 = vpow.pop %v3050
      %v3052 = vmul.f32 %v3003, 1.442695
      %v3053 = vpow.pop %v3052
      %v3054 = vmul.f32 %v3004, 1.442695
      %v3055 = vpow.pop %v3054
      %v3056 = vmul.f32 %v3005, 1.442695
      %v3057 = vpow.pop %v3056
      %v3058 = vmul.f32 %v3006, 1.442695
      %v3059 = vpow.pop %v3058
      %v3060 = vmul.f32 %v3007, 1.442695
      %v3061 = vpow.pop %v3060
      %v3062 = vmul.f32 %v3008, 1.442695
      %v3063 = vpow.pop %v3062
      %v3064 = vmul.f32 %v3009, 1.442695
      %v3065 = vpow.pop %v3064
      %v3066 = vadd.f32 %v3011, 1.0
      %v3067 = vadd.f32 %v3013, 1.0
      %v3068 = vadd.f32 %v3015, 1.0
      %v3069 = vadd.f32 %v3017, 1.0
      %v3070 = vadd.f32 %v3019, 1.0
      %v3071 = vadd.f32 %v3021, 1.0
      %v3072 = vadd.f32 %v3023, 1.0
      %v3073 = vadd.f32 %v3025, 1.0
      %v3074 = vadd.f32 %v3027, 1.0
      %v3075 = vadd.f32 %v3029, 1.0
      %v3076 = vadd.f32 %v3031, 1.0
      %v3077 = vadd.f32 %v3033, 1.0
      %v3078 = vadd.f32 %v3035, 1.0
      %v3079 = vadd.f32 %v3037, 1.0
      %v3080 = vadd.f32 %v3039, 1.0
      %v3081 = vadd.f32 %v3041, 1.0
      %v3082 = vadd.f32 %v3043, 1.0
      %v3083 = vadd.f32 %v3045, 1.0
      %v3084 = vadd.f32 %v3047, 1.0
      %v3085 = vadd.f32 %v3049, 1.0
      %v3086 = vadd.f32 %v3051, 1.0
      %v3087 = vadd.f32 %v3053, 1.0
      %v3088 = vadd.f32 %v3055, 1.0
      %v3089 = vadd.f32 %v3057, 1.0
      %v3090 = vadd.f32 %v3059, 1.0
      %v3091 = vadd.f32 %v3061, 1.0
      %v3092 = vadd.f32 %v3063, 1.0
      %v3093 = vadd.f32 %v3065, 1.0
      %v3094 = vrcp.pop %v3066
      %v3095 = vrcp.pop %v3067
      %v3096 = vrcp.pop %v3068
      %v3097 = vrcp.pop %v3069
      %v3098 = vrcp.pop %v3070
      %v3099 = vrcp.pop %v3071
      %v3100 = vrcp.pop %v3072
      %v3101 = vrcp.pop %v3073
      %v3102 = vrcp.pop %v3074
      %v3103 = vrcp.pop %v3075
      %v3104 = vrcp.pop %v3076
      %v3105 = vrcp.pop %v3077
      %v3106 = vrcp.pop %v3078
      %v3107 = vrcp.pop %v3079
      %v3108 = vrcp.pop %v3080
      %v3109 = vrcp.pop %v3081
      %v3110 = vrcp.pop %v3082
      %v3111 = vrcp.pop %v3083
      %v3112 = vrcp.pop %v3084
      %v3113 = vrcp.pop %v3085
      %v3114 = vrcp.pop %v3086
      %v3115 = vrcp.pop %v3087
      %v3116 = vrcp.pop %v3088
      %v3117 = vrcp.pop %v3089
      %v3118 = vrcp.pop %v3090
      %v3119 = vrcp.pop %v3091
      %v3120 = vrcp.pop %v3092
      %v3121 = vrcp.pop %v3093
      %v3122 = vmul.f32 %v791, %v3094
      %v3123 = vmul.f32 %v793, %v3095
      %v3124 = vmul.f32 %v894, %v3096
      %v3125 = vmul.f32 %v896, %v3097
      %v3126 = vmul.f32 %v797, %v3098
      %v3127 = vmul.f32 %v799, %v3099
      %v3128 = vmul.f32 %v900, %v3100
      %v3129 = vmul.f32 %v902, %v3101
      %v3130 = vmul.f32 %v801, %v3102
      %v3131 = vmul.f32 %v803, %v3103
      %v3132 = vmul.f32 %v904, %v3104
      %v3133 = vmul.f32 %v906, %v3105
      %v3134 = vmul.f32 %v807, %v3106
      %v3135 = vmul.f32 %v809, %v3107
      %v3136 = vmul.f32 %v910, %v3108
      %v3137 = vmul.f32 %v912, %v3109
      %v3138 = vmul.f32 %v811, %v3110
      %v3139 = vmul.f32 %v813, %v3111
      %v3140 = vmul.f32 %v914, %v3112
      %v3141 = vmul.f32 %v916, %v3113
      %v3142 = vmul.f32 %v817, %v3114
      %v3143 = vmul.f32 %v819, %v3115
      %v3144 = vmul.f32 %v920, %v3116
      %v3145 = vmul.f32 %v922, %v3117
      %v3146 = vmul.f32 %v821, %v3118
      %v3147 = vmul.f32 %v823, %v3119
      %v3148 = vmul.f32 %v924, %v3120
      %v3149 = vmul.f32 %v926, %v3121
      %3150 = vxpose.xlu0.b32.start [1/16] %v3122, 128
      %3151 = vxpose.xlu0.b32.cont [2/16] %v3126, 128
      %3152 = vxpose.xlu0.b32.cont [3/16] %v3130, 128
      %3153 = vxpose.xlu0.b32.cont [4/16] %v3134, 128
      %3154 = vxpose.xlu0.b32.cont [5/16] %v3138, 128
      %3155 = vxpose.xlu0.b32.cont [6/16] %v3142, 128
      %3156 = vxpose.xlu0.b32.cont [7/16] %v3146, 128
      %3157 = vxpose.xlu0.b32.cont [8/16] 0.0, 128
      %3158 = vxpose.xlu0.b32.cont [9/16] 0.0, 128
      %3159 = vxpose.xlu0.b32.cont [10/16] 0.0, 128
      %3160 = vxpose.xlu0.b32.cont [11/16] 0.0, 128
      %3161 = vxpose.xlu0.b32.cont [12/16] 0.0, 128
      %3162 = vxpose.xlu0.b32.cont [13/16] 0.0, 128
      %3163 = vxpose.xlu0.b32.cont [14/16] 0.0, 128
      %3164 = vxpose.xlu0.b32.cont [15/16] 0.0, 128
      %3165 = vxpose.xlu0.b32.end [16/16] 0.0, 128
      %v3166 = vpop.trf.xlu0
      %v3167 = vpop.trf.xlu0
      %v3168 = vpop.trf.xlu0
      %v3169 = vpop.trf.xlu0
      %v3170 = vpop.trf.xlu0
      %v3171 = vpop.trf.xlu0
      %v3172 = vpop.trf.xlu0
      %v3173 = vpop.trf.xlu0
      %v3174 = vpop.trf.xlu0
      %v3175 = vpop.trf.xlu0
      %v3176 = vpop.trf.xlu0
      %v3177 = vpop.trf.xlu0
      %v3178 = vpop.trf.xlu0
      %v3179 = vpop.trf.xlu0
      %v3180 = vpop.trf.xlu0
      %v3181 = vpop.trf.xlu0
      %3182 = vxpose.xlu0.b32.start [1/16] %v3123, 128
      %3183 = vxpose.xlu0.b32.cont [2/16] %v3127, 128
      %3184 = vxpose.xlu0.b32.cont [3/16] %v3131, 128
      %3185 = vxpose.xlu0.b32.cont [4/16] %v3135, 128
      %3186 = vxpose.xlu0.b32.cont [5/16] %v3139, 128
      %3187 = vxpose.xlu0.b32.cont [6/16] %v3143, 128
      %3188 = vxpose.xlu0.b32.cont [7/16] %v3147, 128
      %3189 = vxpose.xlu0.b32.cont [8/16] 0.0, 128
      %3190 = vxpose.xlu0.b32.cont [9/16] 0.0, 128
      %3191 = vxpose.xlu0.b32.cont [10/16] 0.0, 128
      %3192 = vxpose.xlu0.b32.cont [11/16] 0.0, 128
      %3193 = vxpose.xlu0.b32.cont [12/16] 0.0, 128
      %3194 = vxpose.xlu0.b32.cont [13/16] 0.0, 128
      %3195 = vxpose.xlu0.b32.cont [14/16] 0.0, 128
      %3196 = vxpose.xlu0.b32.cont [15/16] 0.0, 128
      %3197 = vxpose.xlu0.b32.end [16/16] 0.0, 128
      %v3198 = vpop.trf.xlu0
      %v3199 = vpop.trf.xlu0
      %v3200 = vpop.trf.xlu0
      %v3201 = vpop.trf.xlu0
      %v3202 = vpop.trf.xlu0
      %v3203 = vpop.trf.xlu0
      %v3204 = vpop.trf.xlu0
      %v3205 = vpop.trf.xlu0
      %v3206 = vpop.trf.xlu0
      %v3207 = vpop.trf.xlu0
      %v3208 = vpop.trf.xlu0
      %v3209 = vpop.trf.xlu0
      %v3210 = vpop.trf.xlu0
      %v3211 = vpop.trf.xlu0
      %v3212 = vpop.trf.xlu0
      %v3213 = vpop.trf.xlu0
      %3214 = vxpose.xlu0.b32.start [1/16] %v3124, 128
      %3215 = vxpose.xlu0.b32.cont [2/16] %v3128, 128
      %3216 = vxpose.xlu0.b32.cont [3/16] %v3132, 128
      %3217 = vxpose.xlu0.b32.cont [4/16] %v3136, 128
      %3218 = vxpose.xlu0.b32.cont [5/16] %v3140, 128
      %3219 = vxpose.xlu0.b32.cont [6/16] %v3144, 128
      %3220 = vxpose.xlu0.b32.cont [7/16] %v3148, 128
      %3221 = vxpose.xlu0.b32.cont [8/16] 0.0, 128
      %3222 = vxpose.xlu0.b32.cont [9/16] 0.0, 128
      %3223 = vxpose.xlu0.b32.cont [10/16] 0.0, 128
      %3224 = vxpose.xlu0.b32.cont [11/16] 0.0, 128
      %3225 = vxpose.xlu0.b32.cont [12/16] 0.0, 128
      %3226 = vxpose.xlu0.b32.cont [13/16] 0.0, 128
      %3227 = vxpose.xlu0.b32.cont [14/16] 0.0, 128
      %3228 = vxpose.xlu0.b32.cont [15/16] 0.0, 128
      %3229 = vxpose.xlu0.b32.end [16/16] 0.0, 128
      %v3230 = vpop.trf.xlu0
      %v3231 = vpop.trf.xlu0
      %v3232 = vpop.trf.xlu0
      %v3233 = vpop.trf.xlu0
      %v3234 = vpop.trf.xlu0
      %v3235 = vpop.trf.xlu0
      %v3236 = vpop.trf.xlu0
      %v3237 = vpop.trf.xlu0
      %v3238 = vpop.trf.xlu0
      %v3239 = vpop.trf.xlu0
      %v3240 = vpop.trf.xlu0
      %v3241 = vpop.trf.xlu0
      %v3242 = vpop.trf.xlu0
      %v3243 = vpop.trf.xlu0
      %v3244 = vpop.trf.xlu0
      %v3245 = vpop.trf.xlu0
      %3246 = vxpose.xlu0.b32.start [1/16] %v3125, 128
      %3247 = vxpose.xlu0.b32.cont [2/16] %v3129, 128
      %3248 = vxpose.xlu0.b32.cont [3/16] %v3133, 128
      %3249 = vxpose.xlu0.b32.cont [4/16] %v3137, 128
      %3250 = vxpose.xlu0.b32.cont [5/16] %v3141, 128
      %3251 = vxpose.xlu0.b32.cont [6/16] %v3145, 128
      %3252 = vxpose.xlu0.b32.cont [7/16] %v3149, 128
      %3253 = vxpose.xlu0.b32.cont [8/16] 0.0, 128
      %3254 = vxpose.xlu0.b32.cont [9/16] 0.0, 128
      %3255 = vxpose.xlu0.b32.cont [10/16] 0.0, 128
      %3256 = vxpose.xlu0.b32.cont [11/16] 0.0, 128
      %3257 = vxpose.xlu0.b32.cont [12/16] 0.0, 128
      %3258 = vxpose.xlu0.b32.cont [13/16] 0.0, 128
      %3259 = vxpose.xlu0.b32.cont [14/16] 0.0, 128
      %3260 = vxpose.xlu0.b32.cont [15/16] 0.0, 128
      %3261 = vxpose.xlu0.b32.end [16/16] 0.0, 128
      %v3262 = vpop.trf.xlu0
      %v3263 = vpop.trf.xlu0
      %v3264 = vpop.trf.xlu0
      %v3265 = vpop.trf.xlu0
      %v3266 = vpop.trf.xlu0
      %v3267 = vpop.trf.xlu0
      %v3268 = vpop.trf.xlu0
      %v3269 = vpop.trf.xlu0
      %v3270 = vpop.trf.xlu0
      %v3271 = vpop.trf.xlu0
      %v3272 = vpop.trf.xlu0
      %v3273 = vpop.trf.xlu0
      %v3274 = vpop.trf.xlu0
      %v3275 = vpop.trf.xlu0
      %v3276 = vpop.trf.xlu0
      %v3277 = vpop.trf.xlu0
      %3278 = vst.msk [vmem:[#allocation4] sm:$0xff] %vm1923, %v3166
      %3279 = vst.msk [vmem:[#allocation4 + $0x8] sm:$0xff] %vm1923, %v3167
      %3280 = vst.msk [vmem:[#allocation4 + $0x10] sm:$0xff] %vm1923, %v3168
      %3281 = vst.msk [vmem:[#allocation4 + $0x18] sm:$0xff] %vm1923, %v3169
      %3282 = vst.msk [vmem:[#allocation4 + $0x20] sm:$0xff] %vm1923, %v3170
      %3283 = vst.msk [vmem:[#allocation4 + $0x28] sm:$0xff] %vm1923, %v3171
      %3284 = vst.msk [vmem:[#allocation4 + $0x30] sm:$0xff] %vm1923, %v3172
      %3285 = vst.msk [vmem:[#allocation4 + $0x38] sm:$0xff] %vm1923, %v3173
      %3286 = vst.msk [vmem:[#allocation4 + $0x40] sm:$0xff] %vm1923, %v3174
      %3287 = vst.msk [vmem:[#allocation4 + $0x48] sm:$0xff] %vm1923, %v3175
      %3288 = vst.msk [vmem:[#allocation4 + $0x50] sm:$0xff] %vm1923, %v3176
      %3289 = vst.msk [vmem:[#allocation4 + $0x58] sm:$0xff] %vm1923, %v3177
      %3290 = vst.msk [vmem:[#allocation4 + $0x60] sm:$0xff] %vm1923, %v3178
      %3291 = vst.msk [vmem:[#allocation4 + $0x68] sm:$0xff] %vm1923, %v3179
      %3292 = vst.msk [vmem:[#allocation4 + $0x70] sm:$0xff] %vm1923, %v3180
      %3293 = vst.msk [vmem:[#allocation4 + $0x78] sm:$0xff] %vm1923, %v3181
      %3294 = vst.msk [vmem:[#allocation4 + $0x80] sm:$0xff] %vm1923, %v3198
      %3295 = vst.msk [vmem:[#allocation4 + $0x88] sm:$0xff] %vm1923, %v3199
      %3296 = vst.msk [vmem:[#allocation4 + $0x90] sm:$0xff] %vm1923, %v3200
      %3297 = vst.msk [vmem:[#allocation4 + $0x98] sm:$0xff] %vm1923, %v3201
      %3298 = vst.msk [vmem:[#allocation4 + $0xa0] sm:$0xff] %vm1923, %v3202
      %3299 = vst.msk [vmem:[#allocation4 + $0xa8] sm:$0xff] %vm1923, %v3203
      %3300 = vst.msk [vmem:[#allocation4 + $0xb0] sm:$0xff] %vm1923, %v3204
      %3301 = vst.msk [vmem:[#allocation4 + $0xb8] sm:$0xff] %vm1923, %v3205
      %3302 = vst.msk [vmem:[#allocation4 + $0xc0] sm:$0xff] %vm1923, %v3206
      %3303 = vst.msk [vmem:[#allocation4 + $0xc8] sm:$0xff] %vm1923, %v3207
      %3304 = vst.msk [vmem:[#allocation4 + $0xd0] sm:$0xff] %vm1923, %v3208
      %3305 = vst.msk [vmem:[#allocation4 + $0xd8] sm:$0xff] %vm1923, %v3209
      %3306 = vst.msk [vmem:[#allocation4 + $0xe0] sm:$0xff] %vm1923, %v3210
      %3307 = vst.msk [vmem:[#allocation4 + $0xe8] sm:$0xff] %vm1923, %v3211
      %3308 = vst.msk [vmem:[#allocation4 + $0xf0] sm:$0xff] %vm1923, %v3212
      %3309 = vst.msk [vmem:[#allocation4 + $0xf8] sm:$0xff] %vm1923, %v3213
      %3310 = vst.msk [vmem:[#allocation4 + $0x100] sm:$0xff] %vm1923, %v3230
      %3311 = vst.msk [vmem:[#allocation4 + $0x108] sm:$0xff] %vm1923, %v3231
      %3312 = vst.msk [vmem:[#allocation4 + $0x110] sm:$0xff] %vm1923, %v3232
      %3313 = vst.msk [vmem:[#allocation4 + $0x118] sm:$0xff] %vm1923, %v3233
      %3314 = vst.msk [vmem:[#allocation4 + $0x120] sm:$0xff] %vm1923, %v3234
      %3315 = vst.msk [vmem:[#allocation4 + $0x128] sm:$0xff] %vm1923, %v3235
      %3316 = vst.msk [vmem:[#allocation4 + $0x130] sm:$0xff] %vm1923, %v3236
      %3317 = vst.msk [vmem:[#allocation4 + $0x138] sm:$0xff] %vm1923, %v3237
      %3318 = vst.msk [vmem:[#allocation4 + $0x140] sm:$0xff] %vm1923, %v3238
      %3319 = vst.msk [vmem:[#allocation4 + $0x148] sm:$0xff] %vm1923, %v3239
      %3320 = vst.msk [vmem:[#allocation4 + $0x150] sm:$0xff] %vm1923, %v3240
      %3321 = vst.msk [vmem:[#allocation4 + $0x158] sm:$0xff] %vm1923, %v3241
      %3322 = vst.msk [vmem:[#allocation4 + $0x160] sm:$0xff] %vm1923, %v3242
      %3323 = vst.msk [vmem:[#allocation4 + $0x168] sm:$0xff] %vm1923, %v3243
      %3324 = vst.msk [vmem:[#allocation4 + $0x170] sm:$0xff] %vm1923, %v3244
      %3325 = vst.msk [vmem:[#allocation4 + $0x178] sm:$0xff] %vm1923, %v3245
      %3326 = vst.msk [vmem:[#allocation4 + $0x180] sm:$0xff] %vm1923, %v3262
      %3327 = vst.msk [vmem:[#allocation4 + $0x188] sm:$0xff] %vm1923, %v3263
      %3328 = vst.msk [vmem:[#allocation4 + $0x190] sm:$0xff] %vm1923, %v3264
      %3329 = vst.msk [vmem:[#allocation4 + $0x198] sm:$0xff] %vm1923, %v3265
      %3330 = vst.msk [vmem:[#allocation4 + $0x1a0] sm:$0xff] %vm1923, %v3266
      %3331 = vst.msk [vmem:[#allocation4 + $0x1a8] sm:$0xff] %vm1923, %v3267
      %3332 = vst.msk [vmem:[#allocation4 + $0x1b0] sm:$0xff] %vm1923, %v3268
      %3333 = vst.msk [vmem:[#allocation4 + $0x1b8] sm:$0xff] %vm1923, %v3269
      %3334 = vst.msk [vmem:[#allocation4 + $0x1c0] sm:$0xff] %vm1923, %v3270
      %3335 = vst.msk [vmem:[#allocation4 + $0x1c8] sm:$0xff] %vm1923, %v3271
      %3336 = vst.msk [vmem:[#allocation4 + $0x1d0] sm:$0xff] %vm1923, %v3272
      %3337 = vst.msk [vmem:[#allocation4 + $0x1d8] sm:$0xff] %vm1923, %v3273
      %3338 = vst.msk [vmem:[#allocation4 + $0x1e0] sm:$0xff] %vm1923, %v3274
      %3339 = vst.msk [vmem:[#allocation4 + $0x1e8] sm:$0xff] %vm1923, %v3275
      %3340 = vst.msk [vmem:[#allocation4 + $0x1f0] sm:$0xff] %vm1923, %v3276
      %3341 = vst.msk [vmem:[#allocation4 + $0x1f8] sm:$0xff] %vm1923, %v3277
      %vm3342 = vcmask 64512
      %3343 = vst.msk [vmem:[#allocation5] sm:$0xff] %vm3342, %v1989
      %3344 = vst.msk [vmem:[#allocation5 + $0x8] sm:$0xff] %vm3342, %v1993
      %3345 = vst.msk [vmem:[#allocation5 + $0x10] sm:$0xff] %vm3342, %v1999
      %3346 = vst.msk [vmem:[#allocation5 + $0x18] sm:$0xff] %vm3342, %v2003
      %3351 = vrot.lane.b32.xlu0 %v1989, 120
      %v3352 = vpop.permute.xlu0 %3351
      %3353 = vrot.lane.b32.xlu0 %v1993, 120
      %v3354 = vpop.permute.xlu0 %3353
      %3355 = vrot.lane.b32.xlu0 %v1999, 120
      %v3356 = vpop.permute.xlu0 %3355
      %3357 = vrot.lane.b32.xlu0 %v2003, 120
      %v3358 = vpop.permute.xlu0 %3357
      %s3363 = scalar_lea.vmem [#allocation5], 32
      %3364 = vst.msk [vmem:[%s3363] sm:$0xff] %vm3342, %v3352
      %3365 = vst.msk [vmem:[%s3363 + $0x8] sm:$0xff] %vm3342, %v3354
      %3366 = vst.msk [vmem:[%s3363 + $0x10] sm:$0xff] %vm3342, %v3356
      %3367 = vst.msk [vmem:[%s3363 + $0x18] sm:$0xff] %vm3342, %v3358
      %3368 = vrot.lane.b32.xlu0 %v1989, 112
      %v3369 = vpop.permute.xlu0 %3368
      %3370 = vrot.lane.b32.xlu0 %v1993, 112
      %v3371 = vpop.permute.xlu0 %3370
      %3372 = vrot.lane.b32.xlu0 %v1999, 112
      %v3373 = vpop.permute.xlu0 %3372
      %3374 = vrot.lane.b32.xlu0 %v2003, 112
      %v3375 = vpop.permute.xlu0 %3374
      %s3380 = scalar_lea.vmem [#allocation5], 64
      %3381 = vst.msk [vmem:[%s3380] sm:$0xff] %vm3342, %v3369
      %3382 = vst.msk [vmem:[%s3380 + $0x8] sm:$0xff] %vm3342, %v3371
      %3383 = vst.msk [vmem:[%s3380 + $0x10] sm:$0xff] %vm3342, %v3373
      %3384 = vst.msk [vmem:[%s3380 + $0x18] sm:$0xff] %vm3342, %v3375
      %3385 = vrot.lane.b32.xlu0 %v1989, 104
      %v3386 = vpop.permute.xlu0 %3385
      %3387 = vrot.lane.b32.xlu0 %v1993, 104
      %v3388 = vpop.permute.xlu0 %3387
      %3389 = vrot.lane.b32.xlu0 %v1999, 104
      %v3390 = vpop.permute.xlu0 %3389
      %3391 = vrot.lane.b32.xlu0 %v2003, 104
      %v3392 = vpop.permute.xlu0 %3391
      %s3397 = scalar_lea.vmem [#allocation5], 96
      %3398 = vst.msk [vmem:[%s3397] sm:$0xff] %vm3342, %v3386
      %3399 = vst.msk [vmem:[%s3397 + $0x8] sm:$0xff] %vm3342, %v3388
      %3400 = vst.msk [vmem:[%s3397 + $0x10] sm:$0xff] %vm3342, %v3390
      %3401 = vst.msk [vmem:[%s3397 + $0x18] sm:$0xff] %vm3342, %v3392
      %3402 = vrot.lane.b32.xlu0 %v1989, 96
      %v3403 = vpop.permute.xlu0 %3402
      %3404 = vrot.lane.b32.xlu0 %v1993, 96
      %v3405 = vpop.permute.xlu0 %3404
      %3406 = vrot.lane.b32.xlu0 %v1999, 96
      %v3407 = vpop.permute.xlu0 %3406
      %3408 = vrot.lane.b32.xlu0 %v2003, 96
      %v3409 = vpop.permute.xlu0 %3408
      %s3414 = scalar_lea.vmem [#allocation5], 128
      %3415 = vst.msk [vmem:[%s3414] sm:$0xff] %vm3342, %v3403
      %3416 = vst.msk [vmem:[%s3414 + $0x8] sm:$0xff] %vm3342, %v3405
      %3417 = vst.msk [vmem:[%s3414 + $0x10] sm:$0xff] %vm3342, %v3407
      %3418 = vst.msk [vmem:[%s3414 + $0x18] sm:$0xff] %vm3342, %v3409
      %3419 = vrot.lane.b32.xlu0 %v1989, 88
      %v3420 = vpop.permute.xlu0 %3419
      %3421 = vrot.lane.b32.xlu0 %v1993, 88
      %v3422 = vpop.permute.xlu0 %3421
      %3423 = vrot.lane.b32.xlu0 %v1999, 88
      %v3424 = vpop.permute.xlu0 %3423
      %3425 = vrot.lane.b32.xlu0 %v2003, 88
      %v3426 = vpop.permute.xlu0 %3425
      %s3431 = scalar_lea.vmem [#allocation5], 160
      %3432 = vst.msk [vmem:[%s3431] sm:$0xff] %vm3342, %v3420
      %3433 = vst.msk [vmem:[%s3431 + $0x8] sm:$0xff] %vm3342, %v3422
      %3434 = vst.msk [vmem:[%s3431 + $0x10] sm:$0xff] %vm3342, %v3424
      %3435 = vst.msk [vmem:[%s3431 + $0x18] sm:$0xff] %vm3342, %v3426
      %3436 = vrot.lane.b32.xlu0 %v1989, 80
      %v3437 = vpop.permute.xlu0 %3436
      %3438 = vrot.lane.b32.xlu0 %v1993, 80
      %v3439 = vpop.permute.xlu0 %3438
      %3440 = vrot.lane.b32.xlu0 %v1999, 80
      %v3441 = vpop.permute.xlu0 %3440
      %3442 = vrot.lane.b32.xlu0 %v2003, 80
      %v3443 = vpop.permute.xlu0 %3442
      %s3448 = scalar_lea.vmem [#allocation5], 192
      %3449 = vst.msk [vmem:[%s3448] sm:$0xff] %vm3342, %v3437
      %3450 = vst.msk [vmem:[%s3448 + $0x8] sm:$0xff] %vm3342, %v3439
      %3451 = vst.msk [vmem:[%s3448 + $0x10] sm:$0xff] %vm3342, %v3441
      %3452 = vst.msk [vmem:[%s3448 + $0x18] sm:$0xff] %vm3342, %v3443
      %3453 = vrot.lane.b32.xlu0 %v1989, 72
      %v3454 = vpop.permute.xlu0 %3453
      %3455 = vrot.lane.b32.xlu0 %v1993, 72
      %v3456 = vpop.permute.xlu0 %3455
      %3457 = vrot.lane.b32.xlu0 %v1999, 72
      %v3458 = vpop.permute.xlu0 %3457
      %3459 = vrot.lane.b32.xlu0 %v2003, 72
      %v3460 = vpop.permute.xlu0 %3459
      %s3465 = scalar_lea.vmem [#allocation5], 224
      %3466 = vst.msk [vmem:[%s3465] sm:$0xff] %vm3342, %v3454
      %3467 = vst.msk [vmem:[%s3465 + $0x8] sm:$0xff] %vm3342, %v3456
      %3468 = vst.msk [vmem:[%s3465 + $0x10] sm:$0xff] %vm3342, %v3458
      %3469 = vst.msk [vmem:[%s3465 + $0x18] sm:$0xff] %vm3342, %v3460
      %3470 = vrot.lane.b32.xlu0 %v1989, 64
      %v3471 = vpop.permute.xlu0 %3470
      %3472 = vrot.lane.b32.xlu0 %v1993, 64
      %v3473 = vpop.permute.xlu0 %3472
      %3474 = vrot.lane.b32.xlu0 %v1999, 64
      %v3475 = vpop.permute.xlu0 %3474
      %3476 = vrot.lane.b32.xlu0 %v2003, 64
      %v3477 = vpop.permute.xlu0 %3476
      %s3482 = scalar_lea.vmem [#allocation5], 256
      %3483 = vst.msk [vmem:[%s3482] sm:$0xff] %vm3342, %v3471
      %3484 = vst.msk [vmem:[%s3482 + $0x8] sm:$0xff] %vm3342, %v3473
      %3485 = vst.msk [vmem:[%s3482 + $0x10] sm:$0xff] %vm3342, %v3475
      %3486 = vst.msk [vmem:[%s3482 + $0x18] sm:$0xff] %vm3342, %v3477
      %3487 = vrot.lane.b32.xlu0 %v1989, 56
      %v3488 = vpop.permute.xlu0 %3487
      %3489 = vrot.lane.b32.xlu0 %v1993, 56
      %v3490 = vpop.permute.xlu0 %3489
      %3491 = vrot.lane.b32.xlu0 %v1999, 56
      %v3492 = vpop.permute.xlu0 %3491
      %3493 = vrot.lane.b32.xlu0 %v2003, 56
      %v3494 = vpop.permute.xlu0 %3493
      %s3499 = scalar_lea.vmem [#allocation5], 288
      %3500 = vst.msk [vmem:[%s3499] sm:$0xff] %vm3342, %v3488
      %3501 = vst.msk [vmem:[%s3499 + $0x8] sm:$0xff] %vm3342, %v3490
      %3502 = vst.msk [vmem:[%s3499 + $0x10] sm:$0xff] %vm3342, %v3492
      %3503 = vst.msk [vmem:[%s3499 + $0x18] sm:$0xff] %vm3342, %v3494
      %3504 = vrot.lane.b32.xlu0 %v1989, 48
      %v3505 = vpop.permute.xlu0 %3504
      %3506 = vrot.lane.b32.xlu0 %v1993, 48
      %v3507 = vpop.permute.xlu0 %3506
      %3508 = vrot.lane.b32.xlu0 %v1999, 48
      %v3509 = vpop.permute.xlu0 %3508
      %3510 = vrot.lane.b32.xlu0 %v2003, 48
      %v3511 = vpop.permute.xlu0 %3510
      %s3516 = scalar_lea.vmem [#allocation5], 320
      %3517 = vst.msk [vmem:[%s3516] sm:$0xff] %vm3342, %v3505
      %3518 = vst.msk [vmem:[%s3516 + $0x8] sm:$0xff] %vm3342, %v3507
      %3519 = vst.msk [vmem:[%s3516 + $0x10] sm:$0xff] %vm3342, %v3509
      %3520 = vst.msk [vmem:[%s3516 + $0x18] sm:$0xff] %vm3342, %v3511
      %3521 = vrot.lane.b32.xlu0 %v1989, 40
      %v3522 = vpop.permute.xlu0 %3521
      %3523 = vrot.lane.b32.xlu0 %v1993, 40
      %v3524 = vpop.permute.xlu0 %3523
      %3525 = vrot.lane.b32.xlu0 %v1999, 40
      %v3526 = vpop.permute.xlu0 %3525
      %3527 = vrot.lane.b32.xlu0 %v2003, 40
      %v3528 = vpop.permute.xlu0 %3527
      %s3533 = scalar_lea.vmem [#allocation5], 352
      %3534 = vst.msk [vmem:[%s3533] sm:$0xff] %vm3342, %v3522
      %3535 = vst.msk [vmem:[%s3533 + $0x8] sm:$0xff] %vm3342, %v3524
      %3536 = vst.msk [vmem:[%s3533 + $0x10] sm:$0xff] %vm3342, %v3526
      %3537 = vst.msk [vmem:[%s3533 + $0x18] sm:$0xff] %vm3342, %v3528
      %3538 = vrot.lane.b32.xlu0 %v1989, 32
      %v3539 = vpop.permute.xlu0 %3538
      %3540 = vrot.lane.b32.xlu0 %v1993, 32
      %v3541 = vpop.permute.xlu0 %3540
      %3542 = vrot.lane.b32.xlu0 %v1999, 32
      %v3543 = vpop.permute.xlu0 %3542
      %3544 = vrot.lane.b32.xlu0 %v2003, 32
      %v3545 = vpop.permute.xlu0 %3544
      %s3550 = scalar_lea.vmem [#allocation5], 384
      %3551 = vst.msk [vmem:[%s3550] sm:$0xff] %vm3342, %v3539
      %3552 = vst.msk [vmem:[%s3550 + $0x8] sm:$0xff] %vm3342, %v3541
      %3553 = vst.msk [vmem:[%s3550 + $0x10] sm:$0xff] %vm3342, %v3543
      %3554 = vst.msk [vmem:[%s3550 + $0x18] sm:$0xff] %vm3342, %v3545
      %3555 = vrot.lane.b32.xlu0 %v1989, 24
      %v3556 = vpop.permute.xlu0 %3555
      %3557 = vrot.lane.b32.xlu0 %v1993, 24
      %v3558 = vpop.permute.xlu0 %3557
      %3559 = vrot.lane.b32.xlu0 %v1999, 24
      %v3560 = vpop.permute.xlu0 %3559
      %3561 = vrot.lane.b32.xlu0 %v2003, 24
      %v3562 = vpop.permute.xlu0 %3561
      %s3567 = scalar_lea.vmem [#allocation5], 416
      %3568 = vst.msk [vmem:[%s3567] sm:$0xff] %vm3342, %v3556
      %3569 = vst.msk [vmem:[%s3567 + $0x8] sm:$0xff] %vm3342, %v3558
      %3570 = vst.msk [vmem:[%s3567 + $0x10] sm:$0xff] %vm3342, %v3560
      %3571 = vst.msk [vmem:[%s3567 + $0x18] sm:$0xff] %vm3342, %v3562
      %3572 = vrot.lane.b32.xlu0 %v1989, 16
      %v3573 = vpop.permute.xlu0 %3572
      %3574 = vrot.lane.b32.xlu0 %v1993, 16
      %v3575 = vpop.permute.xlu0 %3574
      %3576 = vrot.lane.b32.xlu0 %v1999, 16
      %v3577 = vpop.permute.xlu0 %3576
      %3578 = vrot.lane.b32.xlu0 %v2003, 16
      %v3579 = vpop.permute.xlu0 %3578
      %s3584 = scalar_lea.vmem [#allocation5], 448
      %3585 = vst.msk [vmem:[%s3584] sm:$0xff] %vm3342, %v3573
      %3586 = vst.msk [vmem:[%s3584 + $0x8] sm:$0xff] %vm3342, %v3575
      %3587 = vst.msk [vmem:[%s3584 + $0x10] sm:$0xff] %vm3342, %v3577
      %3588 = vst.msk [vmem:[%s3584 + $0x18] sm:$0xff] %vm3342, %v3579
      %3589 = vrot.lane.b32.xlu0 %v1989, 8
      %v3590 = vpop.permute.xlu0 %3589
      %3591 = vrot.lane.b32.xlu0 %v1993, 8
      %v3592 = vpop.permute.xlu0 %3591
      %3593 = vrot.lane.b32.xlu0 %v1999, 8
      %v3594 = vpop.permute.xlu0 %3593
      %3595 = vrot.lane.b32.xlu0 %v2003, 8
      %v3596 = vpop.permute.xlu0 %3595
      %s3601 = scalar_lea.vmem [#allocation5], 480
      %3602 = vst.msk [vmem:[%s3601] sm:$0xff] %vm3342, %v3590
      %3603 = vst.msk [vmem:[%s3601 + $0x8] sm:$0xff] %vm3342, %v3592
      %3604 = vst.msk [vmem:[%s3601 + $0x10] sm:$0xff] %vm3342, %v3594
      %3605 = vst.msk [vmem:[%s3601 + $0x18] sm:$0xff] %vm3342, %v3596
      %s3606 = scalar_lea.vmem [#allocation5], 512
      %3607 = vst.msk [vmem:[%s3606] sm:$0xff] %vm3342, %v1991
      %3608 = vst.msk [vmem:[%s3606 + $0x8] sm:$0xff] %vm3342, %v1995
      %3609 = vst.msk [vmem:[%s3606 + $0x10] sm:$0xff] %vm3342, %v2001
      %3610 = vst.msk [vmem:[%s3606 + $0x18] sm:$0xff] %vm3342, %v2005
      %3615 = vrot.lane.b32.xlu0 %v1991, 120
      %v3616 = vpop.permute.xlu0 %3615
      %3617 = vrot.lane.b32.xlu0 %v1995, 120
      %v3618 = vpop.permute.xlu0 %3617
      %3619 = vrot.lane.b32.xlu0 %v2001, 120
      %v3620 = vpop.permute.xlu0 %3619
      %3621 = vrot.lane.b32.xlu0 %v2005, 120
      %v3622 = vpop.permute.xlu0 %3621
      %s3627 = scalar_lea.vmem [#allocation5], 544
      %3628 = vst.msk [vmem:[%s3627] sm:$0xff] %vm3342, %v3616
      %3629 = vst.msk [vmem:[%s3627 + $0x8] sm:$0xff] %vm3342, %v3618
      %3630 = vst.msk [vmem:[%s3627 + $0x10] sm:$0xff] %vm3342, %v3620
      %3631 = vst.msk [vmem:[%s3627 + $0x18] sm:$0xff] %vm3342, %v3622
      %3632 = vrot.lane.b32.xlu0 %v1991, 112
      %v3633 = vpop.permute.xlu0 %3632
      %3634 = vrot.lane.b32.xlu0 %v1995, 112
      %v3635 = vpop.permute.xlu0 %3634
      %3636 = vrot.lane.b32.xlu0 %v2001, 112
      %v3637 = vpop.permute.xlu0 %3636
      %3638 = vrot.lane.b32.xlu0 %v2005, 112
      %v3639 = vpop.permute.xlu0 %3638
      %s3644 = scalar_lea.vmem [#allocation5], 576
      %3645 = vst.msk [vmem:[%s3644] sm:$0xff] %vm3342, %v3633
      %3646 = vst.msk [vmem:[%s3644 + $0x8] sm:$0xff] %vm3342, %v3635
      %3647 = vst.msk [vmem:[%s3644 + $0x10] sm:$0xff] %vm3342, %v3637
      %3648 = vst.msk [vmem:[%s3644 + $0x18] sm:$0xff] %vm3342, %v3639
      %3649 = vrot.lane.b32.xlu0 %v1991, 104
      %v3650 = vpop.permute.xlu0 %3649
      %3651 = vrot.lane.b32.xlu0 %v1995, 104
      %v3652 = vpop.permute.xlu0 %3651
      %3653 = vrot.lane.b32.xlu0 %v2001, 104
      %v3654 = vpop.permute.xlu0 %3653
      %3655 = vrot.lane.b32.xlu0 %v2005, 104
      %v3656 = vpop.permute.xlu0 %3655
      %s3661 = scalar_lea.vmem [#allocation5], 608
      %3662 = vst.msk [vmem:[%s3661] sm:$0xff] %vm3342, %v3650
      %3663 = vst.msk [vmem:[%s3661 + $0x8] sm:$0xff] %vm3342, %v3652
      %3664 = vst.msk [vmem:[%s3661 + $0x10] sm:$0xff] %vm3342, %v3654
      %3665 = vst.msk [vmem:[%s3661 + $0x18] sm:$0xff] %vm3342, %v3656
      %3666 = vrot.lane.b32.xlu0 %v1991, 96
      %v3667 = vpop.permute.xlu0 %3666
      %3668 = vrot.lane.b32.xlu0 %v1995, 96
      %v3669 = vpop.permute.xlu0 %3668
      %3670 = vrot.lane.b32.xlu0 %v2001, 96
      %v3671 = vpop.permute.xlu0 %3670
      %3672 = vrot.lane.b32.xlu0 %v2005, 96
      %v3673 = vpop.permute.xlu0 %3672
      %s3678 = scalar_lea.vmem [#allocation5], 640
      %3679 = vst.msk [vmem:[%s3678] sm:$0xff] %vm3342, %v3667
      %3680 = vst.msk [vmem:[%s3678 + $0x8] sm:$0xff] %vm3342, %v3669
      %3681 = vst.msk [vmem:[%s3678 + $0x10] sm:$0xff] %vm3342, %v3671
      %3682 = vst.msk [vmem:[%s3678 + $0x18] sm:$0xff] %vm3342, %v3673
      %3683 = vrot.lane.b32.xlu0 %v1991, 88
      %v3684 = vpop.permute.xlu0 %3683
      %3685 = vrot.lane.b32.xlu0 %v1995, 88
      %v3686 = vpop.permute.xlu0 %3685
      %3687 = vrot.lane.b32.xlu0 %v2001, 88
      %v3688 = vpop.permute.xlu0 %3687
      %3689 = vrot.lane.b32.xlu0 %v2005, 88
      %v3690 = vpop.permute.xlu0 %3689
      %s3695 = scalar_lea.vmem [#allocation5], 672
      %3696 = vst.msk [vmem:[%s3695] sm:$0xff] %vm3342, %v3684
      %3697 = vst.msk [vmem:[%s3695 + $0x8] sm:$0xff] %vm3342, %v3686
      %3698 = vst.msk [vmem:[%s3695 + $0x10] sm:$0xff] %vm3342, %v3688
      %3699 = vst.msk [vmem:[%s3695 + $0x18] sm:$0xff] %vm3342, %v3690
      %3700 = vrot.lane.b32.xlu0 %v1991, 80
      %v3701 = vpop.permute.xlu0 %3700
      %3702 = vrot.lane.b32.xlu0 %v1995, 80
      %v3703 = vpop.permute.xlu0 %3702
      %3704 = vrot.lane.b32.xlu0 %v2001, 80
      %v3705 = vpop.permute.xlu0 %3704
      %3706 = vrot.lane.b32.xlu0 %v2005, 80
      %v3707 = vpop.permute.xlu0 %3706
      %s3712 = scalar_lea.vmem [#allocation5], 704
      %3713 = vst.msk [vmem:[%s3712] sm:$0xff] %vm3342, %v3701
      %3714 = vst.msk [vmem:[%s3712 + $0x8] sm:$0xff] %vm3342, %v3703
      %3715 = vst.msk [vmem:[%s3712 + $0x10] sm:$0xff] %vm3342, %v3705
      %3716 = vst.msk [vmem:[%s3712 + $0x18] sm:$0xff] %vm3342, %v3707
      %3717 = vrot.lane.b32.xlu0 %v1991, 72
      %v3718 = vpop.permute.xlu0 %3717
      %3719 = vrot.lane.b32.xlu0 %v1995, 72
      %v3720 = vpop.permute.xlu0 %3719
      %3721 = vrot.lane.b32.xlu0 %v2001, 72
      %v3722 = vpop.permute.xlu0 %3721
      %3723 = vrot.lane.b32.xlu0 %v2005, 72
      %v3724 = vpop.permute.xlu0 %3723
      %s3729 = scalar_lea.vmem [#allocation5], 736
      %3730 = vst.msk [vmem:[%s3729] sm:$0xff] %vm3342, %v3718
      %3731 = vst.msk [vmem:[%s3729 + $0x8] sm:$0xff] %vm3342, %v3720
      %3732 = vst.msk [vmem:[%s3729 + $0x10] sm:$0xff] %vm3342, %v3722
      %3733 = vst.msk [vmem:[%s3729 + $0x18] sm:$0xff] %vm3342, %v3724
      %3734 = vrot.lane.b32.xlu0 %v1991, 64
      %v3735 = vpop.permute.xlu0 %3734
      %3736 = vrot.lane.b32.xlu0 %v1995, 64
      %v3737 = vpop.permute.xlu0 %3736
      %3738 = vrot.lane.b32.xlu0 %v2001, 64
      %v3739 = vpop.permute.xlu0 %3738
      %3740 = vrot.lane.b32.xlu0 %v2005, 64
      %v3741 = vpop.permute.xlu0 %3740
      %s3746 = scalar_lea.vmem [#allocation5], 768
      %3747 = vst.msk [vmem:[%s3746] sm:$0xff] %vm3342, %v3735
      %3748 = vst.msk [vmem:[%s3746 + $0x8] sm:$0xff] %vm3342, %v3737
      %3749 = vst.msk [vmem:[%s3746 + $0x10] sm:$0xff] %vm3342, %v3739
      %3750 = vst.msk [vmem:[%s3746 + $0x18] sm:$0xff] %vm3342, %v3741
      %3751 = vrot.lane.b32.xlu0 %v1991, 56
      %v3752 = vpop.permute.xlu0 %3751
      %3753 = vrot.lane.b32.xlu0 %v1995, 56
      %v3754 = vpop.permute.xlu0 %3753
      %3755 = vrot.lane.b32.xlu0 %v2001, 56
      %v3756 = vpop.permute.xlu0 %3755
      %3757 = vrot.lane.b32.xlu0 %v2005, 56
      %v3758 = vpop.permute.xlu0 %3757
      %s3763 = scalar_lea.vmem [#allocation5], 800
      %3764 = vst.msk [vmem:[%s3763] sm:$0xff] %vm3342, %v3752
      %3765 = vst.msk [vmem:[%s3763 + $0x8] sm:$0xff] %vm3342, %v3754
      %3766 = vst.msk [vmem:[%s3763 + $0x10] sm:$0xff] %vm3342, %v3756
      %3767 = vst.msk [vmem:[%s3763 + $0x18] sm:$0xff] %vm3342, %v3758
      %3768 = vrot.lane.b32.xlu0 %v1991, 48
      %v3769 = vpop.permute.xlu0 %3768
      %3770 = vrot.lane.b32.xlu0 %v1995, 48
      %v3771 = vpop.permute.xlu0 %3770
      %3772 = vrot.lane.b32.xlu0 %v2001, 48
      %v3773 = vpop.permute.xlu0 %3772
      %3774 = vrot.lane.b32.xlu0 %v2005, 48
      %v3775 = vpop.permute.xlu0 %3774
      %s3780 = scalar_lea.vmem [#allocation5], 832
      %3781 = vst.msk [vmem:[%s3780] sm:$0xff] %vm3342, %v3769
      %3782 = vst.msk [vmem:[%s3780 + $0x8] sm:$0xff] %vm3342, %v3771
      %3783 = vst.msk [vmem:[%s3780 + $0x10] sm:$0xff] %vm3342, %v3773
      %3784 = vst.msk [vmem:[%s3780 + $0x18] sm:$0xff] %vm3342, %v3775
      %3785 = vrot.lane.b32.xlu0 %v1991, 40
      %v3786 = vpop.permute.xlu0 %3785
      %3787 = vrot.lane.b32.xlu0 %v1995, 40
      %v3788 = vpop.permute.xlu0 %3787
      %3789 = vrot.lane.b32.xlu0 %v2001, 40
      %v3790 = vpop.permute.xlu0 %3789
      %3791 = vrot.lane.b32.xlu0 %v2005, 40
      %v3792 = vpop.permute.xlu0 %3791
      %s3797 = scalar_lea.vmem [#allocation5], 864
      %3798 = vst.msk [vmem:[%s3797] sm:$0xff] %vm3342, %v3786
      %3799 = vst.msk [vmem:[%s3797 + $0x8] sm:$0xff] %vm3342, %v3788
      %3800 = vst.msk [vmem:[%s3797 + $0x10] sm:$0xff] %vm3342, %v3790
      %3801 = vst.msk [vmem:[%s3797 + $0x18] sm:$0xff] %vm3342, %v3792
      %3802 = vrot.lane.b32.xlu0 %v1991, 32
      %v3803 = vpop.permute.xlu0 %3802
      %3804 = vrot.lane.b32.xlu0 %v1995, 32
      %v3805 = vpop.permute.xlu0 %3804
      %3806 = vrot.lane.b32.xlu0 %v2001, 32
      %v3807 = vpop.permute.xlu0 %3806
      %3808 = vrot.lane.b32.xlu0 %v2005, 32
      %v3809 = vpop.permute.xlu0 %3808
      %s3814 = scalar_lea.vmem [#allocation5], 896
      %3815 = vst.msk [vmem:[%s3814] sm:$0xff] %vm3342, %v3803
      %3816 = vst.msk [vmem:[%s3814 + $0x8] sm:$0xff] %vm3342, %v3805
      %3817 = vst.msk [vmem:[%s3814 + $0x10] sm:$0xff] %vm3342, %v3807
      %3818 = vst.msk [vmem:[%s3814 + $0x18] sm:$0xff] %vm3342, %v3809
      %3819 = vrot.lane.b32.xlu0 %v1991, 24
      %v3820 = vpop.permute.xlu0 %3819
      %3821 = vrot.lane.b32.xlu0 %v1995, 24
      %v3822 = vpop.permute.xlu0 %3821
      %3823 = vrot.lane.b32.xlu0 %v2001, 24
      %v3824 = vpop.permute.xlu0 %3823
      %3825 = vrot.lane.b32.xlu0 %v2005, 24
      %v3826 = vpop.permute.xlu0 %3825
      %s3831 = scalar_lea.vmem [#allocation5], 928
      %3832 = vst.msk [vmem:[%s3831] sm:$0xff] %vm3342, %v3820
      %3833 = vst.msk [vmem:[%s3831 + $0x8] sm:$0xff] %vm3342, %v3822
      %3834 = vst.msk [vmem:[%s3831 + $0x10] sm:$0xff] %vm3342, %v3824
      %3835 = vst.msk [vmem:[%s3831 + $0x18] sm:$0xff] %vm3342, %v3826
      %3836 = vrot.lane.b32.xlu0 %v1991, 16
      %v3837 = vpop.permute.xlu0 %3836
      %3838 = vrot.lane.b32.xlu0 %v1995, 16
      %v3839 = vpop.permute.xlu0 %3838
      %3840 = vrot.lane.b32.xlu0 %v2001, 16
      %v3841 = vpop.permute.xlu0 %3840
      %3842 = vrot.lane.b32.xlu0 %v2005, 16
      %v3843 = vpop.permute.xlu0 %3842
      %s3848 = scalar_lea.vmem [#allocation5], 960
      %3849 = vst.msk [vmem:[%s3848] sm:$0xff] %vm3342, %v3837
      %3850 = vst.msk [vmem:[%s3848 + $0x8] sm:$0xff] %vm3342, %v3839
      %3851 = vst.msk [vmem:[%s3848 + $0x10] sm:$0xff] %vm3342, %v3841
      %3852 = vst.msk [vmem:[%s3848 + $0x18] sm:$0xff] %vm3342, %v3843
      %3853 = vrot.lane.b32.xlu0 %v1991, 8
      %v3854 = vpop.permute.xlu0 %3853
      %3855 = vrot.lane.b32.xlu0 %v1995, 8
      %v3856 = vpop.permute.xlu0 %3855
      %3857 = vrot.lane.b32.xlu0 %v2001, 8
      %v3858 = vpop.permute.xlu0 %3857
      %3859 = vrot.lane.b32.xlu0 %v2005, 8
      %v3860 = vpop.permute.xlu0 %3859
      %s3865 = scalar_lea.vmem [#allocation5], 992
      %3866 = vst.msk [vmem:[%s3865] sm:$0xff] %vm3342, %v3854
      %3867 = vst.msk [vmem:[%s3865 + $0x8] sm:$0xff] %vm3342, %v3856
      %3868 = vst.msk [vmem:[%s3865 + $0x10] sm:$0xff] %vm3342, %v3858
      %3869 = vst.msk [vmem:[%s3865 + $0x18] sm:$0xff] %vm3342, %v3860
      %s3870 = scalar_lea.vmem [#allocation5], 1024
      %3871 = vst.msk [vmem:[%s3870] sm:$0xff] %vm3342, %v2080
      %3872 = vst.msk [vmem:[%s3870 + $0x8] sm:$0xff] %vm3342, %v2084
      %3873 = vst.msk [vmem:[%s3870 + $0x10] sm:$0xff] %vm3342, %v2090
      %3874 = vst.msk [vmem:[%s3870 + $0x18] sm:$0xff] %vm3342, %v2094
      %3879 = vrot.lane.b32.xlu0 %v2080, 120
      %v3880 = vpop.permute.xlu0 %3879
      %3881 = vrot.lane.b32.xlu0 %v2084, 120
      %v3882 = vpop.permute.xlu0 %3881
      %3883 = vrot.lane.b32.xlu0 %v2090, 120
      %v3884 = vpop.permute.xlu0 %3883
      %3885 = vrot.lane.b32.xlu0 %v2094, 120
      %v3886 = vpop.permute.xlu0 %3885
      %s3891 = scalar_lea.vmem [#allocation5], 1056
      %3892 = vst.msk [vmem:[%s3891] sm:$0xff] %vm3342, %v3880
      %3893 = vst.msk [vmem:[%s3891 + $0x8] sm:$0xff] %vm3342, %v3882
      %3894 = vst.msk [vmem:[%s3891 + $0x10] sm:$0xff] %vm3342, %v3884
      %3895 = vst.msk [vmem:[%s3891 + $0x18] sm:$0xff] %vm3342, %v3886
      %3896 = vrot.lane.b32.xlu0 %v2080, 112
      %v3897 = vpop.permute.xlu0 %3896
      %3898 = vrot.lane.b32.xlu0 %v2084, 112
      %v3899 = vpop.permute.xlu0 %3898
      %3900 = vrot.lane.b32.xlu0 %v2090, 112
      %v3901 = vpop.permute.xlu0 %3900
      %3902 = vrot.lane.b32.xlu0 %v2094, 112
      %v3903 = vpop.permute.xlu0 %3902
      %s3908 = scalar_lea.vmem [#allocation5], 1088
      %3909 = vst.msk [vmem:[%s3908] sm:$0xff] %vm3342, %v3897
      %3910 = vst.msk [vmem:[%s3908 + $0x8] sm:$0xff] %vm3342, %v3899
      %3911 = vst.msk [vmem:[%s3908 + $0x10] sm:$0xff] %vm3342, %v3901
      %3912 = vst.msk [vmem:[%s3908 + $0x18] sm:$0xff] %vm3342, %v3903
      %3913 = vrot.lane.b32.xlu0 %v2080, 104
      %v3914 = vpop.permute.xlu0 %3913
      %3915 = vrot.lane.b32.xlu0 %v2084, 104
      %v3916 = vpop.permute.xlu0 %3915
      %3917 = vrot.lane.b32.xlu0 %v2090, 104
      %v3918 = vpop.permute.xlu0 %3917
      %3919 = vrot.lane.b32.xlu0 %v2094, 104
      %v3920 = vpop.permute.xlu0 %3919
      %s3925 = scalar_lea.vmem [#allocation5], 1120
      %3926 = vst.msk [vmem:[%s3925] sm:$0xff] %vm3342, %v3914
      %3927 = vst.msk [vmem:[%s3925 + $0x8] sm:$0xff] %vm3342, %v3916
      %3928 = vst.msk [vmem:[%s3925 + $0x10] sm:$0xff] %vm3342, %v3918
      %3929 = vst.msk [vmem:[%s3925 + $0x18] sm:$0xff] %vm3342, %v3920
      %3930 = vrot.lane.b32.xlu0 %v2080, 96
      %v3931 = vpop.permute.xlu0 %3930
      %3932 = vrot.lane.b32.xlu0 %v2084, 96
      %v3933 = vpop.permute.xlu0 %3932
      %3934 = vrot.lane.b32.xlu0 %v2090, 96
      %v3935 = vpop.permute.xlu0 %3934
      %3936 = vrot.lane.b32.xlu0 %v2094, 96
      %v3937 = vpop.permute.xlu0 %3936
      %s3942 = scalar_lea.vmem [#allocation5], 1152
      %3943 = vst.msk [vmem:[%s3942] sm:$0xff] %vm3342, %v3931
      %3944 = vst.msk [vmem:[%s3942 + $0x8] sm:$0xff] %vm3342, %v3933
      %3945 = vst.msk [vmem:[%s3942 + $0x10] sm:$0xff] %vm3342, %v3935
      %3946 = vst.msk [vmem:[%s3942 + $0x18] sm:$0xff] %vm3342, %v3937
      %3947 = vrot.lane.b32.xlu0 %v2080, 88
      %v3948 = vpop.permute.xlu0 %3947
      %3949 = vrot.lane.b32.xlu0 %v2084, 88
      %v3950 = vpop.permute.xlu0 %3949
      %3951 = vrot.lane.b32.xlu0 %v2090, 88
      %v3952 = vpop.permute.xlu0 %3951
      %3953 = vrot.lane.b32.xlu0 %v2094, 88
      %v3954 = vpop.permute.xlu0 %3953
      %s3959 = scalar_lea.vmem [#allocation5], 1184
      %3960 = vst.msk [vmem:[%s3959] sm:$0xff] %vm3342, %v3948
      %3961 = vst.msk [vmem:[%s3959 + $0x8] sm:$0xff] %vm3342, %v3950
      %3962 = vst.msk [vmem:[%s3959 + $0x10] sm:$0xff] %vm3342, %v3952
      %3963 = vst.msk [vmem:[%s3959 + $0x18] sm:$0xff] %vm3342, %v3954
      %3964 = vrot.lane.b32.xlu0 %v2080, 80
      %v3965 = vpop.permute.xlu0 %3964
      %3966 = vrot.lane.b32.xlu0 %v2084, 80
      %v3967 = vpop.permute.xlu0 %3966
      %3968 = vrot.lane.b32.xlu0 %v2090, 80
      %v3969 = vpop.permute.xlu0 %3968
      %3970 = vrot.lane.b32.xlu0 %v2094, 80
      %v3971 = vpop.permute.xlu0 %3970
      %s3976 = scalar_lea.vmem [#allocation5], 1216
      %3977 = vst.msk [vmem:[%s3976] sm:$0xff] %vm3342, %v3965
      %3978 = vst.msk [vmem:[%s3976 + $0x8] sm:$0xff] %vm3342, %v3967
      %3979 = vst.msk [vmem:[%s3976 + $0x10] sm:$0xff] %vm3342, %v3969
      %3980 = vst.msk [vmem:[%s3976 + $0x18] sm:$0xff] %vm3342, %v3971
      %3981 = vrot.lane.b32.xlu0 %v2080, 72
      %v3982 = vpop.permute.xlu0 %3981
      %3983 = vrot.lane.b32.xlu0 %v2084, 72
      %v3984 = vpop.permute.xlu0 %3983
      %3985 = vrot.lane.b32.xlu0 %v2090, 72
      %v3986 = vpop.permute.xlu0 %3985
      %3987 = vrot.lane.b32.xlu0 %v2094, 72
      %v3988 = vpop.permute.xlu0 %3987
      %s3993 = scalar_lea.vmem [#allocation5], 1248
      %3994 = vst.msk [vmem:[%s3993] sm:$0xff] %vm3342, %v3982
      %3995 = vst.msk [vmem:[%s3993 + $0x8] sm:$0xff] %vm3342, %v3984
      %3996 = vst.msk [vmem:[%s3993 + $0x10] sm:$0xff] %vm3342, %v3986
      %3997 = vst.msk [vmem:[%s3993 + $0x18] sm:$0xff] %vm3342, %v3988
      %3998 = vrot.lane.b32.xlu0 %v2080, 64
      %v3999 = vpop.permute.xlu0 %3998
      %4000 = vrot.lane.b32.xlu0 %v2084, 64
      %v4001 = vpop.permute.xlu0 %4000
      %4002 = vrot.lane.b32.xlu0 %v2090, 64
      %v4003 = vpop.permute.xlu0 %4002
      %4004 = vrot.lane.b32.xlu0 %v2094, 64
      %v4005 = vpop.permute.xlu0 %4004
      %s4010 = scalar_lea.vmem [#allocation5], 1280
      %4011 = vst.msk [vmem:[%s4010] sm:$0xff] %vm3342, %v3999
      %4012 = vst.msk [vmem:[%s4010 + $0x8] sm:$0xff] %vm3342, %v4001
      %4013 = vst.msk [vmem:[%s4010 + $0x10] sm:$0xff] %vm3342, %v4003
      %4014 = vst.msk [vmem:[%s4010 + $0x18] sm:$0xff] %vm3342, %v4005
      %4015 = vrot.lane.b32.xlu0 %v2080, 56
      %v4016 = vpop.permute.xlu0 %4015
      %4017 = vrot.lane.b32.xlu0 %v2084, 56
      %v4018 = vpop.permute.xlu0 %4017
      %4019 = vrot.lane.b32.xlu0 %v2090, 56
      %v4020 = vpop.permute.xlu0 %4019
      %4021 = vrot.lane.b32.xlu0 %v2094, 56
      %v4022 = vpop.permute.xlu0 %4021
      %s4027 = scalar_lea.vmem [#allocation5], 1312
      %4028 = vst.msk [vmem:[%s4027] sm:$0xff] %vm3342, %v4016
      %4029 = vst.msk [vmem:[%s4027 + $0x8] sm:$0xff] %vm3342, %v4018
      %4030 = vst.msk [vmem:[%s4027 + $0x10] sm:$0xff] %vm3342, %v4020
      %4031 = vst.msk [vmem:[%s4027 + $0x18] sm:$0xff] %vm3342, %v4022
      %4032 = vrot.lane.b32.xlu0 %v2080, 48
      %v4033 = vpop.permute.xlu0 %4032
      %4034 = vrot.lane.b32.xlu0 %v2084, 48
      %v4035 = vpop.permute.xlu0 %4034
      %4036 = vrot.lane.b32.xlu0 %v2090, 48
      %v4037 = vpop.permute.xlu0 %4036
      %4038 = vrot.lane.b32.xlu0 %v2094, 48
      %v4039 = vpop.permute.xlu0 %4038
      %s4044 = scalar_lea.vmem [#allocation5], 1344
      %4045 = vst.msk [vmem:[%s4044] sm:$0xff] %vm3342, %v4033
      %4046 = vst.msk [vmem:[%s4044 + $0x8] sm:$0xff] %vm3342, %v4035
      %4047 = vst.msk [vmem:[%s4044 + $0x10] sm:$0xff] %vm3342, %v4037
      %4048 = vst.msk [vmem:[%s4044 + $0x18] sm:$0xff] %vm3342, %v4039
      %4049 = vrot.lane.b32.xlu0 %v2080, 40
      %v4050 = vpop.permute.xlu0 %4049
      %4051 = vrot.lane.b32.xlu0 %v2084, 40
      %v4052 = vpop.permute.xlu0 %4051
      %4053 = vrot.lane.b32.xlu0 %v2090, 40
      %v4054 = vpop.permute.xlu0 %4053
      %4055 = vrot.lane.b32.xlu0 %v2094, 40
      %v4056 = vpop.permute.xlu0 %4055
      %s4061 = scalar_lea.vmem [#allocation5], 1376
      %4062 = vst.msk [vmem:[%s4061] sm:$0xff] %vm3342, %v4050
      %4063 = vst.msk [vmem:[%s4061 + $0x8] sm:$0xff] %vm3342, %v4052
      %4064 = vst.msk [vmem:[%s4061 + $0x10] sm:$0xff] %vm3342, %v4054
      %4065 = vst.msk [vmem:[%s4061 + $0x18] sm:$0xff] %vm3342, %v4056
      %4066 = vrot.lane.b32.xlu0 %v2080, 32
      %v4067 = vpop.permute.xlu0 %4066
      %4068 = vrot.lane.b32.xlu0 %v2084, 32
      %v4069 = vpop.permute.xlu0 %4068
      %4070 = vrot.lane.b32.xlu0 %v2090, 32
      %v4071 = vpop.permute.xlu0 %4070
      %4072 = vrot.lane.b32.xlu0 %v2094, 32
      %v4073 = vpop.permute.xlu0 %4072
      %s4078 = scalar_lea.vmem [#allocation5], 1408
      %4079 = vst.msk [vmem:[%s4078] sm:$0xff] %vm3342, %v4067
      %4080 = vst.msk [vmem:[%s4078 + $0x8] sm:$0xff] %vm3342, %v4069
      %4081 = vst.msk [vmem:[%s4078 + $0x10] sm:$0xff] %vm3342, %v4071
      %4082 = vst.msk [vmem:[%s4078 + $0x18] sm:$0xff] %vm3342, %v4073
      %4083 = vrot.lane.b32.xlu0 %v2080, 24
      %v4084 = vpop.permute.xlu0 %4083
      %4085 = vrot.lane.b32.xlu0 %v2084, 24
      %v4086 = vpop.permute.xlu0 %4085
      %4087 = vrot.lane.b32.xlu0 %v2090, 24
      %v4088 = vpop.permute.xlu0 %4087
      %4089 = vrot.lane.b32.xlu0 %v2094, 24
      %v4090 = vpop.permute.xlu0 %4089
      %s4095 = scalar_lea.vmem [#allocation5], 1440
      %4096 = vst.msk [vmem:[%s4095] sm:$0xff] %vm3342, %v4084
      %4097 = vst.msk [vmem:[%s4095 + $0x8] sm:$0xff] %vm3342, %v4086
      %4098 = vst.msk [vmem:[%s4095 + $0x10] sm:$0xff] %vm3342, %v4088
      %4099 = vst.msk [vmem:[%s4095 + $0x18] sm:$0xff] %vm3342, %v4090
      %4100 = vrot.lane.b32.xlu0 %v2080, 16
      %v4101 = vpop.permute.xlu0 %4100
      %4102 = vrot.lane.b32.xlu0 %v2084, 16
      %v4103 = vpop.permute.xlu0 %4102
      %4104 = vrot.lane.b32.xlu0 %v2090, 16
      %v4105 = vpop.permute.xlu0 %4104
      %4106 = vrot.lane.b32.xlu0 %v2094, 16
      %v4107 = vpop.permute.xlu0 %4106
      %s4112 = scalar_lea.vmem [#allocation5], 1472
      %4113 = vst.msk [vmem:[%s4112] sm:$0xff] %vm3342, %v4101
      %4114 = vst.msk [vmem:[%s4112 + $0x8] sm:$0xff] %vm3342, %v4103
      %4115 = vst.msk [vmem:[%s4112 + $0x10] sm:$0xff] %vm3342, %v4105
      %4116 = vst.msk [vmem:[%s4112 + $0x18] sm:$0xff] %vm3342, %v4107
      %4117 = vrot.lane.b32.xlu0 %v2080, 8
      %v4118 = vpop.permute.xlu0 %4117
      %4119 = vrot.lane.b32.xlu0 %v2084, 8
      %v4120 = vpop.permute.xlu0 %4119
      %4121 = vrot.lane.b32.xlu0 %v2090, 8
      %v4122 = vpop.permute.xlu0 %4121
      %4123 = vrot.lane.b32.xlu0 %v2094, 8
      %v4124 = vpop.permute.xlu0 %4123
      %s4129 = scalar_lea.vmem [#allocation5], 1504
      %4130 = vst.msk [vmem:[%s4129] sm:$0xff] %vm3342, %v4118
      %4131 = vst.msk [vmem:[%s4129 + $0x8] sm:$0xff] %vm3342, %v4120
      %4132 = vst.msk [vmem:[%s4129 + $0x10] sm:$0xff] %vm3342, %v4122
      %4133 = vst.msk [vmem:[%s4129 + $0x18] sm:$0xff] %vm3342, %v4124
      %s4134 = scalar_lea.vmem [#allocation5], 1536
      %4135 = vst.msk [vmem:[%s4134] sm:$0xff] %vm3342, %v2082
      %4136 = vst.msk [vmem:[%s4134 + $0x8] sm:$0xff] %vm3342, %v2086
      %4137 = vst.msk [vmem:[%s4134 + $0x10] sm:$0xff] %vm3342, %v2092
      %4138 = vst.msk [vmem:[%s4134 + $0x18] sm:$0xff] %vm3342, %v2096
      %4143 = vrot.lane.b32.xlu0 %v2082, 120
      %v4144 = vpop.permute.xlu0 %4143
      %4145 = vrot.lane.b32.xlu0 %v2086, 120
      %v4146 = vpop.permute.xlu0 %4145
      %4147 = vrot.lane.b32.xlu0 %v2092, 120
      %v4148 = vpop.permute.xlu0 %4147
      %4149 = vrot.lane.b32.xlu0 %v2096, 120
      %v4150 = vpop.permute.xlu0 %4149
      %s4155 = scalar_lea.vmem [#allocation5], 1568
      %4156 = vst.msk [vmem:[%s4155] sm:$0xff] %vm3342, %v4144
      %4157 = vst.msk [vmem:[%s4155 + $0x8] sm:$0xff] %vm3342, %v4146
      %4158 = vst.msk [vmem:[%s4155 + $0x10] sm:$0xff] %vm3342, %v4148
      %4159 = vst.msk [vmem:[%s4155 + $0x18] sm:$0xff] %vm3342, %v4150
      %4160 = vrot.lane.b32.xlu0 %v2082, 112
      %v4161 = vpop.permute.xlu0 %4160
      %4162 = vrot.lane.b32.xlu0 %v2086, 112
      %v4163 = vpop.permute.xlu0 %4162
      %4164 = vrot.lane.b32.xlu0 %v2092, 112
      %v4165 = vpop.permute.xlu0 %4164
      %4166 = vrot.lane.b32.xlu0 %v2096, 112
      %v4167 = vpop.permute.xlu0 %4166
      %s4172 = scalar_lea.vmem [#allocation5], 1600
      %4173 = vst.msk [vmem:[%s4172] sm:$0xff] %vm3342, %v4161
      %4174 = vst.msk [vmem:[%s4172 + $0x8] sm:$0xff] %vm3342, %v4163
      %4175 = vst.msk [vmem:[%s4172 + $0x10] sm:$0xff] %vm3342, %v4165
      %4176 = vst.msk [vmem:[%s4172 + $0x18] sm:$0xff] %vm3342, %v4167
      %4177 = vrot.lane.b32.xlu0 %v2082, 104
      %v4178 = vpop.permute.xlu0 %4177
      %4179 = vrot.lane.b32.xlu0 %v2086, 104
      %v4180 = vpop.permute.xlu0 %4179
      %4181 = vrot.lane.b32.xlu0 %v2092, 104
      %v4182 = vpop.permute.xlu0 %4181
      %4183 = vrot.lane.b32.xlu0 %v2096, 104
      %v4184 = vpop.permute.xlu0 %4183
      %s4189 = scalar_lea.vmem [#allocation5], 1632
      %4190 = vst.msk [vmem:[%s4189] sm:$0xff] %vm3342, %v4178
      %4191 = vst.msk [vmem:[%s4189 + $0x8] sm:$0xff] %vm3342, %v4180
      %4192 = vst.msk [vmem:[%s4189 + $0x10] sm:$0xff] %vm3342, %v4182
      %4193 = vst.msk [vmem:[%s4189 + $0x18] sm:$0xff] %vm3342, %v4184
      %4194 = vrot.lane.b32.xlu0 %v2082, 96
      %v4195 = vpop.permute.xlu0 %4194
      %4196 = vrot.lane.b32.xlu0 %v2086, 96
      %v4197 = vpop.permute.xlu0 %4196
      %4198 = vrot.lane.b32.xlu0 %v2092, 96
      %v4199 = vpop.permute.xlu0 %4198
      %4200 = vrot.lane.b32.xlu0 %v2096, 96
      %v4201 = vpop.permute.xlu0 %4200
      %s4206 = scalar_lea.vmem [#allocation5], 1664
      %4207 = vst.msk [vmem:[%s4206] sm:$0xff] %vm3342, %v4195
      %4208 = vst.msk [vmem:[%s4206 + $0x8] sm:$0xff] %vm3342, %v4197
      %4209 = vst.msk [vmem:[%s4206 + $0x10] sm:$0xff] %vm3342, %v4199
      %4210 = vst.msk [vmem:[%s4206 + $0x18] sm:$0xff] %vm3342, %v4201
      %4211 = vrot.lane.b32.xlu0 %v2082, 88
      %v4212 = vpop.permute.xlu0 %4211
      %4213 = vrot.lane.b32.xlu0 %v2086, 88
      %v4214 = vpop.permute.xlu0 %4213
      %4215 = vrot.lane.b32.xlu0 %v2092, 88
      %v4216 = vpop.permute.xlu0 %4215
      %4217 = vrot.lane.b32.xlu0 %v2096, 88
      %v4218 = vpop.permute.xlu0 %4217
      %s4223 = scalar_lea.vmem [#allocation5], 1696
      %4224 = vst.msk [vmem:[%s4223] sm:$0xff] %vm3342, %v4212
      %4225 = vst.msk [vmem:[%s4223 + $0x8] sm:$0xff] %vm3342, %v4214
      %4226 = vst.msk [vmem:[%s4223 + $0x10] sm:$0xff] %vm3342, %v4216
      %4227 = vst.msk [vmem:[%s4223 + $0x18] sm:$0xff] %vm3342, %v4218
      %4228 = vrot.lane.b32.xlu0 %v2082, 80
      %v4229 = vpop.permute.xlu0 %4228
      %4230 = vrot.lane.b32.xlu0 %v2086, 80
      %v4231 = vpop.permute.xlu0 %4230
      %4232 = vrot.lane.b32.xlu0 %v2092, 80
      %v4233 = vpop.permute.xlu0 %4232
      %4234 = vrot.lane.b32.xlu0 %v2096, 80
      %v4235 = vpop.permute.xlu0 %4234
      %s4240 = scalar_lea.vmem [#allocation5], 1728
      %4241 = vst.msk [vmem:[%s4240] sm:$0xff] %vm3342, %v4229
      %4242 = vst.msk [vmem:[%s4240 + $0x8] sm:$0xff] %vm3342, %v4231
      %4243 = vst.msk [vmem:[%s4240 + $0x10] sm:$0xff] %vm3342, %v4233
      %4244 = vst.msk [vmem:[%s4240 + $0x18] sm:$0xff] %vm3342, %v4235
      %4245 = vrot.lane.b32.xlu0 %v2082, 72
      %v4246 = vpop.permute.xlu0 %4245
      %4247 = vrot.lane.b32.xlu0 %v2086, 72
      %v4248 = vpop.permute.xlu0 %4247
      %4249 = vrot.lane.b32.xlu0 %v2092, 72
      %v4250 = vpop.permute.xlu0 %4249
      %4251 = vrot.lane.b32.xlu0 %v2096, 72
      %v4252 = vpop.permute.xlu0 %4251
      %s4257 = scalar_lea.vmem [#allocation5], 1760
      %4258 = vst.msk [vmem:[%s4257] sm:$0xff] %vm3342, %v4246
      %4259 = vst.msk [vmem:[%s4257 + $0x8] sm:$0xff] %vm3342, %v4248
      %4260 = vst.msk [vmem:[%s4257 + $0x10] sm:$0xff] %vm3342, %v4250
      %4261 = vst.msk [vmem:[%s4257 + $0x18] sm:$0xff] %vm3342, %v4252
      %4262 = vrot.lane.b32.xlu0 %v2082, 64
      %v4263 = vpop.permute.xlu0 %4262
      %4264 = vrot.lane.b32.xlu0 %v2086, 64
      %v4265 = vpop.permute.xlu0 %4264
      %4266 = vrot.lane.b32.xlu0 %v2092, 64
      %v4267 = vpop.permute.xlu0 %4266
      %4268 = vrot.lane.b32.xlu0 %v2096, 64
      %v4269 = vpop.permute.xlu0 %4268
      %s4274 = scalar_lea.vmem [#allocation5], 1792
      %4275 = vst.msk [vmem:[%s4274] sm:$0xff] %vm3342, %v4263
      %4276 = vst.msk [vmem:[%s4274 + $0x8] sm:$0xff] %vm3342, %v4265
      %4277 = vst.msk [vmem:[%s4274 + $0x10] sm:$0xff] %vm3342, %v4267
      %4278 = vst.msk [vmem:[%s4274 + $0x18] sm:$0xff] %vm3342, %v4269
      %4279 = vrot.lane.b32.xlu0 %v2082, 56
      %v4280 = vpop.permute.xlu0 %4279
      %4281 = vrot.lane.b32.xlu0 %v2086, 56
      %v4282 = vpop.permute.xlu0 %4281
      %4283 = vrot.lane.b32.xlu0 %v2092, 56
      %v4284 = vpop.permute.xlu0 %4283
      %4285 = vrot.lane.b32.xlu0 %v2096, 56
      %v4286 = vpop.permute.xlu0 %4285
      %s4291 = scalar_lea.vmem [#allocation5], 1824
      %4292 = vst.msk [vmem:[%s4291] sm:$0xff] %vm3342, %v4280
      %4293 = vst.msk [vmem:[%s4291 + $0x8] sm:$0xff] %vm3342, %v4282
      %4294 = vst.msk [vmem:[%s4291 + $0x10] sm:$0xff] %vm3342, %v4284
      %4295 = vst.msk [vmem:[%s4291 + $0x18] sm:$0xff] %vm3342, %v4286
      %4296 = vrot.lane.b32.xlu0 %v2082, 48
      %v4297 = vpop.permute.xlu0 %4296
      %4298 = vrot.lane.b32.xlu0 %v2086, 48
      %v4299 = vpop.permute.xlu0 %4298
      %4300 = vrot.lane.b32.xlu0 %v2092, 48
      %v4301 = vpop.permute.xlu0 %4300
      %4302 = vrot.lane.b32.xlu0 %v2096, 48
      %v4303 = vpop.permute.xlu0 %4302
      %s4308 = scalar_lea.vmem [#allocation5], 1856
      %4309 = vst.msk [vmem:[%s4308] sm:$0xff] %vm3342, %v4297
      %4310 = vst.msk [vmem:[%s4308 + $0x8] sm:$0xff] %vm3342, %v4299
      %4311 = vst.msk [vmem:[%s4308 + $0x10] sm:$0xff] %vm3342, %v4301
      %4312 = vst.msk [vmem:[%s4308 + $0x18] sm:$0xff] %vm3342, %v4303
      %4313 = vrot.lane.b32.xlu0 %v2082, 40
      %v4314 = vpop.permute.xlu0 %4313
      %4315 = vrot.lane.b32.xlu0 %v2086, 40
      %v4316 = vpop.permute.xlu0 %4315
      %4317 = vrot.lane.b32.xlu0 %v2092, 40
      %v4318 = vpop.permute.xlu0 %4317
      %4319 = vrot.lane.b32.xlu0 %v2096, 40
      %v4320 = vpop.permute.xlu0 %4319
      %s4325 = scalar_lea.vmem [#allocation5], 1888
      %4326 = vst.msk [vmem:[%s4325] sm:$0xff] %vm3342, %v4314
      %4327 = vst.msk [vmem:[%s4325 + $0x8] sm:$0xff] %vm3342, %v4316
      %4328 = vst.msk [vmem:[%s4325 + $0x10] sm:$0xff] %vm3342, %v4318
      %4329 = vst.msk [vmem:[%s4325 + $0x18] sm:$0xff] %vm3342, %v4320
      %4330 = vrot.lane.b32.xlu0 %v2082, 32
      %v4331 = vpop.permute.xlu0 %4330
      %4332 = vrot.lane.b32.xlu0 %v2086, 32
      %v4333 = vpop.permute.xlu0 %4332
      %4334 = vrot.lane.b32.xlu0 %v2092, 32
      %v4335 = vpop.permute.xlu0 %4334
      %4336 = vrot.lane.b32.xlu0 %v2096, 32
      %v4337 = vpop.permute.xlu0 %4336
      %s4342 = scalar_lea.vmem [#allocation5], 1920
      %4343 = vst.msk [vmem:[%s4342] sm:$0xff] %vm3342, %v4331
      %4344 = vst.msk [vmem:[%s4342 + $0x8] sm:$0xff] %vm3342, %v4333
      %4345 = vst.msk [vmem:[%s4342 + $0x10] sm:$0xff] %vm3342, %v4335
      %4346 = vst.msk [vmem:[%s4342 + $0x18] sm:$0xff] %vm3342, %v4337
      %4347 = vrot.lane.b32.xlu0 %v2082, 24
      %v4348 = vpop.permute.xlu0 %4347
      %4349 = vrot.lane.b32.xlu0 %v2086, 24
      %v4350 = vpop.permute.xlu0 %4349
      %4351 = vrot.lane.b32.xlu0 %v2092, 24
      %v4352 = vpop.permute.xlu0 %4351
      %4353 = vrot.lane.b32.xlu0 %v2096, 24
      %v4354 = vpop.permute.xlu0 %4353
      %s4359 = scalar_lea.vmem [#allocation5], 1952
      %4360 = vst.msk [vmem:[%s4359] sm:$0xff] %vm3342, %v4348
      %4361 = vst.msk [vmem:[%s4359 + $0x8] sm:$0xff] %vm3342, %v4350
      %4362 = vst.msk [vmem:[%s4359 + $0x10] sm:$0xff] %vm3342, %v4352
      %4363 = vst.msk [vmem:[%s4359 + $0x18] sm:$0xff] %vm3342, %v4354
      %4364 = vrot.lane.b32.xlu0 %v2082, 16
      %v4365 = vpop.permute.xlu0 %4364
      %4366 = vrot.lane.b32.xlu0 %v2086, 16
      %v4367 = vpop.permute.xlu0 %4366
      %4368 = vrot.lane.b32.xlu0 %v2092, 16
      %v4369 = vpop.permute.xlu0 %4368
      %4370 = vrot.lane.b32.xlu0 %v2096, 16
      %v4371 = vpop.permute.xlu0 %4370
      %s4376 = scalar_lea.vmem [#allocation5], 1984
      %4377 = vst.msk [vmem:[%s4376] sm:$0xff] %vm3342, %v4365
      %4378 = vst.msk [vmem:[%s4376 + $0x8] sm:$0xff] %vm3342, %v4367
      %4379 = vst.msk [vmem:[%s4376 + $0x10] sm:$0xff] %vm3342, %v4369
      %4380 = vst.msk [vmem:[%s4376 + $0x18] sm:$0xff] %vm3342, %v4371
      %4381 = vrot.lane.b32.xlu0 %v2082, 8
      %v4382 = vpop.permute.xlu0 %4381
      %4383 = vrot.lane.b32.xlu0 %v2086, 8
      %v4384 = vpop.permute.xlu0 %4383
      %4385 = vrot.lane.b32.xlu0 %v2092, 8
      %v4386 = vpop.permute.xlu0 %4385
      %4387 = vrot.lane.b32.xlu0 %v2096, 8
      %v4388 = vpop.permute.xlu0 %4387
      %s4393 = scalar_lea.vmem [#allocation5], 2016
      %4394 = vst.msk [vmem:[%s4393] sm:$0xff] %vm3342, %v4382
      %4395 = vst.msk [vmem:[%s4393 + $0x8] sm:$0xff] %vm3342, %v4384
      %4396 = vst.msk [vmem:[%s4393 + $0x10] sm:$0xff] %vm3342, %v4386
      %4397 = vst.msk [vmem:[%s4393 + $0x18] sm:$0xff] %vm3342, %v4388
      %v4398 = vld [vmem:[%s8] sm:$0xff]
      %v4399 = vld [vmem:[%s8 + $0x8] sm:$0xff]
      %v4400 = vmul.f32 %v4398, 1.442695
      %v4401 = vpow.pop %v4400
      %v4402 = vmul.f32 %v4399, 1.442695
      %v4403 = vpow.pop %v4402
      %v4404 = vsub.f32 0.0, %v4401
      %v4405 = vsub.f32 0.0, %v4403
      loop: start=0, step=1, limit=64
      $region65: #{tpu_custom_call.1} parent=63 // loop_pre_header
        _
      $region66: #{tpu_custom_call.1} parent=63 // loop_header
        %s4407 = sphi 0, %s4411
        %p4408 = scmp.ge.s32.totalorder %s4407, 64
        %v4412 = vphi 0.0, %v4785
        %v4413 = vphi 0.0, %v4786
      $region67: #{tpu_custom_call.1} parent=63 // loop_header_branch
        %4410 = sbr.rel (%p4408) target = $region71
      $region68: #{tpu_custom_call.1} parent=63 // loop_body
        %s4414 = smul.u32 %s4407, 8
        %s4415 = scalar_lea.vmem [#allocation3], %s4414
        %v4416 = vld [vmem:[%s4415] sm:$0xff]
        %s4417 = scalar_lea.vmem [#allocation2], %s4414
        %v4418 = vld [vmem:[%s4417] sm:$0xff]
        %v4419 = vmul.f32 %v4416, %v4418
        %s4420 = smul.u32 %s4407, 32
        %s4421 = scalar_lea.vmem [#allocation5], %s4420
        %v4422 = vld [vmem:[%s4421] sm:$0xff]
        %v4423 = vld [vmem:[%s4421 + $0x8] sm:$0xff]
        %v4424 = vld [vmem:[%s4421 + $0x10] sm:$0xff]
        %v4425 = vld [vmem:[%s4421 + $0x18] sm:$0xff]
        %v4426 = vlaneseq
        %v4427 = vshrl.u32 %v4426, 7
        %v4428 = vsub.s32 0, %v4427
        %v4429 = vrot.slane %v4416, %v4428
        %v4430 = vmul.f32 %v4429, %v4404
        %v4431 = vmul.f32 %v4429, %v4405
        %v4432 = vmul.f32 %v4430, 1.442695
        %v4433 = vpow.pop %v4432
        %v4434 = vmul.f32 %v4431, 1.442695
        %v4435 = vpow.pop %v4434
        %v4436 = vlaneseq
        %v4437 = vshrl.u32 %v4436, 7
        %v4438 = vsub.s32 1, %v4437
        %v4439 = vrot.slane %v4416, %v4438
        %v4440 = vmul.f32 %v4439, %v4404
        %v4441 = vmul.f32 %v4439, %v4405
        %v4442 = vmul.f32 %v4440, 1.442695
        %v4443 = vpow.pop %v4442
        %v4444 = vmul.f32 %v4441, 1.442695
        %v4445 = vpow.pop %v4444
        %v4446 = vlaneseq
        %v4447 = vshrl.u32 %v4446, 7
        %v4448 = vsub.s32 2, %v4447
        %v4449 = vrot.slane %v4416, %v4448
        %v4450 = vmul.f32 %v4449, %v4404
        %v4451 = vmul.f32 %v4449, %v4405
        %v4452 = vmul.f32 %v4450, 1.442695
        %v4453 = vpow.pop %v4452
        %v4454 = vmul.f32 %v4451, 1.442695
        %v4455 = vpow.pop %v4454
        %v4456 = vlaneseq
        %v4457 = vshrl.u32 %v4456, 7
        %v4458 = vsub.s32 3, %v4457
        %v4459 = vrot.slane %v4416, %v4458
        %v4460 = vmul.f32 %v4459, %v4404
        %v4461 = vmul.f32 %v4459, %v4405
        %v4462 = vmul.f32 %v4460, 1.442695
        %v4463 = vpow.pop %v4462
        %v4464 = vmul.f32 %v4461, 1.442695
        %v4465 = vpow.pop %v4464
        %v4466 = vlaneseq
        %v4467 = vshrl.u32 %v4466, 7
        %v4468 = vsub.s32 4, %v4467
        %v4469 = vrot.slane %v4416, %v4468
        %v4470 = vmul.f32 %v4469, %v4404
        %v4471 = vmul.f32 %v4469, %v4405
        %v4472 = vmul.f32 %v4470, 1.442695
        %v4473 = vpow.pop %v4472
        %v4474 = vmul.f32 %v4471, 1.442695
        %v4475 = vpow.pop %v4474
        %v4476 = vlaneseq
        %v4477 = vshrl.u32 %v4476, 7
        %v4478 = vsub.s32 5, %v4477
        %v4479 = vrot.slane %v4416, %v4478
        %v4480 = vmul.f32 %v4479, %v4404
        %v4481 = vmul.f32 %v4479, %v4405
        %v4482 = vmul.f32 %v4480, 1.442695
        %v4483 = vpow.pop %v4482
        %v4484 = vmul.f32 %v4481, 1.442695
        %v4485 = vpow.pop %v4484
        %v4486 = vlaneseq
        %v4487 = vshrl.u32 %v4486, 7
        %v4488 = vsub.s32 6, %v4487
        %v4489 = vrot.slane %v4416, %v4488
        %v4490 = vmul.f32 %v4489, %v4404
        %v4491 = vmul.f32 %v4489, %v4405
        %v4492 = vmul.f32 %v4490, 1.442695
        %v4493 = vpow.pop %v4492
        %v4494 = vmul.f32 %v4491, 1.442695
        %v4495 = vpow.pop %v4494
        %v4496 = vlaneseq
        %v4497 = vshrl.u32 %v4496, 7
        %v4498 = vsub.s32 7, %v4497
        %v4499 = vrot.slane %v4416, %v4498
        %v4500 = vmul.f32 %v4499, %v4404
        %v4501 = vmul.f32 %v4499, %v4405
        %v4502 = vmul.f32 %v4500, 1.442695
        %v4503 = vpow.pop %v4502
        %v4504 = vmul.f32 %v4501, 1.442695
        %v4505 = vpow.pop %v4504
        %4507 = vset.pattern.permute.xlu0 0
        %4508 = vperm.xlu0 %4507, %v4422
        %v4509 = vpop.permute.xlu0 %4508
        %4512 = vset.pattern.permute.xlu0 0
        %4513 = vperm.xlu0 %4512, %v4423
        %v4514 = vpop.permute.xlu0 %4513
        %v4516 = vlaneseq
        %v4517 = vshrl.u32 %v4516, 7
        %v4518 = vsub.s32 0, %v4517
        %v4519 = vrot.slane %v4419, %v4518
        %v4520 = vmul.f32 %v4509, %v4519
        %v4521 = vmul.f32 %v4514, %v4519
        %v4522 = vmul.f32 %v4433, %v4412
        %v4523 = vmul.f32 %v4435, %v4413
        %v4524 = vadd.f32 %v4522, %v4520
        %v4525 = vadd.f32 %v4523, %v4521
        %4527 = vset.pattern.permute.xlu0 0
        %4528 = vperm.xlu0 %4527, %v4424
        %v4529 = vpop.permute.xlu0 %4528
        %4532 = vset.pattern.permute.xlu0 0
        %4533 = vperm.xlu0 %4532, %v4425
        %v4534 = vpop.permute.xlu0 %4533
        %v4536 = vmul.f32 %v4529, %v4524
        %v4537 = vmul.f32 %v4534, %v4525
        %v4538 = vsel %vm1923, %v4536, 0.0
        %v4539 = vsel %vm1923, %v4537, 0.0
        %v4540 = vadd.f32 %v4538, %v4539
        %v4541 = vrot.slane %v4540, 4
        %v4542 = vadd.f32 %v4540, %v4541
        %v4543 = vrot.slane %v4542, 2
        %v4544 = vadd.f32 %v4542, %v4543
        %v4545 = vrot.slane %v4544, 1
        %v4546 = vadd.f32 %v4544, %v4545
        %4547 = vset.pattern.permute.xlu0 1
        %4548 = vperm.xlu0 %4547, %v4422
        %v4549 = vpop.permute.xlu0 %4548
        %4551 = vset.pattern.permute.xlu0 1
        %4552 = vperm.xlu0 %4551, %v4423
        %v4553 = vpop.permute.xlu0 %4552
        %v4555 = vlaneseq
        %v4556 = vshrl.u32 %v4555, 7
        %v4557 = vsub.s32 1, %v4556
        %v4558 = vrot.slane %v4419, %v4557
        %v4559 = vmul.f32 %v4549, %v4558
        %v4560 = vmul.f32 %v4553, %v4558
        %v4561 = vmul.f32 %v4443, %v4524
        %v4562 = vmul.f32 %v4445, %v4525
        %v4563 = vadd.f32 %v4561, %v4559
        %v4564 = vadd.f32 %v4562, %v4560
        %4565 = vset.pattern.permute.xlu0 1
        %4566 = vperm.xlu0 %4565, %v4424
        %v4567 = vpop.permute.xlu0 %4566
        %4569 = vset.pattern.permute.xlu0 1
        %4570 = vperm.xlu0 %4569, %v4425
        %v4571 = vpop.permute.xlu0 %4570
        %v4573 = vmul.f32 %v4567, %v4563
        %v4574 = vmul.f32 %v4571, %v4564
        %v4575 = vsel %vm1923, %v4573, 0.0
        %v4576 = vsel %vm1923, %v4574, 0.0
        %v4577 = vadd.f32 %v4575, %v4576
        %v4578 = vrot.slane %v4577, 4
        %v4579 = vadd.f32 %v4577, %v4578
        %v4580 = vrot.slane %v4579, 2
        %v4581 = vadd.f32 %v4579, %v4580
        %v4582 = vrot.slane %v4581, 1
        %v4583 = vadd.f32 %v4581, %v4582
        %4584 = vset.pattern.permute.xlu0 2
        %4585 = vperm.xlu0 %4584, %v4422
        %v4586 = vpop.permute.xlu0 %4585
        %4588 = vset.pattern.permute.xlu0 2
        %4589 = vperm.xlu0 %4588, %v4423
        %v4590 = vpop.permute.xlu0 %4589
        %v4592 = vlaneseq
        %v4593 = vshrl.u32 %v4592, 7
        %v4594 = vsub.s32 2, %v4593
        %v4595 = vrot.slane %v4419, %v4594
        %v4596 = vmul.f32 %v4586, %v4595
        %v4597 = vmul.f32 %v4590, %v4595
        %v4598 = vmul.f32 %v4453, %v4563
        %v4599 = vmul.f32 %v4455, %v4564
        %v4600 = vadd.f32 %v4598, %v4596
        %v4601 = vadd.f32 %v4599, %v4597
        %4602 = vset.pattern.permute.xlu0 2
        %4603 = vperm.xlu0 %4602, %v4424
        %v4604 = vpop.permute.xlu0 %4603
        %4606 = vset.pattern.permute.xlu0 2
        %4607 = vperm.xlu0 %4606, %v4425
        %v4608 = vpop.permute.xlu0 %4607
        %v4610 = vmul.f32 %v4604, %v4600
        %v4611 = vmul.f32 %v4608, %v4601
        %v4612 = vsel %vm1923, %v4610, 0.0
        %v4613 = vsel %vm1923, %v4611, 0.0
        %v4614 = vadd.f32 %v4612, %v4613
        %v4615 = vrot.slane %v4614, 4
        %v4616 = vadd.f32 %v4614, %v4615
        %v4617 = vrot.slane %v4616, 2
        %v4618 = vadd.f32 %v4616, %v4617
        %v4619 = vrot.slane %v4618, 1
        %v4620 = vadd.f32 %v4618, %v4619
        %4621 = vset.pattern.permute.xlu0 3
        %4622 = vperm.xlu0 %4621, %v4422
        %v4623 = vpop.permute.xlu0 %4622
        %4625 = vset.pattern.permute.xlu0 3
        %4626 = vperm.xlu0 %4625, %v4423
        %v4627 = vpop.permute.xlu0 %4626
        %v4629 = vlaneseq
        %v4630 = vshrl.u32 %v4629, 7
        %v4631 = vsub.s32 3, %v4630
        %v4632 = vrot.slane %v4419, %v4631
        %v4633 = vmul.f32 %v4623, %v4632
        %v4634 = vmul.f32 %v4627, %v4632
        %v4635 = vmul.f32 %v4463, %v4600
        %v4636 = vmul.f32 %v4465, %v4601
        %v4637 = vadd.f32 %v4635, %v4633
        %v4638 = vadd.f32 %v4636, %v4634
        %4639 = vset.pattern.permute.xlu0 3
        %4640 = vperm.xlu0 %4639, %v4424
        %v4641 = vpop.permute.xlu0 %4640
        %4643 = vset.pattern.permute.xlu0 3
        %4644 = vperm.xlu0 %4643, %v4425
        %v4645 = vpop.permute.xlu0 %4644
        %v4647 = vmul.f32 %v4641, %v4637
        %v4648 = vmul.f32 %v4645, %v4638
        %v4649 = vsel %vm1923, %v4647, 0.0
        %v4650 = vsel %vm1923, %v4648, 0.0
        %v4651 = vadd.f32 %v4649, %v4650
        %v4652 = vrot.slane %v4651, 4
        %v4653 = vadd.f32 %v4651, %v4652
        %v4654 = vrot.slane %v4653, 2
        %v4655 = vadd.f32 %v4653, %v4654
        %v4656 = vrot.slane %v4655, 1
        %v4657 = vadd.f32 %v4655, %v4656
        %4658 = vset.pattern.permute.xlu0 4
        %4659 = vperm.xlu0 %4658, %v4422
        %v4660 = vpop.permute.xlu0 %4659
        %4662 = vset.pattern.permute.xlu0 4
        %4663 = vperm.xlu0 %4662, %v4423
        %v4664 = vpop.permute.xlu0 %4663
        %v4666 = vlaneseq
        %v4667 = vshrl.u32 %v4666, 7
        %v4668 = vsub.s32 4, %v4667
        %v4669 = vrot.slane %v4419, %v4668
        %v4670 = vmul.f32 %v4660, %v4669
        %v4671 = vmul.f32 %v4664, %v4669
        %v4672 = vmul.f32 %v4473, %v4637
        %v4673 = vmul.f32 %v4475, %v4638
        %v4674 = vadd.f32 %v4672, %v4670
        %v4675 = vadd.f32 %v4673, %v4671
        %4676 = vset.pattern.permute.xlu0 4
        %4677 = vperm.xlu0 %4676, %v4424
        %v4678 = vpop.permute.xlu0 %4677
        %4680 = vset.pattern.permute.xlu0 4
        %4681 = vperm.xlu0 %4680, %v4425
        %v4682 = vpop.permute.xlu0 %4681
        %v4684 = vmul.f32 %v4678, %v4674
        %v4685 = vmul.f32 %v4682, %v4675
        %v4686 = vsel %vm1923, %v4684, 0.0
        %v4687 = vsel %vm1923, %v4685, 0.0
        %v4688 = vadd.f32 %v4686, %v4687
        %v4689 = vrot.slane %v4688, 4
        %v4690 = vadd.f32 %v4688, %v4689
        %v4691 = vrot.slane %v4690, 2
        %v4692 = vadd.f32 %v4690, %v4691
        %v4693 = vrot.slane %v4692, 1
        %v4694 = vadd.f32 %v4692, %v4693
        %4695 = vset.pattern.permute.xlu0 5
        %4696 = vperm.xlu0 %4695, %v4422
        %v4697 = vpop.permute.xlu0 %4696
        %4699 = vset.pattern.permute.xlu0 5
        %4700 = vperm.xlu0 %4699, %v4423
        %v4701 = vpop.permute.xlu0 %4700
        %v4703 = vlaneseq
        %v4704 = vshrl.u32 %v4703, 7
        %v4705 = vsub.s32 5, %v4704
        %v4706 = vrot.slane %v4419, %v4705
        %v4707 = vmul.f32 %v4697, %v4706
        %v4708 = vmul.f32 %v4701, %v4706
        %v4709 = vmul.f32 %v4483, %v4674
        %v4710 = vmul.f32 %v4485, %v4675
        %v4711 = vadd.f32 %v4709, %v4707
        %v4712 = vadd.f32 %v4710, %v4708
        %4713 = vset.pattern.permute.xlu0 5
        %4714 = vperm.xlu0 %4713, %v4424
        %v4715 = vpop.permute.xlu0 %4714
        %4717 = vset.pattern.permute.xlu0 5
        %4718 = vperm.xlu0 %4717, %v4425
        %v4719 = vpop.permute.xlu0 %4718
        %v4721 = vmul.f32 %v4715, %v4711
        %v4722 = vmul.f32 %v4719, %v4712
        %v4723 = vsel %vm1923, %v4721, 0.0
        %v4724 = vsel %vm1923, %v4722, 0.0
        %v4725 = vadd.f32 %v4723, %v4724
        %v4726 = vrot.slane %v4725, 4
        %v4727 = vadd.f32 %v4725, %v4726
        %v4728 = vrot.slane %v4727, 2
        %v4729 = vadd.f32 %v4727, %v4728
        %v4730 = vrot.slane %v4729, 1
        %v4731 = vadd.f32 %v4729, %v4730
        %4732 = vset.pattern.permute.xlu0 6
        %4733 = vperm.xlu0 %4732, %v4422
        %v4734 = vpop.permute.xlu0 %4733
        %4736 = vset.pattern.permute.xlu0 6
        %4737 = vperm.xlu0 %4736, %v4423
        %v4738 = vpop.permute.xlu0 %4737
        %v4740 = vlaneseq
        %v4741 = vshrl.u32 %v4740, 7
        %v4742 = vsub.s32 6, %v4741
        %v4743 = vrot.slane %v4419, %v4742
        %v4744 = vmul.f32 %v4734, %v4743
        %v4745 = vmul.f32 %v4738, %v4743
        %v4746 = vmul.f32 %v4493, %v4711
        %v4747 = vmul.f32 %v4495, %v4712
        %v4748 = vadd.f32 %v4746, %v4744
        %v4749 = vadd.f32 %v4747, %v4745
        %4750 = vset.pattern.permute.xlu0 6
        %4751 = vperm.xlu0 %4750, %v4424
        %v4752 = vpop.permute.xlu0 %4751
        %4754 = vset.pattern.permute.xlu0 6
        %4755 = vperm.xlu0 %4754, %v4425
        %v4756 = vpop.permute.xlu0 %4755
        %v4758 = vmul.f32 %v4752, %v4748
        %v4759 = vmul.f32 %v4756, %v4749
        %v4760 = vsel %vm1923, %v4758, 0.0
        %v4761 = vsel %vm1923, %v4759, 0.0
        %v4762 = vadd.f32 %v4760, %v4761
        %v4763 = vrot.slane %v4762, 4
        %v4764 = vadd.f32 %v4762, %v4763
        %v4765 = vrot.slane %v4764, 2
        %v4766 = vadd.f32 %v4764, %v4765
        %v4767 = vrot.slane %v4766, 1
        %v4768 = vadd.f32 %v4766, %v4767
        %4769 = vset.pattern.permute.xlu0 7
        %4770 = vperm.xlu0 %4769, %v4422
        %v4771 = vpop.permute.xlu0 %4770
        %4773 = vset.pattern.permute.xlu0 7
        %4774 = vperm.xlu0 %4773, %v4423
        %v4775 = vpop.permute.xlu0 %4774
        %v4777 = vlaneseq
        %v4778 = vshrl.u32 %v4777, 7
        %v4779 = vsub.s32 7, %v4778
        %v4780 = vrot.slane %v4419, %v4779
        %v4781 = vmul.f32 %v4771, %v4780
        %v4782 = vmul.f32 %v4775, %v4780
        %v4783 = vmul.f32 %v4503, %v4748
        %v4784 = vmul.f32 %v4505, %v4749
        %v4785 = vadd.f32 %v4783, %v4781
        %v4786 = vadd.f32 %v4784, %v4782
        %4787 = vset.pattern.permute.xlu0 7
        %4788 = vperm.xlu0 %4787, %v4424
        %v4789 = vpop.permute.xlu0 %4788
        %4791 = vset.pattern.permute.xlu0 7
        %4792 = vperm.xlu0 %4791, %v4425
        %v4793 = vpop.permute.xlu0 %4792
        %v4795 = vmul.f32 %v4789, %v4785
        %v4796 = vmul.f32 %v4793, %v4786
        %v4797 = vsel %vm1923, %v4795, 0.0
        %v4798 = vsel %vm1923, %v4796, 0.0
        %v4799 = vadd.f32 %v4797, %v4798
        %v4800 = vrot.slane %v4799, 4
        %v4801 = vadd.f32 %v4799, %v4800
        %v4802 = vrot.slane %v4801, 2
        %v4803 = vadd.f32 %v4801, %v4802
        %v4804 = vrot.slane %v4803, 1
        %v4805 = vadd.f32 %v4803, %v4804
        %vm4806 = vcmask 1040384
        %v4807 = vsel %vm4806, %v4546, %v4583
        %vm4808 = vcmask 1041408
        %v4809 = vsel %vm4808, %v4807, %v4620
        %vm4810 = vcmask 1042432
        %v4811 = vsel %vm4810, %v4809, %v4657
        %v4812 = vsel %vm406, %v4811, %v4694
        %vm4813 = vcmask 1044480
        %v4814 = vsel %vm4813, %v4812, %v4731
        %v4815 = vsel %vm709, %v4814, %v4768
        %vm4816 = vcmask 1046528
        %v4817 = vsel %vm4816, %v4815, %v4805
        %s4818 = scalar_lea.vmem [#allocation6], %s4414
        %4819 = vst.msk [vmem:[%s4818] sm:$0xff] %vm1923, %v4817
      $region69: #{tpu_custom_call.1} parent=63 // loop_footer
        %s4411 = sadd.s32 1, %s4407
      $region70: #{tpu_custom_call.1} parent=63 // loop_footer_branch
        %4406 = sbr.rel target = $region66
      $region71: #{tpu_custom_call.1} parent=63 // loop_exit
        _
      %v4820 = vld [vmem:[#allocation6] sm:$0xff]
      %v4821 = vld [vmem:[#allocation6 + $0x8] sm:$0xff]
      %v4822 = vld [vmem:[#allocation6 + $0x10] sm:$0xff]
      %v4823 = vld [vmem:[#allocation6 + $0x18] sm:$0xff]
      %v4824 = vld [vmem:[#allocation6 + $0x20] sm:$0xff]
      %v4825 = vld [vmem:[#allocation6 + $0x28] sm:$0xff]
      %v4826 = vld [vmem:[#allocation6 + $0x30] sm:$0xff]
      %v4827 = vld [vmem:[#allocation6 + $0x38] sm:$0xff]
      %v4828 = vld [vmem:[#allocation6 + $0x40] sm:$0xff]
      %v4829 = vld [vmem:[#allocation6 + $0x48] sm:$0xff]
      %v4830 = vld [vmem:[#allocation6 + $0x50] sm:$0xff]
      %v4831 = vld [vmem:[#allocation6 + $0x58] sm:$0xff]
      %v4832 = vld [vmem:[#allocation6 + $0x60] sm:$0xff]
      %v4833 = vld [vmem:[#allocation6 + $0x68] sm:$0xff]
      %v4834 = vld [vmem:[#allocation6 + $0x70] sm:$0xff]
      %v4835 = vld [vmem:[#allocation6 + $0x78] sm:$0xff]
      %v4836 = vld [vmem:[#allocation6 + $0x80] sm:$0xff]
      %v4837 = vld [vmem:[#allocation6 + $0x88] sm:$0xff]
      %v4838 = vld [vmem:[#allocation6 + $0x90] sm:$0xff]
      %v4839 = vld [vmem:[#allocation6 + $0x98] sm:$0xff]
      %v4840 = vld [vmem:[#allocation6 + $0xa0] sm:$0xff]
      %v4841 = vld [vmem:[#allocation6 + $0xa8] sm:$0xff]
      %v4842 = vld [vmem:[#allocation6 + $0xb0] sm:$0xff]
      %v4843 = vld [vmem:[#allocation6 + $0xb8] sm:$0xff]
      %v4844 = vld [vmem:[#allocation6 + $0xc0] sm:$0xff]
      %v4845 = vld [vmem:[#allocation6 + $0xc8] sm:$0xff]
      %v4846 = vld [vmem:[#allocation6 + $0xd0] sm:$0xff]
      %v4847 = vld [vmem:[#allocation6 + $0xd8] sm:$0xff]
      %v4848 = vld [vmem:[#allocation6 + $0xe0] sm:$0xff]
      %v4849 = vld [vmem:[#allocation6 + $0xe8] sm:$0xff]
      %v4850 = vld [vmem:[#allocation6 + $0xf0] sm:$0xff]
      %v4851 = vld [vmem:[#allocation6 + $0xf8] sm:$0xff]
      %v4852 = vld [vmem:[#allocation6 + $0x100] sm:$0xff]
      %v4853 = vld [vmem:[#allocation6 + $0x108] sm:$0xff]
      %v4854 = vld [vmem:[#allocation6 + $0x110] sm:$0xff]
      %v4855 = vld [vmem:[#allocation6 + $0x118] sm:$0xff]
      %v4856 = vld [vmem:[#allocation6 + $0x120] sm:$0xff]
      %v4857 = vld [vmem:[#allocation6 + $0x128] sm:$0xff]
      %v4858 = vld [vmem:[#allocation6 + $0x130] sm:$0xff]
      %v4859 = vld [vmem:[#allocation6 + $0x138] sm:$0xff]
      %v4860 = vld [vmem:[#allocation6 + $0x140] sm:$0xff]
      %v4861 = vld [vmem:[#allocation6 + $0x148] sm:$0xff]
      %v4862 = vld [vmem:[#allocation6 + $0x150] sm:$0xff]
      %v4863 = vld [vmem:[#allocation6 + $0x158] sm:$0xff]
      %v4864 = vld [vmem:[#allocation6 + $0x160] sm:$0xff]
      %v4865 = vld [vmem:[#allocation6 + $0x168] sm:$0xff]
      %v4866 = vld [vmem:[#allocation6 + $0x170] sm:$0xff]
      %v4867 = vld [vmem:[#allocation6 + $0x178] sm:$0xff]
      %v4868 = vld [vmem:[#allocation6 + $0x180] sm:$0xff]
      %v4869 = vld [vmem:[#allocation6 + $0x188] sm:$0xff]
      %v4870 = vld [vmem:[#allocation6 + $0x190] sm:$0xff]
      %v4871 = vld [vmem:[#allocation6 + $0x198] sm:$0xff]
      %v4872 = vld [vmem:[#allocation6 + $0x1a0] sm:$0xff]
      %v4873 = vld [vmem:[#allocation6 + $0x1a8] sm:$0xff]
      %v4874 = vld [vmem:[#allocation6 + $0x1b0] sm:$0xff]
      %v4875 = vld [vmem:[#allocation6 + $0x1b8] sm:$0xff]
      %v4876 = vld [vmem:[#allocation6 + $0x1c0] sm:$0xff]
      %v4877 = vld [vmem:[#allocation6 + $0x1c8] sm:$0xff]
      %v4878 = vld [vmem:[#allocation6 + $0x1d0] sm:$0xff]
      %v4879 = vld [vmem:[#allocation6 + $0x1d8] sm:$0xff]
      %v4880 = vld [vmem:[#allocation6 + $0x1e0] sm:$0xff]
      %v4881 = vld [vmem:[#allocation6 + $0x1e8] sm:$0xff]
      %v4882 = vld [vmem:[#allocation6 + $0x1f0] sm:$0xff]
      %v4883 = vld [vmem:[#allocation6 + $0x1f8] sm:$0xff]
      %v4884 = vld [vmem:[%s9] sm:$0x1]
      %v4885 = vld [vmem:[#allocation2] sm:$0xff]
      %v4886 = vld [vmem:[#allocation2 + $0x8] sm:$0xff]
      %v4887 = vld [vmem:[#allocation2 + $0x10] sm:$0xff]
      %v4888 = vld [vmem:[#allocation2 + $0x18] sm:$0xff]
      %v4889 = vld [vmem:[#allocation2 + $0x20] sm:$0xff]
      %v4890 = vld [vmem:[#allocation2 + $0x28] sm:$0xff]
      %v4891 = vld [vmem:[#allocation2 + $0x30] sm:$0xff]
      %v4892 = vld [vmem:[#allocation2 + $0x38] sm:$0xff]
      %v4893 = vld [vmem:[#allocation2 + $0x40] sm:$0xff]
      %v4894 = vld [vmem:[#allocation2 + $0x48] sm:$0xff]
      %v4895 = vld [vmem:[#allocation2 + $0x50] sm:$0xff]
      %v4896 = vld [vmem:[#allocation2 + $0x58] sm:$0xff]
      %v4897 = vld [vmem:[#allocation2 + $0x60] sm:$0xff]
      %v4898 = vld [vmem:[#allocation2 + $0x68] sm:$0xff]
      %v4899 = vld [vmem:[#allocation2 + $0x70] sm:$0xff]
      %v4900 = vld [vmem:[#allocation2 + $0x78] sm:$0xff]
      %v4901 = vld [vmem:[#allocation2 + $0x80] sm:$0xff]
      %v4902 = vld [vmem:[#allocation2 + $0x88] sm:$0xff]
      %v4903 = vld [vmem:[#allocation2 + $0x90] sm:$0xff]
      %v4904 = vld [vmem:[#allocation2 + $0x98] sm:$0xff]
      %v4905 = vld [vmem:[#allocation2 + $0xa0] sm:$0xff]
      %v4906 = vld [vmem:[#allocation2 + $0xa8] sm:$0xff]
      %v4907 = vld [vmem:[#allocation2 + $0xb0] sm:$0xff]
      %v4908 = vld [vmem:[#allocation2 + $0xb8] sm:$0xff]
      %v4909 = vld [vmem:[#allocation2 + $0xc0] sm:$0xff]
      %v4910 = vld [vmem:[#allocation2 + $0xc8] sm:$0xff]
      %v4911 = vld [vmem:[#allocation2 + $0xd0] sm:$0xff]
      %v4912 = vld [vmem:[#allocation2 + $0xd8] sm:$0xff]
      %v4913 = vld [vmem:[#allocation2 + $0xe0] sm:$0xff]
      %v4914 = vld [vmem:[#allocation2 + $0xe8] sm:$0xff]
      %v4915 = vld [vmem:[#allocation2 + $0xf0] sm:$0xff]
      %v4916 = vld [vmem:[#allocation2 + $0xf8] sm:$0xff]
      %v4917 = vld [vmem:[#allocation2 + $0x100] sm:$0xff]
      %v4918 = vld [vmem:[#allocation2 + $0x108] sm:$0xff]
      %v4919 = vld [vmem:[#allocation2 + $0x110] sm:$0xff]
      %v4920 = vld [vmem:[#allocation2 + $0x118] sm:$0xff]
      %v4921 = vld [vmem:[#allocation2 + $0x120] sm:$0xff]
      %v4922 = vld [vmem:[#allocation2 + $0x128] sm:$0xff]
      %v4923 = vld [vmem:[#allocation2 + $0x130] sm:$0xff]
      %v4924 = vld [vmem:[#allocation2 + $0x138] sm:$0xff]
      %v4925 = vld [vmem:[#allocation2 + $0x140] sm:$0xff]
      %v4926 = vld [vmem:[#allocation2 + $0x148] sm:$0xff]
      %v4927 = vld [vmem:[#allocation2 + $0x150] sm:$0xff]
      %v4928 = vld [vmem:[#allocation2 + $0x158] sm:$0xff]
      %v4929 = vld [vmem:[#allocation2 + $0x160] sm:$0xff]
      %v4930 = vld [vmem:[#allocation2 + $0x168] sm:$0xff]
      %v4931 = vld [vmem:[#allocation2 + $0x170] sm:$0xff]
      %v4932 = vld [vmem:[#allocation2 + $0x178] sm:$0xff]
      %v4933 = vld [vmem:[#allocation2 + $0x180] sm:$0xff]
      %v4934 = vld [vmem:[#allocation2 + $0x188] sm:$0xff]
      %v4935 = vld [vmem:[#allocation2 + $0x190] sm:$0xff]
      %v4936 = vld [vmem:[#allocation2 + $0x198] sm:$0xff]
      %v4937 = vld [vmem:[#allocation2 + $0x1a0] sm:$0xff]
      %v4938 = vld [vmem:[#allocation2 + $0x1a8] sm:$0xff]
      %v4939 = vld [vmem:[#allocation2 + $0x1b0] sm:$0xff]
      %v4940 = vld [vmem:[#allocation2 + $0x1b8] sm:$0xff]
      %v4941 = vld [vmem:[#allocation2 + $0x1c0] sm:$0xff]
      %v4942 = vld [vmem:[#allocation2 + $0x1c8] sm:$0xff]
      %v4943 = vld [vmem:[#allocation2 + $0x1d0] sm:$0xff]
      %v4944 = vld [vmem:[#allocation2 + $0x1d8] sm:$0xff]
      %v4945 = vld [vmem:[#allocation2 + $0x1e0] sm:$0xff]
      %v4946 = vld [vmem:[#allocation2 + $0x1e8] sm:$0xff]
      %v4947 = vld [vmem:[#allocation2 + $0x1f0] sm:$0xff]
      %v4948 = vld [vmem:[#allocation2 + $0x1f8] sm:$0xff]
      %v4950 = vlaneseq
      %v4951 = vshrl.u32 %v4950, 7
      %v4952 = vsub.s32 0, %v4951
      %v4953 = vrot.slane %v4884, %v4952
      %v4955 = vmul.f32 %v4953, %v4885
      %v4956 = vmul.f32 %v4953, %v4886
      %v4957 = vmul.f32 %v4953, %v4887
      %v4958 = vmul.f32 %v4953, %v4888
      %v4959 = vmul.f32 %v4953, %v4889
      %v4960 = vmul.f32 %v4953, %v4890
      %v4961 = vmul.f32 %v4953, %v4891
      %v4962 = vmul.f32 %v4953, %v4892
      %v4963 = vmul.f32 %v4953, %v4893
      %v4964 = vmul.f32 %v4953, %v4894
      %v4965 = vmul.f32 %v4953, %v4895
      %v4966 = vmul.f32 %v4953, %v4896
      %v4967 = vmul.f32 %v4953, %v4897
      %v4968 = vmul.f32 %v4953, %v4898
      %v4969 = vmul.f32 %v4953, %v4899
      %v4970 = vmul.f32 %v4953, %v4900
      %v4971 = vmul.f32 %v4953, %v4901
      %v4972 = vmul.f32 %v4953, %v4902
      %v4973 = vmul.f32 %v4953, %v4903
      %v4974 = vmul.f32 %v4953, %v4904
      %v4975 = vmul.f32 %v4953, %v4905
      %v4976 = vmul.f32 %v4953, %v4906
      %v4977 = vmul.f32 %v4953, %v4907
      %v4978 = vmul.f32 %v4953, %v4908
      %v4979 = vmul.f32 %v4953, %v4909
      %v4980 = vmul.f32 %v4953, %v4910
      %v4981 = vmul.f32 %v4953, %v4911
      %v4982 = vmul.f32 %v4953, %v4912
      %v4983 = vmul.f32 %v4953, %v4913
      %v4984 = vmul.f32 %v4953, %v4914
      %v4985 = vmul.f32 %v4953, %v4915
      %v4986 = vmul.f32 %v4953, %v4916
      %v4987 = vmul.f32 %v4953, %v4917
      %v4988 = vmul.f32 %v4953, %v4918
      %v4989 = vmul.f32 %v4953, %v4919
      %v4990 = vmul.f32 %v4953, %v4920
      %v4991 = vmul.f32 %v4953, %v4921
      %v4992 = vmul.f32 %v4953, %v4922
      %v4993 = vmul.f32 %v4953, %v4923
      %v4994 = vmul.f32 %v4953, %v4924
      %v4995 = vmul.f32 %v4953, %v4925
      %v4996 = vmul.f32 %v4953, %v4926
      %v4997 = vmul.f32 %v4953, %v4927
      %v4998 = vmul.f32 %v4953, %v4928
      %v4999 = vmul.f32 %v4953, %v4929
      %v5000 = vmul.f32 %v4953, %v4930
      %v5001 = vmul.f32 %v4953, %v4931
      %v5002 = vmul.f32 %v4953, %v4932
      %v5003 = vmul.f32 %v4953, %v4933
      %v5004 = vmul.f32 %v4953, %v4934
      %v5005 = vmul.f32 %v4953, %v4935
      %v5006 = vmul.f32 %v4953, %v4936
      %v5007 = vmul.f32 %v4953, %v4937
      %v5008 = vmul.f32 %v4953, %v4938
      %v5009 = vmul.f32 %v4953, %v4939
      %v5010 = vmul.f32 %v4953, %v4940
      %v5011 = vmul.f32 %v4953, %v4941
      %v5012 = vmul.f32 %v4953, %v4942
      %v5013 = vmul.f32 %v4953, %v4943
      %v5014 = vmul.f32 %v4953, %v4944
      %v5015 = vmul.f32 %v4953, %v4945
      %v5016 = vmul.f32 %v4953, %v4946
      %v5017 = vmul.f32 %v4953, %v4947
      %v5018 = vmul.f32 %v4953, %v4948
      %v5019 = vadd.f32 %v4820, %v4955
      %v5020 = vadd.f32 %v4821, %v4956
      %v5021 = vadd.f32 %v4822, %v4957
      %v5022 = vadd.f32 %v4823, %v4958
      %v5023 = vadd.f32 %v4824, %v4959
      %v5024 = vadd.f32 %v4825, %v4960
      %v5025 = vadd.f32 %v4826, %v4961
      %v5026 = vadd.f32 %v4827, %v4962
      %v5027 = vadd.f32 %v4828, %v4963
      %v5028 = vadd.f32 %v4829, %v4964
      %v5029 = vadd.f32 %v4830, %v4965
      %v5030 = vadd.f32 %v4831, %v4966
      %v5031 = vadd.f32 %v4832, %v4967
      %v5032 = vadd.f32 %v4833, %v4968
      %v5033 = vadd.f32 %v4834, %v4969
      %v5034 = vadd.f32 %v4835, %v4970
      %v5035 = vadd.f32 %v4836, %v4971
      %v5036 = vadd.f32 %v4837, %v4972
      %v5037 = vadd.f32 %v4838, %v4973
      %v5038 = vadd.f32 %v4839, %v4974
      %v5039 = vadd.f32 %v4840, %v4975
      %v5040 = vadd.f32 %v4841, %v4976
      %v5041 = vadd.f32 %v4842, %v4977
      %v5042 = vadd.f32 %v4843, %v4978
      %v5043 = vadd.f32 %v4844, %v4979
      %v5044 = vadd.f32 %v4845, %v4980
      %v5045 = vadd.f32 %v4846, %v4981
      %v5046 = vadd.f32 %v4847, %v4982
      %v5047 = vadd.f32 %v4848, %v4983
      %v5048 = vadd.f32 %v4849, %v4984
      %v5049 = vadd.f32 %v4850, %v4985
      %v5050 = vadd.f32 %v4851, %v4986
      %v5051 = vadd.f32 %v4852, %v4987
      %v5052 = vadd.f32 %v4853, %v4988
      %v5053 = vadd.f32 %v4854, %v4989
      %v5054 = vadd.f32 %v4855, %v4990
      %v5055 = vadd.f32 %v4856, %v4991
      %v5056 = vadd.f32 %v4857, %v4992
      %v5057 = vadd.f32 %v4858, %v4993
      %v5058 = vadd.f32 %v4859, %v4994
      %v5059 = vadd.f32 %v4860, %v4995
      %v5060 = vadd.f32 %v4861, %v4996
      %v5061 = vadd.f32 %v4862, %v4997
      %v5062 = vadd.f32 %v4863, %v4998
      %v5063 = vadd.f32 %v4864, %v4999
      %v5064 = vadd.f32 %v4865, %v5000
      %v5065 = vadd.f32 %v4866, %v5001
      %v5066 = vadd.f32 %v4867, %v5002
      %v5067 = vadd.f32 %v4868, %v5003
      %v5068 = vadd.f32 %v4869, %v5004
      %v5069 = vadd.f32 %v4870, %v5005
      %v5070 = vadd.f32 %v4871, %v5006
      %v5071 = vadd.f32 %v4872, %v5007
      %v5072 = vadd.f32 %v4873, %v5008
      %v5073 = vadd.f32 %v4874, %v5009
      %v5074 = vadd.f32 %v4875, %v5010
      %v5075 = vadd.f32 %v4876, %v5011
      %v5076 = vadd.f32 %v4877, %v5012
      %v5077 = vadd.f32 %v4878, %v5013
      %v5078 = vadd.f32 %v4879, %v5014
      %v5079 = vadd.f32 %v4880, %v5015
      %v5080 = vadd.f32 %v4881, %v5016
      %v5081 = vadd.f32 %v4882, %v5017
      %v5082 = vadd.f32 %v4883, %v5018
      %v5083 = vld [vmem:[#allocation4] sm:$0xff]
      %v5084 = vld [vmem:[#allocation4 + $0x8] sm:$0xff]
      %v5085 = vld [vmem:[#allocation4 + $0x10] sm:$0xff]
      %v5086 = vld [vmem:[#allocation4 + $0x18] sm:$0xff]
      %v5087 = vld [vmem:[#allocation4 + $0x20] sm:$0xff]
      %v5088 = vld [vmem:[#allocation4 + $0x28] sm:$0xff]
      %v5089 = vld [vmem:[#allocation4 + $0x30] sm:$0xff]
      %v5090 = vld [vmem:[#allocation4 + $0x38] sm:$0xff]
      %v5091 = vld [vmem:[#allocation4 + $0x40] sm:$0xff]
      %v5092 = vld [vmem:[#allocation4 + $0x48] sm:$0xff]
      %v5093 = vld [vmem:[#allocation4 + $0x50] sm:$0xff]
      %v5094 = vld [vmem:[#allocation4 + $0x58] sm:$0xff]
      %v5095 = vld [vmem:[#allocation4 + $0x60] sm:$0xff]
      %v5096 = vld [vmem:[#allocation4 + $0x68] sm:$0xff]
      %v5097 = vld [vmem:[#allocation4 + $0x70] sm:$0xff]
      %v5098 = vld [vmem:[#allocation4 + $0x78] sm:$0xff]
      %v5099 = vld [vmem:[#allocation4 + $0x80] sm:$0xff]
      %v5100 = vld [vmem:[#allocation4 + $0x88] sm:$0xff]
      %v5101 = vld [vmem:[#allocation4 + $0x90] sm:$0xff]
      %v5102 = vld [vmem:[#allocation4 + $0x98] sm:$0xff]
      %v5103 = vld [vmem:[#allocation4 + $0xa0] sm:$0xff]
      %v5104 = vld [vmem:[#allocation4 + $0xa8] sm:$0xff]
      %v5105 = vld [vmem:[#allocation4 + $0xb0] sm:$0xff]
      %v5106 = vld [vmem:[#allocation4 + $0xb8] sm:$0xff]
      %v5107 = vld [vmem:[#allocation4 + $0xc0] sm:$0xff]
      %v5108 = vld [vmem:[#allocation4 + $0xc8] sm:$0xff]
      %v5109 = vld [vmem:[#allocation4 + $0xd0] sm:$0xff]
      %v5110 = vld [vmem:[#allocation4 + $0xd8] sm:$0xff]
      %v5111 = vld [vmem:[#allocation4 + $0xe0] sm:$0xff]
      %v5112 = vld [vmem:[#allocation4 + $0xe8] sm:$0xff]
      %v5113 = vld [vmem:[#allocation4 + $0xf0] sm:$0xff]
      %v5114 = vld [vmem:[#allocation4 + $0xf8] sm:$0xff]
      %v5115 = vld [vmem:[#allocation4 + $0x100] sm:$0xff]
      %v5116 = vld [vmem:[#allocation4 + $0x108] sm:$0xff]
      %v5117 = vld [vmem:[#allocation4 + $0x110] sm:$0xff]
      %v5118 = vld [vmem:[#allocation4 + $0x118] sm:$0xff]
      %v5119 = vld [vmem:[#allocation4 + $0x120] sm:$0xff]
      %v5120 = vld [vmem:[#allocation4 + $0x128] sm:$0xff]
      %v5121 = vld [vmem:[#allocation4 + $0x130] sm:$0xff]
      %v5122 = vld [vmem:[#allocation4 + $0x138] sm:$0xff]
      %v5123 = vld [vmem:[#allocation4 + $0x140] sm:$0xff]
      %v5124 = vld [vmem:[#allocation4 + $0x148] sm:$0xff]
      %v5125 = vld [vmem:[#allocation4 + $0x150] sm:$0xff]
      %v5126 = vld [vmem:[#allocation4 + $0x158] sm:$0xff]
      %v5127 = vld [vmem:[#allocation4 + $0x160] sm:$0xff]
      %v5128 = vld [vmem:[#allocation4 + $0x168] sm:$0xff]
      %v5129 = vld [vmem:[#allocation4 + $0x170] sm:$0xff]
      %v5130 = vld [vmem:[#allocation4 + $0x178] sm:$0xff]
      %v5131 = vld [vmem:[#allocation4 + $0x180] sm:$0xff]
      %v5132 = vld [vmem:[#allocation4 + $0x188] sm:$0xff]
      %v5133 = vld [vmem:[#allocation4 + $0x190] sm:$0xff]
      %v5134 = vld [vmem:[#allocation4 + $0x198] sm:$0xff]
      %v5135 = vld [vmem:[#allocation4 + $0x1a0] sm:$0xff]
      %v5136 = vld [vmem:[#allocation4 + $0x1a8] sm:$0xff]
      %v5137 = vld [vmem:[#allocation4 + $0x1b0] sm:$0xff]
      %v5138 = vld [vmem:[#allocation4 + $0x1b8] sm:$0xff]
      %v5139 = vld [vmem:[#allocation4 + $0x1c0] sm:$0xff]
      %v5140 = vld [vmem:[#allocation4 + $0x1c8] sm:$0xff]
      %v5141 = vld [vmem:[#allocation4 + $0x1d0] sm:$0xff]
      %v5142 = vld [vmem:[#allocation4 + $0x1d8] sm:$0xff]
      %v5143 = vld [vmem:[#allocation4 + $0x1e0] sm:$0xff]
      %v5144 = vld [vmem:[#allocation4 + $0x1e8] sm:$0xff]
      %v5145 = vld [vmem:[#allocation4 + $0x1f0] sm:$0xff]
      %v5146 = vld [vmem:[#allocation4 + $0x1f8] sm:$0xff]
      %v5147 = vmul.f32 %v5019, %v5083
      %v5148 = vmul.f32 %v5020, %v5084
      %v5149 = vmul.f32 %v5021, %v5085
      %v5150 = vmul.f32 %v5022, %v5086
      %v5151 = vmul.f32 %v5023, %v5087
      %v5152 = vmul.f32 %v5024, %v5088
      %v5153 = vmul.f32 %v5025, %v5089
      %v5154 = vmul.f32 %v5026, %v5090
      %v5155 = vmul.f32 %v5027, %v5091
      %v5156 = vmul.f32 %v5028, %v5092
      %v5157 = vmul.f32 %v5029, %v5093
      %v5158 = vmul.f32 %v5030, %v5094
      %v5159 = vmul.f32 %v5031, %v5095
      %v5160 = vmul.f32 %v5032, %v5096
      %v5161 = vmul.f32 %v5033, %v5097
      %v5162 = vmul.f32 %v5034, %v5098
      %v5163 = vmul.f32 %v5035, %v5099
      %v5164 = vmul.f32 %v5036, %v5100
      %v5165 = vmul.f32 %v5037, %v5101
      %v5166 = vmul.f32 %v5038, %v5102
      %v5167 = vmul.f32 %v5039, %v5103
      %v5168 = vmul.f32 %v5040, %v5104
      %v5169 = vmul.f32 %v5041, %v5105
      %v5170 = vmul.f32 %v5042, %v5106
      %v5171 = vmul.f32 %v5043, %v5107
      %v5172 = vmul.f32 %v5044, %v5108
      %v5173 = vmul.f32 %v5045, %v5109
      %v5174 = vmul.f32 %v5046, %v5110
      %v5175 = vmul.f32 %v5047, %v5111
      %v5176 = vmul.f32 %v5048, %v5112
      %v5177 = vmul.f32 %v5049, %v5113
      %v5178 = vmul.f32 %v5050, %v5114
      %v5179 = vmul.f32 %v5051, %v5115
      %v5180 = vmul.f32 %v5052, %v5116
      %v5181 = vmul.f32 %v5053, %v5117
      %v5182 = vmul.f32 %v5054, %v5118
      %v5183 = vmul.f32 %v5055, %v5119
      %v5184 = vmul.f32 %v5056, %v5120
      %v5185 = vmul.f32 %v5057, %v5121
      %v5186 = vmul.f32 %v5058, %v5122
      %v5187 = vmul.f32 %v5059, %v5123
      %v5188 = vmul.f32 %v5060, %v5124
      %v5189 = vmul.f32 %v5061, %v5125
      %v5190 = vmul.f32 %v5062, %v5126
      %v5191 = vmul.f32 %v5063, %v5127
      %v5192 = vmul.f32 %v5064, %v5128
      %v5193 = vmul.f32 %v5065, %v5129
      %v5194 = vmul.f32 %v5066, %v5130
      %v5195 = vmul.f32 %v5067, %v5131
      %v5196 = vmul.f32 %v5068, %v5132
      %v5197 = vmul.f32 %v5069, %v5133
      %v5198 = vmul.f32 %v5070, %v5134
      %v5199 = vmul.f32 %v5071, %v5135
      %v5200 = vmul.f32 %v5072, %v5136
      %v5201 = vmul.f32 %v5073, %v5137
      %v5202 = vmul.f32 %v5074, %v5138
      %v5203 = vmul.f32 %v5075, %v5139
      %v5204 = vmul.f32 %v5076, %v5140
      %v5205 = vmul.f32 %v5077, %v5141
      %v5206 = vmul.f32 %v5078, %v5142
      %v5207 = vmul.f32 %v5079, %v5143
      %v5208 = vmul.f32 %v5080, %v5144
      %v5209 = vmul.f32 %v5081, %v5145
      %v5210 = vmul.f32 %v5082, %v5146
      %v5211 = vpack.c.bf16 %v5148, %v5147
      %v5212 = vpack.c.bf16 %v5150, %v5149
      %v5213 = vpack.c.bf16 %v5152, %v5151
      %v5214 = vpack.c.bf16 %v5154, %v5153
      %v5215 = vpack.c.bf16 %v5156, %v5155
      %v5216 = vpack.c.bf16 %v5158, %v5157
      %v5217 = vpack.c.bf16 %v5160, %v5159
      %v5218 = vpack.c.bf16 %v5162, %v5161
      %v5219 = vpack.c.bf16 %v5164, %v5163
      %v5220 = vpack.c.bf16 %v5166, %v5165
      %v5221 = vpack.c.bf16 %v5168, %v5167
      %v5222 = vpack.c.bf16 %v5170, %v5169
      %v5223 = vpack.c.bf16 %v5172, %v5171
      %v5224 = vpack.c.bf16 %v5174, %v5173
      %v5225 = vpack.c.bf16 %v5176, %v5175
      %v5226 = vpack.c.bf16 %v5178, %v5177
      %v5227 = vpack.c.bf16 %v5180, %v5179
      %v5228 = vpack.c.bf16 %v5182, %v5181
      %v5229 = vpack.c.bf16 %v5184, %v5183
      %v5230 = vpack.c.bf16 %v5186, %v5185
      %v5231 = vpack.c.bf16 %v5188, %v5187
      %v5232 = vpack.c.bf16 %v5190, %v5189
      %v5233 = vpack.c.bf16 %v5192, %v5191
      %v5234 = vpack.c.bf16 %v5194, %v5193
      %v5235 = vpack.c.bf16 %v5196, %v5195
      %v5236 = vpack.c.bf16 %v5198, %v5197
      %v5237 = vpack.c.bf16 %v5200, %v5199
      %v5238 = vpack.c.bf16 %v5202, %v5201
      %v5239 = vpack.c.bf16 %v5204, %v5203
      %v5240 = vpack.c.bf16 %v5206, %v5205
      %v5241 = vpack.c.bf16 %v5208, %v5207
      %v5242 = vpack.c.bf16 %v5210, %v5209
      %v5243 = vld [vmem:[%s10] sm:$0xf]
      %v5244 = vld [vmem:[%s10 + $0x4] sm:$0xf]
      %v5245 = vld [vmem:[%s10 + $0x8] sm:$0xf]
      %v5246 = vld [vmem:[%s10 + $0xc] sm:$0x3]
      %v5251 = vunpack.c.l.b16 %v5243
      %v5252 = vunpack.c.l.b16 %v5244
      %v5253 = vunpack.c.l.b16 %v5245
      %v5254 = vunpack.c.l.b16 %v5246
      %v5255 = vpack.c.b16 %v5252, %v5251
      %v5256 = vpack.c.b16 %v5254, %v5253
      %v5258 = vsel %vm1923, %v5255, 0
      %v5261 = vsel %vm1923, %v5256, 0
      %v5264 = vsel %vm1923, %v5211, 0
      %v5267 = vsel %vm1923, %v5212, 0
      %v5270 = vsel %vm1923, %v5213, 0
      %v5273 = vsel %vm1923, %v5214, 0
      %v5276 = vsel %vm1923, %v5215, 0
      %v5279 = vsel %vm1923, %v5216, 0
      %v5282 = vsel %vm1923, %v5217, 0
      %v5285 = vsel %vm1923, %v5218, 0
      %v5288 = vsel %vm1923, %v5219, 0
      %v5291 = vsel %vm1923, %v5220, 0
      %v5294 = vsel %vm1923, %v5221, 0
      %v5297 = vsel %vm1923, %v5222, 0
      %v5300 = vsel %vm1923, %v5223, 0
      %v5303 = vsel %vm1923, %v5224, 0
      %v5306 = vsel %vm1923, %v5225, 0
      %v5309 = vsel %vm1923, %v5226, 0
      %v5312 = vsel %vm1923, %v5227, 0
      %v5315 = vsel %vm1923, %v5228, 0
      %v5318 = vsel %vm1923, %v5229, 0
      %v5321 = vsel %vm1923, %v5230, 0
      %v5324 = vsel %vm1923, %v5231, 0
      %v5327 = vsel %vm1923, %v5232, 0
      %v5330 = vsel %vm1923, %v5233, 0
      %v5333 = vsel %vm1923, %v5234, 0
      %v5336 = vsel %vm1923, %v5235, 0
      %v5339 = vsel %vm1923, %v5236, 0
      %v5342 = vsel %vm1923, %v5237, 0
      %v5345 = vsel %vm1923, %v5238, 0
      %v5348 = vsel %vm1923, %v5239, 0
      %v5351 = vsel %vm1923, %v5240, 0
      %v5354 = vsel %vm1923, %v5241, 0
      %v5357 = vsel %vm1923, %v5242, 0
      %5359 = vmatprep.subr.bf16.mxu0 0
      %5360 = vmatpush1.bf16.xpose.msra.mxu0 %v5264
      %5361 = vmatprep.subr.bf16.mxu0 0
      %5362 = vmatpush1.bf16.xpose.msra.mxu0 %v5267
      %5363 = vmatprep.subr.bf16.mxu0 0
      %5364 = vmatpush1.bf16.xpose.msra.mxu0 %v5270
      %5365 = vmatprep.subr.bf16.mxu0 0
      %5366 = vmatpush1.bf16.xpose.msra.mxu0 %v5273
      %5367 = vmatprep.subr.bf16.mxu0 0
      %5368 = vmatpush1.bf16.xpose.msra.mxu0 %v5276
      %5369 = vmatprep.subr.bf16.mxu0 0
      %5370 = vmatpush1.bf16.xpose.msra.mxu0 %v5279
      %5371 = vmatprep.subr.bf16.mxu0 0
      %5372 = vmatpush1.bf16.xpose.msra.mxu0 %v5282
      %5373 = vmatprep.subr.bf16.mxu0 0
      %5374 = vmatpush1.bf16.xpose.msra.mxu0 %v5285
      %5375 = vmatprep.subr.bf16.mxu0 0
      %5376 = vmatpush1.bf16.xpose.msra.mxu0 %v5288
      %5377 = vmatprep.subr.bf16.mxu0 0
      %5378 = vmatpush1.bf16.xpose.msra.mxu0 %v5291
      %5379 = vmatprep.subr.bf16.mxu0 0
      %5380 = vmatpush1.bf16.xpose.msra.mxu0 %v5294
      %5381 = vmatprep.subr.bf16.mxu0 0
      %5382 = vmatpush1.bf16.xpose.msra.mxu0 %v5297
      %5383 = vmatprep.subr.bf16.mxu0 0
      %5384 = vmatpush1.bf16.xpose.msra.mxu0 %v5300
      %5385 = vmatprep.subr.bf16.mxu0 0
      %5386 = vmatpush1.bf16.xpose.msra.mxu0 %v5303
      %5387 = vmatprep.subr.bf16.mxu0 0
      %5388 = vmatpush1.bf16.xpose.msra.mxu0 %v5306
      %5389 = vmatprep.subr.bf16.mxu0 0
      %5390 = vmatpush1.bf16.xpose.msra.mxu0 %v5309
      %5391 = vmatprep.mubr.bf16.mxu0 0
      %5392 = vmatmul.mubr.bf16.gmra.mrb[0].mxu0 %v5258
      %v5393 = vpop.f32.mrb[0].mxu0
      %v5394 = vadd.f32 0.0, %v5393
      %v5395 = vpop.f32.mrb[0].mxu0
      %v5396 = vadd.f32 0.0, %v5395
      %v5397 = vpop.f32.mrb[0].mxu0
      %v5398 = vadd.f32 0.0, %v5397
      %v5399 = vpop.f32.mrb[0].mxu0
      %v5400 = vadd.f32 0.0, %v5399
      %5401 = vmatprep.mubr.bf16.mxu0 0
      %5402 = vmatmul.mubr.bf16.gmra.mrb[0].mxu0 %v5261
      %v5403 = vpop.f32.mrb[0].mxu0
      %v5404 = vadd.f32 0.0, %v5403
      %v5405 = vpop.f32.mrb[0].mxu0
      %v5406 = vadd.f32 0.0, %v5405
      %v5407 = vpop.f32.mrb[0].mxu0
      %v5408 = vadd.f32 0.0, %v5407
      %v5409 = vpop.f32.mrb[0].mxu0
      %v5410 = vadd.f32 0.0, %v5409
      %5411 = vdwg.mxu0
      %5412 = vmatprep.subr.bf16.mxu0 0
      %5413 = vmatpush1.bf16.xpose.msra.mxu0 %v5312
      %5414 = vmatprep.subr.bf16.mxu0 0
      %5415 = vmatpush1.bf16.xpose.msra.mxu0 %v5315
      %5416 = vmatprep.subr.bf16.mxu0 0
      %5417 = vmatpush1.bf16.xpose.msra.mxu0 %v5318
      %5418 = vmatprep.subr.bf16.mxu0 0
      %5419 = vmatpush1.bf16.xpose.msra.mxu0 %v5321
      %5420 = vmatprep.subr.bf16.mxu0 0
      %5421 = vmatpush1.bf16.xpose.msra.mxu0 %v5324
      %5422 = vmatprep.subr.bf16.mxu0 0
      %5423 = vmatpush1.bf16.xpose.msra.mxu0 %v5327
      %5424 = vmatprep.subr.bf16.mxu0 0
      %5425 = vmatpush1.bf16.xpose.msra.mxu0 %v5330
      %5426 = vmatprep.subr.bf16.mxu0 0
      %5427 = vmatpush1.bf16.xpose.msra.mxu0 %v5333
      %5428 = vmatprep.subr.bf16.mxu0 0
      %5429 = vmatpush1.bf16.xpose.msra.mxu0 %v5336
      %5430 = vmatprep.subr.bf16.mxu0 0
      %5431 = vmatpush1.bf16.xpose.msra.mxu0 %v5339
      %5432 = vmatprep.subr.bf16.mxu0 0
      %5433 = vmatpush1.bf16.xpose.msra.mxu0 %v5342
      %5434 = vmatprep.subr.bf16.mxu0 0
      %5435 = vmatpush1.bf16.xpose.msra.mxu0 %v5345
      %5436 = vmatprep.subr.bf16.mxu0 0
      %5437 = vmatpush1.bf16.xpose.msra.mxu0 %v5348
      %5438 = vmatprep.subr.bf16.mxu0 0
      %5439 = vmatpush1.bf16.xpose.msra.mxu0 %v5351
      %5440 = vmatprep.subr.bf16.mxu0 0
      %5441 = vmatpush1.bf16.xpose.msra.mxu0 %v5354
      %5442 = vmatprep.subr.bf16.mxu0 0
      %5443 = vmatpush1.bf16.xpose.msra.mxu0 %v5357
      %5444 = vmatprep.mubr.bf16.mxu0 0
      %5445 = vmatmul.mubr.bf16.gmra.mrb[0].mxu0 %v5258
      %v5446 = vpop.f32.mrb[0].mxu0
      %v5447 = vadd.f32 0.0, %v5446
      %v5448 = vpop.f32.mrb[0].mxu0
      %v5449 = vadd.f32 0.0, %v5448
      %v5450 = vpop.f32.mrb[0].mxu0
      %v5451 = vadd.f32 0.0, %v5450
      %v5452 = vpop.f32.mrb[0].mxu0
      %v5453 = vadd.f32 0.0, %v5452
      %5454 = vmatprep.mubr.bf16.mxu0 0
      %5455 = vmatmul.mubr.bf16.gmra.mrb[0].mxu0 %v5261
      %v5456 = vpop.f32.mrb[0].mxu0
      %v5457 = vadd.f32 0.0, %v5456
      %v5458 = vpop.f32.mrb[0].mxu0
      %v5459 = vadd.f32 0.0, %v5458
      %v5460 = vpop.f32.mrb[0].mxu0
      %v5461 = vadd.f32 0.0, %v5460
      %v5462 = vpop.f32.mrb[0].mxu0
      %v5463 = vadd.f32 0.0, %v5462
      %5464 = vdwg.mxu0
      %5465 = vst [vmem:[%s386] sm:$0xff] %v5394
      %5466 = vst [vmem:[%s386 + $0x8] sm:$0xff] %v5396
      %5467 = vst [vmem:[%s386 + $0x10] sm:$0xff] %v5447
      %5468 = vst [vmem:[%s386 + $0x18] sm:$0xff] %v5449
      %5469 = vst [vmem:[%s386 + $0x20] sm:$0xff] %v5398
      %5470 = vst [vmem:[%s386 + $0x28] sm:$0xff] %v5400
      %5471 = vst [vmem:[%s386 + $0x30] sm:$0xff] %v5451
      %5472 = vst [vmem:[%s386 + $0x38] sm:$0xff] %v5453
      %5473 = vst [vmem:[%s386 + $0x40] sm:$0xff] %v5404
      %5474 = vst [vmem:[%s386 + $0x48] sm:$0xff] %v5406
      %5475 = vst [vmem:[%s386 + $0x50] sm:$0xff] %v5457
      %5476 = vst [vmem:[%s386 + $0x58] sm:$0xff] %v5459
      %5477 = vst [vmem:[%s386 + $0x60] sm:$0xf] %v5408
      %5478 = vst [vmem:[%s386 + $0x68] sm:$0xf] %v5410
      %5479 = vst [vmem:[%s386 + $0x70] sm:$0xf] %v5461
      %5480 = vst [vmem:[%s386 + $0x78] sm:$0xf] %v5463
      %p5481 = scmp.lt.s32.totalorder %s22, 1
      %s5482 = scalar_select %p5481, %s22, 1
      %s5483 = smul.addr %s5482, 16
      %s5484 = smul.addr %s5483, 8
      %s5485 = scalar_lea.vmem %s11, %s5484
      // Predicated region
      $region72: #{tpu_custom_call.1} parent=63 // pred_check
        %p5486 = pneg %p276
      $region73: #{tpu_custom_call.1} parent=63 // pred_check_branch
        %5488 = sbr.rel (%p5486) target = $region75
      $region74: #{tpu_custom_call.1} parent=63 // pred_region
        _
      $region75: #{tpu_custom_call.1} parent=63 // pred_fallthru
        _
    $region64: #{tpu_custom_call.1} parent=5 // pred_fallthru
      _
    %p5489 = scmp.le.s32.totalorder 2, %s17
    // Predicated region
    $region76: #{tpu_custom_call.1} parent=5 // pred_check
      %p5490 = pneg %p5489
    $region77: #{tpu_custom_call.1} parent=5 // pred_check_branch
      %5492 = sbr.rel (%p5490) target = $region79
    $region78: #{tpu_custom_call.1} parent=5 // pred_region
      %s5493 = ssub.s32 %s17, 2
      // Predicated region
      $region80: #{tpu_custom_call.1} parent=78 // pred_check
        %p5494 = pneg %p282
      $region81: #{tpu_custom_call.1} parent=78 // pred_check_branch
        %5496 = sbr.rel (%p5494) target = $region83
      $region82: #{tpu_custom_call.1} parent=78 // pred_region
        %p5497 = scmp.lt.s32.totalorder %s23, 1
        %s5498 = scalar_select %p5497, %s23, 1
        %s5499 = smul.addr %s5498, 16
        %s5500 = smul.addr %s5499, 8
        %s5501 = scalar_lea.vmem %s11, %s5500
      $region83: #{tpu_custom_call.1} parent=78 // pred_fallthru
        _
    $region79: #{tpu_custom_call.1} parent=5 // pred_fallthru
      _
  $region6: #{tpu_custom_call.1} parent=0 // loop_footer
    %s21 = sadd.s32 1, %s17
  $region7: #{tpu_custom_call.1} parent=0 // loop_footer_branch
    %16 = sbr.rel target = $region3
  $region8: #{tpu_custom_call.1} parent=0 // loop_exit
    _

</llo_original>
